<compile_context>
chip_gen: v5e
topology: v5e:2x2
jax: 0.10.0
libtpu: 0.0.40
codegen_flags: <defaults>
</compile_context>

<pallas_src>
import jax
import jax.numpy as jnp
from jax import lax
from jax.experimental import pallas as pl
from jax.experimental.pallas import tpu as pltpu

INPUT_DIM = 3
HIDDEN = 64          # logical hidden size (matches torch)
HP = 128             # hidden padded to one 128-lane tile per gate
OUTPUT_DIM = 1
NUM_LAYERS = 3
FC_HIDDEN = 64


# --------------------------------------------------------------------------
# Kernel
# --------------------------------------------------------------------------
def gru_inverse_kernel(gi0_ref,
                       w_ih1_ref, b_gi1_ref, w_ih2_ref, b_gi2_ref,
                       w_hh0_ref, b_hhn0_ref, w_hh1_ref, b_hhn1_ref,
                       w_hh2_ref, b_hhn2_ref,
                       w1h_ref, fc_pos_ref, w2_ref, b2_ref,
                       out_ref,
                       gi_a_ref, gi_b_ref):
    """3-layer GRU recurrence + MLP head for one batch block.

    gi0_ref    : (T, BB, 3*HP) f32   layer-0 input projection (+ folded biases)
    w_ih{1,2}  : (HP, 3*HP)    bf16  input->gates weights for layers 1, 2
    b_gi{1,2}  : (1, 3*HP)     f32   b_ih (+ b_hh for r,z) for layers 1, 2
    w_hh{0..2} : (HP, 3*HP)    bf16  hidden->gates weights
    b_hhn{0..2}: (1, HP)       f32   b_hh of the n gate (kept inside r*(.))
    w1h        : (HP, FC)      bf16  FC1 weights acting on h_n
    fc_pos     : (BB, FC)      f32   pos @ W1_pos.T + b1 (precomputed)
    w2, b2     : (FC, 1) bf16, (1,1) f32
    gi_a, gi_b : (T, BB, 3*HP) f32   scratch gi buffers for layers 1 and 2
    """
    T = gi0_ref.shape[0]
    Bb = gi0_ref.shape[1]
    unroll = min(T, 8)   # partial unroll: scheduler visibility without code bloat

    def run_layer(gi_src_ref, w_hh_ref, b_hhn_ref,
                  w_ih_next_ref=None, b_gi_next_ref=None, gi_dst_ref=None):
        b_hhn = b_hhn_ref[...]                     # (1, HP), broadcast at use

        def step(t, h):
            h_b = h.astype(jnp.bfloat16)           # bf16 MXU operand, f32 carry
            # Per-gate dots (r, z, n), each a (BB,128)x(128,128) MXU op consumed
            # immediately -> live vreg set stays small even at BB=128.
            r = jax.nn.sigmoid(
                gi_src_ref[t, :, 0:HP]
                + jnp.dot(h_b, w_hh_ref[:, 0:HP],
                          preferred_element_type=jnp.float32))
            z = jax.nn.sigmoid(
                gi_src_ref[t, :, HP:2 * HP]
                + jnp.dot(h_b, w_hh_ref[:, HP:2 * HP],
                          preferred_element_type=jnp.float32))
            n = jnp.tanh(
                gi_src_ref[t, :, 2 * HP:3 * HP]
                + r * (jnp.dot(h_b, w_hh_ref[:, 2 * HP:3 * HP],
                               preferred_element_type=jnp.float32) + b_hhn))
            h_new = (1.0 - z) * n + z * h
            if gi_dst_ref is not None:
                # Fused next-layer input projection: hides in the MXU slack of
                # the serial recurrence step; removes the separate passes.
                gi_dst_ref[t] = (
                    jnp.dot(h_new.astype(jnp.bfloat16), w_ih_next_ref[...],
                            preferred_element_type=jnp.float32)
                    + b_gi_next_ref[...])
            return h_new

        h0 = jnp.zeros((Bb, HP), jnp.float32)
        return lax.fori_loop(0, T, step, h0, unroll=unroll)

    # Layer 0 (input projection precomputed in the wrapper) -> writes gi_a.
    run_layer(gi0_ref, w_hh0_ref, b_hhn0_ref, w_ih1_ref, b_gi1_ref, gi_a_ref)
    # Layer 1 (reads gi_a) -> writes gi_b.
    run_layer(gi_a_ref, w_hh1_ref, b_hhn1_ref, w_ih2_ref, b_gi2_ref, gi_b_ref)
    # Layer 2 (reads gi_b) — last layer, only the final hidden state is needed.
    h_last = run_layer(gi_b_ref, w_hh2_ref, b_hhn2_ref)

    # FC head: Linear(H+3, 64) -> ReLU -> Linear(64, 1).
    # The concat is split: h part in-kernel, pos part (tiny lanes) pre-folded.
    hidden1 = (jnp.dot(h_last.astype(jnp.bfloat16), w1h_ref[...],
                       preferred_element_type=jnp.float32) + fc_pos_ref[...])
    hidden1 = jnp.maximum(hidden1, 0.0)
    out = (jnp.dot(hidden1.astype(jnp.bfloat16), w2_ref[...],
                   preferred_element_type=jnp.float32) + b2_ref[...])
    out_ref[...] = out.astype(out_ref.dtype)


# --------------------------------------------------------------------------
# Parameter packing (padding H 64 -> 128 with zeros keeps math exact:
# padded hidden columns stay identically 0 through the recurrence).
# --------------------------------------------------------------------------
def _pack_gate_matrix(w, dtype=jnp.bfloat16):
    """w: (3*HIDDEN, in_dim) torch (r,z,n) layout -> (HP, 3*HP), (in, out)."""
    in_dim = w.shape[1]
    blocks = []
    for g in range(3):
        m = jnp.zeros((HP, HP), jnp.float32)
        m = m.at[:in_dim, :HIDDEN].set(w[g * HIDDEN:(g + 1) * HIDDEN, :].T)
        blocks.append(m)
    return jnp.concatenate(blocks, axis=1).astype(dtype)


def _pack_gi_bias(b_ih, b_hh):
    """b_ih (+ b_hh for r,z gates) packed/padded to (1, 3*HP), f32."""
    parts = []
    for g in range(3):
        b = b_ih[g * HIDDEN:(g + 1) * HIDDEN]
        if g < 2:
            b = b + b_hh[g * HIDDEN:(g + 1) * HIDDEN]
        parts.append(jnp.pad(b, (0, HP - HIDDEN)))
    return jnp.concatenate(parts).reshape(1, 3 * HP).astype(jnp.float32)


def _pack_bhh_n(b_hh):
    return jnp.pad(b_hh[2 * HIDDEN:3 * HIDDEN],
                   (0, HP - HIDDEN)).reshape(1, HP).astype(jnp.float32)


def _layer0_input_proj(seq, w_ih0, b_ih0, b_hh0, Bp):
    """seq (B,T,3) -> gi0 (T, Bp, 3*HP), biases folded, gate-blocked & padded."""
    B = seq.shape[0]
    parts = []
    for g in range(3):
        w_g = w_ih0[g * HIDDEN:(g + 1) * HIDDEN, :]           # (H, 3)
        b_g = b_ih0[g * HIDDEN:(g + 1) * HIDDEN]
        if g < 2:
            b_g = b_g + b_hh0[g * HIDDEN:(g + 1) * HIDDEN]
        gi = jnp.einsum('btd,hd->bth', seq, w_g) + b_g         # (B, T, H)
        parts.append(jnp.pad(gi, ((0, 0), (0, 0), (0, HP - HIDDEN))))
    gi0 = jnp.concatenate(parts, axis=-1)                      # (B, T, 3*HP)
    gi0 = jnp.transpose(gi0, (1, 0, 2))                        # (T, B, 3*HP)
    return jnp.pad(gi0, ((0, 0), (0, Bp - B), (0, 0)))         # (T, Bp, 3*HP)


def _choose_bb(batch):
    """Rows per batch block: multiple of 8, <=128, and >=2 blocks when possible
    so v7x's two TensorCores both get work (on v5e/v6e this just maximizes the
    MXU M-dim per block)."""
    bp8 = ((batch + 7) // 8) * 8
    if bp8 <= 8:
        return 8
    half = (((bp8 + 1) // 2) + 7) // 8 * 8
    return int(max(8, min(128, half)))


# --------------------------------------------------------------------------
# Wrapper
# --------------------------------------------------------------------------
def gru_inverse_model(sequence, desired_pos, gru_params, fc_params):
    """sequence: (B, T, 3) batch-first (PyTorch convention); desired_pos: (B, 3)."""
    B, T, _ = sequence.shape
    BB = _choose_bb(B)
    Bp = pl.cdiv(B, BB) * BB
    seq = sequence.astype(jnp.float32)
    pos = desired_pos.astype(jnp.float32)

    w_ih0, w_hh0, b_ih0, b_hh0 = gru_params[0]
    gi0 = _layer0_input_proj(seq, w_ih0, b_ih0, b_hh0, Bp)

    args = [gi0]
    in_specs = [pl.BlockSpec((T, BB, 3 * HP), lambda b: (0, b, 0))]

    # Layers 1..: input->gate weights + folded biases (used by fused projection).
    for layer in range(1, NUM_LAYERS):
        w_ih, w_hh, b_ih, b_hh = gru_params[layer]
        args.append(_pack_gate_matrix(w_ih))
        in_specs.append(pl.BlockSpec((HP, 3 * HP), lambda b: (0, 0)))
        args.append(_pack_gi_bias(b_ih, b_hh))
        in_specs.append(pl.BlockSpec((1, 3 * HP), lambda b: (0, 0)))

    # All layers: hidden->gate weights + n-gate hidden bias.
    for layer in range(NUM_LAYERS):
        w_ih, w_hh, b_ih, b_hh = gru_params[layer]
        args.append(_pack_gate_matrix(w_hh))
        in_specs.append(pl.BlockSpec((HP, 3 * HP), lambda b: (0, 0)))
        args.append(_pack_bhh_n(b_hh))
        in_specs.append(pl.BlockSpec((1, HP), lambda b: (0, 0)))

    # FC head: split [h | pos] @ W1.T; the pos part (lane dim 3) is pre-folded.
    W1, b1, W2, b2 = fc_params
    w1h = (jnp.zeros((HP, FC_HIDDEN), jnp.float32)
           .at[:HIDDEN].set(W1[:, :HIDDEN].T).astype(jnp.bfloat16))
    pos_p = jnp.zeros((Bp, INPUT_DIM), jnp.float32).at[:B].set(pos)
    fc_pos = pos_p @ W1[:, HIDDEN:].T + b1                      # (Bp, FC_HIDDEN)
    args += [w1h, fc_pos, W2.T.astype(jnp.bfloat16), b2.reshape(1, 1)]
    in_specs += [pl.BlockSpec((HP, FC_HIDDEN), lambda b: (0, 0)),
                 pl.BlockSpec((BB, FC_HIDDEN), lambda b: (b, 0)),
                 pl.BlockSpec((FC_HIDDEN, OUTPUT_DIM), lambda b: (0, 0)),
                 pl.BlockSpec((1, 1), lambda b: (0, 0))]

    # VMEM budget: gi0 (double-buffered) + two gi scratch buffers + weights.
    gi_bytes = T * BB * 3 * HP * 4
    vmem_needed = 4 * gi_bytes + (8 << 20)
    vmem_limit = int(min(64 << 20, max(32 << 20, vmem_needed)))

    grid_spec = pltpu.PrefetchScalarGridSpec(
        num_scalar_prefetch=0,
        grid=(Bp // BB,),
        in_specs=in_specs,
        out_specs=pl.BlockSpec((BB, OUTPUT_DIM), lambda b: (b, 0)),
        scratch_shapes=[
            pltpu.VMEM((T, BB, 3 * HP), jnp.float32),   # gi for layer 1
            pltpu.VMEM((T, BB, 3 * HP), jnp.float32),   # gi for layer 2
        ],
    )

    out = pl.pallas_call(
        gru_inverse_kernel,
        out_shape=jax.ShapeDtypeStruct((Bp, OUTPUT_DIM), jnp.float32),
        grid_spec=grid_spec,
        compiler_params=pltpu.CompilerParams(
            dimension_semantics=("parallel",),   # batch blocks across TCs (v7x)
            vmem_limit_bytes=vmem_limit),
    )(*args)
    return out[:B]


# --------------------------------------------------------------------------
# Parameters & pure-JAX reference (torch.nn.GRU semantics)
# --------------------------------------------------------------------------
def init_params(key):
    H = HIDDEN
    bound = 1.0 / jnp.sqrt(jnp.float32(H))
    keys = iter(jax.random.split(key, 4 * NUM_LAYERS + 4))

    gru_params = []
    for l in range(NUM_LAYERS):
        in_dim = INPUT_DIM if l == 0 else H
        w_ih = jax.random.uniform(next(keys), (3 * H, in_dim), jnp.float32, -bound, bound)
        w_hh = jax.random.uniform(next(keys), (3 * H, H), jnp.float32, -bound, bound)
        b_ih = jax.random.uniform(next(keys), (3 * H,), jnp.float32, -bound, bound)
        b_hh = jax.random.uniform(next(keys), (3 * H,), jnp.float32, -bound, bound)
        gru_params.append((w_ih, w_hh, b_ih, b_hh))

    b1_bound = 1.0 / jnp.sqrt(jnp.float32(H + 3))
    W1 = jax.random.uniform(next(keys), (FC_HIDDEN, H + 3), jnp.float32, -b1_bound, b1_bound)
    b1 = jax.random.uniform(next(keys), (FC_HIDDEN,), jnp.float32, -b1_bound, b1_bound)
    b2_bound = 1.0 / jnp.sqrt(jnp.float32(FC_HIDDEN))
    W2 = jax.random.uniform(next(keys), (OUTPUT_DIM, FC_HIDDEN), jnp.float32, -b2_bound, b2_bound)
    b2 = jax.random.uniform(next(keys), (OUTPUT_DIM,), jnp.float32, -b2_bound, b2_bound)
    return gru_params, (W1, b1, W2, b2)


def reference(sequence, desired_pos, gru_params, fc_params):
    B, T, _ = sequence.shape
    H = HIDDEN
    layer_in = sequence.astype(jnp.float32)
    h = None
    for (w_ih, w_hh, b_ih, b_hh) in gru_params:
        h = jnp.zeros((B, H), jnp.float32)
        outs = []
        for t in range(T):
            x_t = layer_in[:, t, :]
            gi = x_t @ w_ih.T + b_ih
            gh = h @ w_hh.T + b_hh
            r = jax.nn.sigmoid(gi[:, :H] + gh[:, :H])
            z = jax.nn.sigmoid(gi[:, H:2 * H] + gh[:, H:2 * H])
            n = jnp.tanh(gi[:, 2 * H:] + r * gh[:, 2 * H:])
            h = (1.0 - z) * n + z * h
            outs.append(h)
        layer_in = jnp.stack(outs, axis=1)
    W1, b1, W2, b2 = fc_params
    combined = jnp.concatenate([h, desired_pos.astype(jnp.float32)], axis=-1)
    hidden1 = jnp.maximum(combined @ W1.T + b1, 0.0)
    return hidden1 @ W2.T + b2


if __name__ == "__main__":
    key = jax.random.PRNGKey(0)
    k_param, k_seq, k_pos = jax.random.split(key, 3)

    B, T = 2, 8
    sequence = jax.random.normal(k_seq, (B, T, INPUT_DIM), jnp.float32)
    desired_pos = jax.random.normal(k_pos, (B, INPUT_DIM), jnp.float32)

    gru_params, fc_params = init_params(k_param)

    out = gru_inverse_model(sequence, desired_pos, gru_params, fc_params)
    out = jax.block_until_ready(out)

    ref = reference(sequence, desired_pos, gru_params, fc_params)
    assert out.shape == (B, OUTPUT_DIM)
    # Tolerance covers the TPU bf16 matmul pass vs. the XLA f32 reference.
    assert jnp.allclose(out, ref, rtol=5e-3, atol=5e-3), (out, ref)

    print("KERNEL_OK")
</pallas_src>

<mosaic_0001>
module attributes {stable_mosaic.version = 11 : i64} {
  func.func @gru_inverse_kernel(%arg0: i32, %arg1: memref<8x8x384xf32, #tpu.memory_space<vmem>>, %arg2: memref<128x384xbf16, #tpu.memory_space<vmem>>, %arg3: memref<1x384xf32, #tpu.memory_space<vmem>>, %arg4: memref<128x384xbf16, #tpu.memory_space<vmem>>, %arg5: memref<1x384xf32, #tpu.memory_space<vmem>>, %arg6: memref<128x384xbf16, #tpu.memory_space<vmem>>, %arg7: memref<1x128xf32, #tpu.memory_space<vmem>>, %arg8: memref<128x384xbf16, #tpu.memory_space<vmem>>, %arg9: memref<1x128xf32, #tpu.memory_space<vmem>>, %arg10: memref<128x384xbf16, #tpu.memory_space<vmem>>, %arg11: memref<1x128xf32, #tpu.memory_space<vmem>>, %arg12: memref<128x64xbf16, #tpu.memory_space<vmem>>, %arg13: memref<8x64xf32, #tpu.memory_space<vmem>>, %arg14: memref<64x1xbf16, #tpu.memory_space<vmem>>, %arg15: memref<1x1xf32, #tpu.memory_space<vmem>>, %arg16: memref<8x1xf32, #tpu.memory_space<vmem>>, %arg17: memref<8x8x384xf32, #tpu.memory_space<vmem>>, %arg18: memref<8x8x384xf32, #tpu.memory_space<vmem>>) attributes {dimension_semantics = [#tpu.dimension_semantics<parallel>], iteration_bounds = array<i64: 1>, scalar_prefetch = 0 : i64, scratch_operands = 2 : i64, tpu.core_type = #tpu.core_type<tc>, window_params = [{transform_indices = @transform_0, window_bounds = array<i64: 8, 8, 384>}, {pipeline_mode = #tpu.pipeline_mode<synchronous>, transform_indices = @transform_1, window_bounds = array<i64: 128, 384>}, {pipeline_mode = #tpu.pipeline_mode<synchronous>, transform_indices = @transform_2, window_bounds = array<i64: 1, 384>}, {pipeline_mode = #tpu.pipeline_mode<synchronous>, transform_indices = @transform_3, window_bounds = array<i64: 128, 384>}, {pipeline_mode = #tpu.pipeline_mode<synchronous>, transform_indices = @transform_4, window_bounds = array<i64: 1, 384>}, {pipeline_mode = #tpu.pipeline_mode<synchronous>, transform_indices = @transform_5, window_bounds = array<i64: 128, 384>}, {pipeline_mode = #tpu.pipeline_mode<synchronous>, transform_indices = @transform_6, window_bounds = array<i64: 1, 128>}, {pipeline_mode = #tpu.pipeline_mode<synchronous>, transform_indices = @transform_7, window_bounds = array<i64: 128, 384>}, {pipeline_mode = #tpu.pipeline_mode<synchronous>, transform_indices = @transform_8, window_bounds = array<i64: 1, 128>}, {pipeline_mode = #tpu.pipeline_mode<synchronous>, transform_indices = @transform_9, window_bounds = array<i64: 128, 384>}, {pipeline_mode = #tpu.pipeline_mode<synchronous>, transform_indices = @transform_10, window_bounds = array<i64: 1, 128>}, {pipeline_mode = #tpu.pipeline_mode<synchronous>, transform_indices = @transform_11, window_bounds = array<i64: 128, 64>}, {transform_indices = @transform_12, window_bounds = array<i64: 8, 64>}, {pipeline_mode = #tpu.pipeline_mode<synchronous>, transform_indices = @transform_13, window_bounds = array<i64: 64, 1>}, {pipeline_mode = #tpu.pipeline_mode<synchronous>, transform_indices = @transform_14, window_bounds = array<i64: 1, 1>}, {transform_indices = @transform_15, window_bounds = array<i64: 8, 1>}]} {
    %c0 = arith.constant 0 : index
    %c0_0 = arith.constant 0 : index
    %0 = vector.load %arg7[%c0, %c0_0] : memref<1x128xf32, #tpu.memory_space<vmem>>, vector<1x128xf32>
    %cst = arith.constant 0.000000e+00 : f32
    %1 = vector.broadcast %cst : f32 to vector<8x128xf32>
    %c0_i32 = arith.constant 0 : i32
    %2 = arith.truncf %1 : vector<8x128xf32> to vector<8x128xbf16>
    %3 = arith.index_cast %c0_i32 : i32 to index
    %c0_1 = arith.constant 0 : index
    %c0_2 = arith.constant 0 : index
    %4 = vector.load %arg1[%3, %c0_1, %c0_2] : memref<8x8x384xf32, #tpu.memory_space<vmem>>, vector<1x8x128xf32>
    %5 = vector.shape_cast %4 : vector<1x8x128xf32> to vector<8x128xf32>
    %c0_3 = arith.constant 0 : index
    %c0_4 = arith.constant 0 : index
    %6 = vector.load %arg6[%c0_3, %c0_4] : memref<128x384xbf16, #tpu.memory_space<vmem>>, vector<128x128xbf16>
    %cst_5 = arith.constant dense<0.000000e+00> : vector<8x128xf32>
    %7 = tpu.matmul %2, %6, %cst_5 {dimension_numbers = #tpu.dot_dimension_numbers<[1], [0], [0], [1], [0, 0, 1, 1], [], []>} : vector<8x128xbf16>, vector<128x128xbf16>, vector<8x128xf32> -> vector<8x128xf32>
    %8 = arith.addf %5, %7 : vector<8x128xf32>
    %9 = arith.negf %8 : vector<8x128xf32>
    %10 = math.exp %9 : vector<8x128xf32>
    %cst_6 = arith.constant 1.000000e+00 : f32
    %11 = vector.broadcast %cst_6 : f32 to vector<8x128xf32>
    %12 = arith.addf %11, %10 : vector<8x128xf32>
    %13 = arith.divf %11, %12 : vector<8x128xf32>
    %14 = arith.index_cast %c0_i32 : i32 to index
    %c0_7 = arith.constant 0 : index
    %c128 = arith.constant 128 : index
    %15 = vector.load %arg1[%14, %c0_7, %c128] : memref<8x8x384xf32, #tpu.memory_space<vmem>>, vector<1x8x128xf32>
    %16 = vector.shape_cast %15 : vector<1x8x128xf32> to vector<8x128xf32>
    %c0_8 = arith.constant 0 : index
    %c128_9 = arith.constant 128 : index
    %17 = vector.load %arg6[%c0_8, %c128_9] : memref<128x384xbf16, #tpu.memory_space<vmem>>, vector<128x128xbf16>
    %cst_10 = arith.constant dense<0.000000e+00> : vector<8x128xf32>
    %18 = tpu.matmul %2, %17, %cst_10 {dimension_numbers = #tpu.dot_dimension_numbers<[1], [0], [0], [1], [0, 0, 1, 1], [], []>} : vector<8x128xbf16>, vector<128x128xbf16>, vector<8x128xf32> -> vector<8x128xf32>
    %19 = arith.addf %16, %18 : vector<8x128xf32>
    %20 = arith.negf %19 : vector<8x128xf32>
    %21 = math.exp %20 : vector<8x128xf32>
    %cst_11 = arith.constant 1.000000e+00 : f32
    %22 = vector.broadcast %cst_11 : f32 to vector<8x128xf32>
    %23 = arith.addf %22, %21 : vector<8x128xf32>
    %24 = arith.divf %22, %23 : vector<8x128xf32>
    %25 = arith.index_cast %c0_i32 : i32 to index
    %c0_12 = arith.constant 0 : index
    %c256 = arith.constant 256 : index
    %26 = vector.load %arg1[%25, %c0_12, %c256] : memref<8x8x384xf32, #tpu.memory_space<vmem>>, vector<1x8x128xf32>
    %27 = vector.shape_cast %26 : vector<1x8x128xf32> to vector<8x128xf32>
    %c0_13 = arith.constant 0 : index
    %c256_14 = arith.constant 256 : index
    %28 = vector.load %arg6[%c0_13, %c256_14] : memref<128x384xbf16, #tpu.memory_space<vmem>>, vector<128x128xbf16>
    %cst_15 = arith.constant dense<0.000000e+00> : vector<8x128xf32>
    %29 = tpu.matmul %2, %28, %cst_15 {dimension_numbers = #tpu.dot_dimension_numbers<[1], [0], [0], [1], [0, 0, 1, 1], [], []>} : vector<8x128xbf16>, vector<128x128xbf16>, vector<8x128xf32> -> vector<8x128xf32>
    %30 = vector.broadcast %0 : vector<1x128xf32> to vector<8x128xf32>
    %31 = arith.addf %29, %30 : vector<8x128xf32>
    %32 = arith.mulf %13, %31 : vector<8x128xf32>
    %33 = arith.addf %27, %32 : vector<8x128xf32>
    %34 = math.tanh %33 : vector<8x128xf32>
    %cst_16 = arith.constant 1.000000e+00 : f32
    %35 = vector.broadcast %cst_16 : f32 to vector<8x128xf32>
    %36 = arith.subf %35, %24 : vector<8x128xf32>
    %37 = arith.mulf %36, %34 : vector<8x128xf32>
    %38 = arith.mulf %24, %1 : vector<8x128xf32>
    %39 = arith.addf %37, %38 : vector<8x128xf32>
    %40 = arith.truncf %39 : vector<8x128xf32> to vector<8x128xbf16>
    %c0_17 = arith.constant 0 : index
    %c0_18 = arith.constant 0 : index
    %41 = vector.load %arg2[%c0_17, %c0_18] : memref<128x384xbf16, #tpu.memory_space<vmem>>, vector<128x384xbf16>
    %cst_19 = arith.constant dense<0.000000e+00> : vector<8x384xf32>
    %42 = tpu.matmul %40, %41, %cst_19 {dimension_numbers = #tpu.dot_dimension_numbers<[1], [0], [0], [1], [0, 0, 1, 1], [], []>} : vector<8x128xbf16>, vector<128x384xbf16>, vector<8x384xf32> -> vector<8x384xf32>
    %c0_20 = arith.constant 0 : index
    %c0_21 = arith.constant 0 : index
    %43 = vector.load %arg3[%c0_20, %c0_21] : memref<1x384xf32, #tpu.memory_space<vmem>>, vector<1x384xf32>
    %44 = vector.broadcast %43 : vector<1x384xf32> to vector<8x384xf32>
    %45 = arith.addf %42, %44 : vector<8x384xf32>
    %46 = arith.index_cast %c0_i32 : i32 to index
    %c0_22 = arith.constant 0 : index
    %c0_23 = arith.constant 0 : index
    %47 = vector.load %arg17[%46, %c0_22, %c0_23] : memref<8x8x384xf32, #tpu.memory_space<vmem>>, vector<1x8x384xf32>
    %48 = vector.shape_cast %47 : vector<1x8x384xf32> to vector<8x384xf32>
    %49 = vector.shape_cast %45 : vector<8x384xf32> to vector<1x8x384xf32>
    tpu.vector_store %arg17[%46, %c0_22, %c0_23], %49 {strides = array<i32>} : memref<8x8x384xf32, #tpu.memory_space<vmem>>, vector<1x8x384xf32>,
    %c1_i32 = arith.constant 1 : i32
    %50 = arith.truncf %39 : vector<8x128xf32> to vector<8x128xbf16>
    %51 = arith.index_cast %c1_i32 : i32 to index
    %c0_24 = arith.constant 0 : index
    %c0_25 = arith.constant 0 : index
    %52 = vector.load %arg1[%51, %c0_24, %c0_25] : memref<8x8x384xf32, #tpu.memory_space<vmem>>, vector<1x8x128xf32>
    %53 = vector.shape_cast %52 : vector<1x8x128xf32> to vector<8x128xf32>
    %c0_26 = arith.constant 0 : index
    %c0_27 = arith.constant 0 : index
    %54 = vector.load %arg6[%c0_26, %c0_27] : memref<128x384xbf16, #tpu.memory_space<vmem>>, vector<128x128xbf16>
    %cst_28 = arith.constant dense<0.000000e+00> : vector<8x128xf32>
    %55 = tpu.matmul %50, %54, %cst_28 {dimension_numbers = #tpu.dot_dimension_numbers<[1], [0], [0], [1], [0, 0, 1, 1], [], []>} : vector<8x128xbf16>, vector<128x128xbf16>, vector<8x128xf32> -> vector<8x128xf32>
    %56 = arith.addf %53, %55 : vector<8x128xf32>
    %57 = arith.negf %56 : vector<8x128xf32>
    %58 = math.exp %57 : vector<8x128xf32>
    %cst_29 = arith.constant 1.000000e+00 : f32
    %59 = vector.broadcast %cst_29 : f32 to vector<8x128xf32>
    %60 = arith.addf %59, %58 : vector<8x128xf32>
    %61 = arith.divf %59, %60 : vector<8x128xf32>
    %62 = arith.index_cast %c1_i32 : i32 to index
    %c0_30 = arith.constant 0 : index
    %c128_31 = arith.constant 128 : index
    %63 = vector.load %arg1[%62, %c0_30, %c128_31] : memref<8x8x384xf32, #tpu.memory_space<vmem>>, vector<1x8x128xf32>
    %64 = vector.shape_cast %63 : vector<1x8x128xf32> to vector<8x128xf32>
    %c0_32 = arith.constant 0 : index
    %c128_33 = arith.constant 128 : index
    %65 = vector.load %arg6[%c0_32, %c128_33] : memref<128x384xbf16, #tpu.memory_space<vmem>>, vector<128x128xbf16>
    %cst_34 = arith.constant dense<0.000000e+00> : vector<8x128xf32>
    %66 = tpu.matmul %50, %65, %cst_34 {dimension_numbers = #tpu.dot_dimension_numbers<[1], [0], [0], [1], [0, 0, 1, 1], [], []>} : vector<8x128xbf16>, vector<128x128xbf16>, vector<8x128xf32> -> vector<8x128xf32>
    %67 = arith.addf %64, %66 : vector<8x128xf32>
    %68 = arith.negf %67 : vector<8x128xf32>
    %69 = math.exp %68 : vector<8x128xf32>
    %cst_35 = arith.constant 1.000000e+00 : f32
    %70 = vector.broadcast %cst_35 : f32 to vector<8x128xf32>
    %71 = arith.addf %70, %69 : vector<8x128xf32>
    %72 = arith.divf %70, %71 : vector<8x128xf32>
    %73 = arith.index_cast %c1_i32 : i32 to index
    %c0_36 = arith.constant 0 : index
    %c256_37 = arith.constant 256 : index
    %74 = vector.load %arg1[%73, %c0_36, %c256_37] : memref<8x8x384xf32, #tpu.memory_space<vmem>>, vector<1x8x128xf32>
    %75 = vector.shape_cast %74 : vector<1x8x128xf32> to vector<8x128xf32>
    %c0_38 = arith.constant 0 : index
    %c256_39 = arith.constant 256 : index
    %76 = vector.load %arg6[%c0_38, %c256_39] : memref<128x384xbf16, #tpu.memory_space<vmem>>, vector<128x128xbf16>
    %cst_40 = arith.constant dense<0.000000e+00> : vector<8x128xf32>
    %77 = tpu.matmul %50, %76, %cst_40 {dimension_numbers = #tpu.dot_dimension_numbers<[1], [0], [0], [1], [0, 0, 1, 1], [], []>} : vector<8x128xbf16>, vector<128x128xbf16>, vector<8x128xf32> -> vector<8x128xf32>
    %78 = vector.broadcast %0 : vector<1x128xf32> to vector<8x128xf32>
    %79 = arith.addf %77, %78 : vector<8x128xf32>
    %80 = arith.mulf %61, %79 : vector<8x128xf32>
    %81 = arith.addf %75, %80 : vector<8x128xf32>
    %82 = math.tanh %81 : vector<8x128xf32>
    %cst_41 = arith.constant 1.000000e+00 : f32
    %83 = vector.broadcast %cst_41 : f32 to vector<8x128xf32>
    %84 = arith.subf %83, %72 : vector<8x128xf32>
    %85 = arith.mulf %84, %82 : vector<8x128xf32>
    %86 = arith.mulf %72, %39 : vector<8x128xf32>
    %87 = arith.addf %85, %86 : vector<8x128xf32>
    %88 = arith.truncf %87 : vector<8x128xf32> to vector<8x128xbf16>
    %c0_42 = arith.constant 0 : index
    %c0_43 = arith.constant 0 : index
    %89 = vector.load %arg2[%c0_42, %c0_43] : memref<128x384xbf16, #tpu.memory_space<vmem>>, vector<128x384xbf16>
    %cst_44 = arith.constant dense<0.000000e+00> : vector<8x384xf32>
    %90 = tpu.matmul %88, %89, %cst_44 {dimension_numbers = #tpu.dot_dimension_numbers<[1], [0], [0], [1], [0, 0, 1, 1], [], []>} : vector<8x128xbf16>, vector<128x384xbf16>, vector<8x384xf32> -> vector<8x384xf32>
    %c0_45 = arith.constant 0 : index
    %c0_46 = arith.constant 0 : index
    %91 = vector.load %arg3[%c0_45, %c0_46] : memref<1x384xf32, #tpu.memory_space<vmem>>, vector<1x384xf32>
    %92 = vector.broadcast %91 : vector<1x384xf32> to vector<8x384xf32>
    %93 = arith.addf %90, %92 : vector<8x384xf32>
    %94 = arith.index_cast %c1_i32 : i32 to index
    %c0_47 = arith.constant 0 : index
    %c0_48 = arith.constant 0 : index
    %95 = vector.load %arg17[%94, %c0_47, %c0_48] : memref<8x8x384xf32, #tpu.memory_space<vmem>>, vector<1x8x384xf32>
    %96 = vector.shape_cast %95 : vector<1x8x384xf32> to vector<8x384xf32>
    %97 = vector.shape_cast %93 : vector<8x384xf32> to vector<1x8x384xf32>
    tpu.vector_store %arg17[%94, %c0_47, %c0_48], %97 {strides = array<i32>} : memref<8x8x384xf32, #tpu.memory_space<vmem>>, vector<1x8x384xf32>,
    %c2_i32 = arith.constant 2 : i32
    %98 = arith.truncf %87 : vector<8x128xf32> to vector<8x128xbf16>
    %99 = arith.index_cast %c2_i32 : i32 to index
    %c0_49 = arith.constant 0 : index
    %c0_50 = arith.constant 0 : index
    %100 = vector.load %arg1[%99, %c0_49, %c0_50] : memref<8x8x384xf32, #tpu.memory_space<vmem>>, vector<1x8x128xf32>
    %101 = vector.shape_cast %100 : vector<1x8x128xf32> to vector<8x128xf32>
    %c0_51 = arith.constant 0 : index
    %c0_52 = arith.constant 0 : index
    %102 = vector.load %arg6[%c0_51, %c0_52] : memref<128x384xbf16, #tpu.memory_space<vmem>>, vector<128x128xbf16>
    %cst_53 = arith.constant dense<0.000000e+00> : vector<8x128xf32>
    %103 = tpu.matmul %98, %102, %cst_53 {dimension_numbers = #tpu.dot_dimension_numbers<[1], [0], [0], [1], [0, 0, 1, 1], [], []>} : vector<8x128xbf16>, vector<128x128xbf16>, vector<8x128xf32> -> vector<8x128xf32>
    %104 = arith.addf %101, %103 : vector<8x128xf32>
    %105 = arith.negf %104 : vector<8x128xf32>
    %106 = math.exp %105 : vector<8x128xf32>
    %cst_54 = arith.constant 1.000000e+00 : f32
    %107 = vector.broadcast %cst_54 : f32 to vector<8x128xf32>
    %108 = arith.addf %107, %106 : vector<8x128xf32>
    %109 = arith.divf %107, %108 : vector<8x128xf32>
    %110 = arith.index_cast %c2_i32 : i32 to index
    %c0_55 = arith.constant 0 : index
    %c128_56 = arith.constant 128 : index
    %111 = vector.load %arg1[%110, %c0_55, %c128_56] : memref<8x8x384xf32, #tpu.memory_space<vmem>>, vector<1x8x128xf32>
    %112 = vector.shape_cast %111 : vector<1x8x128xf32> to vector<8x128xf32>
    %c0_57 = arith.constant 0 : index
    %c128_58 = arith.constant 128 : index
    %113 = vector.load %arg6[%c0_57, %c128_58] : memref<128x384xbf16, #tpu.memory_space<vmem>>, vector<128x128xbf16>
    %cst_59 = arith.constant dense<0.000000e+00> : vector<8x128xf32>
    %114 = tpu.matmul %98, %113, %cst_59 {dimension_numbers = #tpu.dot_dimension_numbers<[1], [0], [0], [1], [0, 0, 1, 1], [], []>} : vector<8x128xbf16>, vector<128x128xbf16>, vector<8x128xf32> -> vector<8x128xf32>
    %115 = arith.addf %112, %114 : vector<8x128xf32>
    %116 = arith.negf %115 : vector<8x128xf32>
    %117 = math.exp %116 : vector<8x128xf32>
    %cst_60 = arith.constant 1.000000e+00 : f32
    %118 = vector.broadcast %cst_60 : f32 to vector<8x128xf32>
    %119 = arith.addf %118, %117 : vector<8x128xf32>
    %120 = arith.divf %118, %119 : vector<8x128xf32>
    %121 = arith.index_cast %c2_i32 : i32 to index
    %c0_61 = arith.constant 0 : index
    %c256_62 = arith.constant 256 : index
    %122 = vector.load %arg1[%121, %c0_61, %c256_62] : memref<8x8x384xf32, #tpu.memory_space<vmem>>, vector<1x8x128xf32>
    %123 = vector.shape_cast %122 : vector<1x8x128xf32> to vector<8x128xf32>
    %c0_63 = arith.constant 0 : index
    %c256_64 = arith.constant 256 : index
    %124 = vector.load %arg6[%c0_63, %c256_64] : memref<128x384xbf16, #tpu.memory_space<vmem>>, vector<128x128xbf16>
    %cst_65 = arith.constant dense<0.000000e+00> : vector<8x128xf32>
    %125 = tpu.matmul %98, %124, %cst_65 {dimension_numbers = #tpu.dot_dimension_numbers<[1], [0], [0], [1], [0, 0, 1, 1], [], []>} : vector<8x128xbf16>, vector<128x128xbf16>, vector<8x128xf32> -> vector<8x128xf32>
    %126 = vector.broadcast %0 : vector<1x128xf32> to vector<8x128xf32>
    %127 = arith.addf %125, %126 : vector<8x128xf32>
    %128 = arith.mulf %109, %127 : vector<8x128xf32>
    %129 = arith.addf %123, %128 : vector<8x128xf32>
    %130 = math.tanh %129 : vector<8x128xf32>
    %cst_66 = arith.constant 1.000000e+00 : f32
    %131 = vector.broadcast %cst_66 : f32 to vector<8x128xf32>
    %132 = arith.subf %131, %120 : vector<8x128xf32>
    %133 = arith.mulf %132, %130 : vector<8x128xf32>
    %134 = arith.mulf %120, %87 : vector<8x128xf32>
    %135 = arith.addf %133, %134 : vector<8x128xf32>
    %136 = arith.truncf %135 : vector<8x128xf32> to vector<8x128xbf16>
    %c0_67 = arith.constant 0 : index
    %c0_68 = arith.constant 0 : index
    %137 = vector.load %arg2[%c0_67, %c0_68] : memref<128x384xbf16, #tpu.memory_space<vmem>>, vector<128x384xbf16>
    %cst_69 = arith.constant dense<0.000000e+00> : vector<8x384xf32>
    %138 = tpu.matmul %136, %137, %cst_69 {dimension_numbers = #tpu.dot_dimension_numbers<[1], [0], [0], [1], [0, 0, 1, 1], [], []>} : vector<8x128xbf16>, vector<128x384xbf16>, vector<8x384xf32> -> vector<8x384xf32>
    %c0_70 = arith.constant 0 : index
    %c0_71 = arith.constant 0 : index
    %139 = vector.load %arg3[%c0_70, %c0_71] : memref<1x384xf32, #tpu.memory_space<vmem>>, vector<1x384xf32>
    %140 = vector.broadcast %139 : vector<1x384xf32> to vector<8x384xf32>
    %141 = arith.addf %138, %140 : vector<8x384xf32>
    %142 = arith.index_cast %c2_i32 : i32 to index
    %c0_72 = arith.constant 0 : index
    %c0_73 = arith.constant 0 : index
    %143 = vector.load %arg17[%142, %c0_72, %c0_73] : memref<8x8x384xf32, #tpu.memory_space<vmem>>, vector<1x8x384xf32>
    %144 = vector.shape_cast %143 : vector<1x8x384xf32> to vector<8x384xf32>
    %145 = vector.shape_cast %141 : vector<8x384xf32> to vector<1x8x384xf32>
    tpu.vector_store %arg17[%142, %c0_72, %c0_73], %145 {strides = array<i32>} : memref<8x8x384xf32, #tpu.memory_space<vmem>>, vector<1x8x384xf32>,
    %c3_i32 = arith.constant 3 : i32
    %146 = arith.truncf %135 : vector<8x128xf32> to vector<8x128xbf16>
    %147 = arith.index_cast %c3_i32 : i32 to index
    %c0_74 = arith.constant 0 : index
    %c0_75 = arith.constant 0 : index
    %148 = vector.load %arg1[%147, %c0_74, %c0_75] : memref<8x8x384xf32, #tpu.memory_space<vmem>>, vector<1x8x128xf32>
    %149 = vector.shape_cast %148 : vector<1x8x128xf32> to vector<8x128xf32>
    %c0_76 = arith.constant 0 : index
    %c0_77 = arith.constant 0 : index
    %150 = vector.load %arg6[%c0_76, %c0_77] : memref<128x384xbf16, #tpu.memory_space<vmem>>, vector<128x128xbf16>
    %cst_78 = arith.constant dense<0.000000e+00> : vector<8x128xf32>
    %151 = tpu.matmul %146, %150, %cst_78 {dimension_numbers = #tpu.dot_dimension_numbers<[1], [0], [0], [1], [0, 0, 1, 1], [], []>} : vector<8x128xbf16>, vector<128x128xbf16>, vector<8x128xf32> -> vector<8x128xf32>
    %152 = arith.addf %149, %151 : vector<8x128xf32>
    %153 = arith.negf %152 : vector<8x128xf32>
    %154 = math.exp %153 : vector<8x128xf32>
    %cst_79 = arith.constant 1.000000e+00 : f32
    %155 = vector.broadcast %cst_79 : f32 to vector<8x128xf32>
    %156 = arith.addf %155, %154 : vector<8x128xf32>
    %157 = arith.divf %155, %156 : vector<8x128xf32>
    %158 = arith.index_cast %c3_i32 : i32 to index
    %c0_80 = arith.constant 0 : index
    %c128_81 = arith.constant 128 : index
    %159 = vector.load %arg1[%158, %c0_80, %c128_81] : memref<8x8x384xf32, #tpu.memory_space<vmem>>, vector<1x8x128xf32>
    %160 = vector.shape_cast %159 : vector<1x8x128xf32> to vector<8x128xf32>
    %c0_82 = arith.constant 0 : index
    %c128_83 = arith.constant 128 : index
    %161 = vector.load %arg6[%c0_82, %c128_83] : memref<128x384xbf16, #tpu.memory_space<vmem>>, vector<128x128xbf16>
    %cst_84 = arith.constant dense<0.000000e+00> : vector<8x128xf32>
    %162 = tpu.matmul %146, %161, %cst_84 {dimension_numbers = #tpu.dot_dimension_numbers<[1], [0], [0], [1], [0, 0, 1, 1], [], []>} : vector<8x128xbf16>, vector<128x128xbf16>, vector<8x128xf32> -> vector<8x128xf32>
    %163 = arith.addf %160, %162 : vector<8x128xf32>
    %164 = arith.negf %163 : vector<8x128xf32>
    %165 = math.exp %164 : vector<8x128xf32>
    %cst_85 = arith.constant 1.000000e+00 : f32
    %166 = vector.broadcast %cst_85 : f32 to vector<8x128xf32>
    %167 = arith.addf %166, %165 : vector<8x128xf32>
    %168 = arith.divf %166, %167 : vector<8x128xf32>
    %169 = arith.index_cast %c3_i32 : i32 to index
    %c0_86 = arith.constant 0 : index
    %c256_87 = arith.constant 256 : index
    %170 = vector.load %arg1[%169, %c0_86, %c256_87] : memref<8x8x384xf32, #tpu.memory_space<vmem>>, vector<1x8x128xf32>
    %171 = vector.shape_cast %170 : vector<1x8x128xf32> to vector<8x128xf32>
    %c0_88 = arith.constant 0 : index
    %c256_89 = arith.constant 256 : index
    %172 = vector.load %arg6[%c0_88, %c256_89] : memref<128x384xbf16, #tpu.memory_space<vmem>>, vector<128x128xbf16>
    %cst_90 = arith.constant dense<0.000000e+00> : vector<8x128xf32>
    %173 = tpu.matmul %146, %172, %cst_90 {dimension_numbers = #tpu.dot_dimension_numbers<[1], [0], [0], [1], [0, 0, 1, 1], [], []>} : vector<8x128xbf16>, vector<128x128xbf16>, vector<8x128xf32> -> vector<8x128xf32>
    %174 = vector.broadcast %0 : vector<1x128xf32> to vector<8x128xf32>
    %175 = arith.addf %173, %174 : vector<8x128xf32>
    %176 = arith.mulf %157, %175 : vector<8x128xf32>
    %177 = arith.addf %171, %176 : vector<8x128xf32>
    %178 = math.tanh %177 : vector<8x128xf32>
    %cst_91 = arith.constant 1.000000e+00 : f32
    %179 = vector.broadcast %cst_91 : f32 to vector<8x128xf32>
    %180 = arith.subf %179, %168 : vector<8x128xf32>
    %181 = arith.mulf %180, %178 : vector<8x128xf32>
    %182 = arith.mulf %168, %135 : vector<8x128xf32>
    %183 = arith.addf %181, %182 : vector<8x128xf32>
    %184 = arith.truncf %183 : vector<8x128xf32> to vector<8x128xbf16>
    %c0_92 = arith.constant 0 : index
    %c0_93 = arith.constant 0 : index
    %185 = vector.load %arg2[%c0_92, %c0_93] : memref<128x384xbf16, #tpu.memory_space<vmem>>, vector<128x384xbf16>
    %cst_94 = arith.constant dense<0.000000e+00> : vector<8x384xf32>
    %186 = tpu.matmul %184, %185, %cst_94 {dimension_numbers = #tpu.dot_dimension_numbers<[1], [0], [0], [1], [0, 0, 1, 1], [], []>} : vector<8x128xbf16>, vector<128x384xbf16>, vector<8x384xf32> -> vector<8x384xf32>
    %c0_95 = arith.constant 0 : index
    %c0_96 = arith.constant 0 : index
    %187 = vector.load %arg3[%c0_95, %c0_96] : memref<1x384xf32, #tpu.memory_space<vmem>>, vector<1x384xf32>
    %188 = vector.broadcast %187 : vector<1x384xf32> to vector<8x384xf32>
    %189 = arith.addf %186, %188 : vector<8x384xf32>
    %190 = arith.index_cast %c3_i32 : i32 to index
    %c0_97 = arith.constant 0 : index
    %c0_98 = arith.constant 0 : index
    %191 = vector.load %arg17[%190, %c0_97, %c0_98] : memref<8x8x384xf32, #tpu.memory_space<vmem>>, vector<1x8x384xf32>
    %192 = vector.shape_cast %191 : vector<1x8x384xf32> to vector<8x384xf32>
    %193 = vector.shape_cast %189 : vector<8x384xf32> to vector<1x8x384xf32>
    tpu.vector_store %arg17[%190, %c0_97, %c0_98], %193 {strides = array<i32>} : memref<8x8x384xf32, #tpu.memory_space<vmem>>, vector<1x8x384xf32>,
    %c4_i32 = arith.constant 4 : i32
    %194 = arith.truncf %183 : vector<8x128xf32> to vector<8x128xbf16>
    %195 = arith.index_cast %c4_i32 : i32 to index
    %c0_99 = arith.constant 0 : index
    %c0_100 = arith.constant 0 : index
    %196 = vector.load %arg1[%195, %c0_99, %c0_100] : memref<8x8x384xf32, #tpu.memory_space<vmem>>, vector<1x8x128xf32>
    %197 = vector.shape_cast %196 : vector<1x8x128xf32> to vector<8x128xf32>
    %c0_101 = arith.constant 0 : index
    %c0_102 = arith.constant 0 : index
    %198 = vector.load %arg6[%c0_101, %c0_102] : memref<128x384xbf16, #tpu.memory_space<vmem>>, vector<128x128xbf16>
    %cst_103 = arith.constant dense<0.000000e+00> : vector<8x128xf32>
    %199 = tpu.matmul %194, %198, %cst_103 {dimension_numbers = #tpu.dot_dimension_numbers<[1], [0], [0], [1], [0, 0, 1, 1], [], []>} : vector<8x128xbf16>, vector<128x128xbf16>, vector<8x128xf32> -> vector<8x128xf32>
    %200 = arith.addf %197, %199 : vector<8x128xf32>
    %201 = arith.negf %200 : vector<8x128xf32>
    %202 = math.exp %201 : vector<8x128xf32>
    %cst_104 = arith.constant 1.000000e+00 : f32
    %203 = vector.broadcast %cst_104 : f32 to vector<8x128xf32>
    %204 = arith.addf %203, %202 : vector<8x128xf32>
    %205 = arith.divf %203, %204 : vector<8x128xf32>
    %206 = arith.index_cast %c4_i32 : i32 to index
    %c0_105 = arith.constant 0 : index
    %c128_106 = arith.constant 128 : index
    %207 = vector.load %arg1[%206, %c0_105, %c128_106] : memref<8x8x384xf32, #tpu.memory_space<vmem>>, vector<1x8x128xf32>
    %208 = vector.shape_cast %207 : vector<1x8x128xf32> to vector<8x128xf32>
    %c0_107 = arith.constant 0 : index
    %c128_108 = arith.constant 128 : index
    %209 = vector.load %arg6[%c0_107, %c128_108] : memref<128x384xbf16, #tpu.memory_space<vmem>>, vector<128x128xbf16>
    %cst_109 = arith.constant dense<0.000000e+00> : vector<8x128xf32>
    %210 = tpu.matmul %194, %209, %cst_109 {dimension_numbers = #tpu.dot_dimension_numbers<[1], [0], [0], [1], [0, 0, 1, 1], [], []>} : vector<8x128xbf16>, vector<128x128xbf16>, vector<8x128xf32> -> vector<8x128xf32>
    %211 = arith.addf %208, %210 : vector<8x128xf32>
    %212 = arith.negf %211 : vector<8x128xf32>
    %213 = math.exp %212 : vector<8x128xf32>
    %cst_110 = arith.constant 1.000000e+00 : f32
    %214 = vector.broadcast %cst_110 : f32 to vector<8x128xf32>
    %215 = arith.addf %214, %213 : vector<8x128xf32>
    %216 = arith.divf %214, %215 : vector<8x128xf32>
    %217 = arith.index_cast %c4_i32 : i32 to index
    %c0_111 = arith.constant 0 : index
    %c256_112 = arith.constant 256 : index
    %218 = vector.load %arg1[%217, %c0_111, %c256_112] : memref<8x8x384xf32, #tpu.memory_space<vmem>>, vector<1x8x128xf32>
    %219 = vector.shape_cast %218 : vector<1x8x128xf32> to vector<8x128xf32>
    %c0_113 = arith.constant 0 : index
    %c256_114 = arith.constant 256 : index
    %220 = vector.load %arg6[%c0_113, %c256_114] : memref<128x384xbf16, #tpu.memory_space<vmem>>, vector<128x128xbf16>
    %cst_115 = arith.constant dense<0.000000e+00> : vector<8x128xf32>
    %221 = tpu.matmul %194, %220, %cst_115 {dimension_numbers = #tpu.dot_dimension_numbers<[1], [0], [0], [1], [0, 0, 1, 1], [], []>} : vector<8x128xbf16>, vector<128x128xbf16>, vector<8x128xf32> -> vector<8x128xf32>
    %222 = vector.broadcast %0 : vector<1x128xf32> to vector<8x128xf32>
    %223 = arith.addf %221, %222 : vector<8x128xf32>
    %224 = arith.mulf %205, %223 : vector<8x128xf32>
    %225 = arith.addf %219, %224 : vector<8x128xf32>
    %226 = math.tanh %225 : vector<8x128xf32>
    %cst_116 = arith.constant 1.000000e+00 : f32
    %227 = vector.broadcast %cst_116 : f32 to vector<8x128xf32>
    %228 = arith.subf %227, %216 : vector<8x128xf32>
    %229 = arith.mulf %228, %226 : vector<8x128xf32>
    %230 = arith.mulf %216, %183 : vector<8x128xf32>
    %231 = arith.addf %229, %230 : vector<8x128xf32>
    %232 = arith.truncf %231 : vector<8x128xf32> to vector<8x128xbf16>
    %c0_117 = arith.constant 0 : index
    %c0_118 = arith.constant 0 : index
    %233 = vector.load %arg2[%c0_117, %c0_118] : memref<128x384xbf16, #tpu.memory_space<vmem>>, vector<128x384xbf16>
    %cst_119 = arith.constant dense<0.000000e+00> : vector<8x384xf32>
    %234 = tpu.matmul %232, %233, %cst_119 {dimension_numbers = #tpu.dot_dimension_numbers<[1], [0], [0], [1], [0, 0, 1, 1], [], []>} : vector<8x128xbf16>, vector<128x384xbf16>, vector<8x384xf32> -> vector<8x384xf32>
    %c0_120 = arith.constant 0 : index
    %c0_121 = arith.constant 0 : index
    %235 = vector.load %arg3[%c0_120, %c0_121] : memref<1x384xf32, #tpu.memory_space<vmem>>, vector<1x384xf32>
    %236 = vector.broadcast %235 : vector<1x384xf32> to vector<8x384xf32>
    %237 = arith.addf %234, %236 : vector<8x384xf32>
    %238 = arith.index_cast %c4_i32 : i32 to index
    %c0_122 = arith.constant 0 : index
    %c0_123 = arith.constant 0 : index
    %239 = vector.load %arg17[%238, %c0_122, %c0_123] : memref<8x8x384xf32, #tpu.memory_space<vmem>>, vector<1x8x384xf32>
    %240 = vector.shape_cast %239 : vector<1x8x384xf32> to vector<8x384xf32>
    %241 = vector.shape_cast %237 : vector<8x384xf32> to vector<1x8x384xf32>
    tpu.vector_store %arg17[%238, %c0_122, %c0_123], %241 {strides = array<i32>} : memref<8x8x384xf32, #tpu.memory_space<vmem>>, vector<1x8x384xf32>,
    %c5_i32 = arith.constant 5 : i32
    %242 = arith.truncf %231 : vector<8x128xf32> to vector<8x128xbf16>
    %243 = arith.index_cast %c5_i32 : i32 to index
    %c0_124 = arith.constant 0 : index
    %c0_125 = arith.constant 0 : index
    %244 = vector.load %arg1[%243, %c0_124, %c0_125] : memref<8x8x384xf32, #tpu.memory_space<vmem>>, vector<1x8x128xf32>
    %245 = vector.shape_cast %244 : vector<1x8x128xf32> to vector<8x128xf32>
    %c0_126 = arith.constant 0 : index
    %c0_127 = arith.constant 0 : index
    %246 = vector.load %arg6[%c0_126, %c0_127] : memref<128x384xbf16, #tpu.memory_space<vmem>>, vector<128x128xbf16>
    %cst_128 = arith.constant dense<0.000000e+00> : vector<8x128xf32>
    %247 = tpu.matmul %242, %246, %cst_128 {dimension_numbers = #tpu.dot_dimension_numbers<[1], [0], [0], [1], [0, 0, 1, 1], [], []>} : vector<8x128xbf16>, vector<128x128xbf16>, vector<8x128xf32> -> vector<8x128xf32>
    %248 = arith.addf %245, %247 : vector<8x128xf32>
    %249 = arith.negf %248 : vector<8x128xf32>
    %250 = math.exp %249 : vector<8x128xf32>
    %cst_129 = arith.constant 1.000000e+00 : f32
    %251 = vector.broadcast %cst_129 : f32 to vector<8x128xf32>
    %252 = arith.addf %251, %250 : vector<8x128xf32>
    %253 = arith.divf %251, %252 : vector<8x128xf32>
    %254 = arith.index_cast %c5_i32 : i32 to index
    %c0_130 = arith.constant 0 : index
    %c128_131 = arith.constant 128 : index
    %255 = vector.load %arg1[%254, %c0_130, %c128_131] : memref<8x8x384xf32, #tpu.memory_space<vmem>>, vector<1x8x128xf32>
    %256 = vector.shape_cast %255 : vector<1x8x128xf32> to vector<8x128xf32>
    %c0_132 = arith.constant 0 : index
    %c128_133 = arith.constant 128 : index
    %257 = vector.load %arg6[%c0_132, %c128_133] : memref<128x384xbf16, #tpu.memory_space<vmem>>, vector<128x128xbf16>
    %cst_134 = arith.constant dense<0.000000e+00> : vector<8x128xf32>
    %258 = tpu.matmul %242, %257, %cst_134 {dimension_numbers = #tpu.dot_dimension_numbers<[1], [0], [0], [1], [0, 0, 1, 1], [], []>} : vector<8x128xbf16>, vector<128x128xbf16>, vector<8x128xf32> -> vector<8x128xf32>
    %259 = arith.addf %256, %258 : vector<8x128xf32>
    %260 = arith.negf %259 : vector<8x128xf32>
    %261 = math.exp %260 : vector<8x128xf32>
    %cst_135 = arith.constant 1.000000e+00 : f32
    %262 = vector.broadcast %cst_135 : f32 to vector<8x128xf32>
    %263 = arith.addf %262, %261 : vector<8x128xf32>
    %264 = arith.divf %262, %263 : vector<8x128xf32>
    %265 = arith.index_cast %c5_i32 : i32 to index
    %c0_136 = arith.constant 0 : index
    %c256_137 = arith.constant 256 : index
    %266 = vector.load %arg1[%265, %c0_136, %c256_137] : memref<8x8x384xf32, #tpu.memory_space<vmem>>, vector<1x8x128xf32>
    %267 = vector.shape_cast %266 : vector<1x8x128xf32> to vector<8x128xf32>
    %c0_138 = arith.constant 0 : index
    %c256_139 = arith.constant 256 : index
    %268 = vector.load %arg6[%c0_138, %c256_139] : memref<128x384xbf16, #tpu.memory_space<vmem>>, vector<128x128xbf16>
    %cst_140 = arith.constant dense<0.000000e+00> : vector<8x128xf32>
    %269 = tpu.matmul %242, %268, %cst_140 {dimension_numbers = #tpu.dot_dimension_numbers<[1], [0], [0], [1], [0, 0, 1, 1], [], []>} : vector<8x128xbf16>, vector<128x128xbf16>, vector<8x128xf32> -> vector<8x128xf32>
    %270 = vector.broadcast %0 : vector<1x128xf32> to vector<8x128xf32>
    %271 = arith.addf %269, %270 : vector<8x128xf32>
    %272 = arith.mulf %253, %271 : vector<8x128xf32>
    %273 = arith.addf %267, %272 : vector<8x128xf32>
    %274 = math.tanh %273 : vector<8x128xf32>
    %cst_141 = arith.constant 1.000000e+00 : f32
    %275 = vector.broadcast %cst_141 : f32 to vector<8x128xf32>
    %276 = arith.subf %275, %264 : vector<8x128xf32>
    %277 = arith.mulf %276, %274 : vector<8x128xf32>
    %278 = arith.mulf %264, %231 : vector<8x128xf32>
    %279 = arith.addf %277, %278 : vector<8x128xf32>
    %280 = arith.truncf %279 : vector<8x128xf32> to vector<8x128xbf16>
    %c0_142 = arith.constant 0 : index
    %c0_143 = arith.constant 0 : index
    %281 = vector.load %arg2[%c0_142, %c0_143] : memref<128x384xbf16, #tpu.memory_space<vmem>>, vector<128x384xbf16>
    %cst_144 = arith.constant dense<0.000000e+00> : vector<8x384xf32>
    %282 = tpu.matmul %280, %281, %cst_144 {dimension_numbers = #tpu.dot_dimension_numbers<[1], [0], [0], [1], [0, 0, 1, 1], [], []>} : vector<8x128xbf16>, vector<128x384xbf16>, vector<8x384xf32> -> vector<8x384xf32>
    %c0_145 = arith.constant 0 : index
    %c0_146 = arith.constant 0 : index
    %283 = vector.load %arg3[%c0_145, %c0_146] : memref<1x384xf32, #tpu.memory_space<vmem>>, vector<1x384xf32>
    %284 = vector.broadcast %283 : vector<1x384xf32> to vector<8x384xf32>
    %285 = arith.addf %282, %284 : vector<8x384xf32>
    %286 = arith.index_cast %c5_i32 : i32 to index
    %c0_147 = arith.constant 0 : index
    %c0_148 = arith.constant 0 : index
    %287 = vector.load %arg17[%286, %c0_147, %c0_148] : memref<8x8x384xf32, #tpu.memory_space<vmem>>, vector<1x8x384xf32>
    %288 = vector.shape_cast %287 : vector<1x8x384xf32> to vector<8x384xf32>
    %289 = vector.shape_cast %285 : vector<8x384xf32> to vector<1x8x384xf32>
    tpu.vector_store %arg17[%286, %c0_147, %c0_148], %289 {strides = array<i32>} : memref<8x8x384xf32, #tpu.memory_space<vmem>>, vector<1x8x384xf32>,
    %c6_i32 = arith.constant 6 : i32
    %290 = arith.truncf %279 : vector<8x128xf32> to vector<8x128xbf16>
    %291 = arith.index_cast %c6_i32 : i32 to index
    %c0_149 = arith.constant 0 : index
    %c0_150 = arith.constant 0 : index
    %292 = vector.load %arg1[%291, %c0_149, %c0_150] : memref<8x8x384xf32, #tpu.memory_space<vmem>>, vector<1x8x128xf32>
    %293 = vector.shape_cast %292 : vector<1x8x128xf32> to vector<8x128xf32>
    %c0_151 = arith.constant 0 : index
    %c0_152 = arith.constant 0 : index
    %294 = vector.load %arg6[%c0_151, %c0_152] : memref<128x384xbf16, #tpu.memory_space<vmem>>, vector<128x128xbf16>
    %cst_153 = arith.constant dense<0.000000e+00> : vector<8x128xf32>
    %295 = tpu.matmul %290, %294, %cst_153 {dimension_numbers = #tpu.dot_dimension_numbers<[1], [0], [0], [1], [0, 0, 1, 1], [], []>} : vector<8x128xbf16>, vector<128x128xbf16>, vector<8x128xf32> -> vector<8x128xf32>
    %296 = arith.addf %293, %295 : vector<8x128xf32>
    %297 = arith.negf %296 : vector<8x128xf32>
    %298 = math.exp %297 : vector<8x128xf32>
    %cst_154 = arith.constant 1.000000e+00 : f32
    %299 = vector.broadcast %cst_154 : f32 to vector<8x128xf32>
    %300 = arith.addf %299, %298 : vector<8x128xf32>
    %301 = arith.divf %299, %300 : vector<8x128xf32>
    %302 = arith.index_cast %c6_i32 : i32 to index
    %c0_155 = arith.constant 0 : index
    %c128_156 = arith.constant 128 : index
    %303 = vector.load %arg1[%302, %c0_155, %c128_156] : memref<8x8x384xf32, #tpu.memory_space<vmem>>, vector<1x8x128xf32>
    %304 = vector.shape_cast %303 : vector<1x8x128xf32> to vector<8x128xf32>
    %c0_157 = arith.constant 0 : index
    %c128_158 = arith.constant 128 : index
    %305 = vector.load %arg6[%c0_157, %c128_158] : memref<128x384xbf16, #tpu.memory_space<vmem>>, vector<128x128xbf16>
    %cst_159 = arith.constant dense<0.000000e+00> : vector<8x128xf32>
    %306 = tpu.matmul %290, %305, %cst_159 {dimension_numbers = #tpu.dot_dimension_numbers<[1], [0], [0], [1], [0, 0, 1, 1], [], []>} : vector<8x128xbf16>, vector<128x128xbf16>, vector<8x128xf32> -> vector<8x128xf32>
    %307 = arith.addf %304, %306 : vector<8x128xf32>
    %308 = arith.negf %307 : vector<8x128xf32>
    %309 = math.exp %308 : vector<8x128xf32>
    %cst_160 = arith.constant 1.000000e+00 : f32
    %310 = vector.broadcast %cst_160 : f32 to vector<8x128xf32>
    %311 = arith.addf %310, %309 : vector<8x128xf32>
    %312 = arith.divf %310, %311 : vector<8x128xf32>
    %313 = arith.index_cast %c6_i32 : i32 to index
    %c0_161 = arith.constant 0 : index
    %c256_162 = arith.constant 256 : index
    %314 = vector.load %arg1[%313, %c0_161, %c256_162] : memref<8x8x384xf32, #tpu.memory_space<vmem>>, vector<1x8x128xf32>
    %315 = vector.shape_cast %314 : vector<1x8x128xf32> to vector<8x128xf32>
    %c0_163 = arith.constant 0 : index
    %c256_164 = arith.constant 256 : index
    %316 = vector.load %arg6[%c0_163, %c256_164] : memref<128x384xbf16, #tpu.memory_space<vmem>>, vector<128x128xbf16>
    %cst_165 = arith.constant dense<0.000000e+00> : vector<8x128xf32>
    %317 = tpu.matmul %290, %316, %cst_165 {dimension_numbers = #tpu.dot_dimension_numbers<[1], [0], [0], [1], [0, 0, 1, 1], [], []>} : vector<8x128xbf16>, vector<128x128xbf16>, vector<8x128xf32> -> vector<8x128xf32>
    %318 = vector.broadcast %0 : vector<1x128xf32> to vector<8x128xf32>
    %319 = arith.addf %317, %318 : vector<8x128xf32>
    %320 = arith.mulf %301, %319 : vector<8x128xf32>
    %321 = arith.addf %315, %320 : vector<8x128xf32>
    %322 = math.tanh %321 : vector<8x128xf32>
    %cst_166 = arith.constant 1.000000e+00 : f32
    %323 = vector.broadcast %cst_166 : f32 to vector<8x128xf32>
    %324 = arith.subf %323, %312 : vector<8x128xf32>
    %325 = arith.mulf %324, %322 : vector<8x128xf32>
    %326 = arith.mulf %312, %279 : vector<8x128xf32>
    %327 = arith.addf %325, %326 : vector<8x128xf32>
    %328 = arith.truncf %327 : vector<8x128xf32> to vector<8x128xbf16>
    %c0_167 = arith.constant 0 : index
    %c0_168 = arith.constant 0 : index
    %329 = vector.load %arg2[%c0_167, %c0_168] : memref<128x384xbf16, #tpu.memory_space<vmem>>, vector<128x384xbf16>
    %cst_169 = arith.constant dense<0.000000e+00> : vector<8x384xf32>
    %330 = tpu.matmul %328, %329, %cst_169 {dimension_numbers = #tpu.dot_dimension_numbers<[1], [0], [0], [1], [0, 0, 1, 1], [], []>} : vector<8x128xbf16>, vector<128x384xbf16>, vector<8x384xf32> -> vector<8x384xf32>
    %c0_170 = arith.constant 0 : index
    %c0_171 = arith.constant 0 : index
    %331 = vector.load %arg3[%c0_170, %c0_171] : memref<1x384xf32, #tpu.memory_space<vmem>>, vector<1x384xf32>
    %332 = vector.broadcast %331 : vector<1x384xf32> to vector<8x384xf32>
    %333 = arith.addf %330, %332 : vector<8x384xf32>
    %334 = arith.index_cast %c6_i32 : i32 to index
    %c0_172 = arith.constant 0 : index
    %c0_173 = arith.constant 0 : index
    %335 = vector.load %arg17[%334, %c0_172, %c0_173] : memref<8x8x384xf32, #tpu.memory_space<vmem>>, vector<1x8x384xf32>
    %336 = vector.shape_cast %335 : vector<1x8x384xf32> to vector<8x384xf32>
    %337 = vector.shape_cast %333 : vector<8x384xf32> to vector<1x8x384xf32>
    tpu.vector_store %arg17[%334, %c0_172, %c0_173], %337 {strides = array<i32>} : memref<8x8x384xf32, #tpu.memory_space<vmem>>, vector<1x8x384xf32>,
    %c7_i32 = arith.constant 7 : i32
    %338 = arith.truncf %327 : vector<8x128xf32> to vector<8x128xbf16>
    %339 = arith.index_cast %c7_i32 : i32 to index
    %c0_174 = arith.constant 0 : index
    %c0_175 = arith.constant 0 : index
    %340 = vector.load %arg1[%339, %c0_174, %c0_175] : memref<8x8x384xf32, #tpu.memory_space<vmem>>, vector<1x8x128xf32>
    %341 = vector.shape_cast %340 : vector<1x8x128xf32> to vector<8x128xf32>
    %c0_176 = arith.constant 0 : index
    %c0_177 = arith.constant 0 : index
    %342 = vector.load %arg6[%c0_176, %c0_177] : memref<128x384xbf16, #tpu.memory_space<vmem>>, vector<128x128xbf16>
    %cst_178 = arith.constant dense<0.000000e+00> : vector<8x128xf32>
    %343 = tpu.matmul %338, %342, %cst_178 {dimension_numbers = #tpu.dot_dimension_numbers<[1], [0], [0], [1], [0, 0, 1, 1], [], []>} : vector<8x128xbf16>, vector<128x128xbf16>, vector<8x128xf32> -> vector<8x128xf32>
    %344 = arith.addf %341, %343 : vector<8x128xf32>
    %345 = arith.negf %344 : vector<8x128xf32>
    %346 = math.exp %345 : vector<8x128xf32>
    %cst_179 = arith.constant 1.000000e+00 : f32
    %347 = vector.broadcast %cst_179 : f32 to vector<8x128xf32>
    %348 = arith.addf %347, %346 : vector<8x128xf32>
    %349 = arith.divf %347, %348 : vector<8x128xf32>
    %350 = arith.index_cast %c7_i32 : i32 to index
    %c0_180 = arith.constant 0 : index
    %c128_181 = arith.constant 128 : index
    %351 = vector.load %arg1[%350, %c0_180, %c128_181] : memref<8x8x384xf32, #tpu.memory_space<vmem>>, vector<1x8x128xf32>
    %352 = vector.shape_cast %351 : vector<1x8x128xf32> to vector<8x128xf32>
    %c0_182 = arith.constant 0 : index
    %c128_183 = arith.constant 128 : index
    %353 = vector.load %arg6[%c0_182, %c128_183] : memref<128x384xbf16, #tpu.memory_space<vmem>>, vector<128x128xbf16>
    %cst_184 = arith.constant dense<0.000000e+00> : vector<8x128xf32>
    %354 = tpu.matmul %338, %353, %cst_184 {dimension_numbers = #tpu.dot_dimension_numbers<[1], [0], [0], [1], [0, 0, 1, 1], [], []>} : vector<8x128xbf16>, vector<128x128xbf16>, vector<8x128xf32> -> vector<8x128xf32>
    %355 = arith.addf %352, %354 : vector<8x128xf32>
    %356 = arith.negf %355 : vector<8x128xf32>
    %357 = math.exp %356 : vector<8x128xf32>
    %cst_185 = arith.constant 1.000000e+00 : f32
    %358 = vector.broadcast %cst_185 : f32 to vector<8x128xf32>
    %359 = arith.addf %358, %357 : vector<8x128xf32>
    %360 = arith.divf %358, %359 : vector<8x128xf32>
    %361 = arith.index_cast %c7_i32 : i32 to index
    %c0_186 = arith.constant 0 : index
    %c256_187 = arith.constant 256 : index
    %362 = vector.load %arg1[%361, %c0_186, %c256_187] : memref<8x8x384xf32, #tpu.memory_space<vmem>>, vector<1x8x128xf32>
    %363 = vector.shape_cast %362 : vector<1x8x128xf32> to vector<8x128xf32>
    %c0_188 = arith.constant 0 : index
    %c256_189 = arith.constant 256 : index
    %364 = vector.load %arg6[%c0_188, %c256_189] : memref<128x384xbf16, #tpu.memory_space<vmem>>, vector<128x128xbf16>
    %cst_190 = arith.constant dense<0.000000e+00> : vector<8x128xf32>
    %365 = tpu.matmul %338, %364, %cst_190 {dimension_numbers = #tpu.dot_dimension_numbers<[1], [0], [0], [1], [0, 0, 1, 1], [], []>} : vector<8x128xbf16>, vector<128x128xbf16>, vector<8x128xf32> -> vector<8x128xf32>
    %366 = vector.broadcast %0 : vector<1x128xf32> to vector<8x128xf32>
    %367 = arith.addf %365, %366 : vector<8x128xf32>
    %368 = arith.mulf %349, %367 : vector<8x128xf32>
    %369 = arith.addf %363, %368 : vector<8x128xf32>
    %370 = math.tanh %369 : vector<8x128xf32>
    %cst_191 = arith.constant 1.000000e+00 : f32
    %371 = vector.broadcast %cst_191 : f32 to vector<8x128xf32>
    %372 = arith.subf %371, %360 : vector<8x128xf32>
    %373 = arith.mulf %372, %370 : vector<8x128xf32>
    %374 = arith.mulf %360, %327 : vector<8x128xf32>
    %375 = arith.addf %373, %374 : vector<8x128xf32>
    %376 = arith.truncf %375 : vector<8x128xf32> to vector<8x128xbf16>
    %c0_192 = arith.constant 0 : index
    %c0_193 = arith.constant 0 : index
    %377 = vector.load %arg2[%c0_192, %c0_193] : memref<128x384xbf16, #tpu.memory_space<vmem>>, vector<128x384xbf16>
    %cst_194 = arith.constant dense<0.000000e+00> : vector<8x384xf32>
    %378 = tpu.matmul %376, %377, %cst_194 {dimension_numbers = #tpu.dot_dimension_numbers<[1], [0], [0], [1], [0, 0, 1, 1], [], []>} : vector<8x128xbf16>, vector<128x384xbf16>, vector<8x384xf32> -> vector<8x384xf32>
    %c0_195 = arith.constant 0 : index
    %c0_196 = arith.constant 0 : index
    %379 = vector.load %arg3[%c0_195, %c0_196] : memref<1x384xf32, #tpu.memory_space<vmem>>, vector<1x384xf32>
    %380 = vector.broadcast %379 : vector<1x384xf32> to vector<8x384xf32>
    %381 = arith.addf %378, %380 : vector<8x384xf32>
    %382 = arith.index_cast %c7_i32 : i32 to index
    %c0_197 = arith.constant 0 : index
    %c0_198 = arith.constant 0 : index
    %383 = vector.load %arg17[%382, %c0_197, %c0_198] : memref<8x8x384xf32, #tpu.memory_space<vmem>>, vector<1x8x384xf32>
    %384 = vector.shape_cast %383 : vector<1x8x384xf32> to vector<8x384xf32>
    %385 = vector.shape_cast %381 : vector<8x384xf32> to vector<1x8x384xf32>
    tpu.vector_store %arg17[%382, %c0_197, %c0_198], %385 {strides = array<i32>} : memref<8x8x384xf32, #tpu.memory_space<vmem>>, vector<1x8x384xf32>,
    %c8_i32 = arith.constant 8 : i32
    %c0_199 = arith.constant 0 : index
    %c0_200 = arith.constant 0 : index
    %386 = vector.load %arg9[%c0_199, %c0_200] : memref<1x128xf32, #tpu.memory_space<vmem>>, vector<1x128xf32>
    %cst_201 = arith.constant 0.000000e+00 : f32
    %387 = vector.broadcast %cst_201 : f32 to vector<8x128xf32>
    %c0_i32_202 = arith.constant 0 : i32
    %388 = arith.truncf %387 : vector<8x128xf32> to vector<8x128xbf16>
    %389 = arith.index_cast %c0_i32_202 : i32 to index
    %c0_203 = arith.constant 0 : index
    %c0_204 = arith.constant 0 : index
    %390 = vector.load %arg17[%389, %c0_203, %c0_204] : memref<8x8x384xf32, #tpu.memory_space<vmem>>, vector<1x8x128xf32>
    %391 = vector.shape_cast %390 : vector<1x8x128xf32> to vector<8x128xf32>
    %c0_205 = arith.constant 0 : index
    %c0_206 = arith.constant 0 : index
    %392 = vector.load %arg8[%c0_205, %c0_206] : memref<128x384xbf16, #tpu.memory_space<vmem>>, vector<128x128xbf16>
    %cst_207 = arith.constant dense<0.000000e+00> : vector<8x128xf32>
    %393 = tpu.matmul %388, %392, %cst_207 {dimension_numbers = #tpu.dot_dimension_numbers<[1], [0], [0], [1], [0, 0, 1, 1], [], []>} : vector<8x128xbf16>, vector<128x128xbf16>, vector<8x128xf32> -> vector<8x128xf32>
    %394 = arith.addf %391, %393 : vector<8x128xf32>
    %395 = arith.negf %394 : vector<8x128xf32>
    %396 = math.exp %395 : vector<8x128xf32>
    %cst_208 = arith.constant 1.000000e+00 : f32
    %397 = vector.broadcast %cst_208 : f32 to vector<8x128xf32>
    %398 = arith.addf %397, %396 : vector<8x128xf32>
    %399 = arith.divf %397, %398 : vector<8x128xf32>
    %400 = arith.index_cast %c0_i32_202 : i32 to index
    %c0_209 = arith.constant 0 : index
    %c128_210 = arith.constant 128 : index
    %401 = vector.load %arg17[%400, %c0_209, %c128_210] : memref<8x8x384xf32, #tpu.memory_space<vmem>>, vector<1x8x128xf32>
    %402 = vector.shape_cast %401 : vector<1x8x128xf32> to vector<8x128xf32>
    %c0_211 = arith.constant 0 : index
    %c128_212 = arith.constant 128 : index
    %403 = vector.load %arg8[%c0_211, %c128_212] : memref<128x384xbf16, #tpu.memory_space<vmem>>, vector<128x128xbf16>
    %cst_213 = arith.constant dense<0.000000e+00> : vector<8x128xf32>
    %404 = tpu.matmul %388, %403, %cst_213 {dimension_numbers = #tpu.dot_dimension_numbers<[1], [0], [0], [1], [0, 0, 1, 1], [], []>} : vector<8x128xbf16>, vector<128x128xbf16>, vector<8x128xf32> -> vector<8x128xf32>
    %405 = arith.addf %402, %404 : vector<8x128xf32>
    %406 = arith.negf %405 : vector<8x128xf32>
    %407 = math.exp %406 : vector<8x128xf32>
    %cst_214 = arith.constant 1.000000e+00 : f32
    %408 = vector.broadcast %cst_214 : f32 to vector<8x128xf32>
    %409 = arith.addf %408, %407 : vector<8x128xf32>
    %410 = arith.divf %408, %409 : vector<8x128xf32>
    %411 = arith.index_cast %c0_i32_202 : i32 to index
    %c0_215 = arith.constant 0 : index
    %c256_216 = arith.constant 256 : index
    %412 = vector.load %arg17[%411, %c0_215, %c256_216] : memref<8x8x384xf32, #tpu.memory_space<vmem>>, vector<1x8x128xf32>
    %413 = vector.shape_cast %412 : vector<1x8x128xf32> to vector<8x128xf32>
    %c0_217 = arith.constant 0 : index
    %c256_218 = arith.constant 256 : index
    %414 = vector.load %arg8[%c0_217, %c256_218] : memref<128x384xbf16, #tpu.memory_space<vmem>>, vector<128x128xbf16>
    %cst_219 = arith.constant dense<0.000000e+00> : vector<8x128xf32>
    %415 = tpu.matmul %388, %414, %cst_219 {dimension_numbers = #tpu.dot_dimension_numbers<[1], [0], [0], [1], [0, 0, 1, 1], [], []>} : vector<8x128xbf16>, vector<128x128xbf16>, vector<8x128xf32> -> vector<8x128xf32>
    %416 = vector.broadcast %386 : vector<1x128xf32> to vector<8x128xf32>
    %417 = arith.addf %415, %416 : vector<8x128xf32>
    %418 = arith.mulf %399, %417 : vector<8x128xf32>
    %419 = arith.addf %413, %418 : vector<8x128xf32>
    %420 = math.tanh %419 : vector<8x128xf32>
    %cst_220 = arith.constant 1.000000e+00 : f32
    %421 = vector.broadcast %cst_220 : f32 to vector<8x128xf32>
    %422 = arith.subf %421, %410 : vector<8x128xf32>
    %423 = arith.mulf %422, %420 : vector<8x128xf32>
    %424 = arith.mulf %410, %387 : vector<8x128xf32>
    %425 = arith.addf %423, %424 : vector<8x128xf32>
    %426 = arith.truncf %425 : vector<8x128xf32> to vector<8x128xbf16>
    %c0_221 = arith.constant 0 : index
    %c0_222 = arith.constant 0 : index
    %427 = vector.load %arg4[%c0_221, %c0_222] : memref<128x384xbf16, #tpu.memory_space<vmem>>, vector<128x384xbf16>
    %cst_223 = arith.constant dense<0.000000e+00> : vector<8x384xf32>
    %428 = tpu.matmul %426, %427, %cst_223 {dimension_numbers = #tpu.dot_dimension_numbers<[1], [0], [0], [1], [0, 0, 1, 1], [], []>} : vector<8x128xbf16>, vector<128x384xbf16>, vector<8x384xf32> -> vector<8x384xf32>
    %c0_224 = arith.constant 0 : index
    %c0_225 = arith.constant 0 : index
    %429 = vector.load %arg5[%c0_224, %c0_225] : memref<1x384xf32, #tpu.memory_space<vmem>>, vector<1x384xf32>
    %430 = vector.broadcast %429 : vector<1x384xf32> to vector<8x384xf32>
    %431 = arith.addf %428, %430 : vector<8x384xf32>
    %432 = arith.index_cast %c0_i32_202 : i32 to index
    %c0_226 = arith.constant 0 : index
    %c0_227 = arith.constant 0 : index
    %433 = vector.load %arg18[%432, %c0_226, %c0_227] : memref<8x8x384xf32, #tpu.memory_space<vmem>>, vector<1x8x384xf32>
    %434 = vector.shape_cast %433 : vector<1x8x384xf32> to vector<8x384xf32>
    %435 = vector.shape_cast %431 : vector<8x384xf32> to vector<1x8x384xf32>
    tpu.vector_store %arg18[%432, %c0_226, %c0_227], %435 {strides = array<i32>} : memref<8x8x384xf32, #tpu.memory_space<vmem>>, vector<1x8x384xf32>,
    %c1_i32_228 = arith.constant 1 : i32
    %436 = arith.truncf %425 : vector<8x128xf32> to vector<8x128xbf16>
    %437 = arith.index_cast %c1_i32_228 : i32 to index
    %c0_229 = arith.constant 0 : index
    %c0_230 = arith.constant 0 : index
    %438 = vector.load %arg17[%437, %c0_229, %c0_230] : memref<8x8x384xf32, #tpu.memory_space<vmem>>, vector<1x8x128xf32>
    %439 = vector.shape_cast %438 : vector<1x8x128xf32> to vector<8x128xf32>
    %c0_231 = arith.constant 0 : index
    %c0_232 = arith.constant 0 : index
    %440 = vector.load %arg8[%c0_231, %c0_232] : memref<128x384xbf16, #tpu.memory_space<vmem>>, vector<128x128xbf16>
    %cst_233 = arith.constant dense<0.000000e+00> : vector<8x128xf32>
    %441 = tpu.matmul %436, %440, %cst_233 {dimension_numbers = #tpu.dot_dimension_numbers<[1], [0], [0], [1], [0, 0, 1, 1], [], []>} : vector<8x128xbf16>, vector<128x128xbf16>, vector<8x128xf32> -> vector<8x128xf32>
    %442 = arith.addf %439, %441 : vector<8x128xf32>
    %443 = arith.negf %442 : vector<8x128xf32>
    %444 = math.exp %443 : vector<8x128xf32>
    %cst_234 = arith.constant 1.000000e+00 : f32
    %445 = vector.broadcast %cst_234 : f32 to vector<8x128xf32>
    %446 = arith.addf %445, %444 : vector<8x128xf32>
    %447 = arith.divf %445, %446 : vector<8x128xf32>
    %448 = arith.index_cast %c1_i32_228 : i32 to index
    %c0_235 = arith.constant 0 : index
    %c128_236 = arith.constant 128 : index
    %449 = vector.load %arg17[%448, %c0_235, %c128_236] : memref<8x8x384xf32, #tpu.memory_space<vmem>>, vector<1x8x128xf32>
    %450 = vector.shape_cast %449 : vector<1x8x128xf32> to vector<8x128xf32>
    %c0_237 = arith.constant 0 : index
    %c128_238 = arith.constant 128 : index
    %451 = vector.load %arg8[%c0_237, %c128_238] : memref<128x384xbf16, #tpu.memory_space<vmem>>, vector<128x128xbf16>
    %cst_239 = arith.constant dense<0.000000e+00> : vector<8x128xf32>
    %452 = tpu.matmul %436, %451, %cst_239 {dimension_numbers = #tpu.dot_dimension_numbers<[1], [0], [0], [1], [0, 0, 1, 1], [], []>} : vector<8x128xbf16>, vector<128x128xbf16>, vector<8x128xf32> -> vector<8x128xf32>
    %453 = arith.addf %450, %452 : vector<8x128xf32>
    %454 = arith.negf %453 : vector<8x128xf32>
    %455 = math.exp %454 : vector<8x128xf32>
    %cst_240 = arith.constant 1.000000e+00 : f32
    %456 = vector.broadcast %cst_240 : f32 to vector<8x128xf32>
    %457 = arith.addf %456, %455 : vector<8x128xf32>
    %458 = arith.divf %456, %457 : vector<8x128xf32>
    %459 = arith.index_cast %c1_i32_228 : i32 to index
    %c0_241 = arith.constant 0 : index
    %c256_242 = arith.constant 256 : index
    %460 = vector.load %arg17[%459, %c0_241, %c256_242] : memref<8x8x384xf32, #tpu.memory_space<vmem>>, vector<1x8x128xf32>
    %461 = vector.shape_cast %460 : vector<1x8x128xf32> to vector<8x128xf32>
    %c0_243 = arith.constant 0 : index
    %c256_244 = arith.constant 256 : index
    %462 = vector.load %arg8[%c0_243, %c256_244] : memref<128x384xbf16, #tpu.memory_space<vmem>>, vector<128x128xbf16>
    %cst_245 = arith.constant dense<0.000000e+00> : vector<8x128xf32>
    %463 = tpu.matmul %436, %462, %cst_245 {dimension_numbers = #tpu.dot_dimension_numbers<[1], [0], [0], [1], [0, 0, 1, 1], [], []>} : vector<8x128xbf16>, vector<128x128xbf16>, vector<8x128xf32> -> vector<8x128xf32>
    %464 = vector.broadcast %386 : vector<1x128xf32> to vector<8x128xf32>
    %465 = arith.addf %463, %464 : vector<8x128xf32>
    %466 = arith.mulf %447, %465 : vector<8x128xf32>
    %467 = arith.addf %461, %466 : vector<8x128xf32>
    %468 = math.tanh %467 : vector<8x128xf32>
    %cst_246 = arith.constant 1.000000e+00 : f32
    %469 = vector.broadcast %cst_246 : f32 to vector<8x128xf32>
    %470 = arith.subf %469, %458 : vector<8x128xf32>
    %471 = arith.mulf %470, %468 : vector<8x128xf32>
    %472 = arith.mulf %458, %425 : vector<8x128xf32>
    %473 = arith.addf %471, %472 : vector<8x128xf32>
    %474 = arith.truncf %473 : vector<8x128xf32> to vector<8x128xbf16>
    %c0_247 = arith.constant 0 : index
    %c0_248 = arith.constant 0 : index
    %475 = vector.load %arg4[%c0_247, %c0_248] : memref<128x384xbf16, #tpu.memory_space<vmem>>, vector<128x384xbf16>
    %cst_249 = arith.constant dense<0.000000e+00> : vector<8x384xf32>
    %476 = tpu.matmul %474, %475, %cst_249 {dimension_numbers = #tpu.dot_dimension_numbers<[1], [0], [0], [1], [0, 0, 1, 1], [], []>} : vector<8x128xbf16>, vector<128x384xbf16>, vector<8x384xf32> -> vector<8x384xf32>
    %c0_250 = arith.constant 0 : index
    %c0_251 = arith.constant 0 : index
    %477 = vector.load %arg5[%c0_250, %c0_251] : memref<1x384xf32, #tpu.memory_space<vmem>>, vector<1x384xf32>
    %478 = vector.broadcast %477 : vector<1x384xf32> to vector<8x384xf32>
    %479 = arith.addf %476, %478 : vector<8x384xf32>
    %480 = arith.index_cast %c1_i32_228 : i32 to index
    %c0_252 = arith.constant 0 : index
    %c0_253 = arith.constant 0 : index
    %481 = vector.load %arg18[%480, %c0_252, %c0_253] : memref<8x8x384xf32, #tpu.memory_space<vmem>>, vector<1x8x384xf32>
    %482 = vector.shape_cast %481 : vector<1x8x384xf32> to vector<8x384xf32>
    %483 = vector.shape_cast %479 : vector<8x384xf32> to vector<1x8x384xf32>
    tpu.vector_store %arg18[%480, %c0_252, %c0_253], %483 {strides = array<i32>} : memref<8x8x384xf32, #tpu.memory_space<vmem>>, vector<1x8x384xf32>,
    %c2_i32_254 = arith.constant 2 : i32
    %484 = arith.truncf %473 : vector<8x128xf32> to vector<8x128xbf16>
    %485 = arith.index_cast %c2_i32_254 : i32 to index
    %c0_255 = arith.constant 0 : index
    %c0_256 = arith.constant 0 : index
    %486 = vector.load %arg17[%485, %c0_255, %c0_256] : memref<8x8x384xf32, #tpu.memory_space<vmem>>, vector<1x8x128xf32>
    %487 = vector.shape_cast %486 : vector<1x8x128xf32> to vector<8x128xf32>
    %c0_257 = arith.constant 0 : index
    %c0_258 = arith.constant 0 : index
    %488 = vector.load %arg8[%c0_257, %c0_258] : memref<128x384xbf16, #tpu.memory_space<vmem>>, vector<128x128xbf16>
    %cst_259 = arith.constant dense<0.000000e+00> : vector<8x128xf32>
    %489 = tpu.matmul %484, %488, %cst_259 {dimension_numbers = #tpu.dot_dimension_numbers<[1], [0], [0], [1], [0, 0, 1, 1], [], []>} : vector<8x128xbf16>, vector<128x128xbf16>, vector<8x128xf32> -> vector<8x128xf32>
    %490 = arith.addf %487, %489 : vector<8x128xf32>
    %491 = arith.negf %490 : vector<8x128xf32>
    %492 = math.exp %491 : vector<8x128xf32>
    %cst_260 = arith.constant 1.000000e+00 : f32
    %493 = vector.broadcast %cst_260 : f32 to vector<8x128xf32>
    %494 = arith.addf %493, %492 : vector<8x128xf32>
    %495 = arith.divf %493, %494 : vector<8x128xf32>
    %496 = arith.index_cast %c2_i32_254 : i32 to index
    %c0_261 = arith.constant 0 : index
    %c128_262 = arith.constant 128 : index
    %497 = vector.load %arg17[%496, %c0_261, %c128_262] : memref<8x8x384xf32, #tpu.memory_space<vmem>>, vector<1x8x128xf32>
    %498 = vector.shape_cast %497 : vector<1x8x128xf32> to vector<8x128xf32>
    %c0_263 = arith.constant 0 : index
    %c128_264 = arith.constant 128 : index
    %499 = vector.load %arg8[%c0_263, %c128_264] : memref<128x384xbf16, #tpu.memory_space<vmem>>, vector<128x128xbf16>
    %cst_265 = arith.constant dense<0.000000e+00> : vector<8x128xf32>
    %500 = tpu.matmul %484, %499, %cst_265 {dimension_numbers = #tpu.dot_dimension_numbers<[1], [0], [0], [1], [0, 0, 1, 1], [], []>} : vector<8x128xbf16>, vector<128x128xbf16>, vector<8x128xf32> -> vector<8x128xf32>
    %501 = arith.addf %498, %500 : vector<8x128xf32>
    %502 = arith.negf %501 : vector<8x128xf32>
    %503 = math.exp %502 : vector<8x128xf32>
    %cst_266 = arith.constant 1.000000e+00 : f32
    %504 = vector.broadcast %cst_266 : f32 to vector<8x128xf32>
    %505 = arith.addf %504, %503 : vector<8x128xf32>
    %506 = arith.divf %504, %505 : vector<8x128xf32>
    %507 = arith.index_cast %c2_i32_254 : i32 to index
    %c0_267 = arith.constant 0 : index
    %c256_268 = arith.constant 256 : index
    %508 = vector.load %arg17[%507, %c0_267, %c256_268] : memref<8x8x384xf32, #tpu.memory_space<vmem>>, vector<1x8x128xf32>
    %509 = vector.shape_cast %508 : vector<1x8x128xf32> to vector<8x128xf32>
    %c0_269 = arith.constant 0 : index
    %c256_270 = arith.constant 256 : index
    %510 = vector.load %arg8[%c0_269, %c256_270] : memref<128x384xbf16, #tpu.memory_space<vmem>>, vector<128x128xbf16>
    %cst_271 = arith.constant dense<0.000000e+00> : vector<8x128xf32>
    %511 = tpu.matmul %484, %510, %cst_271 {dimension_numbers = #tpu.dot_dimension_numbers<[1], [0], [0], [1], [0, 0, 1, 1], [], []>} : vector<8x128xbf16>, vector<128x128xbf16>, vector<8x128xf32> -> vector<8x128xf32>
    %512 = vector.broadcast %386 : vector<1x128xf32> to vector<8x128xf32>
    %513 = arith.addf %511, %512 : vector<8x128xf32>
    %514 = arith.mulf %495, %513 : vector<8x128xf32>
    %515 = arith.addf %509, %514 : vector<8x128xf32>
    %516 = math.tanh %515 : vector<8x128xf32>
    %cst_272 = arith.constant 1.000000e+00 : f32
    %517 = vector.broadcast %cst_272 : f32 to vector<8x128xf32>
    %518 = arith.subf %517, %506 : vector<8x128xf32>
    %519 = arith.mulf %518, %516 : vector<8x128xf32>
    %520 = arith.mulf %506, %473 : vector<8x128xf32>
    %521 = arith.addf %519, %520 : vector<8x128xf32>
    %522 = arith.truncf %521 : vector<8x128xf32> to vector<8x128xbf16>
    %c0_273 = arith.constant 0 : index
    %c0_274 = arith.constant 0 : index
    %523 = vector.load %arg4[%c0_273, %c0_274] : memref<128x384xbf16, #tpu.memory_space<vmem>>, vector<128x384xbf16>
    %cst_275 = arith.constant dense<0.000000e+00> : vector<8x384xf32>
    %524 = tpu.matmul %522, %523, %cst_275 {dimension_numbers = #tpu.dot_dimension_numbers<[1], [0], [0], [1], [0, 0, 1, 1], [], []>} : vector<8x128xbf16>, vector<128x384xbf16>, vector<8x384xf32> -> vector<8x384xf32>
    %c0_276 = arith.constant 0 : index
    %c0_277 = arith.constant 0 : index
    %525 = vector.load %arg5[%c0_276, %c0_277] : memref<1x384xf32, #tpu.memory_space<vmem>>, vector<1x384xf32>
    %526 = vector.broadcast %525 : vector<1x384xf32> to vector<8x384xf32>
    %527 = arith.addf %524, %526 : vector<8x384xf32>
    %528 = arith.index_cast %c2_i32_254 : i32 to index
    %c0_278 = arith.constant 0 : index
    %c0_279 = arith.constant 0 : index
    %529 = vector.load %arg18[%528, %c0_278, %c0_279] : memref<8x8x384xf32, #tpu.memory_space<vmem>>, vector<1x8x384xf32>
    %530 = vector.shape_cast %529 : vector<1x8x384xf32> to vector<8x384xf32>
    %531 = vector.shape_cast %527 : vector<8x384xf32> to vector<1x8x384xf32>
    tpu.vector_store %arg18[%528, %c0_278, %c0_279], %531 {strides = array<i32>} : memref<8x8x384xf32, #tpu.memory_space<vmem>>, vector<1x8x384xf32>,
    %c3_i32_280 = arith.constant 3 : i32
    %532 = arith.truncf %521 : vector<8x128xf32> to vector<8x128xbf16>
    %533 = arith.index_cast %c3_i32_280 : i32 to index
    %c0_281 = arith.constant 0 : index
    %c0_282 = arith.constant 0 : index
    %534 = vector.load %arg17[%533, %c0_281, %c0_282] : memref<8x8x384xf32, #tpu.memory_space<vmem>>, vector<1x8x128xf32>
    %535 = vector.shape_cast %534 : vector<1x8x128xf32> to vector<8x128xf32>
    %c0_283 = arith.constant 0 : index
    %c0_284 = arith.constant 0 : index
    %536 = vector.load %arg8[%c0_283, %c0_284] : memref<128x384xbf16, #tpu.memory_space<vmem>>, vector<128x128xbf16>
    %cst_285 = arith.constant dense<0.000000e+00> : vector<8x128xf32>
    %537 = tpu.matmul %532, %536, %cst_285 {dimension_numbers = #tpu.dot_dimension_numbers<[1], [0], [0], [1], [0, 0, 1, 1], [], []>} : vector<8x128xbf16>, vector<128x128xbf16>, vector<8x128xf32> -> vector<8x128xf32>
    %538 = arith.addf %535, %537 : vector<8x128xf32>
    %539 = arith.negf %538 : vector<8x128xf32>
    %540 = math.exp %539 : vector<8x128xf32>
    %cst_286 = arith.constant 1.000000e+00 : f32
    %541 = vector.broadcast %cst_286 : f32 to vector<8x128xf32>
    %542 = arith.addf %541, %540 : vector<8x128xf32>
    %543 = arith.divf %541, %542 : vector<8x128xf32>
    %544 = arith.index_cast %c3_i32_280 : i32 to index
    %c0_287 = arith.constant 0 : index
    %c128_288 = arith.constant 128 : index
    %545 = vector.load %arg17[%544, %c0_287, %c128_288] : memref<8x8x384xf32, #tpu.memory_space<vmem>>, vector<1x8x128xf32>
    %546 = vector.shape_cast %545 : vector<1x8x128xf32> to vector<8x128xf32>
    %c0_289 = arith.constant 0 : index
    %c128_290 = arith.constant 128 : index
    %547 = vector.load %arg8[%c0_289, %c128_290] : memref<128x384xbf16, #tpu.memory_space<vmem>>, vector<128x128xbf16>
    %cst_291 = arith.constant dense<0.000000e+00> : vector<8x128xf32>
    %548 = tpu.matmul %532, %547, %cst_291 {dimension_numbers = #tpu.dot_dimension_numbers<[1], [0], [0], [1], [0, 0, 1, 1], [], []>} : vector<8x128xbf16>, vector<128x128xbf16>, vector<8x128xf32> -> vector<8x128xf32>
    %549 = arith.addf %546, %548 : vector<8x128xf32>
    %550 = arith.negf %549 : vector<8x128xf32>
    %551 = math.exp %550 : vector<8x128xf32>
    %cst_292 = arith.constant 1.000000e+00 : f32
    %552 = vector.broadcast %cst_292 : f32 to vector<8x128xf32>
    %553 = arith.addf %552, %551 : vector<8x128xf32>
    %554 = arith.divf %552, %553 : vector<8x128xf32>
    %555 = arith.index_cast %c3_i32_280 : i32 to index
    %c0_293 = arith.constant 0 : index
    %c256_294 = arith.constant 256 : index
    %556 = vector.load %arg17[%555, %c0_293, %c256_294] : memref<8x8x384xf32, #tpu.memory_space<vmem>>, vector<1x8x128xf32>
    %557 = vector.shape_cast %556 : vector<1x8x128xf32> to vector<8x128xf32>
    %c0_295 = arith.constant 0 : index
    %c256_296 = arith.constant 256 : index
    %558 = vector.load %arg8[%c0_295, %c256_296] : memref<128x384xbf16, #tpu.memory_space<vmem>>, vector<128x128xbf16>
    %cst_297 = arith.constant dense<0.000000e+00> : vector<8x128xf32>
    %559 = tpu.matmul %532, %558, %cst_297 {dimension_numbers = #tpu.dot_dimension_numbers<[1], [0], [0], [1], [0, 0, 1, 1], [], []>} : vector<8x128xbf16>, vector<128x128xbf16>, vector<8x128xf32> -> vector<8x128xf32>
    %560 = vector.broadcast %386 : vector<1x128xf32> to vector<8x128xf32>
    %561 = arith.addf %559, %560 : vector<8x128xf32>
    %562 = arith.mulf %543, %561 : vector<8x128xf32>
    %563 = arith.addf %557, %562 : vector<8x128xf32>
    %564 = math.tanh %563 : vector<8x128xf32>
    %cst_298 = arith.constant 1.000000e+00 : f32
    %565 = vector.broadcast %cst_298 : f32 to vector<8x128xf32>
    %566 = arith.subf %565, %554 : vector<8x128xf32>
    %567 = arith.mulf %566, %564 : vector<8x128xf32>
    %568 = arith.mulf %554, %521 : vector<8x128xf32>
    %569 = arith.addf %567, %568 : vector<8x128xf32>
    %570 = arith.truncf %569 : vector<8x128xf32> to vector<8x128xbf16>
    %c0_299 = arith.constant 0 : index
    %c0_300 = arith.constant 0 : index
    %571 = vector.load %arg4[%c0_299, %c0_300] : memref<128x384xbf16, #tpu.memory_space<vmem>>, vector<128x384xbf16>
    %cst_301 = arith.constant dense<0.000000e+00> : vector<8x384xf32>
    %572 = tpu.matmul %570, %571, %cst_301 {dimension_numbers = #tpu.dot_dimension_numbers<[1], [0], [0], [1], [0, 0, 1, 1], [], []>} : vector<8x128xbf16>, vector<128x384xbf16>, vector<8x384xf32> -> vector<8x384xf32>
    %c0_302 = arith.constant 0 : index
    %c0_303 = arith.constant 0 : index
    %573 = vector.load %arg5[%c0_302, %c0_303] : memref<1x384xf32, #tpu.memory_space<vmem>>, vector<1x384xf32>
    %574 = vector.broadcast %573 : vector<1x384xf32> to vector<8x384xf32>
    %575 = arith.addf %572, %574 : vector<8x384xf32>
    %576 = arith.index_cast %c3_i32_280 : i32 to index
    %c0_304 = arith.constant 0 : index
    %c0_305 = arith.constant 0 : index
    %577 = vector.load %arg18[%576, %c0_304, %c0_305] : memref<8x8x384xf32, #tpu.memory_space<vmem>>, vector<1x8x384xf32>
    %578 = vector.shape_cast %577 : vector<1x8x384xf32> to vector<8x384xf32>
    %579 = vector.shape_cast %575 : vector<8x384xf32> to vector<1x8x384xf32>
    tpu.vector_store %arg18[%576, %c0_304, %c0_305], %579 {strides = array<i32>} : memref<8x8x384xf32, #tpu.memory_space<vmem>>, vector<1x8x384xf32>,
    %c4_i32_306 = arith.constant 4 : i32
    %580 = arith.truncf %569 : vector<8x128xf32> to vector<8x128xbf16>
    %581 = arith.index_cast %c4_i32_306 : i32 to index
    %c0_307 = arith.constant 0 : index
    %c0_308 = arith.constant 0 : index
    %582 = vector.load %arg17[%581, %c0_307, %c0_308] : memref<8x8x384xf32, #tpu.memory_space<vmem>>, vector<1x8x128xf32>
    %583 = vector.shape_cast %582 : vector<1x8x128xf32> to vector<8x128xf32>
    %c0_309 = arith.constant 0 : index
    %c0_310 = arith.constant 0 : index
    %584 = vector.load %arg8[%c0_309, %c0_310] : memref<128x384xbf16, #tpu.memory_space<vmem>>, vector<128x128xbf16>
    %cst_311 = arith.constant dense<0.000000e+00> : vector<8x128xf32>
    %585 = tpu.matmul %580, %584, %cst_311 {dimension_numbers = #tpu.dot_dimension_numbers<[1], [0], [0], [1], [0, 0, 1, 1], [], []>} : vector<8x128xbf16>, vector<128x128xbf16>, vector<8x128xf32> -> vector<8x128xf32>
    %586 = arith.addf %583, %585 : vector<8x128xf32>
    %587 = arith.negf %586 : vector<8x128xf32>
    %588 = math.exp %587 : vector<8x128xf32>
    %cst_312 = arith.constant 1.000000e+00 : f32
    %589 = vector.broadcast %cst_312 : f32 to vector<8x128xf32>
    %590 = arith.addf %589, %588 : vector<8x128xf32>
    %591 = arith.divf %589, %590 : vector<8x128xf32>
    %592 = arith.index_cast %c4_i32_306 : i32 to index
    %c0_313 = arith.constant 0 : index
    %c128_314 = arith.constant 128 : index
    %593 = vector.load %arg17[%592, %c0_313, %c128_314] : memref<8x8x384xf32, #tpu.memory_space<vmem>>, vector<1x8x128xf32>
    %594 = vector.shape_cast %593 : vector<1x8x128xf32> to vector<8x128xf32>
    %c0_315 = arith.constant 0 : index
    %c128_316 = arith.constant 128 : index
    %595 = vector.load %arg8[%c0_315, %c128_316] : memref<128x384xbf16, #tpu.memory_space<vmem>>, vector<128x128xbf16>
    %cst_317 = arith.constant dense<0.000000e+00> : vector<8x128xf32>
    %596 = tpu.matmul %580, %595, %cst_317 {dimension_numbers = #tpu.dot_dimension_numbers<[1], [0], [0], [1], [0, 0, 1, 1], [], []>} : vector<8x128xbf16>, vector<128x128xbf16>, vector<8x128xf32> -> vector<8x128xf32>
    %597 = arith.addf %594, %596 : vector<8x128xf32>
    %598 = arith.negf %597 : vector<8x128xf32>
    %599 = math.exp %598 : vector<8x128xf32>
    %cst_318 = arith.constant 1.000000e+00 : f32
    %600 = vector.broadcast %cst_318 : f32 to vector<8x128xf32>
    %601 = arith.addf %600, %599 : vector<8x128xf32>
    %602 = arith.divf %600, %601 : vector<8x128xf32>
    %603 = arith.index_cast %c4_i32_306 : i32 to index
    %c0_319 = arith.constant 0 : index
    %c256_320 = arith.constant 256 : index
    %604 = vector.load %arg17[%603, %c0_319, %c256_320] : memref<8x8x384xf32, #tpu.memory_space<vmem>>, vector<1x8x128xf32>
    %605 = vector.shape_cast %604 : vector<1x8x128xf32> to vector<8x128xf32>
    %c0_321 = arith.constant 0 : index
    %c256_322 = arith.constant 256 : index
    %606 = vector.load %arg8[%c0_321, %c256_322] : memref<128x384xbf16, #tpu.memory_space<vmem>>, vector<128x128xbf16>
    %cst_323 = arith.constant dense<0.000000e+00> : vector<8x128xf32>
    %607 = tpu.matmul %580, %606, %cst_323 {dimension_numbers = #tpu.dot_dimension_numbers<[1], [0], [0], [1], [0, 0, 1, 1], [], []>} : vector<8x128xbf16>, vector<128x128xbf16>, vector<8x128xf32> -> vector<8x128xf32>
    %608 = vector.broadcast %386 : vector<1x128xf32> to vector<8x128xf32>
    %609 = arith.addf %607, %608 : vector<8x128xf32>
    %610 = arith.mulf %591, %609 : vector<8x128xf32>
    %611 = arith.addf %605, %610 : vector<8x128xf32>
    %612 = math.tanh %611 : vector<8x128xf32>
    %cst_324 = arith.constant 1.000000e+00 : f32
    %613 = vector.broadcast %cst_324 : f32 to vector<8x128xf32>
    %614 = arith.subf %613, %602 : vector<8x128xf32>
    %615 = arith.mulf %614, %612 : vector<8x128xf32>
    %616 = arith.mulf %602, %569 : vector<8x128xf32>
    %617 = arith.addf %615, %616 : vector<8x128xf32>
    %618 = arith.truncf %617 : vector<8x128xf32> to vector<8x128xbf16>
    %c0_325 = arith.constant 0 : index
    %c0_326 = arith.constant 0 : index
    %619 = vector.load %arg4[%c0_325, %c0_326] : memref<128x384xbf16, #tpu.memory_space<vmem>>, vector<128x384xbf16>
    %cst_327 = arith.constant dense<0.000000e+00> : vector<8x384xf32>
    %620 = tpu.matmul %618, %619, %cst_327 {dimension_numbers = #tpu.dot_dimension_numbers<[1], [0], [0], [1], [0, 0, 1, 1], [], []>} : vector<8x128xbf16>, vector<128x384xbf16>, vector<8x384xf32> -> vector<8x384xf32>
    %c0_328 = arith.constant 0 : index
    %c0_329 = arith.constant 0 : index
    %621 = vector.load %arg5[%c0_328, %c0_329] : memref<1x384xf32, #tpu.memory_space<vmem>>, vector<1x384xf32>
    %622 = vector.broadcast %621 : vector<1x384xf32> to vector<8x384xf32>
    %623 = arith.addf %620, %622 : vector<8x384xf32>
    %624 = arith.index_cast %c4_i32_306 : i32 to index
    %c0_330 = arith.constant 0 : index
    %c0_331 = arith.constant 0 : index
    %625 = vector.load %arg18[%624, %c0_330, %c0_331] : memref<8x8x384xf32, #tpu.memory_space<vmem>>, vector<1x8x384xf32>
    %626 = vector.shape_cast %625 : vector<1x8x384xf32> to vector<8x384xf32>
    %627 = vector.shape_cast %623 : vector<8x384xf32> to vector<1x8x384xf32>
    tpu.vector_store %arg18[%624, %c0_330, %c0_331], %627 {strides = array<i32>} : memref<8x8x384xf32, #tpu.memory_space<vmem>>, vector<1x8x384xf32>,
    %c5_i32_332 = arith.constant 5 : i32
    %628 = arith.truncf %617 : vector<8x128xf32> to vector<8x128xbf16>
    %629 = arith.index_cast %c5_i32_332 : i32 to index
    %c0_333 = arith.constant 0 : index
    %c0_334 = arith.constant 0 : index
    %630 = vector.load %arg17[%629, %c0_333, %c0_334] : memref<8x8x384xf32, #tpu.memory_space<vmem>>, vector<1x8x128xf32>
    %631 = vector.shape_cast %630 : vector<1x8x128xf32> to vector<8x128xf32>
    %c0_335 = arith.constant 0 : index
    %c0_336 = arith.constant 0 : index
    %632 = vector.load %arg8[%c0_335, %c0_336] : memref<128x384xbf16, #tpu.memory_space<vmem>>, vector<128x128xbf16>
    %cst_337 = arith.constant dense<0.000000e+00> : vector<8x128xf32>
    %633 = tpu.matmul %628, %632, %cst_337 {dimension_numbers = #tpu.dot_dimension_numbers<[1], [0], [0], [1], [0, 0, 1, 1], [], []>} : vector<8x128xbf16>, vector<128x128xbf16>, vector<8x128xf32> -> vector<8x128xf32>
    %634 = arith.addf %631, %633 : vector<8x128xf32>
    %635 = arith.negf %634 : vector<8x128xf32>
    %636 = math.exp %635 : vector<8x128xf32>
    %cst_338 = arith.constant 1.000000e+00 : f32
    %637 = vector.broadcast %cst_338 : f32 to vector<8x128xf32>
    %638 = arith.addf %637, %636 : vector<8x128xf32>
    %639 = arith.divf %637, %638 : vector<8x128xf32>
    %640 = arith.index_cast %c5_i32_332 : i32 to index
    %c0_339 = arith.constant 0 : index
    %c128_340 = arith.constant 128 : index
    %641 = vector.load %arg17[%640, %c0_339, %c128_340] : memref<8x8x384xf32, #tpu.memory_space<vmem>>, vector<1x8x128xf32>
    %642 = vector.shape_cast %641 : vector<1x8x128xf32> to vector<8x128xf32>
    %c0_341 = arith.constant 0 : index
    %c128_342 = arith.constant 128 : index
    %643 = vector.load %arg8[%c0_341, %c128_342] : memref<128x384xbf16, #tpu.memory_space<vmem>>, vector<128x128xbf16>
    %cst_343 = arith.constant dense<0.000000e+00> : vector<8x128xf32>
    %644 = tpu.matmul %628, %643, %cst_343 {dimension_numbers = #tpu.dot_dimension_numbers<[1], [0], [0], [1], [0, 0, 1, 1], [], []>} : vector<8x128xbf16>, vector<128x128xbf16>, vector<8x128xf32> -> vector<8x128xf32>
    %645 = arith.addf %642, %644 : vector<8x128xf32>
    %646 = arith.negf %645 : vector<8x128xf32>
    %647 = math.exp %646 : vector<8x128xf32>
    %cst_344 = arith.constant 1.000000e+00 : f32
    %648 = vector.broadcast %cst_344 : f32 to vector<8x128xf32>
    %649 = arith.addf %648, %647 : vector<8x128xf32>
    %650 = arith.divf %648, %649 : vector<8x128xf32>
    %651 = arith.index_cast %c5_i32_332 : i32 to index
    %c0_345 = arith.constant 0 : index
    %c256_346 = arith.constant 256 : index
    %652 = vector.load %arg17[%651, %c0_345, %c256_346] : memref<8x8x384xf32, #tpu.memory_space<vmem>>, vector<1x8x128xf32>
    %653 = vector.shape_cast %652 : vector<1x8x128xf32> to vector<8x128xf32>
    %c0_347 = arith.constant 0 : index
    %c256_348 = arith.constant 256 : index
    %654 = vector.load %arg8[%c0_347, %c256_348] : memref<128x384xbf16, #tpu.memory_space<vmem>>, vector<128x128xbf16>
    %cst_349 = arith.constant dense<0.000000e+00> : vector<8x128xf32>
    %655 = tpu.matmul %628, %654, %cst_349 {dimension_numbers = #tpu.dot_dimension_numbers<[1], [0], [0], [1], [0, 0, 1, 1], [], []>} : vector<8x128xbf16>, vector<128x128xbf16>, vector<8x128xf32> -> vector<8x128xf32>
    %656 = vector.broadcast %386 : vector<1x128xf32> to vector<8x128xf32>
    %657 = arith.addf %655, %656 : vector<8x128xf32>
    %658 = arith.mulf %639, %657 : vector<8x128xf32>
    %659 = arith.addf %653, %658 : vector<8x128xf32>
    %660 = math.tanh %659 : vector<8x128xf32>
    %cst_350 = arith.constant 1.000000e+00 : f32
    %661 = vector.broadcast %cst_350 : f32 to vector<8x128xf32>
    %662 = arith.subf %661, %650 : vector<8x128xf32>
    %663 = arith.mulf %662, %660 : vector<8x128xf32>
    %664 = arith.mulf %650, %617 : vector<8x128xf32>
    %665 = arith.addf %663, %664 : vector<8x128xf32>
    %666 = arith.truncf %665 : vector<8x128xf32> to vector<8x128xbf16>
    %c0_351 = arith.constant 0 : index
    %c0_352 = arith.constant 0 : index
    %667 = vector.load %arg4[%c0_351, %c0_352] : memref<128x384xbf16, #tpu.memory_space<vmem>>, vector<128x384xbf16>
    %cst_353 = arith.constant dense<0.000000e+00> : vector<8x384xf32>
    %668 = tpu.matmul %666, %667, %cst_353 {dimension_numbers = #tpu.dot_dimension_numbers<[1], [0], [0], [1], [0, 0, 1, 1], [], []>} : vector<8x128xbf16>, vector<128x384xbf16>, vector<8x384xf32> -> vector<8x384xf32>
    %c0_354 = arith.constant 0 : index
    %c0_355 = arith.constant 0 : index
    %669 = vector.load %arg5[%c0_354, %c0_355] : memref<1x384xf32, #tpu.memory_space<vmem>>, vector<1x384xf32>
    %670 = vector.broadcast %669 : vector<1x384xf32> to vector<8x384xf32>
    %671 = arith.addf %668, %670 : vector<8x384xf32>
    %672 = arith.index_cast %c5_i32_332 : i32 to index
    %c0_356 = arith.constant 0 : index
    %c0_357 = arith.constant 0 : index
    %673 = vector.load %arg18[%672, %c0_356, %c0_357] : memref<8x8x384xf32, #tpu.memory_space<vmem>>, vector<1x8x384xf32>
    %674 = vector.shape_cast %673 : vector<1x8x384xf32> to vector<8x384xf32>
    %675 = vector.shape_cast %671 : vector<8x384xf32> to vector<1x8x384xf32>
    tpu.vector_store %arg18[%672, %c0_356, %c0_357], %675 {strides = array<i32>} : memref<8x8x384xf32, #tpu.memory_space<vmem>>, vector<1x8x384xf32>,
    %c6_i32_358 = arith.constant 6 : i32
    %676 = arith.truncf %665 : vector<8x128xf32> to vector<8x128xbf16>
    %677 = arith.index_cast %c6_i32_358 : i32 to index
    %c0_359 = arith.constant 0 : index
    %c0_360 = arith.constant 0 : index
    %678 = vector.load %arg17[%677, %c0_359, %c0_360] : memref<8x8x384xf32, #tpu.memory_space<vmem>>, vector<1x8x128xf32>
    %679 = vector.shape_cast %678 : vector<1x8x128xf32> to vector<8x128xf32>
    %c0_361 = arith.constant 0 : index
    %c0_362 = arith.constant 0 : index
    %680 = vector.load %arg8[%c0_361, %c0_362] : memref<128x384xbf16, #tpu.memory_space<vmem>>, vector<128x128xbf16>
    %cst_363 = arith.constant dense<0.000000e+00> : vector<8x128xf32>
    %681 = tpu.matmul %676, %680, %cst_363 {dimension_numbers = #tpu.dot_dimension_numbers<[1], [0], [0], [1], [0, 0, 1, 1], [], []>} : vector<8x128xbf16>, vector<128x128xbf16>, vector<8x128xf32> -> vector<8x128xf32>
    %682 = arith.addf %679, %681 : vector<8x128xf32>
    %683 = arith.negf %682 : vector<8x128xf32>
    %684 = math.exp %683 : vector<8x128xf32>
    %cst_364 = arith.constant 1.000000e+00 : f32
    %685 = vector.broadcast %cst_364 : f32 to vector<8x128xf32>
    %686 = arith.addf %685, %684 : vector<8x128xf32>
    %687 = arith.divf %685, %686 : vector<8x128xf32>
    %688 = arith.index_cast %c6_i32_358 : i32 to index
    %c0_365 = arith.constant 0 : index
    %c128_366 = arith.constant 128 : index
    %689 = vector.load %arg17[%688, %c0_365, %c128_366] : memref<8x8x384xf32, #tpu.memory_space<vmem>>, vector<1x8x128xf32>
    %690 = vector.shape_cast %689 : vector<1x8x128xf32> to vector<8x128xf32>
    %c0_367 = arith.constant 0 : index
    %c128_368 = arith.constant 128 : index
    %691 = vector.load %arg8[%c0_367, %c128_368] : memref<128x384xbf16, #tpu.memory_space<vmem>>, vector<128x128xbf16>
    %cst_369 = arith.constant dense<0.000000e+00> : vector<8x128xf32>
    %692 = tpu.matmul %676, %691, %cst_369 {dimension_numbers = #tpu.dot_dimension_numbers<[1], [0], [0], [1], [0, 0, 1, 1], [], []>} : vector<8x128xbf16>, vector<128x128xbf16>, vector<8x128xf32> -> vector<8x128xf32>
    %693 = arith.addf %690, %692 : vector<8x128xf32>
    %694 = arith.negf %693 : vector<8x128xf32>
    %695 = math.exp %694 : vector<8x128xf32>
    %cst_370 = arith.constant 1.000000e+00 : f32
    %696 = vector.broadcast %cst_370 : f32 to vector<8x128xf32>
    %697 = arith.addf %696, %695 : vector<8x128xf32>
    %698 = arith.divf %696, %697 : vector<8x128xf32>
    %699 = arith.index_cast %c6_i32_358 : i32 to index
    %c0_371 = arith.constant 0 : index
    %c256_372 = arith.constant 256 : index
    %700 = vector.load %arg17[%699, %c0_371, %c256_372] : memref<8x8x384xf32, #tpu.memory_space<vmem>>, vector<1x8x128xf32>
    %701 = vector.shape_cast %700 : vector<1x8x128xf32> to vector<8x128xf32>
    %c0_373 = arith.constant 0 : index
    %c256_374 = arith.constant 256 : index
    %702 = vector.load %arg8[%c0_373, %c256_374] : memref<128x384xbf16, #tpu.memory_space<vmem>>, vector<128x128xbf16>
    %cst_375 = arith.constant dense<0.000000e+00> : vector<8x128xf32>
    %703 = tpu.matmul %676, %702, %cst_375 {dimension_numbers = #tpu.dot_dimension_numbers<[1], [0], [0], [1], [0, 0, 1, 1], [], []>} : vector<8x128xbf16>, vector<128x128xbf16>, vector<8x128xf32> -> vector<8x128xf32>
    %704 = vector.broadcast %386 : vector<1x128xf32> to vector<8x128xf32>
    %705 = arith.addf %703, %704 : vector<8x128xf32>
    %706 = arith.mulf %687, %705 : vector<8x128xf32>
    %707 = arith.addf %701, %706 : vector<8x128xf32>
    %708 = math.tanh %707 : vector<8x128xf32>
    %cst_376 = arith.constant 1.000000e+00 : f32
    %709 = vector.broadcast %cst_376 : f32 to vector<8x128xf32>
    %710 = arith.subf %709, %698 : vector<8x128xf32>
    %711 = arith.mulf %710, %708 : vector<8x128xf32>
    %712 = arith.mulf %698, %665 : vector<8x128xf32>
    %713 = arith.addf %711, %712 : vector<8x128xf32>
    %714 = arith.truncf %713 : vector<8x128xf32> to vector<8x128xbf16>
    %c0_377 = arith.constant 0 : index
    %c0_378 = arith.constant 0 : index
    %715 = vector.load %arg4[%c0_377, %c0_378] : memref<128x384xbf16, #tpu.memory_space<vmem>>, vector<128x384xbf16>
    %cst_379 = arith.constant dense<0.000000e+00> : vector<8x384xf32>
    %716 = tpu.matmul %714, %715, %cst_379 {dimension_numbers = #tpu.dot_dimension_numbers<[1], [0], [0], [1], [0, 0, 1, 1], [], []>} : vector<8x128xbf16>, vector<128x384xbf16>, vector<8x384xf32> -> vector<8x384xf32>
    %c0_380 = arith.constant 0 : index
    %c0_381 = arith.constant 0 : index
    %717 = vector.load %arg5[%c0_380, %c0_381] : memref<1x384xf32, #tpu.memory_space<vmem>>, vector<1x384xf32>
    %718 = vector.broadcast %717 : vector<1x384xf32> to vector<8x384xf32>
    %719 = arith.addf %716, %718 : vector<8x384xf32>
    %720 = arith.index_cast %c6_i32_358 : i32 to index
    %c0_382 = arith.constant 0 : index
    %c0_383 = arith.constant 0 : index
    %721 = vector.load %arg18[%720, %c0_382, %c0_383] : memref<8x8x384xf32, #tpu.memory_space<vmem>>, vector<1x8x384xf32>
    %722 = vector.shape_cast %721 : vector<1x8x384xf32> to vector<8x384xf32>
    %723 = vector.shape_cast %719 : vector<8x384xf32> to vector<1x8x384xf32>
    tpu.vector_store %arg18[%720, %c0_382, %c0_383], %723 {strides = array<i32>} : memref<8x8x384xf32, #tpu.memory_space<vmem>>, vector<1x8x384xf32>,
    %c7_i32_384 = arith.constant 7 : i32
    %724 = arith.truncf %713 : vector<8x128xf32> to vector<8x128xbf16>
    %725 = arith.index_cast %c7_i32_384 : i32 to index
    %c0_385 = arith.constant 0 : index
    %c0_386 = arith.constant 0 : index
    %726 = vector.load %arg17[%725, %c0_385, %c0_386] : memref<8x8x384xf32, #tpu.memory_space<vmem>>, vector<1x8x128xf32>
    %727 = vector.shape_cast %726 : vector<1x8x128xf32> to vector<8x128xf32>
    %c0_387 = arith.constant 0 : index
    %c0_388 = arith.constant 0 : index
    %728 = vector.load %arg8[%c0_387, %c0_388] : memref<128x384xbf16, #tpu.memory_space<vmem>>, vector<128x128xbf16>
    %cst_389 = arith.constant dense<0.000000e+00> : vector<8x128xf32>
    %729 = tpu.matmul %724, %728, %cst_389 {dimension_numbers = #tpu.dot_dimension_numbers<[1], [0], [0], [1], [0, 0, 1, 1], [], []>} : vector<8x128xbf16>, vector<128x128xbf16>, vector<8x128xf32> -> vector<8x128xf32>
    %730 = arith.addf %727, %729 : vector<8x128xf32>
    %731 = arith.negf %730 : vector<8x128xf32>
    %732 = math.exp %731 : vector<8x128xf32>
    %cst_390 = arith.constant 1.000000e+00 : f32
    %733 = vector.broadcast %cst_390 : f32 to vector<8x128xf32>
    %734 = arith.addf %733, %732 : vector<8x128xf32>
    %735 = arith.divf %733, %734 : vector<8x128xf32>
    %736 = arith.index_cast %c7_i32_384 : i32 to index
    %c0_391 = arith.constant 0 : index
    %c128_392 = arith.constant 128 : index
    %737 = vector.load %arg17[%736, %c0_391, %c128_392] : memref<8x8x384xf32, #tpu.memory_space<vmem>>, vector<1x8x128xf32>
    %738 = vector.shape_cast %737 : vector<1x8x128xf32> to vector<8x128xf32>
    %c0_393 = arith.constant 0 : index
    %c128_394 = arith.constant 128 : index
    %739 = vector.load %arg8[%c0_393, %c128_394] : memref<128x384xbf16, #tpu.memory_space<vmem>>, vector<128x128xbf16>
    %cst_395 = arith.constant dense<0.000000e+00> : vector<8x128xf32>
    %740 = tpu.matmul %724, %739, %cst_395 {dimension_numbers = #tpu.dot_dimension_numbers<[1], [0], [0], [1], [0, 0, 1, 1], [], []>} : vector<8x128xbf16>, vector<128x128xbf16>, vector<8x128xf32> -> vector<8x128xf32>
    %741 = arith.addf %738, %740 : vector<8x128xf32>
    %742 = arith.negf %741 : vector<8x128xf32>
    %743 = math.exp %742 : vector<8x128xf32>
    %cst_396 = arith.constant 1.000000e+00 : f32
    %744 = vector.broadcast %cst_396 : f32 to vector<8x128xf32>
    %745 = arith.addf %744, %743 : vector<8x128xf32>
    %746 = arith.divf %744, %745 : vector<8x128xf32>
    %747 = arith.index_cast %c7_i32_384 : i32 to index
    %c0_397 = arith.constant 0 : index
    %c256_398 = arith.constant 256 : index
    %748 = vector.load %arg17[%747, %c0_397, %c256_398] : memref<8x8x384xf32, #tpu.memory_space<vmem>>, vector<1x8x128xf32>
    %749 = vector.shape_cast %748 : vector<1x8x128xf32> to vector<8x128xf32>
    %c0_399 = arith.constant 0 : index
    %c256_400 = arith.constant 256 : index
    %750 = vector.load %arg8[%c0_399, %c256_400] : memref<128x384xbf16, #tpu.memory_space<vmem>>, vector<128x128xbf16>
    %cst_401 = arith.constant dense<0.000000e+00> : vector<8x128xf32>
    %751 = tpu.matmul %724, %750, %cst_401 {dimension_numbers = #tpu.dot_dimension_numbers<[1], [0], [0], [1], [0, 0, 1, 1], [], []>} : vector<8x128xbf16>, vector<128x128xbf16>, vector<8x128xf32> -> vector<8x128xf32>
    %752 = vector.broadcast %386 : vector<1x128xf32> to vector<8x128xf32>
    %753 = arith.addf %751, %752 : vector<8x128xf32>
    %754 = arith.mulf %735, %753 : vector<8x128xf32>
    %755 = arith.addf %749, %754 : vector<8x128xf32>
    %756 = math.tanh %755 : vector<8x128xf32>
    %cst_402 = arith.constant 1.000000e+00 : f32
    %757 = vector.broadcast %cst_402 : f32 to vector<8x128xf32>
    %758 = arith.subf %757, %746 : vector<8x128xf32>
    %759 = arith.mulf %758, %756 : vector<8x128xf32>
    %760 = arith.mulf %746, %713 : vector<8x128xf32>
    %761 = arith.addf %759, %760 : vector<8x128xf32>
    %762 = arith.truncf %761 : vector<8x128xf32> to vector<8x128xbf16>
    %c0_403 = arith.constant 0 : index
    %c0_404 = arith.constant 0 : index
    %763 = vector.load %arg4[%c0_403, %c0_404] : memref<128x384xbf16, #tpu.memory_space<vmem>>, vector<128x384xbf16>
    %cst_405 = arith.constant dense<0.000000e+00> : vector<8x384xf32>
    %764 = tpu.matmul %762, %763, %cst_405 {dimension_numbers = #tpu.dot_dimension_numbers<[1], [0], [0], [1], [0, 0, 1, 1], [], []>} : vector<8x128xbf16>, vector<128x384xbf16>, vector<8x384xf32> -> vector<8x384xf32>
    %c0_406 = arith.constant 0 : index
    %c0_407 = arith.constant 0 : index
    %765 = vector.load %arg5[%c0_406, %c0_407] : memref<1x384xf32, #tpu.memory_space<vmem>>, vector<1x384xf32>
    %766 = vector.broadcast %765 : vector<1x384xf32> to vector<8x384xf32>
    %767 = arith.addf %764, %766 : vector<8x384xf32>
    %768 = arith.index_cast %c7_i32_384 : i32 to index
    %c0_408 = arith.constant 0 : index
    %c0_409 = arith.constant 0 : index
    %769 = vector.load %arg18[%768, %c0_408, %c0_409] : memref<8x8x384xf32, #tpu.memory_space<vmem>>, vector<1x8x384xf32>
    %770 = vector.shape_cast %769 : vector<1x8x384xf32> to vector<8x384xf32>
    %771 = vector.shape_cast %767 : vector<8x384xf32> to vector<1x8x384xf32>
    tpu.vector_store %arg18[%768, %c0_408, %c0_409], %771 {strides = array<i32>} : memref<8x8x384xf32, #tpu.memory_space<vmem>>, vector<1x8x384xf32>,
    %c8_i32_410 = arith.constant 8 : i32
    %c0_411 = arith.constant 0 : index
    %c0_412 = arith.constant 0 : index
    %772 = vector.load %arg11[%c0_411, %c0_412] : memref<1x128xf32, #tpu.memory_space<vmem>>, vector<1x128xf32>
    %cst_413 = arith.constant 0.000000e+00 : f32
    %773 = vector.broadcast %cst_413 : f32 to vector<8x128xf32>
    %c0_i32_414 = arith.constant 0 : i32
    %774 = arith.truncf %773 : vector<8x128xf32> to vector<8x128xbf16>
    %775 = arith.index_cast %c0_i32_414 : i32 to index
    %c0_415 = arith.constant 0 : index
    %c0_416 = arith.constant 0 : index
    %776 = vector.load %arg18[%775, %c0_415, %c0_416] : memref<8x8x384xf32, #tpu.memory_space<vmem>>, vector<1x8x128xf32>
    %777 = vector.shape_cast %776 : vector<1x8x128xf32> to vector<8x128xf32>
    %c0_417 = arith.constant 0 : index
    %c0_418 = arith.constant 0 : index
    %778 = vector.load %arg10[%c0_417, %c0_418] : memref<128x384xbf16, #tpu.memory_space<vmem>>, vector<128x128xbf16>
    %cst_419 = arith.constant dense<0.000000e+00> : vector<8x128xf32>
    %779 = tpu.matmul %774, %778, %cst_419 {dimension_numbers = #tpu.dot_dimension_numbers<[1], [0], [0], [1], [0, 0, 1, 1], [], []>} : vector<8x128xbf16>, vector<128x128xbf16>, vector<8x128xf32> -> vector<8x128xf32>
    %780 = arith.addf %777, %779 : vector<8x128xf32>
    %781 = arith.negf %780 : vector<8x128xf32>
    %782 = math.exp %781 : vector<8x128xf32>
    %cst_420 = arith.constant 1.000000e+00 : f32
    %783 = vector.broadcast %cst_420 : f32 to vector<8x128xf32>
    %784 = arith.addf %783, %782 : vector<8x128xf32>
    %785 = arith.divf %783, %784 : vector<8x128xf32>
    %786 = arith.index_cast %c0_i32_414 : i32 to index
    %c0_421 = arith.constant 0 : index
    %c128_422 = arith.constant 128 : index
    %787 = vector.load %arg18[%786, %c0_421, %c128_422] : memref<8x8x384xf32, #tpu.memory_space<vmem>>, vector<1x8x128xf32>
    %788 = vector.shape_cast %787 : vector<1x8x128xf32> to vector<8x128xf32>
    %c0_423 = arith.constant 0 : index
    %c128_424 = arith.constant 128 : index
    %789 = vector.load %arg10[%c0_423, %c128_424] : memref<128x384xbf16, #tpu.memory_space<vmem>>, vector<128x128xbf16>
    %cst_425 = arith.constant dense<0.000000e+00> : vector<8x128xf32>
    %790 = tpu.matmul %774, %789, %cst_425 {dimension_numbers = #tpu.dot_dimension_numbers<[1], [0], [0], [1], [0, 0, 1, 1], [], []>} : vector<8x128xbf16>, vector<128x128xbf16>, vector<8x128xf32> -> vector<8x128xf32>
    %791 = arith.addf %788, %790 : vector<8x128xf32>
    %792 = arith.negf %791 : vector<8x128xf32>
    %793 = math.exp %792 : vector<8x128xf32>
    %cst_426 = arith.constant 1.000000e+00 : f32
    %794 = vector.broadcast %cst_426 : f32 to vector<8x128xf32>
    %795 = arith.addf %794, %793 : vector<8x128xf32>
    %796 = arith.divf %794, %795 : vector<8x128xf32>
    %797 = arith.index_cast %c0_i32_414 : i32 to index
    %c0_427 = arith.constant 0 : index
    %c256_428 = arith.constant 256 : index
    %798 = vector.load %arg18[%797, %c0_427, %c256_428] : memref<8x8x384xf32, #tpu.memory_space<vmem>>, vector<1x8x128xf32>
    %799 = vector.shape_cast %798 : vector<1x8x128xf32> to vector<8x128xf32>
    %c0_429 = arith.constant 0 : index
    %c256_430 = arith.constant 256 : index
    %800 = vector.load %arg10[%c0_429, %c256_430] : memref<128x384xbf16, #tpu.memory_space<vmem>>, vector<128x128xbf16>
    %cst_431 = arith.constant dense<0.000000e+00> : vector<8x128xf32>
    %801 = tpu.matmul %774, %800, %cst_431 {dimension_numbers = #tpu.dot_dimension_numbers<[1], [0], [0], [1], [0, 0, 1, 1], [], []>} : vector<8x128xbf16>, vector<128x128xbf16>, vector<8x128xf32> -> vector<8x128xf32>
    %802 = vector.broadcast %772 : vector<1x128xf32> to vector<8x128xf32>
    %803 = arith.addf %801, %802 : vector<8x128xf32>
    %804 = arith.mulf %785, %803 : vector<8x128xf32>
    %805 = arith.addf %799, %804 : vector<8x128xf32>
    %806 = math.tanh %805 : vector<8x128xf32>
    %cst_432 = arith.constant 1.000000e+00 : f32
    %807 = vector.broadcast %cst_432 : f32 to vector<8x128xf32>
    %808 = arith.subf %807, %796 : vector<8x128xf32>
    %809 = arith.mulf %808, %806 : vector<8x128xf32>
    %810 = arith.mulf %796, %773 : vector<8x128xf32>
    %811 = arith.addf %809, %810 : vector<8x128xf32>
    %c1_i32_433 = arith.constant 1 : i32
    %812 = arith.truncf %811 : vector<8x128xf32> to vector<8x128xbf16>
    %813 = arith.index_cast %c1_i32_433 : i32 to index
    %c0_434 = arith.constant 0 : index
    %c0_435 = arith.constant 0 : index
    %814 = vector.load %arg18[%813, %c0_434, %c0_435] : memref<8x8x384xf32, #tpu.memory_space<vmem>>, vector<1x8x128xf32>
    %815 = vector.shape_cast %814 : vector<1x8x128xf32> to vector<8x128xf32>
    %c0_436 = arith.constant 0 : index
    %c0_437 = arith.constant 0 : index
    %816 = vector.load %arg10[%c0_436, %c0_437] : memref<128x384xbf16, #tpu.memory_space<vmem>>, vector<128x128xbf16>
    %cst_438 = arith.constant dense<0.000000e+00> : vector<8x128xf32>
    %817 = tpu.matmul %812, %816, %cst_438 {dimension_numbers = #tpu.dot_dimension_numbers<[1], [0], [0], [1], [0, 0, 1, 1], [], []>} : vector<8x128xbf16>, vector<128x128xbf16>, vector<8x128xf32> -> vector<8x128xf32>
    %818 = arith.addf %815, %817 : vector<8x128xf32>
    %819 = arith.negf %818 : vector<8x128xf32>
    %820 = math.exp %819 : vector<8x128xf32>
    %cst_439 = arith.constant 1.000000e+00 : f32
    %821 = vector.broadcast %cst_439 : f32 to vector<8x128xf32>
    %822 = arith.addf %821, %820 : vector<8x128xf32>
    %823 = arith.divf %821, %822 : vector<8x128xf32>
    %824 = arith.index_cast %c1_i32_433 : i32 to index
    %c0_440 = arith.constant 0 : index
    %c128_441 = arith.constant 128 : index
    %825 = vector.load %arg18[%824, %c0_440, %c128_441] : memref<8x8x384xf32, #tpu.memory_space<vmem>>, vector<1x8x128xf32>
    %826 = vector.shape_cast %825 : vector<1x8x128xf32> to vector<8x128xf32>
    %c0_442 = arith.constant 0 : index
    %c128_443 = arith.constant 128 : index
    %827 = vector.load %arg10[%c0_442, %c128_443] : memref<128x384xbf16, #tpu.memory_space<vmem>>, vector<128x128xbf16>
    %cst_444 = arith.constant dense<0.000000e+00> : vector<8x128xf32>
    %828 = tpu.matmul %812, %827, %cst_444 {dimension_numbers = #tpu.dot_dimension_numbers<[1], [0], [0], [1], [0, 0, 1, 1], [], []>} : vector<8x128xbf16>, vector<128x128xbf16>, vector<8x128xf32> -> vector<8x128xf32>
    %829 = arith.addf %826, %828 : vector<8x128xf32>
    %830 = arith.negf %829 : vector<8x128xf32>
    %831 = math.exp %830 : vector<8x128xf32>
    %cst_445 = arith.constant 1.000000e+00 : f32
    %832 = vector.broadcast %cst_445 : f32 to vector<8x128xf32>
    %833 = arith.addf %832, %831 : vector<8x128xf32>
    %834 = arith.divf %832, %833 : vector<8x128xf32>
    %835 = arith.index_cast %c1_i32_433 : i32 to index
    %c0_446 = arith.constant 0 : index
    %c256_447 = arith.constant 256 : index
    %836 = vector.load %arg18[%835, %c0_446, %c256_447] : memref<8x8x384xf32, #tpu.memory_space<vmem>>, vector<1x8x128xf32>
    %837 = vector.shape_cast %836 : vector<1x8x128xf32> to vector<8x128xf32>
    %c0_448 = arith.constant 0 : index
    %c256_449 = arith.constant 256 : index
    %838 = vector.load %arg10[%c0_448, %c256_449] : memref<128x384xbf16, #tpu.memory_space<vmem>>, vector<128x128xbf16>
    %cst_450 = arith.constant dense<0.000000e+00> : vector<8x128xf32>
    %839 = tpu.matmul %812, %838, %cst_450 {dimension_numbers = #tpu.dot_dimension_numbers<[1], [0], [0], [1], [0, 0, 1, 1], [], []>} : vector<8x128xbf16>, vector<128x128xbf16>, vector<8x128xf32> -> vector<8x128xf32>
    %840 = vector.broadcast %772 : vector<1x128xf32> to vector<8x128xf32>
    %841 = arith.addf %839, %840 : vector<8x128xf32>
    %842 = arith.mulf %823, %841 : vector<8x128xf32>
    %843 = arith.addf %837, %842 : vector<8x128xf32>
    %844 = math.tanh %843 : vector<8x128xf32>
    %cst_451 = arith.constant 1.000000e+00 : f32
    %845 = vector.broadcast %cst_451 : f32 to vector<8x128xf32>
    %846 = arith.subf %845, %834 : vector<8x128xf32>
    %847 = arith.mulf %846, %844 : vector<8x128xf32>
    %848 = arith.mulf %834, %811 : vector<8x128xf32>
    %849 = arith.addf %847, %848 : vector<8x128xf32>
    %c2_i32_452 = arith.constant 2 : i32
    %850 = arith.truncf %849 : vector<8x128xf32> to vector<8x128xbf16>
    %851 = arith.index_cast %c2_i32_452 : i32 to index
    %c0_453 = arith.constant 0 : index
    %c0_454 = arith.constant 0 : index
    %852 = vector.load %arg18[%851, %c0_453, %c0_454] : memref<8x8x384xf32, #tpu.memory_space<vmem>>, vector<1x8x128xf32>
    %853 = vector.shape_cast %852 : vector<1x8x128xf32> to vector<8x128xf32>
    %c0_455 = arith.constant 0 : index
    %c0_456 = arith.constant 0 : index
    %854 = vector.load %arg10[%c0_455, %c0_456] : memref<128x384xbf16, #tpu.memory_space<vmem>>, vector<128x128xbf16>
    %cst_457 = arith.constant dense<0.000000e+00> : vector<8x128xf32>
    %855 = tpu.matmul %850, %854, %cst_457 {dimension_numbers = #tpu.dot_dimension_numbers<[1], [0], [0], [1], [0, 0, 1, 1], [], []>} : vector<8x128xbf16>, vector<128x128xbf16>, vector<8x128xf32> -> vector<8x128xf32>
    %856 = arith.addf %853, %855 : vector<8x128xf32>
    %857 = arith.negf %856 : vector<8x128xf32>
    %858 = math.exp %857 : vector<8x128xf32>
    %cst_458 = arith.constant 1.000000e+00 : f32
    %859 = vector.broadcast %cst_458 : f32 to vector<8x128xf32>
    %860 = arith.addf %859, %858 : vector<8x128xf32>
    %861 = arith.divf %859, %860 : vector<8x128xf32>
    %862 = arith.index_cast %c2_i32_452 : i32 to index
    %c0_459 = arith.constant 0 : index
    %c128_460 = arith.constant 128 : index
    %863 = vector.load %arg18[%862, %c0_459, %c128_460] : memref<8x8x384xf32, #tpu.memory_space<vmem>>, vector<1x8x128xf32>
    %864 = vector.shape_cast %863 : vector<1x8x128xf32> to vector<8x128xf32>
    %c0_461 = arith.constant 0 : index
    %c128_462 = arith.constant 128 : index
    %865 = vector.load %arg10[%c0_461, %c128_462] : memref<128x384xbf16, #tpu.memory_space<vmem>>, vector<128x128xbf16>
    %cst_463 = arith.constant dense<0.000000e+00> : vector<8x128xf32>
    %866 = tpu.matmul %850, %865, %cst_463 {dimension_numbers = #tpu.dot_dimension_numbers<[1], [0], [0], [1], [0, 0, 1, 1], [], []>} : vector<8x128xbf16>, vector<128x128xbf16>, vector<8x128xf32> -> vector<8x128xf32>
    %867 = arith.addf %864, %866 : vector<8x128xf32>
    %868 = arith.negf %867 : vector<8x128xf32>
    %869 = math.exp %868 : vector<8x128xf32>
    %cst_464 = arith.constant 1.000000e+00 : f32
    %870 = vector.broadcast %cst_464 : f32 to vector<8x128xf32>
    %871 = arith.addf %870, %869 : vector<8x128xf32>
    %872 = arith.divf %870, %871 : vector<8x128xf32>
    %873 = arith.index_cast %c2_i32_452 : i32 to index
    %c0_465 = arith.constant 0 : index
    %c256_466 = arith.constant 256 : index
    %874 = vector.load %arg18[%873, %c0_465, %c256_466] : memref<8x8x384xf32, #tpu.memory_space<vmem>>, vector<1x8x128xf32>
    %875 = vector.shape_cast %874 : vector<1x8x128xf32> to vector<8x128xf32>
    %c0_467 = arith.constant 0 : index
    %c256_468 = arith.constant 256 : index
    %876 = vector.load %arg10[%c0_467, %c256_468] : memref<128x384xbf16, #tpu.memory_space<vmem>>, vector<128x128xbf16>
    %cst_469 = arith.constant dense<0.000000e+00> : vector<8x128xf32>
    %877 = tpu.matmul %850, %876, %cst_469 {dimension_numbers = #tpu.dot_dimension_numbers<[1], [0], [0], [1], [0, 0, 1, 1], [], []>} : vector<8x128xbf16>, vector<128x128xbf16>, vector<8x128xf32> -> vector<8x128xf32>
    %878 = vector.broadcast %772 : vector<1x128xf32> to vector<8x128xf32>
    %879 = arith.addf %877, %878 : vector<8x128xf32>
    %880 = arith.mulf %861, %879 : vector<8x128xf32>
    %881 = arith.addf %875, %880 : vector<8x128xf32>
    %882 = math.tanh %881 : vector<8x128xf32>
    %cst_470 = arith.constant 1.000000e+00 : f32
    %883 = vector.broadcast %cst_470 : f32 to vector<8x128xf32>
    %884 = arith.subf %883, %872 : vector<8x128xf32>
    %885 = arith.mulf %884, %882 : vector<8x128xf32>
    %886 = arith.mulf %872, %849 : vector<8x128xf32>
    %887 = arith.addf %885, %886 : vector<8x128xf32>
    %c3_i32_471 = arith.constant 3 : i32
    %888 = arith.truncf %887 : vector<8x128xf32> to vector<8x128xbf16>
    %889 = arith.index_cast %c3_i32_471 : i32 to index
    %c0_472 = arith.constant 0 : index
    %c0_473 = arith.constant 0 : index
    %890 = vector.load %arg18[%889, %c0_472, %c0_473] : memref<8x8x384xf32, #tpu.memory_space<vmem>>, vector<1x8x128xf32>
    %891 = vector.shape_cast %890 : vector<1x8x128xf32> to vector<8x128xf32>
    %c0_474 = arith.constant 0 : index
    %c0_475 = arith.constant 0 : index
    %892 = vector.load %arg10[%c0_474, %c0_475] : memref<128x384xbf16, #tpu.memory_space<vmem>>, vector<128x128xbf16>
    %cst_476 = arith.constant dense<0.000000e+00> : vector<8x128xf32>
    %893 = tpu.matmul %888, %892, %cst_476 {dimension_numbers = #tpu.dot_dimension_numbers<[1], [0], [0], [1], [0, 0, 1, 1], [], []>} : vector<8x128xbf16>, vector<128x128xbf16>, vector<8x128xf32> -> vector<8x128xf32>
    %894 = arith.addf %891, %893 : vector<8x128xf32>
    %895 = arith.negf %894 : vector<8x128xf32>
    %896 = math.exp %895 : vector<8x128xf32>
    %cst_477 = arith.constant 1.000000e+00 : f32
    %897 = vector.broadcast %cst_477 : f32 to vector<8x128xf32>
    %898 = arith.addf %897, %896 : vector<8x128xf32>
    %899 = arith.divf %897, %898 : vector<8x128xf32>
    %900 = arith.index_cast %c3_i32_471 : i32 to index
    %c0_478 = arith.constant 0 : index
    %c128_479 = arith.constant 128 : index
    %901 = vector.load %arg18[%900, %c0_478, %c128_479] : memref<8x8x384xf32, #tpu.memory_space<vmem>>, vector<1x8x128xf32>
    %902 = vector.shape_cast %901 : vector<1x8x128xf32> to vector<8x128xf32>
    %c0_480 = arith.constant 0 : index
    %c128_481 = arith.constant 128 : index
    %903 = vector.load %arg10[%c0_480, %c128_481] : memref<128x384xbf16, #tpu.memory_space<vmem>>, vector<128x128xbf16>
    %cst_482 = arith.constant dense<0.000000e+00> : vector<8x128xf32>
    %904 = tpu.matmul %888, %903, %cst_482 {dimension_numbers = #tpu.dot_dimension_numbers<[1], [0], [0], [1], [0, 0, 1, 1], [], []>} : vector<8x128xbf16>, vector<128x128xbf16>, vector<8x128xf32> -> vector<8x128xf32>
    %905 = arith.addf %902, %904 : vector<8x128xf32>
    %906 = arith.negf %905 : vector<8x128xf32>
    %907 = math.exp %906 : vector<8x128xf32>
    %cst_483 = arith.constant 1.000000e+00 : f32
    %908 = vector.broadcast %cst_483 : f32 to vector<8x128xf32>
    %909 = arith.addf %908, %907 : vector<8x128xf32>
    %910 = arith.divf %908, %909 : vector<8x128xf32>
    %911 = arith.index_cast %c3_i32_471 : i32 to index
    %c0_484 = arith.constant 0 : index
    %c256_485 = arith.constant 256 : index
    %912 = vector.load %arg18[%911, %c0_484, %c256_485] : memref<8x8x384xf32, #tpu.memory_space<vmem>>, vector<1x8x128xf32>
    %913 = vector.shape_cast %912 : vector<1x8x128xf32> to vector<8x128xf32>
    %c0_486 = arith.constant 0 : index
    %c256_487 = arith.constant 256 : index
    %914 = vector.load %arg10[%c0_486, %c256_487] : memref<128x384xbf16, #tpu.memory_space<vmem>>, vector<128x128xbf16>
    %cst_488 = arith.constant dense<0.000000e+00> : vector<8x128xf32>
    %915 = tpu.matmul %888, %914, %cst_488 {dimension_numbers = #tpu.dot_dimension_numbers<[1], [0], [0], [1], [0, 0, 1, 1], [], []>} : vector<8x128xbf16>, vector<128x128xbf16>, vector<8x128xf32> -> vector<8x128xf32>
    %916 = vector.broadcast %772 : vector<1x128xf32> to vector<8x128xf32>
    %917 = arith.addf %915, %916 : vector<8x128xf32>
    %918 = arith.mulf %899, %917 : vector<8x128xf32>
    %919 = arith.addf %913, %918 : vector<8x128xf32>
    %920 = math.tanh %919 : vector<8x128xf32>
    %cst_489 = arith.constant 1.000000e+00 : f32
    %921 = vector.broadcast %cst_489 : f32 to vector<8x128xf32>
    %922 = arith.subf %921, %910 : vector<8x128xf32>
    %923 = arith.mulf %922, %920 : vector<8x128xf32>
    %924 = arith.mulf %910, %887 : vector<8x128xf32>
    %925 = arith.addf %923, %924 : vector<8x128xf32>
    %c4_i32_490 = arith.constant 4 : i32
    %926 = arith.truncf %925 : vector<8x128xf32> to vector<8x128xbf16>
    %927 = arith.index_cast %c4_i32_490 : i32 to index
    %c0_491 = arith.constant 0 : index
    %c0_492 = arith.constant 0 : index
    %928 = vector.load %arg18[%927, %c0_491, %c0_492] : memref<8x8x384xf32, #tpu.memory_space<vmem>>, vector<1x8x128xf32>
    %929 = vector.shape_cast %928 : vector<1x8x128xf32> to vector<8x128xf32>
    %c0_493 = arith.constant 0 : index
    %c0_494 = arith.constant 0 : index
    %930 = vector.load %arg10[%c0_493, %c0_494] : memref<128x384xbf16, #tpu.memory_space<vmem>>, vector<128x128xbf16>
    %cst_495 = arith.constant dense<0.000000e+00> : vector<8x128xf32>
    %931 = tpu.matmul %926, %930, %cst_495 {dimension_numbers = #tpu.dot_dimension_numbers<[1], [0], [0], [1], [0, 0, 1, 1], [], []>} : vector<8x128xbf16>, vector<128x128xbf16>, vector<8x128xf32> -> vector<8x128xf32>
    %932 = arith.addf %929, %931 : vector<8x128xf32>
    %933 = arith.negf %932 : vector<8x128xf32>
    %934 = math.exp %933 : vector<8x128xf32>
    %cst_496 = arith.constant 1.000000e+00 : f32
    %935 = vector.broadcast %cst_496 : f32 to vector<8x128xf32>
    %936 = arith.addf %935, %934 : vector<8x128xf32>
    %937 = arith.divf %935, %936 : vector<8x128xf32>
    %938 = arith.index_cast %c4_i32_490 : i32 to index
    %c0_497 = arith.constant 0 : index
    %c128_498 = arith.constant 128 : index
    %939 = vector.load %arg18[%938, %c0_497, %c128_498] : memref<8x8x384xf32, #tpu.memory_space<vmem>>, vector<1x8x128xf32>
    %940 = vector.shape_cast %939 : vector<1x8x128xf32> to vector<8x128xf32>
    %c0_499 = arith.constant 0 : index
    %c128_500 = arith.constant 128 : index
    %941 = vector.load %arg10[%c0_499, %c128_500] : memref<128x384xbf16, #tpu.memory_space<vmem>>, vector<128x128xbf16>
    %cst_501 = arith.constant dense<0.000000e+00> : vector<8x128xf32>
    %942 = tpu.matmul %926, %941, %cst_501 {dimension_numbers = #tpu.dot_dimension_numbers<[1], [0], [0], [1], [0, 0, 1, 1], [], []>} : vector<8x128xbf16>, vector<128x128xbf16>, vector<8x128xf32> -> vector<8x128xf32>
    %943 = arith.addf %940, %942 : vector<8x128xf32>
    %944 = arith.negf %943 : vector<8x128xf32>
    %945 = math.exp %944 : vector<8x128xf32>
    %cst_502 = arith.constant 1.000000e+00 : f32
    %946 = vector.broadcast %cst_502 : f32 to vector<8x128xf32>
    %947 = arith.addf %946, %945 : vector<8x128xf32>
    %948 = arith.divf %946, %947 : vector<8x128xf32>
    %949 = arith.index_cast %c4_i32_490 : i32 to index
    %c0_503 = arith.constant 0 : index
    %c256_504 = arith.constant 256 : index
    %950 = vector.load %arg18[%949, %c0_503, %c256_504] : memref<8x8x384xf32, #tpu.memory_space<vmem>>, vector<1x8x128xf32>
    %951 = vector.shape_cast %950 : vector<1x8x128xf32> to vector<8x128xf32>
    %c0_505 = arith.constant 0 : index
    %c256_506 = arith.constant 256 : index
    %952 = vector.load %arg10[%c0_505, %c256_506] : memref<128x384xbf16, #tpu.memory_space<vmem>>, vector<128x128xbf16>
    %cst_507 = arith.constant dense<0.000000e+00> : vector<8x128xf32>
    %953 = tpu.matmul %926, %952, %cst_507 {dimension_numbers = #tpu.dot_dimension_numbers<[1], [0], [0], [1], [0, 0, 1, 1], [], []>} : vector<8x128xbf16>, vector<128x128xbf16>, vector<8x128xf32> -> vector<8x128xf32>
    %954 = vector.broadcast %772 : vector<1x128xf32> to vector<8x128xf32>
    %955 = arith.addf %953, %954 : vector<8x128xf32>
    %956 = arith.mulf %937, %955 : vector<8x128xf32>
    %957 = arith.addf %951, %956 : vector<8x128xf32>
    %958 = math.tanh %957 : vector<8x128xf32>
    %cst_508 = arith.constant 1.000000e+00 : f32
    %959 = vector.broadcast %cst_508 : f32 to vector<8x128xf32>
    %960 = arith.subf %959, %948 : vector<8x128xf32>
    %961 = arith.mulf %960, %958 : vector<8x128xf32>
    %962 = arith.mulf %948, %925 : vector<8x128xf32>
    %963 = arith.addf %961, %962 : vector<8x128xf32>
    %c5_i32_509 = arith.constant 5 : i32
    %964 = arith.truncf %963 : vector<8x128xf32> to vector<8x128xbf16>
    %965 = arith.index_cast %c5_i32_509 : i32 to index
    %c0_510 = arith.constant 0 : index
    %c0_511 = arith.constant 0 : index
    %966 = vector.load %arg18[%965, %c0_510, %c0_511] : memref<8x8x384xf32, #tpu.memory_space<vmem>>, vector<1x8x128xf32>
    %967 = vector.shape_cast %966 : vector<1x8x128xf32> to vector<8x128xf32>
    %c0_512 = arith.constant 0 : index
    %c0_513 = arith.constant 0 : index
    %968 = vector.load %arg10[%c0_512, %c0_513] : memref<128x384xbf16, #tpu.memory_space<vmem>>, vector<128x128xbf16>
    %cst_514 = arith.constant dense<0.000000e+00> : vector<8x128xf32>
    %969 = tpu.matmul %964, %968, %cst_514 {dimension_numbers = #tpu.dot_dimension_numbers<[1], [0], [0], [1], [0, 0, 1, 1], [], []>} : vector<8x128xbf16>, vector<128x128xbf16>, vector<8x128xf32> -> vector<8x128xf32>
    %970 = arith.addf %967, %969 : vector<8x128xf32>
    %971 = arith.negf %970 : vector<8x128xf32>
    %972 = math.exp %971 : vector<8x128xf32>
    %cst_515 = arith.constant 1.000000e+00 : f32
    %973 = vector.broadcast %cst_515 : f32 to vector<8x128xf32>
    %974 = arith.addf %973, %972 : vector<8x128xf32>
    %975 = arith.divf %973, %974 : vector<8x128xf32>
    %976 = arith.index_cast %c5_i32_509 : i32 to index
    %c0_516 = arith.constant 0 : index
    %c128_517 = arith.constant 128 : index
    %977 = vector.load %arg18[%976, %c0_516, %c128_517] : memref<8x8x384xf32, #tpu.memory_space<vmem>>, vector<1x8x128xf32>
    %978 = vector.shape_cast %977 : vector<1x8x128xf32> to vector<8x128xf32>
    %c0_518 = arith.constant 0 : index
    %c128_519 = arith.constant 128 : index
    %979 = vector.load %arg10[%c0_518, %c128_519] : memref<128x384xbf16, #tpu.memory_space<vmem>>, vector<128x128xbf16>
    %cst_520 = arith.constant dense<0.000000e+00> : vector<8x128xf32>
    %980 = tpu.matmul %964, %979, %cst_520 {dimension_numbers = #tpu.dot_dimension_numbers<[1], [0], [0], [1], [0, 0, 1, 1], [], []>} : vector<8x128xbf16>, vector<128x128xbf16>, vector<8x128xf32> -> vector<8x128xf32>
    %981 = arith.addf %978, %980 : vector<8x128xf32>
    %982 = arith.negf %981 : vector<8x128xf32>
    %983 = math.exp %982 : vector<8x128xf32>
    %cst_521 = arith.constant 1.000000e+00 : f32
    %984 = vector.broadcast %cst_521 : f32 to vector<8x128xf32>
    %985 = arith.addf %984, %983 : vector<8x128xf32>
    %986 = arith.divf %984, %985 : vector<8x128xf32>
    %987 = arith.index_cast %c5_i32_509 : i32 to index
    %c0_522 = arith.constant 0 : index
    %c256_523 = arith.constant 256 : index
    %988 = vector.load %arg18[%987, %c0_522, %c256_523] : memref<8x8x384xf32, #tpu.memory_space<vmem>>, vector<1x8x128xf32>
    %989 = vector.shape_cast %988 : vector<1x8x128xf32> to vector<8x128xf32>
    %c0_524 = arith.constant 0 : index
    %c256_525 = arith.constant 256 : index
    %990 = vector.load %arg10[%c0_524, %c256_525] : memref<128x384xbf16, #tpu.memory_space<vmem>>, vector<128x128xbf16>
    %cst_526 = arith.constant dense<0.000000e+00> : vector<8x128xf32>
    %991 = tpu.matmul %964, %990, %cst_526 {dimension_numbers = #tpu.dot_dimension_numbers<[1], [0], [0], [1], [0, 0, 1, 1], [], []>} : vector<8x128xbf16>, vector<128x128xbf16>, vector<8x128xf32> -> vector<8x128xf32>
    %992 = vector.broadcast %772 : vector<1x128xf32> to vector<8x128xf32>
    %993 = arith.addf %991, %992 : vector<8x128xf32>
    %994 = arith.mulf %975, %993 : vector<8x128xf32>
    %995 = arith.addf %989, %994 : vector<8x128xf32>
    %996 = math.tanh %995 : vector<8x128xf32>
    %cst_527 = arith.constant 1.000000e+00 : f32
    %997 = vector.broadcast %cst_527 : f32 to vector<8x128xf32>
    %998 = arith.subf %997, %986 : vector<8x128xf32>
    %999 = arith.mulf %998, %996 : vector<8x128xf32>
    %1000 = arith.mulf %986, %963 : vector<8x128xf32>
    %1001 = arith.addf %999, %1000 : vector<8x128xf32>
    %c6_i32_528 = arith.constant 6 : i32
    %1002 = arith.truncf %1001 : vector<8x128xf32> to vector<8x128xbf16>
    %1003 = arith.index_cast %c6_i32_528 : i32 to index
    %c0_529 = arith.constant 0 : index
    %c0_530 = arith.constant 0 : index
    %1004 = vector.load %arg18[%1003, %c0_529, %c0_530] : memref<8x8x384xf32, #tpu.memory_space<vmem>>, vector<1x8x128xf32>
    %1005 = vector.shape_cast %1004 : vector<1x8x128xf32> to vector<8x128xf32>
    %c0_531 = arith.constant 0 : index
    %c0_532 = arith.constant 0 : index
    %1006 = vector.load %arg10[%c0_531, %c0_532] : memref<128x384xbf16, #tpu.memory_space<vmem>>, vector<128x128xbf16>
    %cst_533 = arith.constant dense<0.000000e+00> : vector<8x128xf32>
    %1007 = tpu.matmul %1002, %1006, %cst_533 {dimension_numbers = #tpu.dot_dimension_numbers<[1], [0], [0], [1], [0, 0, 1, 1], [], []>} : vector<8x128xbf16>, vector<128x128xbf16>, vector<8x128xf32> -> vector<8x128xf32>
    %1008 = arith.addf %1005, %1007 : vector<8x128xf32>
    %1009 = arith.negf %1008 : vector<8x128xf32>
    %1010 = math.exp %1009 : vector<8x128xf32>
    %cst_534 = arith.constant 1.000000e+00 : f32
    %1011 = vector.broadcast %cst_534 : f32 to vector<8x128xf32>
    %1012 = arith.addf %1011, %1010 : vector<8x128xf32>
    %1013 = arith.divf %1011, %1012 : vector<8x128xf32>
    %1014 = arith.index_cast %c6_i32_528 : i32 to index
    %c0_535 = arith.constant 0 : index
    %c128_536 = arith.constant 128 : index
    %1015 = vector.load %arg18[%1014, %c0_535, %c128_536] : memref<8x8x384xf32, #tpu.memory_space<vmem>>, vector<1x8x128xf32>
    %1016 = vector.shape_cast %1015 : vector<1x8x128xf32> to vector<8x128xf32>
    %c0_537 = arith.constant 0 : index
    %c128_538 = arith.constant 128 : index
    %1017 = vector.load %arg10[%c0_537, %c128_538] : memref<128x384xbf16, #tpu.memory_space<vmem>>, vector<128x128xbf16>
    %cst_539 = arith.constant dense<0.000000e+00> : vector<8x128xf32>
    %1018 = tpu.matmul %1002, %1017, %cst_539 {dimension_numbers = #tpu.dot_dimension_numbers<[1], [0], [0], [1], [0, 0, 1, 1], [], []>} : vector<8x128xbf16>, vector<128x128xbf16>, vector<8x128xf32> -> vector<8x128xf32>
    %1019 = arith.addf %1016, %1018 : vector<8x128xf32>
    %1020 = arith.negf %1019 : vector<8x128xf32>
    %1021 = math.exp %1020 : vector<8x128xf32>
    %cst_540 = arith.constant 1.000000e+00 : f32
    %1022 = vector.broadcast %cst_540 : f32 to vector<8x128xf32>
    %1023 = arith.addf %1022, %1021 : vector<8x128xf32>
    %1024 = arith.divf %1022, %1023 : vector<8x128xf32>
    %1025 = arith.index_cast %c6_i32_528 : i32 to index
    %c0_541 = arith.constant 0 : index
    %c256_542 = arith.constant 256 : index
    %1026 = vector.load %arg18[%1025, %c0_541, %c256_542] : memref<8x8x384xf32, #tpu.memory_space<vmem>>, vector<1x8x128xf32>
    %1027 = vector.shape_cast %1026 : vector<1x8x128xf32> to vector<8x128xf32>
    %c0_543 = arith.constant 0 : index
    %c256_544 = arith.constant 256 : index
    %1028 = vector.load %arg10[%c0_543, %c256_544] : memref<128x384xbf16, #tpu.memory_space<vmem>>, vector<128x128xbf16>
    %cst_545 = arith.constant dense<0.000000e+00> : vector<8x128xf32>
    %1029 = tpu.matmul %1002, %1028, %cst_545 {dimension_numbers = #tpu.dot_dimension_numbers<[1], [0], [0], [1], [0, 0, 1, 1], [], []>} : vector<8x128xbf16>, vector<128x128xbf16>, vector<8x128xf32> -> vector<8x128xf32>
    %1030 = vector.broadcast %772 : vector<1x128xf32> to vector<8x128xf32>
    %1031 = arith.addf %1029, %1030 : vector<8x128xf32>
    %1032 = arith.mulf %1013, %1031 : vector<8x128xf32>
    %1033 = arith.addf %1027, %1032 : vector<8x128xf32>
    %1034 = math.tanh %1033 : vector<8x128xf32>
    %cst_546 = arith.constant 1.000000e+00 : f32
    %1035 = vector.broadcast %cst_546 : f32 to vector<8x128xf32>
    %1036 = arith.subf %1035, %1024 : vector<8x128xf32>
    %1037 = arith.mulf %1036, %1034 : vector<8x128xf32>
    %1038 = arith.mulf %1024, %1001 : vector<8x128xf32>
    %1039 = arith.addf %1037, %1038 : vector<8x128xf32>
    %c7_i32_547 = arith.constant 7 : i32
    %1040 = arith.truncf %1039 : vector<8x128xf32> to vector<8x128xbf16>
    %1041 = arith.index_cast %c7_i32_547 : i32 to index
    %c0_548 = arith.constant 0 : index
    %c0_549 = arith.constant 0 : index
    %1042 = vector.load %arg18[%1041, %c0_548, %c0_549] : memref<8x8x384xf32, #tpu.memory_space<vmem>>, vector<1x8x128xf32>
    %1043 = vector.shape_cast %1042 : vector<1x8x128xf32> to vector<8x128xf32>
    %c0_550 = arith.constant 0 : index
    %c0_551 = arith.constant 0 : index
    %1044 = vector.load %arg10[%c0_550, %c0_551] : memref<128x384xbf16, #tpu.memory_space<vmem>>, vector<128x128xbf16>
    %cst_552 = arith.constant dense<0.000000e+00> : vector<8x128xf32>
    %1045 = tpu.matmul %1040, %1044, %cst_552 {dimension_numbers = #tpu.dot_dimension_numbers<[1], [0], [0], [1], [0, 0, 1, 1], [], []>} : vector<8x128xbf16>, vector<128x128xbf16>, vector<8x128xf32> -> vector<8x128xf32>
    %1046 = arith.addf %1043, %1045 : vector<8x128xf32>
    %1047 = arith.negf %1046 : vector<8x128xf32>
    %1048 = math.exp %1047 : vector<8x128xf32>
    %cst_553 = arith.constant 1.000000e+00 : f32
    %1049 = vector.broadcast %cst_553 : f32 to vector<8x128xf32>
    %1050 = arith.addf %1049, %1048 : vector<8x128xf32>
    %1051 = arith.divf %1049, %1050 : vector<8x128xf32>
    %1052 = arith.index_cast %c7_i32_547 : i32 to index
    %c0_554 = arith.constant 0 : index
    %c128_555 = arith.constant 128 : index
    %1053 = vector.load %arg18[%1052, %c0_554, %c128_555] : memref<8x8x384xf32, #tpu.memory_space<vmem>>, vector<1x8x128xf32>
    %1054 = vector.shape_cast %1053 : vector<1x8x128xf32> to vector<8x128xf32>
    %c0_556 = arith.constant 0 : index
    %c128_557 = arith.constant 128 : index
    %1055 = vector.load %arg10[%c0_556, %c128_557] : memref<128x384xbf16, #tpu.memory_space<vmem>>, vector<128x128xbf16>
    %cst_558 = arith.constant dense<0.000000e+00> : vector<8x128xf32>
    %1056 = tpu.matmul %1040, %1055, %cst_558 {dimension_numbers = #tpu.dot_dimension_numbers<[1], [0], [0], [1], [0, 0, 1, 1], [], []>} : vector<8x128xbf16>, vector<128x128xbf16>, vector<8x128xf32> -> vector<8x128xf32>
    %1057 = arith.addf %1054, %1056 : vector<8x128xf32>
    %1058 = arith.negf %1057 : vector<8x128xf32>
    %1059 = math.exp %1058 : vector<8x128xf32>
    %cst_559 = arith.constant 1.000000e+00 : f32
    %1060 = vector.broadcast %cst_559 : f32 to vector<8x128xf32>
    %1061 = arith.addf %1060, %1059 : vector<8x128xf32>
    %1062 = arith.divf %1060, %1061 : vector<8x128xf32>
    %1063 = arith.index_cast %c7_i32_547 : i32 to index
    %c0_560 = arith.constant 0 : index
    %c256_561 = arith.constant 256 : index
    %1064 = vector.load %arg18[%1063, %c0_560, %c256_561] : memref<8x8x384xf32, #tpu.memory_space<vmem>>, vector<1x8x128xf32>
    %1065 = vector.shape_cast %1064 : vector<1x8x128xf32> to vector<8x128xf32>
    %c0_562 = arith.constant 0 : index
    %c256_563 = arith.constant 256 : index
    %1066 = vector.load %arg10[%c0_562, %c256_563] : memref<128x384xbf16, #tpu.memory_space<vmem>>, vector<128x128xbf16>
    %cst_564 = arith.constant dense<0.000000e+00> : vector<8x128xf32>
    %1067 = tpu.matmul %1040, %1066, %cst_564 {dimension_numbers = #tpu.dot_dimension_numbers<[1], [0], [0], [1], [0, 0, 1, 1], [], []>} : vector<8x128xbf16>, vector<128x128xbf16>, vector<8x128xf32> -> vector<8x128xf32>
    %1068 = vector.broadcast %772 : vector<1x128xf32> to vector<8x128xf32>
    %1069 = arith.addf %1067, %1068 : vector<8x128xf32>
    %1070 = arith.mulf %1051, %1069 : vector<8x128xf32>
    %1071 = arith.addf %1065, %1070 : vector<8x128xf32>
    %1072 = math.tanh %1071 : vector<8x128xf32>
    %cst_565 = arith.constant 1.000000e+00 : f32
    %1073 = vector.broadcast %cst_565 : f32 to vector<8x128xf32>
    %1074 = arith.subf %1073, %1062 : vector<8x128xf32>
    %1075 = arith.mulf %1074, %1072 : vector<8x128xf32>
    %1076 = arith.mulf %1062, %1039 : vector<8x128xf32>
    %1077 = arith.addf %1075, %1076 : vector<8x128xf32>
    %c8_i32_566 = arith.constant 8 : i32
    %1078 = arith.truncf %1077 : vector<8x128xf32> to vector<8x128xbf16>
    %c0_567 = arith.constant 0 : index
    %c0_568 = arith.constant 0 : index
    %1079 = vector.load %arg12[%c0_567, %c0_568] : memref<128x64xbf16, #tpu.memory_space<vmem>>, vector<128x64xbf16>
    %cst_569 = arith.constant dense<0.000000e+00> : vector<8x64xf32>
    %1080 = tpu.matmul %1078, %1079, %cst_569 {dimension_numbers = #tpu.dot_dimension_numbers<[1], [0], [0], [1], [0, 0, 1, 1], [], []>} : vector<8x128xbf16>, vector<128x64xbf16>, vector<8x64xf32> -> vector<8x64xf32>
    %c0_570 = arith.constant 0 : index
    %c0_571 = arith.constant 0 : index
    %1081 = vector.load %arg13[%c0_570, %c0_571] : memref<8x64xf32, #tpu.memory_space<vmem>>, vector<8x64xf32>
    %1082 = arith.addf %1080, %1081 : vector<8x64xf32>
    %cst_572 = arith.constant 0.000000e+00 : f32
    %1083 = vector.broadcast %cst_572 : f32 to vector<8x64xf32>
    %1084 = arith.maximumf %1082, %1083 : vector<8x64xf32>
    %1085 = arith.truncf %1084 : vector<8x64xf32> to vector<8x64xbf16>
    %c0_573 = arith.constant 0 : index
    %c0_574 = arith.constant 0 : index
    %1086 = vector.load %arg14[%c0_573, %c0_574] : memref<64x1xbf16, #tpu.memory_space<vmem>>, vector<64x1xbf16>
    %cst_575 = arith.constant dense<0.000000e+00> : vector<8x1xf32>
    %1087 = tpu.matmul %1085, %1086, %cst_575 {dimension_numbers = #tpu.dot_dimension_numbers<[1], [0], [0], [1], [0, 0, 1, 1], [], []>} : vector<8x64xbf16>, vector<64x1xbf16>, vector<8x1xf32> -> vector<8x1xf32>
    %c0_576 = arith.constant 0 : index
    %c0_577 = arith.constant 0 : index
    %1088 = vector.load %arg15[%c0_576, %c0_577] : memref<1x1xf32, #tpu.memory_space<vmem>>, vector<1x1xf32>
    %1089 = vector.broadcast %1088 : vector<1x1xf32> to vector<8x1xf32>
    %1090 = arith.addf %1087, %1089 : vector<8x1xf32>
    %c0_578 = arith.constant 0 : index
    %c0_579 = arith.constant 0 : index
    %1091 = vector.load %arg16[%c0_578, %c0_579] : memref<8x1xf32, #tpu.memory_space<vmem>>, vector<8x1xf32>
    tpu.vector_store %arg16[%c0_578, %c0_579], %1090 {strides = array<i32>} : memref<8x1xf32, #tpu.memory_space<vmem>>, vector<8x1xf32>,
    return
  }
  func.func @transform_0(%arg0: i32) -> (i32, i32, i32) {
    %c0_i32 = arith.constant 0 : i32
    %c0_i32_0 = arith.constant 0 : i32
    %c0_i32_1 = arith.constant 0 : i32
    return %c0_i32, %arg0, %c0_i32_0 : i32, i32, i32
  }
  func.func @transform_1(%arg0: i32) -> (i32, i32) {
    %c0_i32 = arith.constant 0 : i32
    %c0_i32_0 = arith.constant 0 : i32
    %c0_i32_1 = arith.constant 0 : i32
    return %c0_i32, %c0_i32_0 : i32, i32
  }
  func.func @transform_2(%arg0: i32) -> (i32, i32) {
    %c0_i32 = arith.constant 0 : i32
    %c0_i32_0 = arith.constant 0 : i32
    %c0_i32_1 = arith.constant 0 : i32
    return %c0_i32, %c0_i32_0 : i32, i32
  }
  func.func @transform_3(%arg0: i32) -> (i32, i32) {
    %c0_i32 = arith.constant 0 : i32
    %c0_i32_0 = arith.constant 0 : i32
    %c0_i32_1 = arith.constant 0 : i32
    return %c0_i32, %c0_i32_0 : i32, i32
  }
  func.func @transform_4(%arg0: i32) -> (i32, i32) {
    %c0_i32 = arith.constant 0 : i32
    %c0_i32_0 = arith.constant 0 : i32
    %c0_i32_1 = arith.constant 0 : i32
    return %c0_i32, %c0_i32_0 : i32, i32
  }
  func.func @transform_5(%arg0: i32) -> (i32, i32) {
    %c0_i32 = arith.constant 0 : i32
    %c0_i32_0 = arith.constant 0 : i32
    %c0_i32_1 = arith.constant 0 : i32
    return %c0_i32, %c0_i32_0 : i32, i32
  }
  func.func @transform_6(%arg0: i32) -> (i32, i32) {
    %c0_i32 = arith.constant 0 : i32
    %c0_i32_0 = arith.constant 0 : i32
    %c0_i32_1 = arith.constant 0 : i32
    return %c0_i32, %c0_i32_0 : i32, i32
  }
  func.func @transform_7(%arg0: i32) -> (i32, i32) {
    %c0_i32 = arith.constant 0 : i32
    %c0_i32_0 = arith.constant 0 : i32
    %c0_i32_1 = arith.constant 0 : i32
    return %c0_i32, %c0_i32_0 : i32, i32
  }
  func.func @transform_8(%arg0: i32) -> (i32, i32) {
    %c0_i32 = arith.constant 0 : i32
    %c0_i32_0 = arith.constant 0 : i32
    %c0_i32_1 = arith.constant 0 : i32
    return %c0_i32, %c0_i32_0 : i32, i32
  }
  func.func @transform_9(%arg0: i32) -> (i32, i32) {
    %c0_i32 = arith.constant 0 : i32
    %c0_i32_0 = arith.constant 0 : i32
    %c0_i32_1 = arith.constant 0 : i32
    return %c0_i32, %c0_i32_0 : i32, i32
  }
  func.func @transform_10(%arg0: i32) -> (i32, i32) {
    %c0_i32 = arith.constant 0 : i32
    %c0_i32_0 = arith.constant 0 : i32
    %c0_i32_1 = arith.constant 0 : i32
    return %c0_i32, %c0_i32_0 : i32, i32
  }
  func.func @transform_11(%arg0: i32) -> (i32, i32) {
    %c0_i32 = arith.constant 0 : i32
    %c0_i32_0 = arith.constant 0 : i32
    %c0_i32_1 = arith.constant 0 : i32
    return %c0_i32, %c0_i32_0 : i32, i32
  }
  func.func @transform_12(%arg0: i32) -> (i32, i32) {
    %c0_i32 = arith.constant 0 : i32
    %c0_i32_0 = arith.constant 0 : i32
    return %arg0, %c0_i32 : i32, i32
  }
  func.func @transform_13(%arg0: i32) -> (i32, i32) {
    %c0_i32 = arith.constant 0 : i32
    %c0_i32_0 = arith.constant 0 : i32
    %c0_i32_1 = arith.constant 0 : i32
    return %c0_i32, %c0_i32_0 : i32, i32
  }
  func.func @transform_14(%arg0: i32) -> (i32, i32) {
    %c0_i32 = arith.constant 0 : i32
    %c0_i32_0 = arith.constant 0 : i32
    %c0_i32_1 = arith.constant 0 : i32
    return %c0_i32, %c0_i32_0 : i32, i32
  }
  func.func @transform_15(%arg0: i32) -> (i32, i32) {
    %c0_i32 = arith.constant 0 : i32
    %c0_i32_0 = arith.constant 0 : i32
    return %arg0, %c0_i32 : i32, i32
  }
}

</mosaic_0001>

<llo_original>
// kernel: tpu_custom_call.1
$region0: #{tpu_custom_call.1}
  #allocation0 [shape = 'u32[]', space=smem, size = 0x4, offset = 0x4, fixed_abs, tag = 'smem constant byte address 0x4 - core index']
  #allocation1 [shape = 'u32[72,128]{1,0:T(1,128)}', space=vmem, size = 0x9000, scoped, tag = 'internal scratch']
  #allocation2 [shape = 'f32[8,8,384]{2,1,0:T(8,128)}', space=vmem, size = 0x18000, scoped, tag = 'scratch operand']
  #allocation3 [shape = 'f32[8,8,384]{2,1,0:T(8,128)}', space=vmem, size = 0x18000, scoped, tag = 'scratch operand']
  #allocation4 [shape = 'f32[1,1]{1,0:T(1,128)S(1)}', space=vmem, size = 0x200, scoped, tag = 'scoped memory for tpu_custom_call.1']
  %s0 = inlined_call_operand.hbm [shape: f32[8,8,384], index: 0, kind: input, shape index: {}]
  %s1 = inlined_call_operand.hbm [shape: bf16[128,384], index: 1, kind: input, shape index: {}]
  %s2 = inlined_call_operand.vmem [shape: f32[1,384], index: 2, kind: input, shape index: {}]
  %s3 = inlined_call_operand.hbm [shape: bf16[128,384], index: 3, kind: input, shape index: {}]
  %s4 = inlined_call_operand.vmem [shape: f32[1,384], index: 4, kind: input, shape index: {}]
  %s5 = inlined_call_operand.hbm [shape: bf16[128,384], index: 5, kind: input, shape index: {}]
  %s6 = inlined_call_operand.vmem [shape: f32[1,128], index: 6, kind: input, shape index: {}]
  %s7 = inlined_call_operand.hbm [shape: bf16[128,384], index: 7, kind: input, shape index: {}]
  %s8 = inlined_call_operand.vmem [shape: f32[1,128], index: 8, kind: input, shape index: {}]
  %s9 = inlined_call_operand.hbm [shape: bf16[128,384], index: 9, kind: input, shape index: {}]
  %s10 = inlined_call_operand.vmem [shape: f32[1,128], index: 10, kind: input, shape index: {}]
  %s11 = inlined_call_operand.vmem [shape: bf16[128,64], index: 11, kind: input, shape index: {}]
  %s12 = inlined_call_operand.vmem [shape: f32[8,64], index: 12, kind: input, shape index: {}]
  %s13 = inlined_call_operand.vmem [shape: bf16[64,1], index: 13, kind: input, shape index: {}]
  %s14 = inlined_call_operand.<no memory space> [shape: f32[1,1], index: 14, kind: input, shape index: {}]
  %s15 = inlined_call_operand.vmem [shape: f32[8,1], index: 15, kind: output, shape index: {}]
  %s16 = sld [smem:[#allocation0]]
  $region94: #{tpu_custom_call.1} parent=0
    _
  %s18 = ssub.s32 1, %s16
  %s19 = scalar_select 0, %s18, %s16
  %v20 = vstv %s14
  %21 = vst [vmem:[#allocation4] sm:$0x1] %v20
  $region1: #{tpu_custom_call.1} parent=0
    #allocation5 [shape = 'u8[98304]{0}', space=vmem, size = 0x18000, scoped, tag = 'input window, operand 0, single buffered']
    #allocation6 [shape = 's32[1]{0}', space=sflag, size = 0x4, scoped, tag = 'scoped memory for tpu_custom_call.1']
    #allocation7 [shape = 'u8[98304]{0}', space=vmem, size = 0x18000, scoped, tag = 'input window, operand 1, single buffered']
    #allocation8 [shape = 's32[1]{0}', space=sflag, size = 0x4, scoped, tag = 'scoped memory for tpu_custom_call.1']
    #allocation9 [shape = 'u8[98304]{0}', space=vmem, size = 0x18000, scoped, tag = 'input window, operand 3, single buffered']
    #allocation10 [shape = 'u8[98304]{0}', space=vmem, size = 0x18000, scoped, tag = 'input window, operand 5, single buffered']
    #allocation11 [shape = 's32[1]{0}', space=sflag, size = 0x4, scoped, tag = 'scoped memory for tpu_custom_call.1']
    #allocation12 [shape = 'u8[98304]{0}', space=vmem, size = 0x18000, scoped, tag = 'input window, operand 7, single buffered']
    #allocation13 [shape = 'u8[98304]{0}', space=vmem, size = 0x18000, scoped, tag = 'input window, operand 9, single buffered']
    #allocation14 [shape = 's32[1]{0}', space=sflag, size = 0x4, scoped, tag = 'scoped memory for tpu_custom_call.1']
    %22 = vsyncpa [#allocation6], 0
    %23 = vsyncpa [#allocation8], 0
    %24 = vsyncpa [#allocation11], 0
    %25 = vsyncpa [#allocation14], 0
    // Predicated region
    $region2: #{tpu_custom_call.1} parent=1 // pred_check
      _
    $region3: #{tpu_custom_call.1} parent=1 // pred_check_branch
      %27 = sbr.rel (0) target = $region5
    $region4: #{tpu_custom_call.1} parent=1 // pred_region
      %29 = vsyncadd [#allocation6], 0
      %s30 = sshll.u32 %s0, 4
      %s31 = int_to_ptr.hbm [resolvable:$true] %s30
      %s32 = sshll.u32 [#allocation5], 4
      %s33 = int_to_ptr.vmem [resolvable:$true] %s32
      %38 = dma.hbm_to_vmem [thread:$0]  %s31, 3072, %s33, [#allocation6], 384, 384, 24
    $region5: #{tpu_custom_call.1} parent=1 // pred_fallthru
      _
    // Predicated region
    $region6: #{tpu_custom_call.1} parent=1 // pred_check
      _
    $region7: #{tpu_custom_call.1} parent=1 // pred_check_branch
      %40 = sbr.rel (0) target = $region9
    $region8: #{tpu_custom_call.1} parent=1 // pred_region
      %42 = vsyncadd [#allocation8], 0
      %s43 = sshll.u32 %s1, 4
      %s44 = int_to_ptr.hbm [resolvable:$true] %s43
      %s45 = sshll.u32 [#allocation7], 4
      %s46 = int_to_ptr.vmem [resolvable:$true] %s45
      %51 = dma.hbm_to_vmem [thread:$0]  %s44, 3072, %s46, [#allocation8], 192, 192, 12
    $region9: #{tpu_custom_call.1} parent=1 // pred_fallthru
      _
    // Predicated region
    $region10: #{tpu_custom_call.1} parent=1 // pred_check
      _
    $region11: #{tpu_custom_call.1} parent=1 // pred_check_branch
      %53 = sbr.rel (0) target = $region13
    $region12: #{tpu_custom_call.1} parent=1 // pred_region
      _
    $region13: #{tpu_custom_call.1} parent=1 // pred_fallthru
      _
    // Predicated region
    $region14: #{tpu_custom_call.1} parent=1 // pred_check
      _
    $region15: #{tpu_custom_call.1} parent=1 // pred_check_branch
      %55 = sbr.rel (0) target = $region17
    $region16: #{tpu_custom_call.1} parent=1 // pred_region
      %57 = vsyncadd [#allocation8], 0
      %s58 = sshll.u32 %s3, 4
      %s59 = int_to_ptr.hbm [resolvable:$true] %s58
      %s60 = sshll.u32 [#allocation9], 4
      %s61 = int_to_ptr.vmem [resolvable:$true] %s60
      %66 = dma.hbm_to_vmem [thread:$0]  %s59, 3072, %s61, [#allocation8], 192, 192, 12
    $region17: #{tpu_custom_call.1} parent=1 // pred_fallthru
      _
    // Predicated region
    $region18: #{tpu_custom_call.1} parent=1 // pred_check
      _
    $region19: #{tpu_custom_call.1} parent=1 // pred_check_branch
      %68 = sbr.rel (0) target = $region21
    $region20: #{tpu_custom_call.1} parent=1 // pred_region
      _
    $region21: #{tpu_custom_call.1} parent=1 // pred_fallthru
      _
    // Predicated region
    $region22: #{tpu_custom_call.1} parent=1 // pred_check
      _
    $region23: #{tpu_custom_call.1} parent=1 // pred_check_branch
      %70 = sbr.rel (0) target = $region25
    $region24: #{tpu_custom_call.1} parent=1 // pred_region
      %72 = vsyncadd [#allocation11], 0
      %s73 = sshll.u32 %s5, 4
      %s74 = int_to_ptr.hbm [resolvable:$true] %s73
      %s75 = sshll.u32 [#allocation10], 4
      %s76 = int_to_ptr.vmem [resolvable:$true] %s75
      %81 = dma.hbm_to_vmem [thread:$0]  %s74, 3072, %s76, [#allocation11], 192, 192, 12
    $region25: #{tpu_custom_call.1} parent=1 // pred_fallthru
      _
    // Predicated region
    $region26: #{tpu_custom_call.1} parent=1 // pred_check
      _
    $region27: #{tpu_custom_call.1} parent=1 // pred_check_branch
      %83 = sbr.rel (0) target = $region29
    $region28: #{tpu_custom_call.1} parent=1 // pred_region
      _
    $region29: #{tpu_custom_call.1} parent=1 // pred_fallthru
      _
    // Predicated region
    $region30: #{tpu_custom_call.1} parent=1 // pred_check
      _
    $region31: #{tpu_custom_call.1} parent=1 // pred_check_branch
      %85 = sbr.rel (0) target = $region33
    $region32: #{tpu_custom_call.1} parent=1 // pred_region
      %87 = vsyncadd [#allocation11], 0
      %s88 = sshll.u32 %s7, 4
      %s89 = int_to_ptr.hbm [resolvable:$true] %s88
      %s90 = sshll.u32 [#allocation12], 4
      %s91 = int_to_ptr.vmem [resolvable:$true] %s90
      %96 = dma.hbm_to_vmem [thread:$0]  %s89, 3072, %s91, [#allocation11], 192, 192, 12
    $region33: #{tpu_custom_call.1} parent=1 // pred_fallthru
      _
    // Predicated region
    $region34: #{tpu_custom_call.1} parent=1 // pred_check
      _
    $region35: #{tpu_custom_call.1} parent=1 // pred_check_branch
      %98 = sbr.rel (0) target = $region37
    $region36: #{tpu_custom_call.1} parent=1 // pred_region
      _
    $region37: #{tpu_custom_call.1} parent=1 // pred_fallthru
      _
    // Predicated region
    $region38: #{tpu_custom_call.1} parent=1 // pred_check
      _
    $region39: #{tpu_custom_call.1} parent=1 // pred_check_branch
      %100 = sbr.rel (0) target = $region41
    $region40: #{tpu_custom_call.1} parent=1 // pred_region
      %102 = vsyncadd [#allocation14], 0
      %s103 = sshll.u32 %s9, 4
      %s104 = int_to_ptr.hbm [resolvable:$true] %s103
      %s105 = sshll.u32 [#allocation13], 4
      %s106 = int_to_ptr.vmem [resolvable:$true] %s105
      %111 = dma.hbm_to_vmem [thread:$0]  %s104, 3072, %s106, [#allocation14], 192, 192, 12
    $region41: #{tpu_custom_call.1} parent=1 // pred_fallthru
      _
    // Predicated region
    $region42: #{tpu_custom_call.1} parent=1 // pred_check
      _
    $region43: #{tpu_custom_call.1} parent=1 // pred_check_branch
      %113 = sbr.rel (0) target = $region45
    $region44: #{tpu_custom_call.1} parent=1 // pred_region
      _
    $region45: #{tpu_custom_call.1} parent=1 // pred_fallthru
      _
    // Predicated region
    $region46: #{tpu_custom_call.1} parent=1 // pred_check
      _
    $region47: #{tpu_custom_call.1} parent=1 // pred_check_branch
      %115 = sbr.rel (0) target = $region49
    $region48: #{tpu_custom_call.1} parent=1 // pred_region
      _
    $region49: #{tpu_custom_call.1} parent=1 // pred_fallthru
      _
    // Predicated region
    $region50: #{tpu_custom_call.1} parent=1 // pred_check
      _
    $region51: #{tpu_custom_call.1} parent=1 // pred_check_branch
      %117 = sbr.rel (0) target = $region53
    $region52: #{tpu_custom_call.1} parent=1 // pred_region
      _
    $region53: #{tpu_custom_call.1} parent=1 // pred_fallthru
      _
    // Predicated region
    $region54: #{tpu_custom_call.1} parent=1 // pred_check
      _
    $region55: #{tpu_custom_call.1} parent=1 // pred_check_branch
      %119 = sbr.rel (0) target = $region57
    $region56: #{tpu_custom_call.1} parent=1 // pred_region
      _
    $region57: #{tpu_custom_call.1} parent=1 // pred_fallthru
      _
    // Predicated region
    $region58: #{tpu_custom_call.1} parent=1 // pred_check
      _
    $region59: #{tpu_custom_call.1} parent=1 // pred_check_branch
      %121 = sbr.rel (0) target = $region61
    $region60: #{tpu_custom_call.1} parent=1 // pred_region
      _
    $region61: #{tpu_custom_call.1} parent=1 // pred_fallthru
      _
    // Predicated region
    $region62: #{tpu_custom_call.1} parent=1 // pred_check
      _
    $region63: #{tpu_custom_call.1} parent=1 // pred_check_branch
      %123 = sbr.rel (0) target = $region65
    $region64: #{tpu_custom_call.1} parent=1 // pred_region
      %125 = dma.done [#allocation6], 3072
    $region65: #{tpu_custom_call.1} parent=1 // pred_fallthru
      _
    // Predicated region
    $region66: #{tpu_custom_call.1} parent=1 // pred_check
      _
    $region67: #{tpu_custom_call.1} parent=1 // pred_check_branch
      %127 = sbr.rel (0) target = $region69
    $region68: #{tpu_custom_call.1} parent=1 // pred_region
      %129 = dma.done [#allocation8], 3072
    $region69: #{tpu_custom_call.1} parent=1 // pred_fallthru
      _
    // Predicated region
    $region70: #{tpu_custom_call.1} parent=1 // pred_check
      _
    $region71: #{tpu_custom_call.1} parent=1 // pred_check_branch
      %131 = sbr.rel (0) target = $region73
    $region72: #{tpu_custom_call.1} parent=1 // pred_region
      %133 = dma.done [#allocation8], 3072
    $region73: #{tpu_custom_call.1} parent=1 // pred_fallthru
      _
    // Predicated region
    $region74: #{tpu_custom_call.1} parent=1 // pred_check
      _
    $region75: #{tpu_custom_call.1} parent=1 // pred_check_branch
      %135 = sbr.rel (0) target = $region77
    $region76: #{tpu_custom_call.1} parent=1 // pred_region
      %137 = dma.done [#allocation11], 3072
    $region77: #{tpu_custom_call.1} parent=1 // pred_fallthru
      _
    // Predicated region
    $region78: #{tpu_custom_call.1} parent=1 // pred_check
      _
    $region79: #{tpu_custom_call.1} parent=1 // pred_check_branch
      %139 = sbr.rel (0) target = $region81
    $region80: #{tpu_custom_call.1} parent=1 // pred_region
      %141 = dma.done [#allocation11], 3072
    $region81: #{tpu_custom_call.1} parent=1 // pred_fallthru
      _
    // Predicated region
    $region82: #{tpu_custom_call.1} parent=1 // pred_check
      _
    $region83: #{tpu_custom_call.1} parent=1 // pred_check_branch
      %143 = sbr.rel (0) target = $region85
    $region84: #{tpu_custom_call.1} parent=1 // pred_region
      %145 = dma.done [#allocation14], 3072
    $region85: #{tpu_custom_call.1} parent=1 // pred_fallthru
      _
    %v147 = vld [vmem:[%s6] sm:$0x1]
    %v148 = vld [vmem:[#allocation5] sm:$0xff]
    %v149 = vld [vmem:[#allocation10] sm:$0xf]
    %v150 = vld [vmem:[#allocation10 + $0xc] sm:$0xf]
    %v151 = vld [vmem:[#allocation10 + $0x18] sm:$0xf]
    %v152 = vld [vmem:[#allocation10 + $0x24] sm:$0xf]
    %v153 = vld [vmem:[#allocation10 + $0x30] sm:$0xf]
    %v154 = vld [vmem:[#allocation10 + $0x3c] sm:$0xf]
    %v155 = vld [vmem:[#allocation10 + $0x48] sm:$0xf]
    %v156 = vld [vmem:[#allocation10 + $0x54] sm:$0xf]
    %v157 = vld [vmem:[#allocation10 + $0x60] sm:$0xf]
    %v158 = vld [vmem:[#allocation10 + $0x6c] sm:$0xf]
    %v159 = vld [vmem:[#allocation10 + $0x78] sm:$0xf]
    %v160 = vld [vmem:[#allocation10 + $0x84] sm:$0xf]
    %v161 = vld [vmem:[#allocation10 + $0x90] sm:$0xf]
    %v162 = vld [vmem:[#allocation10 + $0x9c] sm:$0xf]
    %v163 = vld [vmem:[#allocation10 + $0xa8] sm:$0xf]
    %v164 = vld [vmem:[#allocation10 + $0xb4] sm:$0xf]
    %v181 = vunpack.c.l.b16 %v149
    %v182 = vunpack.c.l.b16 %v150
    %v183 = vunpack.c.l.b16 %v151
    %v184 = vunpack.c.l.b16 %v152
    %v185 = vunpack.c.l.b16 %v153
    %v186 = vunpack.c.l.b16 %v154
    %v187 = vunpack.c.l.b16 %v155
    %v188 = vunpack.c.l.b16 %v156
    %v189 = vunpack.c.l.b16 %v157
    %v190 = vunpack.c.l.b16 %v158
    %v191 = vunpack.c.l.b16 %v159
    %v192 = vunpack.c.l.b16 %v160
    %v193 = vunpack.c.l.b16 %v161
    %v194 = vunpack.c.l.b16 %v162
    %v195 = vunpack.c.l.b16 %v163
    %v196 = vunpack.c.l.b16 %v164
    %v197 = vpack.c.b16 %v182, %v181
    %v198 = vpack.c.b16 %v184, %v183
    %v199 = vpack.c.b16 %v186, %v185
    %v200 = vpack.c.b16 %v188, %v187
    %v201 = vpack.c.b16 %v190, %v189
    %v202 = vpack.c.b16 %v192, %v191
    %v203 = vpack.c.b16 %v194, %v193
    %v204 = vpack.c.b16 %v196, %v195
    %213 = vmatpush.bf16.msra.mxu0 %v204
    %214 = vmatpush.bf16.msra.mxu0 %v203
    %215 = vmatpush.bf16.msra.mxu0 %v202
    %216 = vmatpush.bf16.msra.mxu0 %v201
    %217 = vmatpush.bf16.msra.mxu0 %v200
    %218 = vmatpush.bf16.msra.mxu0 %v199
    %219 = vmatpush.bf16.msra.mxu0 %v198
    %220 = vmatpush.bf16.msra.mxu0 %v197
    %221 = vmatmul.bf16.gmra.mxu0 0
    %v222 = vpop.f32.mrf.mxu0
    %v223 = vadd.f32 0.0, %v222
    %v224 = vpop.f32.mrf.mxu0
    %225 = vdwg.mxu0
    %v226 = vadd.f32 %v148, %v223
    %v227 = vxor.u32 %v226, 2147483648
    %v228 = vmul.f32 %v227, 1.442695
    %v229 = vpow.pop %v228
    %v230 = vadd.f32 %v229, 1.0
    %v231 = vrcp.pop %v230
    %v232 = vmul.f32 %v230, %v231
    %v233 = vsub.f32 1.0, %v232
    %v234 = vmul.f32 %v231, %v233
    %v235 = vadd.f32 %v231, %v234
    %vm236 = vweird.f32 %v230
    %vm237 = vweird.f32 %v231
    %vm238 = vmor %vm236, %vm237
    %v239 = vsel %vm238, %v231, %v235
    %v240 = vand.u32 2147483647, %v230
    %vm241 = vcmp.eq.f32.partialorder %v240, 8.507059e+37
    %v242 = vand.u32 %v230, 2147483648
    %v243 = vor.u32 1.1754944e-38, %v242
    %v244 = vsel %vm241, %v243, %v239
    %v245 = vmul.f32 1.0, %v244
    %v246 = vld [vmem:[#allocation5 + $0x8] sm:$0xff]
    %v247 = vld [vmem:[#allocation10 + $0x4] sm:$0xf]
    %v248 = vld [vmem:[#allocation10 + $0x10] sm:$0xf]
    %v249 = vld [vmem:[#allocation10 + $0x1c] sm:$0xf]
    %v250 = vld [vmem:[#allocation10 + $0x28] sm:$0xf]
    %v251 = vld [vmem:[#allocation10 + $0x34] sm:$0xf]
    %v252 = vld [vmem:[#allocation10 + $0x40] sm:$0xf]
    %v253 = vld [vmem:[#allocation10 + $0x4c] sm:$0xf]
    %v254 = vld [vmem:[#allocation10 + $0x58] sm:$0xf]
    %v255 = vld [vmem:[#allocation10 + $0x64] sm:$0xf]
    %v256 = vld [vmem:[#allocation10 + $0x70] sm:$0xf]
    %v257 = vld [vmem:[#allocation10 + $0x7c] sm:$0xf]
    %v258 = vld [vmem:[#allocation10 + $0x88] sm:$0xf]
    %v259 = vld [vmem:[#allocation10 + $0x94] sm:$0xf]
    %v260 = vld [vmem:[#allocation10 + $0xa0] sm:$0xf]
    %v261 = vld [vmem:[#allocation10 + $0xac] sm:$0xf]
    %v262 = vld [vmem:[#allocation10 + $0xb8] sm:$0xf]
    %v279 = vunpack.c.l.b16 %v247
    %v280 = vunpack.c.l.b16 %v248
    %v281 = vunpack.c.l.b16 %v249
    %v282 = vunpack.c.l.b16 %v250
    %v283 = vunpack.c.l.b16 %v251
    %v284 = vunpack.c.l.b16 %v252
    %v285 = vunpack.c.l.b16 %v253
    %v286 = vunpack.c.l.b16 %v254
    %v287 = vunpack.c.l.b16 %v255
    %v288 = vunpack.c.l.b16 %v256
    %v289 = vunpack.c.l.b16 %v257
    %v290 = vunpack.c.l.b16 %v258
    %v291 = vunpack.c.l.b16 %v259
    %v292 = vunpack.c.l.b16 %v260
    %v293 = vunpack.c.l.b16 %v261
    %v294 = vunpack.c.l.b16 %v262
    %v295 = vpack.c.b16 %v280, %v279
    %v296 = vpack.c.b16 %v282, %v281
    %v297 = vpack.c.b16 %v284, %v283
    %v298 = vpack.c.b16 %v286, %v285
    %v299 = vpack.c.b16 %v288, %v287
    %v300 = vpack.c.b16 %v290, %v289
    %v301 = vpack.c.b16 %v292, %v291
    %v302 = vpack.c.b16 %v294, %v293
    %311 = vmatpush.bf16.msra.mxu0 %v302
    %312 = vmatpush.bf16.msra.mxu0 %v301
    %313 = vmatpush.bf16.msra.mxu0 %v300
    %314 = vmatpush.bf16.msra.mxu0 %v299
    %315 = vmatpush.bf16.msra.mxu0 %v298
    %316 = vmatpush.bf16.msra.mxu0 %v297
    %317 = vmatpush.bf16.msra.mxu0 %v296
    %318 = vmatpush.bf16.msra.mxu0 %v295
    %319 = vmatmul.bf16.gmra.mxu0 0
    %v320 = vpop.f32.mrf.mxu0
    %v321 = vadd.f32 0.0, %v320
    %v322 = vpop.f32.mrf.mxu0
    %323 = vdwg.mxu0
    %v324 = vadd.f32 %v246, %v321
    %v325 = vxor.u32 %v324, 2147483648
    %v326 = vmul.f32 %v325, 1.442695
    %v327 = vpow.pop %v326
    %v328 = vadd.f32 %v327, 1.0
    %v329 = vrcp.pop %v328
    %v330 = vmul.f32 %v328, %v329
    %v331 = vsub.f32 1.0, %v330
    %v332 = vmul.f32 %v329, %v331
    %v333 = vadd.f32 %v329, %v332
    %vm334 = vweird.f32 %v328
    %vm335 = vweird.f32 %v329
    %vm336 = vmor %vm334, %vm335
    %v337 = vsel %vm336, %v329, %v333
    %v338 = vand.u32 2147483647, %v328
    %vm339 = vcmp.eq.f32.partialorder %v338, 8.507059e+37
    %v340 = vand.u32 %v328, 2147483648
    %v341 = vor.u32 1.1754944e-38, %v340
    %v342 = vsel %vm339, %v341, %v337
    %v343 = vmul.f32 1.0, %v342
    %v344 = vld [vmem:[#allocation5 + $0x10] sm:$0xff]
    %v345 = vld [vmem:[#allocation10 + $0x8] sm:$0xf]
    %v346 = vld [vmem:[#allocation10 + $0x14] sm:$0xf]
    %v347 = vld [vmem:[#allocation10 + $0x20] sm:$0xf]
    %v348 = vld [vmem:[#allocation10 + $0x2c] sm:$0xf]
    %v349 = vld [vmem:[#allocation10 + $0x38] sm:$0xf]
    %v350 = vld [vmem:[#allocation10 + $0x44] sm:$0xf]
    %v351 = vld [vmem:[#allocation10 + $0x50] sm:$0xf]
    %v352 = vld [vmem:[#allocation10 + $0x5c] sm:$0xf]
    %v353 = vld [vmem:[#allocation10 + $0x68] sm:$0xf]
    %v354 = vld [vmem:[#allocation10 + $0x74] sm:$0xf]
    %v355 = vld [vmem:[#allocation10 + $0x80] sm:$0xf]
    %v356 = vld [vmem:[#allocation10 + $0x8c] sm:$0xf]
    %v357 = vld [vmem:[#allocation10 + $0x98] sm:$0xf]
    %v358 = vld [vmem:[#allocation10 + $0xa4] sm:$0xf]
    %v359 = vld [vmem:[#allocation10 + $0xb0] sm:$0xf]
    %v360 = vld [vmem:[#allocation10 + $0xbc] sm:$0xf]
    %v362 = vperm.slane %v147, 0
    %v380 = vunpack.c.l.b16 %v345
    %v381 = vunpack.c.l.b16 %v346
    %v382 = vunpack.c.l.b16 %v347
    %v383 = vunpack.c.l.b16 %v348
    %v384 = vunpack.c.l.b16 %v349
    %v385 = vunpack.c.l.b16 %v350
    %v386 = vunpack.c.l.b16 %v351
    %v387 = vunpack.c.l.b16 %v352
    %v388 = vunpack.c.l.b16 %v353
    %v389 = vunpack.c.l.b16 %v354
    %v390 = vunpack.c.l.b16 %v355
    %v391 = vunpack.c.l.b16 %v356
    %v392 = vunpack.c.l.b16 %v357
    %v393 = vunpack.c.l.b16 %v358
    %v394 = vunpack.c.l.b16 %v359
    %v395 = vunpack.c.l.b16 %v360
    %v396 = vpack.c.b16 %v381, %v380
    %v397 = vpack.c.b16 %v383, %v382
    %v398 = vpack.c.b16 %v385, %v384
    %v399 = vpack.c.b16 %v387, %v386
    %v400 = vpack.c.b16 %v389, %v388
    %v401 = vpack.c.b16 %v391, %v390
    %v402 = vpack.c.b16 %v393, %v392
    %v403 = vpack.c.b16 %v395, %v394
    %412 = vmatpush.bf16.msra.mxu0 %v403
    %413 = vmatpush.bf16.msra.mxu0 %v402
    %414 = vmatpush.bf16.msra.mxu0 %v401
    %415 = vmatpush.bf16.msra.mxu0 %v400
    %416 = vmatpush.bf16.msra.mxu0 %v399
    %417 = vmatpush.bf16.msra.mxu0 %v398
    %418 = vmatpush.bf16.msra.mxu0 %v397
    %419 = vmatpush.bf16.msra.mxu0 %v396
    %420 = vmatmul.bf16.gmra.mxu0 0
    %v421 = vpop.f32.mrf.mxu0
    %v422 = vadd.f32 %v362, %v421
    %v423 = vpop.f32.mrf.mxu0
    %424 = vdwg.mxu0
    %v425 = vmul.f32 %v245, %v422
    %v426 = vadd.f32 %v344, %v425
    %v427 = vtanh.pop %v426
    %v428 = vsub.f32 1.0, %v343
    %v429 = vmul.f32 %v428, %v427
    %v430 = vmul.f32 %v343, 0.0
    %v431 = vadd.f32 %v429, %v430
    %v432 = vpack.c.bf16 %v431, %v431
    %v433 = vld [vmem:[#allocation7] sm:$0xff]
    %v434 = vld [vmem:[#allocation7 + $0x8] sm:$0xf]
    %v435 = vld [vmem:[#allocation7 + $0xc] sm:$0xff]
    %v436 = vld [vmem:[#allocation7 + $0x14] sm:$0xf]
    %v437 = vld [vmem:[#allocation7 + $0x18] sm:$0xff]
    %v438 = vld [vmem:[#allocation7 + $0x20] sm:$0xf]
    %v439 = vld [vmem:[#allocation7 + $0x24] sm:$0xff]
    %v440 = vld [vmem:[#allocation7 + $0x2c] sm:$0xf]
    %v441 = vld [vmem:[#allocation7 + $0x30] sm:$0xff]
    %v442 = vld [vmem:[#allocation7 + $0x38] sm:$0xf]
    %v443 = vld [vmem:[#allocation7 + $0x3c] sm:$0xff]
    %v444 = vld [vmem:[#allocation7 + $0x44] sm:$0xf]
    %v445 = vld [vmem:[#allocation7 + $0x48] sm:$0xff]
    %v446 = vld [vmem:[#allocation7 + $0x50] sm:$0xf]
    %v447 = vld [vmem:[#allocation7 + $0x54] sm:$0xff]
    %v448 = vld [vmem:[#allocation7 + $0x5c] sm:$0xf]
    %v449 = vld [vmem:[#allocation7 + $0x60] sm:$0xff]
    %v450 = vld [vmem:[#allocation7 + $0x68] sm:$0xf]
    %v451 = vld [vmem:[#allocation7 + $0x6c] sm:$0xff]
    %v452 = vld [vmem:[#allocation7 + $0x74] sm:$0xf]
    %v453 = vld [vmem:[#allocation7 + $0x78] sm:$0xff]
    %v454 = vld [vmem:[#allocation7 + $0x80] sm:$0xf]
    %v455 = vld [vmem:[#allocation7 + $0x84] sm:$0xff]
    %v456 = vld [vmem:[#allocation7 + $0x8c] sm:$0xf]
    %v457 = vld [vmem:[#allocation7 + $0x90] sm:$0xff]
    %v458 = vld [vmem:[#allocation7 + $0x98] sm:$0xf]
    %v459 = vld [vmem:[#allocation7 + $0x9c] sm:$0xff]
    %v460 = vld [vmem:[#allocation7 + $0xa4] sm:$0xf]
    %v461 = vld [vmem:[#allocation7 + $0xa8] sm:$0xff]
    %v462 = vld [vmem:[#allocation7 + $0xb0] sm:$0xf]
    %v463 = vld [vmem:[#allocation7 + $0xb4] sm:$0xff]
    %v464 = vld [vmem:[#allocation7 + $0xbc] sm:$0xf]
    %v465 = vld [vmem:[%s2] sm:$0x7]
    %v467 = vperm.slane %v465, 0
    %v468 = vperm.slane %v465, 1
    %v469 = vperm.slane %v465, 2
    %v505 = vunpack.c.l.b16 %v433
    %v506 = vunpack.c.h.b16 %v433
    %v507 = vunpack.c.l.b16 %v434
    %v508 = vunpack.c.l.b16 %v435
    %v509 = vunpack.c.h.b16 %v435
    %v510 = vunpack.c.l.b16 %v436
    %v511 = vunpack.c.l.b16 %v437
    %v512 = vunpack.c.h.b16 %v437
    %v513 = vunpack.c.l.b16 %v438
    %v514 = vunpack.c.l.b16 %v439
    %v515 = vunpack.c.h.b16 %v439
    %v516 = vunpack.c.l.b16 %v440
    %v517 = vunpack.c.l.b16 %v441
    %v518 = vunpack.c.h.b16 %v441
    %v519 = vunpack.c.l.b16 %v442
    %v520 = vunpack.c.l.b16 %v443
    %v521 = vunpack.c.h.b16 %v443
    %v522 = vunpack.c.l.b16 %v444
    %v523 = vunpack.c.l.b16 %v445
    %v524 = vunpack.c.h.b16 %v445
    %v525 = vunpack.c.l.b16 %v446
    %v526 = vunpack.c.l.b16 %v447
    %v527 = vunpack.c.h.b16 %v447
    %v528 = vunpack.c.l.b16 %v448
    %v529 = vunpack.c.l.b16 %v449
    %v530 = vunpack.c.h.b16 %v449
    %v531 = vunpack.c.l.b16 %v450
    %v532 = vunpack.c.l.b16 %v451
    %v533 = vunpack.c.h.b16 %v451
    %v534 = vunpack.c.l.b16 %v452
    %v535 = vunpack.c.l.b16 %v453
    %v536 = vunpack.c.h.b16 %v453
    %v537 = vunpack.c.l.b16 %v454
    %v538 = vunpack.c.l.b16 %v455
    %v539 = vunpack.c.h.b16 %v455
    %v540 = vunpack.c.l.b16 %v456
    %v541 = vunpack.c.l.b16 %v457
    %v542 = vunpack.c.h.b16 %v457
    %v543 = vunpack.c.l.b16 %v458
    %v544 = vunpack.c.l.b16 %v459
    %v545 = vunpack.c.h.b16 %v459
    %v546 = vunpack.c.l.b16 %v460
    %v547 = vunpack.c.l.b16 %v461
    %v548 = vunpack.c.h.b16 %v461
    %v549 = vunpack.c.l.b16 %v462
    %v550 = vunpack.c.l.b16 %v463
    %v551 = vunpack.c.h.b16 %v463
    %v552 = vunpack.c.l.b16 %v464
    %v553 = vpack.c.b16 %v508, %v505
    %v554 = vpack.c.b16 %v509, %v506
    %v555 = vpack.c.b16 %v510, %v507
    %v556 = vpack.c.b16 %v514, %v511
    %v557 = vpack.c.b16 %v515, %v512
    %v558 = vpack.c.b16 %v516, %v513
    %v559 = vpack.c.b16 %v520, %v517
    %v560 = vpack.c.b16 %v521, %v518
    %v561 = vpack.c.b16 %v522, %v519
    %v562 = vpack.c.b16 %v526, %v523
    %v563 = vpack.c.b16 %v527, %v524
    %v564 = vpack.c.b16 %v528, %v525
    %v565 = vpack.c.b16 %v532, %v529
    %v566 = vpack.c.b16 %v533, %v530
    %v567 = vpack.c.b16 %v534, %v531
    %v568 = vpack.c.b16 %v538, %v535
    %v569 = vpack.c.b16 %v539, %v536
    %v570 = vpack.c.b16 %v540, %v537
    %v571 = vpack.c.b16 %v544, %v541
    %v572 = vpack.c.b16 %v545, %v542
    %v573 = vpack.c.b16 %v546, %v543
    %v574 = vpack.c.b16 %v550, %v547
    %v575 = vpack.c.b16 %v551, %v548
    %v576 = vpack.c.b16 %v552, %v549
    %601 = vmatpush.bf16.msra.mxu0 %v574
    %602 = vmatpush.bf16.msra.mxu0 %v571
    %603 = vmatpush.bf16.msra.mxu0 %v568
    %604 = vmatpush.bf16.msra.mxu0 %v565
    %605 = vmatpush.bf16.msra.mxu0 %v562
    %606 = vmatpush.bf16.msra.mxu0 %v559
    %607 = vmatpush.bf16.msra.mxu0 %v556
    %608 = vmatpush.bf16.msra.mxu0 %v553
    %609 = vmatmul.bf16.gmra.mxu0 %v432
    %v610 = vpop.f32.mrf.mxu0
    %v611 = vadd.f32 %v467, %v610
    %v612 = vpop.f32.mrf.mxu0
    %613 = vdwg.mxu0
    %614 = vmatpush.bf16.msra.mxu0 %v575
    %615 = vmatpush.bf16.msra.mxu0 %v572
    %616 = vmatpush.bf16.msra.mxu0 %v569
    %617 = vmatpush.bf16.msra.mxu0 %v566
    %618 = vmatpush.bf16.msra.mxu0 %v563
    %619 = vmatpush.bf16.msra.mxu0 %v560
    %620 = vmatpush.bf16.msra.mxu0 %v557
    %621 = vmatpush.bf16.msra.mxu0 %v554
    %622 = vmatmul.bf16.gmra.mxu0 %v432
    %v623 = vpop.f32.mrf.mxu0
    %v624 = vadd.f32 %v468, %v623
    %v625 = vpop.f32.mrf.mxu0
    %626 = vdwg.mxu0
    %627 = vmatpush.bf16.msra.mxu0 %v576
    %628 = vmatpush.bf16.msra.mxu0 %v573
    %629 = vmatpush.bf16.msra.mxu0 %v570
    %630 = vmatpush.bf16.msra.mxu0 %v567
    %631 = vmatpush.bf16.msra.mxu0 %v564
    %632 = vmatpush.bf16.msra.mxu0 %v561
    %633 = vmatpush.bf16.msra.mxu0 %v558
    %634 = vmatpush.bf16.msra.mxu0 %v555
    %635 = vmatmul.bf16.gmra.mxu0 %v432
    %v636 = vpop.f32.mrf.mxu0
    %v637 = vadd.f32 %v469, %v636
    %v638 = vpop.f32.mrf.mxu0
    %639 = vdwg.mxu0
    %640 = vst [vmem:[#allocation2] sm:$0xff] %v611
    %641 = vst [vmem:[#allocation2 + $0x8] sm:$0xff] %v624
    %642 = vst [vmem:[#allocation2 + $0x10] sm:$0xff] %v637
    %s643 = scalar_lea.vmem [#allocation5], 24
    %v644 = vld [vmem:[%s643] sm:$0xff]
    %v645 = vld [vmem:[#allocation10] sm:$0xf]
    %v646 = vld [vmem:[#allocation10 + $0xc] sm:$0xf]
    %v647 = vld [vmem:[#allocation10 + $0x18] sm:$0xf]
    %v648 = vld [vmem:[#allocation10 + $0x24] sm:$0xf]
    %v649 = vld [vmem:[#allocation10 + $0x30] sm:$0xf]
    %v650 = vld [vmem:[#allocation10 + $0x3c] sm:$0xf]
    %v651 = vld [vmem:[#allocation10 + $0x48] sm:$0xf]
    %v652 = vld [vmem:[#allocation10 + $0x54] sm:$0xf]
    %v653 = vld [vmem:[#allocation10 + $0x60] sm:$0xf]
    %v654 = vld [vmem:[#allocation10 + $0x6c] sm:$0xf]
    %v655 = vld [vmem:[#allocation10 + $0x78] sm:$0xf]
    %v656 = vld [vmem:[#allocation10 + $0x84] sm:$0xf]
    %v657 = vld [vmem:[#allocation10 + $0x90] sm:$0xf]
    %v658 = vld [vmem:[#allocation10 + $0x9c] sm:$0xf]
    %v659 = vld [vmem:[#allocation10 + $0xa8] sm:$0xf]
    %v660 = vld [vmem:[#allocation10 + $0xb4] sm:$0xf]
    %v677 = vunpack.c.l.b16 %v645
    %v678 = vunpack.c.l.b16 %v646
    %v679 = vunpack.c.l.b16 %v647
    %v680 = vunpack.c.l.b16 %v648
    %v681 = vunpack.c.l.b16 %v649
    %v682 = vunpack.c.l.b16 %v650
    %v683 = vunpack.c.l.b16 %v651
    %v684 = vunpack.c.l.b16 %v652
    %v685 = vunpack.c.l.b16 %v653
    %v686 = vunpack.c.l.b16 %v654
    %v687 = vunpack.c.l.b16 %v655
    %v688 = vunpack.c.l.b16 %v656
    %v689 = vunpack.c.l.b16 %v657
    %v690 = vunpack.c.l.b16 %v658
    %v691 = vunpack.c.l.b16 %v659
    %v692 = vunpack.c.l.b16 %v660
    %v693 = vpack.c.b16 %v678, %v677
    %v694 = vpack.c.b16 %v680, %v679
    %v695 = vpack.c.b16 %v682, %v681
    %v696 = vpack.c.b16 %v684, %v683
    %v697 = vpack.c.b16 %v686, %v685
    %v698 = vpack.c.b16 %v688, %v687
    %v699 = vpack.c.b16 %v690, %v689
    %v700 = vpack.c.b16 %v692, %v691
    %709 = vmatpush.bf16.msra.mxu0 %v700
    %710 = vmatpush.bf16.msra.mxu0 %v699
    %711 = vmatpush.bf16.msra.mxu0 %v698
    %712 = vmatpush.bf16.msra.mxu0 %v697
    %713 = vmatpush.bf16.msra.mxu0 %v696
    %714 = vmatpush.bf16.msra.mxu0 %v695
    %715 = vmatpush.bf16.msra.mxu0 %v694
    %716 = vmatpush.bf16.msra.mxu0 %v693
    %717 = vmatmul.bf16.gmra.mxu0 %v432
    %v718 = vpop.f32.mrf.mxu0
    %v719 = vadd.f32 0.0, %v718
    %v720 = vpop.f32.mrf.mxu0
    %721 = vdwg.mxu0
    %v722 = vadd.f32 %v644, %v719
    %v723 = vxor.u32 %v722, 2147483648
    %v724 = vmul.f32 %v723, 1.442695
    %v725 = vpow.pop %v724
    %v726 = vadd.f32 %v725, 1.0
    %v727 = vrcp.pop %v726
    %v728 = vmul.f32 %v726, %v727
    %v729 = vsub.f32 1.0, %v728
    %v730 = vmul.f32 %v727, %v729
    %v731 = vadd.f32 %v727, %v730
    %vm732 = vweird.f32 %v726
    %vm733 = vweird.f32 %v727
    %vm734 = vmor %vm732, %vm733
    %v735 = vsel %vm734, %v727, %v731
    %v736 = vand.u32 2147483647, %v726
    %vm737 = vcmp.eq.f32.partialorder %v736, 8.507059e+37
    %v738 = vand.u32 %v726, 2147483648
    %v739 = vor.u32 1.1754944e-38, %v738
    %v740 = vsel %vm737, %v739, %v735
    %v741 = vmul.f32 1.0, %v740
    %v742 = vld [vmem:[%s643 + $0x8] sm:$0xff]
    %v743 = vld [vmem:[#allocation10 + $0x4] sm:$0xf]
    %v744 = vld [vmem:[#allocation10 + $0x10] sm:$0xf]
    %v745 = vld [vmem:[#allocation10 + $0x1c] sm:$0xf]
    %v746 = vld [vmem:[#allocation10 + $0x28] sm:$0xf]
    %v747 = vld [vmem:[#allocation10 + $0x34] sm:$0xf]
    %v748 = vld [vmem:[#allocation10 + $0x40] sm:$0xf]
    %v749 = vld [vmem:[#allocation10 + $0x4c] sm:$0xf]
    %v750 = vld [vmem:[#allocation10 + $0x58] sm:$0xf]
    %v751 = vld [vmem:[#allocation10 + $0x64] sm:$0xf]
    %v752 = vld [vmem:[#allocation10 + $0x70] sm:$0xf]
    %v753 = vld [vmem:[#allocation10 + $0x7c] sm:$0xf]
    %v754 = vld [vmem:[#allocation10 + $0x88] sm:$0xf]
    %v755 = vld [vmem:[#allocation10 + $0x94] sm:$0xf]
    %v756 = vld [vmem:[#allocation10 + $0xa0] sm:$0xf]
    %v757 = vld [vmem:[#allocation10 + $0xac] sm:$0xf]
    %v758 = vld [vmem:[#allocation10 + $0xb8] sm:$0xf]
    %v775 = vunpack.c.l.b16 %v743
    %v776 = vunpack.c.l.b16 %v744
    %v777 = vunpack.c.l.b16 %v745
    %v778 = vunpack.c.l.b16 %v746
    %v779 = vunpack.c.l.b16 %v747
    %v780 = vunpack.c.l.b16 %v748
    %v781 = vunpack.c.l.b16 %v749
    %v782 = vunpack.c.l.b16 %v750
    %v783 = vunpack.c.l.b16 %v751
    %v784 = vunpack.c.l.b16 %v752
    %v785 = vunpack.c.l.b16 %v753
    %v786 = vunpack.c.l.b16 %v754
    %v787 = vunpack.c.l.b16 %v755
    %v788 = vunpack.c.l.b16 %v756
    %v789 = vunpack.c.l.b16 %v757
    %v790 = vunpack.c.l.b16 %v758
    %v791 = vpack.c.b16 %v776, %v775
    %v792 = vpack.c.b16 %v778, %v777
    %v793 = vpack.c.b16 %v780, %v779
    %v794 = vpack.c.b16 %v782, %v781
    %v795 = vpack.c.b16 %v784, %v783
    %v796 = vpack.c.b16 %v786, %v785
    %v797 = vpack.c.b16 %v788, %v787
    %v798 = vpack.c.b16 %v790, %v789
    %807 = vmatpush.bf16.msra.mxu0 %v798
    %808 = vmatpush.bf16.msra.mxu0 %v797
    %809 = vmatpush.bf16.msra.mxu0 %v796
    %810 = vmatpush.bf16.msra.mxu0 %v795
    %811 = vmatpush.bf16.msra.mxu0 %v794
    %812 = vmatpush.bf16.msra.mxu0 %v793
    %813 = vmatpush.bf16.msra.mxu0 %v792
    %814 = vmatpush.bf16.msra.mxu0 %v791
    %815 = vmatmul.bf16.gmra.mxu0 %v432
    %v816 = vpop.f32.mrf.mxu0
    %v817 = vadd.f32 0.0, %v816
    %v818 = vpop.f32.mrf.mxu0
    %819 = vdwg.mxu0
    %v820 = vadd.f32 %v742, %v817
    %v821 = vxor.u32 %v820, 2147483648
    %v822 = vmul.f32 %v821, 1.442695
    %v823 = vpow.pop %v822
    %v824 = vadd.f32 %v823, 1.0
    %v825 = vrcp.pop %v824
    %v826 = vmul.f32 %v824, %v825
    %v827 = vsub.f32 1.0, %v826
    %v828 = vmul.f32 %v825, %v827
    %v829 = vadd.f32 %v825, %v828
    %vm830 = vweird.f32 %v824
    %vm831 = vweird.f32 %v825
    %vm832 = vmor %vm830, %vm831
    %v833 = vsel %vm832, %v825, %v829
    %v834 = vand.u32 2147483647, %v824
    %vm835 = vcmp.eq.f32.partialorder %v834, 8.507059e+37
    %v836 = vand.u32 %v824, 2147483648
    %v837 = vor.u32 1.1754944e-38, %v836
    %v838 = vsel %vm835, %v837, %v833
    %v839 = vmul.f32 1.0, %v838
    %v840 = vld [vmem:[%s643 + $0x10] sm:$0xff]
    %v841 = vld [vmem:[#allocation10 + $0x8] sm:$0xf]
    %v842 = vld [vmem:[#allocation10 + $0x14] sm:$0xf]
    %v843 = vld [vmem:[#allocation10 + $0x20] sm:$0xf]
    %v844 = vld [vmem:[#allocation10 + $0x2c] sm:$0xf]
    %v845 = vld [vmem:[#allocation10 + $0x38] sm:$0xf]
    %v846 = vld [vmem:[#allocation10 + $0x44] sm:$0xf]
    %v847 = vld [vmem:[#allocation10 + $0x50] sm:$0xf]
    %v848 = vld [vmem:[#allocation10 + $0x5c] sm:$0xf]
    %v849 = vld [vmem:[#allocation10 + $0x68] sm:$0xf]
    %v850 = vld [vmem:[#allocation10 + $0x74] sm:$0xf]
    %v851 = vld [vmem:[#allocation10 + $0x80] sm:$0xf]
    %v852 = vld [vmem:[#allocation10 + $0x8c] sm:$0xf]
    %v853 = vld [vmem:[#allocation10 + $0x98] sm:$0xf]
    %v854 = vld [vmem:[#allocation10 + $0xa4] sm:$0xf]
    %v855 = vld [vmem:[#allocation10 + $0xb0] sm:$0xf]
    %v856 = vld [vmem:[#allocation10 + $0xbc] sm:$0xf]
    %v873 = vunpack.c.l.b16 %v841
    %v874 = vunpack.c.l.b16 %v842
    %v875 = vunpack.c.l.b16 %v843
    %v876 = vunpack.c.l.b16 %v844
    %v877 = vunpack.c.l.b16 %v845
    %v878 = vunpack.c.l.b16 %v846
    %v879 = vunpack.c.l.b16 %v847
    %v880 = vunpack.c.l.b16 %v848
    %v881 = vunpack.c.l.b16 %v849
    %v882 = vunpack.c.l.b16 %v850
    %v883 = vunpack.c.l.b16 %v851
    %v884 = vunpack.c.l.b16 %v852
    %v885 = vunpack.c.l.b16 %v853
    %v886 = vunpack.c.l.b16 %v854
    %v887 = vunpack.c.l.b16 %v855
    %v888 = vunpack.c.l.b16 %v856
    %v889 = vpack.c.b16 %v874, %v873
    %v890 = vpack.c.b16 %v876, %v875
    %v891 = vpack.c.b16 %v878, %v877
    %v892 = vpack.c.b16 %v880, %v879
    %v893 = vpack.c.b16 %v882, %v881
    %v894 = vpack.c.b16 %v884, %v883
    %v895 = vpack.c.b16 %v886, %v885
    %v896 = vpack.c.b16 %v888, %v887
    %905 = vmatpush.bf16.msra.mxu0 %v896
    %906 = vmatpush.bf16.msra.mxu0 %v895
    %907 = vmatpush.bf16.msra.mxu0 %v894
    %908 = vmatpush.bf16.msra.mxu0 %v893
    %909 = vmatpush.bf16.msra.mxu0 %v892
    %910 = vmatpush.bf16.msra.mxu0 %v891
    %911 = vmatpush.bf16.msra.mxu0 %v890
    %912 = vmatpush.bf16.msra.mxu0 %v889
    %913 = vmatmul.bf16.gmra.mxu0 %v432
    %v914 = vpop.f32.mrf.mxu0
    %v915 = vadd.f32 %v362, %v914
    %v916 = vpop.f32.mrf.mxu0
    %917 = vdwg.mxu0
    %v918 = vmul.f32 %v741, %v915
    %v919 = vadd.f32 %v840, %v918
    %v920 = vtanh.pop %v919
    %v921 = vsub.f32 1.0, %v839
    %v922 = vmul.f32 %v921, %v920
    %v923 = vmul.f32 %v839, %v431
    %v924 = vadd.f32 %v922, %v923
    %v925 = vpack.c.bf16 %v924, %v924
    %v926 = vld [vmem:[#allocation7] sm:$0xff]
    %v927 = vld [vmem:[#allocation7 + $0x8] sm:$0xf]
    %v928 = vld [vmem:[#allocation7 + $0xc] sm:$0xff]
    %v929 = vld [vmem:[#allocation7 + $0x14] sm:$0xf]
    %v930 = vld [vmem:[#allocation7 + $0x18] sm:$0xff]
    %v931 = vld [vmem:[#allocation7 + $0x20] sm:$0xf]
    %v932 = vld [vmem:[#allocation7 + $0x24] sm:$0xff]
    %v933 = vld [vmem:[#allocation7 + $0x2c] sm:$0xf]
    %v934 = vld [vmem:[#allocation7 + $0x30] sm:$0xff]
    %v935 = vld [vmem:[#allocation7 + $0x38] sm:$0xf]
    %v936 = vld [vmem:[#allocation7 + $0x3c] sm:$0xff]
    %v937 = vld [vmem:[#allocation7 + $0x44] sm:$0xf]
    %v938 = vld [vmem:[#allocation7 + $0x48] sm:$0xff]
    %v939 = vld [vmem:[#allocation7 + $0x50] sm:$0xf]
    %v940 = vld [vmem:[#allocation7 + $0x54] sm:$0xff]
    %v941 = vld [vmem:[#allocation7 + $0x5c] sm:$0xf]
    %v942 = vld [vmem:[#allocation7 + $0x60] sm:$0xff]
    %v943 = vld [vmem:[#allocation7 + $0x68] sm:$0xf]
    %v944 = vld [vmem:[#allocation7 + $0x6c] sm:$0xff]
    %v945 = vld [vmem:[#allocation7 + $0x74] sm:$0xf]
    %v946 = vld [vmem:[#allocation7 + $0x78] sm:$0xff]
    %v947 = vld [vmem:[#allocation7 + $0x80] sm:$0xf]
    %v948 = vld [vmem:[#allocation7 + $0x84] sm:$0xff]
    %v949 = vld [vmem:[#allocation7 + $0x8c] sm:$0xf]
    %v950 = vld [vmem:[#allocation7 + $0x90] sm:$0xff]
    %v951 = vld [vmem:[#allocation7 + $0x98] sm:$0xf]
    %v952 = vld [vmem:[#allocation7 + $0x9c] sm:$0xff]
    %v953 = vld [vmem:[#allocation7 + $0xa4] sm:$0xf]
    %v954 = vld [vmem:[#allocation7 + $0xa8] sm:$0xff]
    %v955 = vld [vmem:[#allocation7 + $0xb0] sm:$0xf]
    %v956 = vld [vmem:[#allocation7 + $0xb4] sm:$0xff]
    %v957 = vld [vmem:[#allocation7 + $0xbc] sm:$0xf]
    %v958 = vld [vmem:[%s2] sm:$0x7]
    %v960 = vperm.slane %v958, 0
    %v961 = vperm.slane %v958, 1
    %v962 = vperm.slane %v958, 2
    %v998 = vunpack.c.l.b16 %v926
    %v999 = vunpack.c.h.b16 %v926
    %v1000 = vunpack.c.l.b16 %v927
    %v1001 = vunpack.c.l.b16 %v928
    %v1002 = vunpack.c.h.b16 %v928
    %v1003 = vunpack.c.l.b16 %v929
    %v1004 = vunpack.c.l.b16 %v930
    %v1005 = vunpack.c.h.b16 %v930
    %v1006 = vunpack.c.l.b16 %v931
    %v1007 = vunpack.c.l.b16 %v932
    %v1008 = vunpack.c.h.b16 %v932
    %v1009 = vunpack.c.l.b16 %v933
    %v1010 = vunpack.c.l.b16 %v934
    %v1011 = vunpack.c.h.b16 %v934
    %v1012 = vunpack.c.l.b16 %v935
    %v1013 = vunpack.c.l.b16 %v936
    %v1014 = vunpack.c.h.b16 %v936
    %v1015 = vunpack.c.l.b16 %v937
    %v1016 = vunpack.c.l.b16 %v938
    %v1017 = vunpack.c.h.b16 %v938
    %v1018 = vunpack.c.l.b16 %v939
    %v1019 = vunpack.c.l.b16 %v940
    %v1020 = vunpack.c.h.b16 %v940
    %v1021 = vunpack.c.l.b16 %v941
    %v1022 = vunpack.c.l.b16 %v942
    %v1023 = vunpack.c.h.b16 %v942
    %v1024 = vunpack.c.l.b16 %v943
    %v1025 = vunpack.c.l.b16 %v944
    %v1026 = vunpack.c.h.b16 %v944
    %v1027 = vunpack.c.l.b16 %v945
    %v1028 = vunpack.c.l.b16 %v946
    %v1029 = vunpack.c.h.b16 %v946
    %v1030 = vunpack.c.l.b16 %v947
    %v1031 = vunpack.c.l.b16 %v948
    %v1032 = vunpack.c.h.b16 %v948
    %v1033 = vunpack.c.l.b16 %v949
    %v1034 = vunpack.c.l.b16 %v950
    %v1035 = vunpack.c.h.b16 %v950
    %v1036 = vunpack.c.l.b16 %v951
    %v1037 = vunpack.c.l.b16 %v952
    %v1038 = vunpack.c.h.b16 %v952
    %v1039 = vunpack.c.l.b16 %v953
    %v1040 = vunpack.c.l.b16 %v954
    %v1041 = vunpack.c.h.b16 %v954
    %v1042 = vunpack.c.l.b16 %v955
    %v1043 = vunpack.c.l.b16 %v956
    %v1044 = vunpack.c.h.b16 %v956
    %v1045 = vunpack.c.l.b16 %v957
    %v1046 = vpack.c.b16 %v1001, %v998
    %v1047 = vpack.c.b16 %v1002, %v999
    %v1048 = vpack.c.b16 %v1003, %v1000
    %v1049 = vpack.c.b16 %v1007, %v1004
    %v1050 = vpack.c.b16 %v1008, %v1005
    %v1051 = vpack.c.b16 %v1009, %v1006
    %v1052 = vpack.c.b16 %v1013, %v1010
    %v1053 = vpack.c.b16 %v1014, %v1011
    %v1054 = vpack.c.b16 %v1015, %v1012
    %v1055 = vpack.c.b16 %v1019, %v1016
    %v1056 = vpack.c.b16 %v1020, %v1017
    %v1057 = vpack.c.b16 %v1021, %v1018
    %v1058 = vpack.c.b16 %v1025, %v1022
    %v1059 = vpack.c.b16 %v1026, %v1023
    %v1060 = vpack.c.b16 %v1027, %v1024
    %v1061 = vpack.c.b16 %v1031, %v1028
    %v1062 = vpack.c.b16 %v1032, %v1029
    %v1063 = vpack.c.b16 %v1033, %v1030
    %v1064 = vpack.c.b16 %v1037, %v1034
    %v1065 = vpack.c.b16 %v1038, %v1035
    %v1066 = vpack.c.b16 %v1039, %v1036
    %v1067 = vpack.c.b16 %v1043, %v1040
    %v1068 = vpack.c.b16 %v1044, %v1041
    %v1069 = vpack.c.b16 %v1045, %v1042
    %1094 = vmatpush.bf16.msra.mxu0 %v1067
    %1095 = vmatpush.bf16.msra.mxu0 %v1064
    %1096 = vmatpush.bf16.msra.mxu0 %v1061
    %1097 = vmatpush.bf16.msra.mxu0 %v1058
    %1098 = vmatpush.bf16.msra.mxu0 %v1055
    %1099 = vmatpush.bf16.msra.mxu0 %v1052
    %1100 = vmatpush.bf16.msra.mxu0 %v1049
    %1101 = vmatpush.bf16.msra.mxu0 %v1046
    %1102 = vmatmul.bf16.gmra.mxu0 %v925
    %v1103 = vpop.f32.mrf.mxu0
    %v1104 = vadd.f32 %v960, %v1103
    %v1105 = vpop.f32.mrf.mxu0
    %1106 = vdwg.mxu0
    %1107 = vmatpush.bf16.msra.mxu0 %v1068
    %1108 = vmatpush.bf16.msra.mxu0 %v1065
    %1109 = vmatpush.bf16.msra.mxu0 %v1062
    %1110 = vmatpush.bf16.msra.mxu0 %v1059
    %1111 = vmatpush.bf16.msra.mxu0 %v1056
    %1112 = vmatpush.bf16.msra.mxu0 %v1053
    %1113 = vmatpush.bf16.msra.mxu0 %v1050
    %1114 = vmatpush.bf16.msra.mxu0 %v1047
    %1115 = vmatmul.bf16.gmra.mxu0 %v925
    %v1116 = vpop.f32.mrf.mxu0
    %v1117 = vadd.f32 %v961, %v1116
    %v1118 = vpop.f32.mrf.mxu0
    %1119 = vdwg.mxu0
    %1120 = vmatpush.bf16.msra.mxu0 %v1069
    %1121 = vmatpush.bf16.msra.mxu0 %v1066
    %1122 = vmatpush.bf16.msra.mxu0 %v1063
    %1123 = vmatpush.bf16.msra.mxu0 %v1060
    %1124 = vmatpush.bf16.msra.mxu0 %v1057
    %1125 = vmatpush.bf16.msra.mxu0 %v1054
    %1126 = vmatpush.bf16.msra.mxu0 %v1051
    %1127 = vmatpush.bf16.msra.mxu0 %v1048
    %1128 = vmatmul.bf16.gmra.mxu0 %v925
    %v1129 = vpop.f32.mrf.mxu0
    %v1130 = vadd.f32 %v962, %v1129
    %v1131 = vpop.f32.mrf.mxu0
    %1132 = vdwg.mxu0
    %s1133 = scalar_lea.vmem [#allocation2], 24
    %1134 = vst [vmem:[%s1133] sm:$0xff] %v1104
    %1135 = vst [vmem:[%s1133 + $0x8] sm:$0xff] %v1117
    %1136 = vst [vmem:[%s1133 + $0x10] sm:$0xff] %v1130
    %s1137 = scalar_lea.vmem [#allocation5], 48
    %v1138 = vld [vmem:[%s1137] sm:$0xff]
    %v1139 = vld [vmem:[#allocation10] sm:$0xf]
    %v1140 = vld [vmem:[#allocation10 + $0xc] sm:$0xf]
    %v1141 = vld [vmem:[#allocation10 + $0x18] sm:$0xf]
    %v1142 = vld [vmem:[#allocation10 + $0x24] sm:$0xf]
    %v1143 = vld [vmem:[#allocation10 + $0x30] sm:$0xf]
    %v1144 = vld [vmem:[#allocation10 + $0x3c] sm:$0xf]
    %v1145 = vld [vmem:[#allocation10 + $0x48] sm:$0xf]
    %v1146 = vld [vmem:[#allocation10 + $0x54] sm:$0xf]
    %v1147 = vld [vmem:[#allocation10 + $0x60] sm:$0xf]
    %v1148 = vld [vmem:[#allocation10 + $0x6c] sm:$0xf]
    %v1149 = vld [vmem:[#allocation10 + $0x78] sm:$0xf]
    %v1150 = vld [vmem:[#allocation10 + $0x84] sm:$0xf]
    %v1151 = vld [vmem:[#allocation10 + $0x90] sm:$0xf]
    %v1152 = vld [vmem:[#allocation10 + $0x9c] sm:$0xf]
    %v1153 = vld [vmem:[#allocation10 + $0xa8] sm:$0xf]
    %v1154 = vld [vmem:[#allocation10 + $0xb4] sm:$0xf]
    %v1171 = vunpack.c.l.b16 %v1139
    %v1172 = vunpack.c.l.b16 %v1140
    %v1173 = vunpack.c.l.b16 %v1141
    %v1174 = vunpack.c.l.b16 %v1142
    %v1175 = vunpack.c.l.b16 %v1143
    %v1176 = vunpack.c.l.b16 %v1144
    %v1177 = vunpack.c.l.b16 %v1145
    %v1178 = vunpack.c.l.b16 %v1146
    %v1179 = vunpack.c.l.b16 %v1147
    %v1180 = vunpack.c.l.b16 %v1148
    %v1181 = vunpack.c.l.b16 %v1149
    %v1182 = vunpack.c.l.b16 %v1150
    %v1183 = vunpack.c.l.b16 %v1151
    %v1184 = vunpack.c.l.b16 %v1152
    %v1185 = vunpack.c.l.b16 %v1153
    %v1186 = vunpack.c.l.b16 %v1154
    %v1187 = vpack.c.b16 %v1172, %v1171
    %v1188 = vpack.c.b16 %v1174, %v1173
    %v1189 = vpack.c.b16 %v1176, %v1175
    %v1190 = vpack.c.b16 %v1178, %v1177
    %v1191 = vpack.c.b16 %v1180, %v1179
    %v1192 = vpack.c.b16 %v1182, %v1181
    %v1193 = vpack.c.b16 %v1184, %v1183
    %v1194 = vpack.c.b16 %v1186, %v1185
    %1203 = vmatpush.bf16.msra.mxu0 %v1194
    %1204 = vmatpush.bf16.msra.mxu0 %v1193
    %1205 = vmatpush.bf16.msra.mxu0 %v1192
    %1206 = vmatpush.bf16.msra.mxu0 %v1191
    %1207 = vmatpush.bf16.msra.mxu0 %v1190
    %1208 = vmatpush.bf16.msra.mxu0 %v1189
    %1209 = vmatpush.bf16.msra.mxu0 %v1188
    %1210 = vmatpush.bf16.msra.mxu0 %v1187
    %1211 = vmatmul.bf16.gmra.mxu0 %v925
    %v1212 = vpop.f32.mrf.mxu0
    %v1213 = vadd.f32 0.0, %v1212
    %v1214 = vpop.f32.mrf.mxu0
    %1215 = vdwg.mxu0
    %v1216 = vadd.f32 %v1138, %v1213
    %v1217 = vxor.u32 %v1216, 2147483648
    %v1218 = vmul.f32 %v1217, 1.442695
    %v1219 = vpow.pop %v1218
    %v1220 = vadd.f32 %v1219, 1.0
    %v1221 = vrcp.pop %v1220
    %v1222 = vmul.f32 %v1220, %v1221
    %v1223 = vsub.f32 1.0, %v1222
    %v1224 = vmul.f32 %v1221, %v1223
    %v1225 = vadd.f32 %v1221, %v1224
    %vm1226 = vweird.f32 %v1220
    %vm1227 = vweird.f32 %v1221
    %vm1228 = vmor %vm1226, %vm1227
    %v1229 = vsel %vm1228, %v1221, %v1225
    %v1230 = vand.u32 2147483647, %v1220
    %vm1231 = vcmp.eq.f32.partialorder %v1230, 8.507059e+37
    %v1232 = vand.u32 %v1220, 2147483648
    %v1233 = vor.u32 1.1754944e-38, %v1232
    %v1234 = vsel %vm1231, %v1233, %v1229
    %v1235 = vmul.f32 1.0, %v1234
    %v1236 = vld [vmem:[%s1137 + $0x8] sm:$0xff]
    %v1237 = vld [vmem:[#allocation10 + $0x4] sm:$0xf]
    %v1238 = vld [vmem:[#allocation10 + $0x10] sm:$0xf]
    %v1239 = vld [vmem:[#allocation10 + $0x1c] sm:$0xf]
    %v1240 = vld [vmem:[#allocation10 + $0x28] sm:$0xf]
    %v1241 = vld [vmem:[#allocation10 + $0x34] sm:$0xf]
    %v1242 = vld [vmem:[#allocation10 + $0x40] sm:$0xf]
    %v1243 = vld [vmem:[#allocation10 + $0x4c] sm:$0xf]
    %v1244 = vld [vmem:[#allocation10 + $0x58] sm:$0xf]
    %v1245 = vld [vmem:[#allocation10 + $0x64] sm:$0xf]
    %v1246 = vld [vmem:[#allocation10 + $0x70] sm:$0xf]
    %v1247 = vld [vmem:[#allocation10 + $0x7c] sm:$0xf]
    %v1248 = vld [vmem:[#allocation10 + $0x88] sm:$0xf]
    %v1249 = vld [vmem:[#allocation10 + $0x94] sm:$0xf]
    %v1250 = vld [vmem:[#allocation10 + $0xa0] sm:$0xf]
    %v1251 = vld [vmem:[#allocation10 + $0xac] sm:$0xf]
    %v1252 = vld [vmem:[#allocation10 + $0xb8] sm:$0xf]
    %v1269 = vunpack.c.l.b16 %v1237
    %v1270 = vunpack.c.l.b16 %v1238
    %v1271 = vunpack.c.l.b16 %v1239
    %v1272 = vunpack.c.l.b16 %v1240
    %v1273 = vunpack.c.l.b16 %v1241
    %v1274 = vunpack.c.l.b16 %v1242
    %v1275 = vunpack.c.l.b16 %v1243
    %v1276 = vunpack.c.l.b16 %v1244
    %v1277 = vunpack.c.l.b16 %v1245
    %v1278 = vunpack.c.l.b16 %v1246
    %v1279 = vunpack.c.l.b16 %v1247
    %v1280 = vunpack.c.l.b16 %v1248
    %v1281 = vunpack.c.l.b16 %v1249
    %v1282 = vunpack.c.l.b16 %v1250
    %v1283 = vunpack.c.l.b16 %v1251
    %v1284 = vunpack.c.l.b16 %v1252
    %v1285 = vpack.c.b16 %v1270, %v1269
    %v1286 = vpack.c.b16 %v1272, %v1271
    %v1287 = vpack.c.b16 %v1274, %v1273
    %v1288 = vpack.c.b16 %v1276, %v1275
    %v1289 = vpack.c.b16 %v1278, %v1277
    %v1290 = vpack.c.b16 %v1280, %v1279
    %v1291 = vpack.c.b16 %v1282, %v1281
    %v1292 = vpack.c.b16 %v1284, %v1283
    %1301 = vmatpush.bf16.msra.mxu0 %v1292
    %1302 = vmatpush.bf16.msra.mxu0 %v1291
    %1303 = vmatpush.bf16.msra.mxu0 %v1290
    %1304 = vmatpush.bf16.msra.mxu0 %v1289
    %1305 = vmatpush.bf16.msra.mxu0 %v1288
    %1306 = vmatpush.bf16.msra.mxu0 %v1287
    %1307 = vmatpush.bf16.msra.mxu0 %v1286
    %1308 = vmatpush.bf16.msra.mxu0 %v1285
    %1309 = vmatmul.bf16.gmra.mxu0 %v925
    %v1310 = vpop.f32.mrf.mxu0
    %v1311 = vadd.f32 0.0, %v1310
    %v1312 = vpop.f32.mrf.mxu0
    %1313 = vdwg.mxu0
    %v1314 = vadd.f32 %v1236, %v1311
    %v1315 = vxor.u32 %v1314, 2147483648
    %v1316 = vmul.f32 %v1315, 1.442695
    %v1317 = vpow.pop %v1316
    %v1318 = vadd.f32 %v1317, 1.0
    %v1319 = vrcp.pop %v1318
    %v1320 = vmul.f32 %v1318, %v1319
    %v1321 = vsub.f32 1.0, %v1320
    %v1322 = vmul.f32 %v1319, %v1321
    %v1323 = vadd.f32 %v1319, %v1322
    %vm1324 = vweird.f32 %v1318
    %vm1325 = vweird.f32 %v1319
    %vm1326 = vmor %vm1324, %vm1325
    %v1327 = vsel %vm1326, %v1319, %v1323
    %v1328 = vand.u32 2147483647, %v1318
    %vm1329 = vcmp.eq.f32.partialorder %v1328, 8.507059e+37
    %v1330 = vand.u32 %v1318, 2147483648
    %v1331 = vor.u32 1.1754944e-38, %v1330
    %v1332 = vsel %vm1329, %v1331, %v1327
    %v1333 = vmul.f32 1.0, %v1332
    %v1334 = vld [vmem:[%s1137 + $0x10] sm:$0xff]
    %v1335 = vld [vmem:[#allocation10 + $0x8] sm:$0xf]
    %v1336 = vld [vmem:[#allocation10 + $0x14] sm:$0xf]
    %v1337 = vld [vmem:[#allocation10 + $0x20] sm:$0xf]
    %v1338 = vld [vmem:[#allocation10 + $0x2c] sm:$0xf]
    %v1339 = vld [vmem:[#allocation10 + $0x38] sm:$0xf]
    %v1340 = vld [vmem:[#allocation10 + $0x44] sm:$0xf]
    %v1341 = vld [vmem:[#allocation10 + $0x50] sm:$0xf]
    %v1342 = vld [vmem:[#allocation10 + $0x5c] sm:$0xf]
    %v1343 = vld [vmem:[#allocation10 + $0x68] sm:$0xf]
    %v1344 = vld [vmem:[#allocation10 + $0x74] sm:$0xf]
    %v1345 = vld [vmem:[#allocation10 + $0x80] sm:$0xf]
    %v1346 = vld [vmem:[#allocation10 + $0x8c] sm:$0xf]
    %v1347 = vld [vmem:[#allocation10 + $0x98] sm:$0xf]
    %v1348 = vld [vmem:[#allocation10 + $0xa4] sm:$0xf]
    %v1349 = vld [vmem:[#allocation10 + $0xb0] sm:$0xf]
    %v1350 = vld [vmem:[#allocation10 + $0xbc] sm:$0xf]
    %v1367 = vunpack.c.l.b16 %v1335
    %v1368 = vunpack.c.l.b16 %v1336
    %v1369 = vunpack.c.l.b16 %v1337
    %v1370 = vunpack.c.l.b16 %v1338
    %v1371 = vunpack.c.l.b16 %v1339
    %v1372 = vunpack.c.l.b16 %v1340
    %v1373 = vunpack.c.l.b16 %v1341
    %v1374 = vunpack.c.l.b16 %v1342
    %v1375 = vunpack.c.l.b16 %v1343
    %v1376 = vunpack.c.l.b16 %v1344
    %v1377 = vunpack.c.l.b16 %v1345
    %v1378 = vunpack.c.l.b16 %v1346
    %v1379 = vunpack.c.l.b16 %v1347
    %v1380 = vunpack.c.l.b16 %v1348
    %v1381 = vunpack.c.l.b16 %v1349
    %v1382 = vunpack.c.l.b16 %v1350
    %v1383 = vpack.c.b16 %v1368, %v1367
    %v1384 = vpack.c.b16 %v1370, %v1369
    %v1385 = vpack.c.b16 %v1372, %v1371
    %v1386 = vpack.c.b16 %v1374, %v1373
    %v1387 = vpack.c.b16 %v1376, %v1375
    %v1388 = vpack.c.b16 %v1378, %v1377
    %v1389 = vpack.c.b16 %v1380, %v1379
    %v1390 = vpack.c.b16 %v1382, %v1381
    %1399 = vmatpush.bf16.msra.mxu0 %v1390
    %1400 = vmatpush.bf16.msra.mxu0 %v1389
    %1401 = vmatpush.bf16.msra.mxu0 %v1388
    %1402 = vmatpush.bf16.msra.mxu0 %v1387
    %1403 = vmatpush.bf16.msra.mxu0 %v1386
    %1404 = vmatpush.bf16.msra.mxu0 %v1385
    %1405 = vmatpush.bf16.msra.mxu0 %v1384
    %1406 = vmatpush.bf16.msra.mxu0 %v1383
    %1407 = vmatmul.bf16.gmra.mxu0 %v925
    %v1408 = vpop.f32.mrf.mxu0
    %v1409 = vadd.f32 %v362, %v1408
    %v1410 = vpop.f32.mrf.mxu0
    %1411 = vdwg.mxu0
    %v1412 = vmul.f32 %v1235, %v1409
    %v1413 = vadd.f32 %v1334, %v1412
    %v1414 = vtanh.pop %v1413
    %v1415 = vsub.f32 1.0, %v1333
    %v1416 = vmul.f32 %v1415, %v1414
    %v1417 = vmul.f32 %v1333, %v924
    %v1418 = vadd.f32 %v1416, %v1417
    %v1419 = vpack.c.bf16 %v1418, %v1418
    %v1420 = vld [vmem:[#allocation7] sm:$0xff]
    %v1421 = vld [vmem:[#allocation7 + $0x8] sm:$0xf]
    %v1422 = vld [vmem:[#allocation7 + $0xc] sm:$0xff]
    %v1423 = vld [vmem:[#allocation7 + $0x14] sm:$0xf]
    %v1424 = vld [vmem:[#allocation7 + $0x18] sm:$0xff]
    %v1425 = vld [vmem:[#allocation7 + $0x20] sm:$0xf]
    %v1426 = vld [vmem:[#allocation7 + $0x24] sm:$0xff]
    %v1427 = vld [vmem:[#allocation7 + $0x2c] sm:$0xf]
    %v1428 = vld [vmem:[#allocation7 + $0x30] sm:$0xff]
    %v1429 = vld [vmem:[#allocation7 + $0x38] sm:$0xf]
    %v1430 = vld [vmem:[#allocation7 + $0x3c] sm:$0xff]
    %v1431 = vld [vmem:[#allocation7 + $0x44] sm:$0xf]
    %v1432 = vld [vmem:[#allocation7 + $0x48] sm:$0xff]
    %v1433 = vld [vmem:[#allocation7 + $0x50] sm:$0xf]
    %v1434 = vld [vmem:[#allocation7 + $0x54] sm:$0xff]
    %v1435 = vld [vmem:[#allocation7 + $0x5c] sm:$0xf]
    %v1436 = vld [vmem:[#allocation7 + $0x60] sm:$0xff]
    %v1437 = vld [vmem:[#allocation7 + $0x68] sm:$0xf]
    %v1438 = vld [vmem:[#allocation7 + $0x6c] sm:$0xff]
    %v1439 = vld [vmem:[#allocation7 + $0x74] sm:$0xf]
    %v1440 = vld [vmem:[#allocation7 + $0x78] sm:$0xff]
    %v1441 = vld [vmem:[#allocation7 + $0x80] sm:$0xf]
    %v1442 = vld [vmem:[#allocation7 + $0x84] sm:$0xff]
    %v1443 = vld [vmem:[#allocation7 + $0x8c] sm:$0xf]
    %v1444 = vld [vmem:[#allocation7 + $0x90] sm:$0xff]
    %v1445 = vld [vmem:[#allocation7 + $0x98] sm:$0xf]
    %v1446 = vld [vmem:[#allocation7 + $0x9c] sm:$0xff]
    %v1447 = vld [vmem:[#allocation7 + $0xa4] sm:$0xf]
    %v1448 = vld [vmem:[#allocation7 + $0xa8] sm:$0xff]
    %v1449 = vld [vmem:[#allocation7 + $0xb0] sm:$0xf]
    %v1450 = vld [vmem:[#allocation7 + $0xb4] sm:$0xff]
    %v1451 = vld [vmem:[#allocation7 + $0xbc] sm:$0xf]
    %v1452 = vld [vmem:[%s2] sm:$0x7]
    %v1454 = vperm.slane %v1452, 0
    %v1455 = vperm.slane %v1452, 1
    %v1456 = vperm.slane %v1452, 2
    %v1492 = vunpack.c.l.b16 %v1420
    %v1493 = vunpack.c.h.b16 %v1420
    %v1494 = vunpack.c.l.b16 %v1421
    %v1495 = vunpack.c.l.b16 %v1422
    %v1496 = vunpack.c.h.b16 %v1422
    %v1497 = vunpack.c.l.b16 %v1423
    %v1498 = vunpack.c.l.b16 %v1424
    %v1499 = vunpack.c.h.b16 %v1424
    %v1500 = vunpack.c.l.b16 %v1425
    %v1501 = vunpack.c.l.b16 %v1426
    %v1502 = vunpack.c.h.b16 %v1426
    %v1503 = vunpack.c.l.b16 %v1427
    %v1504 = vunpack.c.l.b16 %v1428
    %v1505 = vunpack.c.h.b16 %v1428
    %v1506 = vunpack.c.l.b16 %v1429
    %v1507 = vunpack.c.l.b16 %v1430
    %v1508 = vunpack.c.h.b16 %v1430
    %v1509 = vunpack.c.l.b16 %v1431
    %v1510 = vunpack.c.l.b16 %v1432
    %v1511 = vunpack.c.h.b16 %v1432
    %v1512 = vunpack.c.l.b16 %v1433
    %v1513 = vunpack.c.l.b16 %v1434
    %v1514 = vunpack.c.h.b16 %v1434
    %v1515 = vunpack.c.l.b16 %v1435
    %v1516 = vunpack.c.l.b16 %v1436
    %v1517 = vunpack.c.h.b16 %v1436
    %v1518 = vunpack.c.l.b16 %v1437
    %v1519 = vunpack.c.l.b16 %v1438
    %v1520 = vunpack.c.h.b16 %v1438
    %v1521 = vunpack.c.l.b16 %v1439
    %v1522 = vunpack.c.l.b16 %v1440
    %v1523 = vunpack.c.h.b16 %v1440
    %v1524 = vunpack.c.l.b16 %v1441
    %v1525 = vunpack.c.l.b16 %v1442
    %v1526 = vunpack.c.h.b16 %v1442
    %v1527 = vunpack.c.l.b16 %v1443
    %v1528 = vunpack.c.l.b16 %v1444
    %v1529 = vunpack.c.h.b16 %v1444
    %v1530 = vunpack.c.l.b16 %v1445
    %v1531 = vunpack.c.l.b16 %v1446
    %v1532 = vunpack.c.h.b16 %v1446
    %v1533 = vunpack.c.l.b16 %v1447
    %v1534 = vunpack.c.l.b16 %v1448
    %v1535 = vunpack.c.h.b16 %v1448
    %v1536 = vunpack.c.l.b16 %v1449
    %v1537 = vunpack.c.l.b16 %v1450
    %v1538 = vunpack.c.h.b16 %v1450
    %v1539 = vunpack.c.l.b16 %v1451
    %v1540 = vpack.c.b16 %v1495, %v1492
    %v1541 = vpack.c.b16 %v1496, %v1493
    %v1542 = vpack.c.b16 %v1497, %v1494
    %v1543 = vpack.c.b16 %v1501, %v1498
    %v1544 = vpack.c.b16 %v1502, %v1499
    %v1545 = vpack.c.b16 %v1503, %v1500
    %v1546 = vpack.c.b16 %v1507, %v1504
    %v1547 = vpack.c.b16 %v1508, %v1505
    %v1548 = vpack.c.b16 %v1509, %v1506
    %v1549 = vpack.c.b16 %v1513, %v1510
    %v1550 = vpack.c.b16 %v1514, %v1511
    %v1551 = vpack.c.b16 %v1515, %v1512
    %v1552 = vpack.c.b16 %v1519, %v1516
    %v1553 = vpack.c.b16 %v1520, %v1517
    %v1554 = vpack.c.b16 %v1521, %v1518
    %v1555 = vpack.c.b16 %v1525, %v1522
    %v1556 = vpack.c.b16 %v1526, %v1523
    %v1557 = vpack.c.b16 %v1527, %v1524
    %v1558 = vpack.c.b16 %v1531, %v1528
    %v1559 = vpack.c.b16 %v1532, %v1529
    %v1560 = vpack.c.b16 %v1533, %v1530
    %v1561 = vpack.c.b16 %v1537, %v1534
    %v1562 = vpack.c.b16 %v1538, %v1535
    %v1563 = vpack.c.b16 %v1539, %v1536
    %1588 = vmatpush.bf16.msra.mxu0 %v1561
    %1589 = vmatpush.bf16.msra.mxu0 %v1558
    %1590 = vmatpush.bf16.msra.mxu0 %v1555
    %1591 = vmatpush.bf16.msra.mxu0 %v1552
    %1592 = vmatpush.bf16.msra.mxu0 %v1549
    %1593 = vmatpush.bf16.msra.mxu0 %v1546
    %1594 = vmatpush.bf16.msra.mxu0 %v1543
    %1595 = vmatpush.bf16.msra.mxu0 %v1540
    %1596 = vmatmul.bf16.gmra.mxu0 %v1419
    %v1597 = vpop.f32.mrf.mxu0
    %v1598 = vadd.f32 %v1454, %v1597
    %v1599 = vpop.f32.mrf.mxu0
    %1600 = vdwg.mxu0
    %1601 = vmatpush.bf16.msra.mxu0 %v1562
    %1602 = vmatpush.bf16.msra.mxu0 %v1559
    %1603 = vmatpush.bf16.msra.mxu0 %v1556
    %1604 = vmatpush.bf16.msra.mxu0 %v1553
    %1605 = vmatpush.bf16.msra.mxu0 %v1550
    %1606 = vmatpush.bf16.msra.mxu0 %v1547
    %1607 = vmatpush.bf16.msra.mxu0 %v1544
    %1608 = vmatpush.bf16.msra.mxu0 %v1541
    %1609 = vmatmul.bf16.gmra.mxu0 %v1419
    %v1610 = vpop.f32.mrf.mxu0
    %v1611 = vadd.f32 %v1455, %v1610
    %v1612 = vpop.f32.mrf.mxu0
    %1613 = vdwg.mxu0
    %1614 = vmatpush.bf16.msra.mxu0 %v1563
    %1615 = vmatpush.bf16.msra.mxu0 %v1560
    %1616 = vmatpush.bf16.msra.mxu0 %v1557
    %1617 = vmatpush.bf16.msra.mxu0 %v1554
    %1618 = vmatpush.bf16.msra.mxu0 %v1551
    %1619 = vmatpush.bf16.msra.mxu0 %v1548
    %1620 = vmatpush.bf16.msra.mxu0 %v1545
    %1621 = vmatpush.bf16.msra.mxu0 %v1542
    %1622 = vmatmul.bf16.gmra.mxu0 %v1419
    %v1623 = vpop.f32.mrf.mxu0
    %v1624 = vadd.f32 %v1456, %v1623
    %v1625 = vpop.f32.mrf.mxu0
    %1626 = vdwg.mxu0
    %s1627 = scalar_lea.vmem [#allocation2], 48
    %1628 = vst [vmem:[%s1627] sm:$0xff] %v1598
    %1629 = vst [vmem:[%s1627 + $0x8] sm:$0xff] %v1611
    %1630 = vst [vmem:[%s1627 + $0x10] sm:$0xff] %v1624
    %s1631 = scalar_lea.vmem [#allocation5], 72
    %v1632 = vld [vmem:[%s1631] sm:$0xff]
    %v1633 = vld [vmem:[#allocation10] sm:$0xf]
    %v1634 = vld [vmem:[#allocation10 + $0xc] sm:$0xf]
    %v1635 = vld [vmem:[#allocation10 + $0x18] sm:$0xf]
    %v1636 = vld [vmem:[#allocation10 + $0x24] sm:$0xf]
    %v1637 = vld [vmem:[#allocation10 + $0x30] sm:$0xf]
    %v1638 = vld [vmem:[#allocation10 + $0x3c] sm:$0xf]
    %v1639 = vld [vmem:[#allocation10 + $0x48] sm:$0xf]
    %v1640 = vld [vmem:[#allocation10 + $0x54] sm:$0xf]
    %v1641 = vld [vmem:[#allocation10 + $0x60] sm:$0xf]
    %v1642 = vld [vmem:[#allocation10 + $0x6c] sm:$0xf]
    %v1643 = vld [vmem:[#allocation10 + $0x78] sm:$0xf]
    %v1644 = vld [vmem:[#allocation10 + $0x84] sm:$0xf]
    %v1645 = vld [vmem:[#allocation10 + $0x90] sm:$0xf]
    %v1646 = vld [vmem:[#allocation10 + $0x9c] sm:$0xf]
    %v1647 = vld [vmem:[#allocation10 + $0xa8] sm:$0xf]
    %v1648 = vld [vmem:[#allocation10 + $0xb4] sm:$0xf]
    %v1665 = vunpack.c.l.b16 %v1633
    %v1666 = vunpack.c.l.b16 %v1634
    %v1667 = vunpack.c.l.b16 %v1635
    %v1668 = vunpack.c.l.b16 %v1636
    %v1669 = vunpack.c.l.b16 %v1637
    %v1670 = vunpack.c.l.b16 %v1638
    %v1671 = vunpack.c.l.b16 %v1639
    %v1672 = vunpack.c.l.b16 %v1640
    %v1673 = vunpack.c.l.b16 %v1641
    %v1674 = vunpack.c.l.b16 %v1642
    %v1675 = vunpack.c.l.b16 %v1643
    %v1676 = vunpack.c.l.b16 %v1644
    %v1677 = vunpack.c.l.b16 %v1645
    %v1678 = vunpack.c.l.b16 %v1646
    %v1679 = vunpack.c.l.b16 %v1647
    %v1680 = vunpack.c.l.b16 %v1648
    %v1681 = vpack.c.b16 %v1666, %v1665
    %v1682 = vpack.c.b16 %v1668, %v1667
    %v1683 = vpack.c.b16 %v1670, %v1669
    %v1684 = vpack.c.b16 %v1672, %v1671
    %v1685 = vpack.c.b16 %v1674, %v1673
    %v1686 = vpack.c.b16 %v1676, %v1675
    %v1687 = vpack.c.b16 %v1678, %v1677
    %v1688 = vpack.c.b16 %v1680, %v1679
    %1697 = vmatpush.bf16.msra.mxu0 %v1688
    %1698 = vmatpush.bf16.msra.mxu0 %v1687
    %1699 = vmatpush.bf16.msra.mxu0 %v1686
    %1700 = vmatpush.bf16.msra.mxu0 %v1685
    %1701 = vmatpush.bf16.msra.mxu0 %v1684
    %1702 = vmatpush.bf16.msra.mxu0 %v1683
    %1703 = vmatpush.bf16.msra.mxu0 %v1682
    %1704 = vmatpush.bf16.msra.mxu0 %v1681
    %1705 = vmatmul.bf16.gmra.mxu0 %v1419
    %v1706 = vpop.f32.mrf.mxu0
    %v1707 = vadd.f32 0.0, %v1706
    %v1708 = vpop.f32.mrf.mxu0
    %1709 = vdwg.mxu0
    %v1710 = vadd.f32 %v1632, %v1707
    %v1711 = vxor.u32 %v1710, 2147483648
    %v1712 = vmul.f32 %v1711, 1.442695
    %v1713 = vpow.pop %v1712
    %v1714 = vadd.f32 %v1713, 1.0
    %v1715 = vrcp.pop %v1714
    %v1716 = vmul.f32 %v1714, %v1715
    %v1717 = vsub.f32 1.0, %v1716
    %v1718 = vmul.f32 %v1715, %v1717
    %v1719 = vadd.f32 %v1715, %v1718
    %vm1720 = vweird.f32 %v1714
    %vm1721 = vweird.f32 %v1715
    %vm1722 = vmor %vm1720, %vm1721
    %v1723 = vsel %vm1722, %v1715, %v1719
    %v1724 = vand.u32 2147483647, %v1714
    %vm1725 = vcmp.eq.f32.partialorder %v1724, 8.507059e+37
    %v1726 = vand.u32 %v1714, 2147483648
    %v1727 = vor.u32 1.1754944e-38, %v1726
    %v1728 = vsel %vm1725, %v1727, %v1723
    %v1729 = vmul.f32 1.0, %v1728
    %v1730 = vld [vmem:[%s1631 + $0x8] sm:$0xff]
    %v1731 = vld [vmem:[#allocation10 + $0x4] sm:$0xf]
    %v1732 = vld [vmem:[#allocation10 + $0x10] sm:$0xf]
    %v1733 = vld [vmem:[#allocation10 + $0x1c] sm:$0xf]
    %v1734 = vld [vmem:[#allocation10 + $0x28] sm:$0xf]
    %v1735 = vld [vmem:[#allocation10 + $0x34] sm:$0xf]
    %v1736 = vld [vmem:[#allocation10 + $0x40] sm:$0xf]
    %v1737 = vld [vmem:[#allocation10 + $0x4c] sm:$0xf]
    %v1738 = vld [vmem:[#allocation10 + $0x58] sm:$0xf]
    %v1739 = vld [vmem:[#allocation10 + $0x64] sm:$0xf]
    %v1740 = vld [vmem:[#allocation10 + $0x70] sm:$0xf]
    %v1741 = vld [vmem:[#allocation10 + $0x7c] sm:$0xf]
    %v1742 = vld [vmem:[#allocation10 + $0x88] sm:$0xf]
    %v1743 = vld [vmem:[#allocation10 + $0x94] sm:$0xf]
    %v1744 = vld [vmem:[#allocation10 + $0xa0] sm:$0xf]
    %v1745 = vld [vmem:[#allocation10 + $0xac] sm:$0xf]
    %v1746 = vld [vmem:[#allocation10 + $0xb8] sm:$0xf]
    %v1763 = vunpack.c.l.b16 %v1731
    %v1764 = vunpack.c.l.b16 %v1732
    %v1765 = vunpack.c.l.b16 %v1733
    %v1766 = vunpack.c.l.b16 %v1734
    %v1767 = vunpack.c.l.b16 %v1735
    %v1768 = vunpack.c.l.b16 %v1736
    %v1769 = vunpack.c.l.b16 %v1737
    %v1770 = vunpack.c.l.b16 %v1738
    %v1771 = vunpack.c.l.b16 %v1739
    %v1772 = vunpack.c.l.b16 %v1740
    %v1773 = vunpack.c.l.b16 %v1741
    %v1774 = vunpack.c.l.b16 %v1742
    %v1775 = vunpack.c.l.b16 %v1743
    %v1776 = vunpack.c.l.b16 %v1744
    %v1777 = vunpack.c.l.b16 %v1745
    %v1778 = vunpack.c.l.b16 %v1746
    %v1779 = vpack.c.b16 %v1764, %v1763
    %v1780 = vpack.c.b16 %v1766, %v1765
    %v1781 = vpack.c.b16 %v1768, %v1767
    %v1782 = vpack.c.b16 %v1770, %v1769
    %v1783 = vpack.c.b16 %v1772, %v1771
    %v1784 = vpack.c.b16 %v1774, %v1773
    %v1785 = vpack.c.b16 %v1776, %v1775
    %v1786 = vpack.c.b16 %v1778, %v1777
    %1795 = vmatpush.bf16.msra.mxu0 %v1786
    %1796 = vmatpush.bf16.msra.mxu0 %v1785
    %1797 = vmatpush.bf16.msra.mxu0 %v1784
    %1798 = vmatpush.bf16.msra.mxu0 %v1783
    %1799 = vmatpush.bf16.msra.mxu0 %v1782
    %1800 = vmatpush.bf16.msra.mxu0 %v1781
    %1801 = vmatpush.bf16.msra.mxu0 %v1780
    %1802 = vmatpush.bf16.msra.mxu0 %v1779
    %1803 = vmatmul.bf16.gmra.mxu0 %v1419
    %v1804 = vpop.f32.mrf.mxu0
    %v1805 = vadd.f32 0.0, %v1804
    %v1806 = vpop.f32.mrf.mxu0
    %1807 = vdwg.mxu0
    %v1808 = vadd.f32 %v1730, %v1805
    %v1809 = vxor.u32 %v1808, 2147483648
    %v1810 = vmul.f32 %v1809, 1.442695
    %v1811 = vpow.pop %v1810
    %v1812 = vadd.f32 %v1811, 1.0
    %v1813 = vrcp.pop %v1812
    %v1814 = vmul.f32 %v1812, %v1813
    %v1815 = vsub.f32 1.0, %v1814
    %v1816 = vmul.f32 %v1813, %v1815
    %v1817 = vadd.f32 %v1813, %v1816
    %vm1818 = vweird.f32 %v1812
    %vm1819 = vweird.f32 %v1813
    %vm1820 = vmor %vm1818, %vm1819
    %v1821 = vsel %vm1820, %v1813, %v1817
    %v1822 = vand.u32 2147483647, %v1812
    %vm1823 = vcmp.eq.f32.partialorder %v1822, 8.507059e+37
    %v1824 = vand.u32 %v1812, 2147483648
    %v1825 = vor.u32 1.1754944e-38, %v1824
    %v1826 = vsel %vm1823, %v1825, %v1821
    %v1827 = vmul.f32 1.0, %v1826
    %v1828 = vld [vmem:[%s1631 + $0x10] sm:$0xff]
    %v1829 = vld [vmem:[#allocation10 + $0x8] sm:$0xf]
    %v1830 = vld [vmem:[#allocation10 + $0x14] sm:$0xf]
    %v1831 = vld [vmem:[#allocation10 + $0x20] sm:$0xf]
    %v1832 = vld [vmem:[#allocation10 + $0x2c] sm:$0xf]
    %v1833 = vld [vmem:[#allocation10 + $0x38] sm:$0xf]
    %v1834 = vld [vmem:[#allocation10 + $0x44] sm:$0xf]
    %v1835 = vld [vmem:[#allocation10 + $0x50] sm:$0xf]
    %v1836 = vld [vmem:[#allocation10 + $0x5c] sm:$0xf]
    %v1837 = vld [vmem:[#allocation10 + $0x68] sm:$0xf]
    %v1838 = vld [vmem:[#allocation10 + $0x74] sm:$0xf]
    %v1839 = vld [vmem:[#allocation10 + $0x80] sm:$0xf]
    %v1840 = vld [vmem:[#allocation10 + $0x8c] sm:$0xf]
    %v1841 = vld [vmem:[#allocation10 + $0x98] sm:$0xf]
    %v1842 = vld [vmem:[#allocation10 + $0xa4] sm:$0xf]
    %v1843 = vld [vmem:[#allocation10 + $0xb0] sm:$0xf]
    %v1844 = vld [vmem:[#allocation10 + $0xbc] sm:$0xf]
    %v1861 = vunpack.c.l.b16 %v1829
    %v1862 = vunpack.c.l.b16 %v1830
    %v1863 = vunpack.c.l.b16 %v1831
    %v1864 = vunpack.c.l.b16 %v1832
    %v1865 = vunpack.c.l.b16 %v1833
    %v1866 = vunpack.c.l.b16 %v1834
    %v1867 = vunpack.c.l.b16 %v1835
    %v1868 = vunpack.c.l.b16 %v1836
    %v1869 = vunpack.c.l.b16 %v1837
    %v1870 = vunpack.c.l.b16 %v1838
    %v1871 = vunpack.c.l.b16 %v1839
    %v1872 = vunpack.c.l.b16 %v1840
    %v1873 = vunpack.c.l.b16 %v1841
    %v1874 = vunpack.c.l.b16 %v1842
    %v1875 = vunpack.c.l.b16 %v1843
    %v1876 = vunpack.c.l.b16 %v1844
    %v1877 = vpack.c.b16 %v1862, %v1861
    %v1878 = vpack.c.b16 %v1864, %v1863
    %v1879 = vpack.c.b16 %v1866, %v1865
    %v1880 = vpack.c.b16 %v1868, %v1867
    %v1881 = vpack.c.b16 %v1870, %v1869
    %v1882 = vpack.c.b16 %v1872, %v1871
    %v1883 = vpack.c.b16 %v1874, %v1873
    %v1884 = vpack.c.b16 %v1876, %v1875
    %1893 = vmatpush.bf16.msra.mxu0 %v1884
    %1894 = vmatpush.bf16.msra.mxu0 %v1883
    %1895 = vmatpush.bf16.msra.mxu0 %v1882
    %1896 = vmatpush.bf16.msra.mxu0 %v1881
    %1897 = vmatpush.bf16.msra.mxu0 %v1880
    %1898 = vmatpush.bf16.msra.mxu0 %v1879
    %1899 = vmatpush.bf16.msra.mxu0 %v1878
    %1900 = vmatpush.bf16.msra.mxu0 %v1877
    %1901 = vmatmul.bf16.gmra.mxu0 %v1419
    %v1902 = vpop.f32.mrf.mxu0
    %v1903 = vadd.f32 %v362, %v1902
    %v1904 = vpop.f32.mrf.mxu0
    %1905 = vdwg.mxu0
    %v1906 = vmul.f32 %v1729, %v1903
    %v1907 = vadd.f32 %v1828, %v1906
    %v1908 = vtanh.pop %v1907
    %v1909 = vsub.f32 1.0, %v1827
    %v1910 = vmul.f32 %v1909, %v1908
    %v1911 = vmul.f32 %v1827, %v1418
    %v1912 = vadd.f32 %v1910, %v1911
    %v1913 = vpack.c.bf16 %v1912, %v1912
    %v1914 = vld [vmem:[#allocation7] sm:$0xff]
    %v1915 = vld [vmem:[#allocation7 + $0x8] sm:$0xf]
    %v1916 = vld [vmem:[#allocation7 + $0xc] sm:$0xff]
    %v1917 = vld [vmem:[#allocation7 + $0x14] sm:$0xf]
    %v1918 = vld [vmem:[#allocation7 + $0x18] sm:$0xff]
    %v1919 = vld [vmem:[#allocation7 + $0x20] sm:$0xf]
    %v1920 = vld [vmem:[#allocation7 + $0x24] sm:$0xff]
    %v1921 = vld [vmem:[#allocation7 + $0x2c] sm:$0xf]
    %v1922 = vld [vmem:[#allocation7 + $0x30] sm:$0xff]
    %v1923 = vld [vmem:[#allocation7 + $0x38] sm:$0xf]
    %v1924 = vld [vmem:[#allocation7 + $0x3c] sm:$0xff]
    %v1925 = vld [vmem:[#allocation7 + $0x44] sm:$0xf]
    %v1926 = vld [vmem:[#allocation7 + $0x48] sm:$0xff]
    %v1927 = vld [vmem:[#allocation7 + $0x50] sm:$0xf]
    %v1928 = vld [vmem:[#allocation7 + $0x54] sm:$0xff]
    %v1929 = vld [vmem:[#allocation7 + $0x5c] sm:$0xf]
    %v1930 = vld [vmem:[#allocation7 + $0x60] sm:$0xff]
    %v1931 = vld [vmem:[#allocation7 + $0x68] sm:$0xf]
    %v1932 = vld [vmem:[#allocation7 + $0x6c] sm:$0xff]
    %v1933 = vld [vmem:[#allocation7 + $0x74] sm:$0xf]
    %v1934 = vld [vmem:[#allocation7 + $0x78] sm:$0xff]
    %v1935 = vld [vmem:[#allocation7 + $0x80] sm:$0xf]
    %v1936 = vld [vmem:[#allocation7 + $0x84] sm:$0xff]
    %v1937 = vld [vmem:[#allocation7 + $0x8c] sm:$0xf]
    %v1938 = vld [vmem:[#allocation7 + $0x90] sm:$0xff]
    %v1939 = vld [vmem:[#allocation7 + $0x98] sm:$0xf]
    %v1940 = vld [vmem:[#allocation7 + $0x9c] sm:$0xff]
    %v1941 = vld [vmem:[#allocation7 + $0xa4] sm:$0xf]
    %v1942 = vld [vmem:[#allocation7 + $0xa8] sm:$0xff]
    %v1943 = vld [vmem:[#allocation7 + $0xb0] sm:$0xf]
    %v1944 = vld [vmem:[#allocation7 + $0xb4] sm:$0xff]
    %v1945 = vld [vmem:[#allocation7 + $0xbc] sm:$0xf]
    %v1946 = vld [vmem:[%s2] sm:$0x7]
    %v1948 = vperm.slane %v1946, 0
    %v1949 = vperm.slane %v1946, 1
    %v1950 = vperm.slane %v1946, 2
    %v1986 = vunpack.c.l.b16 %v1914
    %v1987 = vunpack.c.h.b16 %v1914
    %v1988 = vunpack.c.l.b16 %v1915
    %v1989 = vunpack.c.l.b16 %v1916
    %v1990 = vunpack.c.h.b16 %v1916
    %v1991 = vunpack.c.l.b16 %v1917
    %v1992 = vunpack.c.l.b16 %v1918
    %v1993 = vunpack.c.h.b16 %v1918
    %v1994 = vunpack.c.l.b16 %v1919
    %v1995 = vunpack.c.l.b16 %v1920
    %v1996 = vunpack.c.h.b16 %v1920
    %v1997 = vunpack.c.l.b16 %v1921
    %v1998 = vunpack.c.l.b16 %v1922
    %v1999 = vunpack.c.h.b16 %v1922
    %v2000 = vunpack.c.l.b16 %v1923
    %v2001 = vunpack.c.l.b16 %v1924
    %v2002 = vunpack.c.h.b16 %v1924
    %v2003 = vunpack.c.l.b16 %v1925
    %v2004 = vunpack.c.l.b16 %v1926
    %v2005 = vunpack.c.h.b16 %v1926
    %v2006 = vunpack.c.l.b16 %v1927
    %v2007 = vunpack.c.l.b16 %v1928
    %v2008 = vunpack.c.h.b16 %v1928
    %v2009 = vunpack.c.l.b16 %v1929
    %v2010 = vunpack.c.l.b16 %v1930
    %v2011 = vunpack.c.h.b16 %v1930
    %v2012 = vunpack.c.l.b16 %v1931
    %v2013 = vunpack.c.l.b16 %v1932
    %v2014 = vunpack.c.h.b16 %v1932
    %v2015 = vunpack.c.l.b16 %v1933
    %v2016 = vunpack.c.l.b16 %v1934
    %v2017 = vunpack.c.h.b16 %v1934
    %v2018 = vunpack.c.l.b16 %v1935
    %v2019 = vunpack.c.l.b16 %v1936
    %v2020 = vunpack.c.h.b16 %v1936
    %v2021 = vunpack.c.l.b16 %v1937
    %v2022 = vunpack.c.l.b16 %v1938
    %v2023 = vunpack.c.h.b16 %v1938
    %v2024 = vunpack.c.l.b16 %v1939
    %v2025 = vunpack.c.l.b16 %v1940
    %v2026 = vunpack.c.h.b16 %v1940
    %v2027 = vunpack.c.l.b16 %v1941
    %v2028 = vunpack.c.l.b16 %v1942
    %v2029 = vunpack.c.h.b16 %v1942
    %v2030 = vunpack.c.l.b16 %v1943
    %v2031 = vunpack.c.l.b16 %v1944
    %v2032 = vunpack.c.h.b16 %v1944
    %v2033 = vunpack.c.l.b16 %v1945
    %v2034 = vpack.c.b16 %v1989, %v1986
    %v2035 = vpack.c.b16 %v1990, %v1987
    %v2036 = vpack.c.b16 %v1991, %v1988
    %v2037 = vpack.c.b16 %v1995, %v1992
    %v2038 = vpack.c.b16 %v1996, %v1993
    %v2039 = vpack.c.b16 %v1997, %v1994
    %v2040 = vpack.c.b16 %v2001, %v1998
    %v2041 = vpack.c.b16 %v2002, %v1999
    %v2042 = vpack.c.b16 %v2003, %v2000
    %v2043 = vpack.c.b16 %v2007, %v2004
    %v2044 = vpack.c.b16 %v2008, %v2005
    %v2045 = vpack.c.b16 %v2009, %v2006
    %v2046 = vpack.c.b16 %v2013, %v2010
    %v2047 = vpack.c.b16 %v2014, %v2011
    %v2048 = vpack.c.b16 %v2015, %v2012
    %v2049 = vpack.c.b16 %v2019, %v2016
    %v2050 = vpack.c.b16 %v2020, %v2017
    %v2051 = vpack.c.b16 %v2021, %v2018
    %v2052 = vpack.c.b16 %v2025, %v2022
    %v2053 = vpack.c.b16 %v2026, %v2023
    %v2054 = vpack.c.b16 %v2027, %v2024
    %v2055 = vpack.c.b16 %v2031, %v2028
    %v2056 = vpack.c.b16 %v2032, %v2029
    %v2057 = vpack.c.b16 %v2033, %v2030
    %2082 = vmatpush.bf16.msra.mxu0 %v2055
    %2083 = vmatpush.bf16.msra.mxu0 %v2052
    %2084 = vmatpush.bf16.msra.mxu0 %v2049
    %2085 = vmatpush.bf16.msra.mxu0 %v2046
    %2086 = vmatpush.bf16.msra.mxu0 %v2043
    %2087 = vmatpush.bf16.msra.mxu0 %v2040
    %2088 = vmatpush.bf16.msra.mxu0 %v2037
    %2089 = vmatpush.bf16.msra.mxu0 %v2034
    %2090 = vmatmul.bf16.gmra.mxu0 %v1913
    %v2091 = vpop.f32.mrf.mxu0
    %v2092 = vadd.f32 %v1948, %v2091
    %v2093 = vpop.f32.mrf.mxu0
    %2094 = vdwg.mxu0
    %2095 = vmatpush.bf16.msra.mxu0 %v2056
    %2096 = vmatpush.bf16.msra.mxu0 %v2053
    %2097 = vmatpush.bf16.msra.mxu0 %v2050
    %2098 = vmatpush.bf16.msra.mxu0 %v2047
    %2099 = vmatpush.bf16.msra.mxu0 %v2044
    %2100 = vmatpush.bf16.msra.mxu0 %v2041
    %2101 = vmatpush.bf16.msra.mxu0 %v2038
    %2102 = vmatpush.bf16.msra.mxu0 %v2035
    %2103 = vmatmul.bf16.gmra.mxu0 %v1913
    %v2104 = vpop.f32.mrf.mxu0
    %v2105 = vadd.f32 %v1949, %v2104
    %v2106 = vpop.f32.mrf.mxu0
    %2107 = vdwg.mxu0
    %2108 = vmatpush.bf16.msra.mxu0 %v2057
    %2109 = vmatpush.bf16.msra.mxu0 %v2054
    %2110 = vmatpush.bf16.msra.mxu0 %v2051
    %2111 = vmatpush.bf16.msra.mxu0 %v2048
    %2112 = vmatpush.bf16.msra.mxu0 %v2045
    %2113 = vmatpush.bf16.msra.mxu0 %v2042
    %2114 = vmatpush.bf16.msra.mxu0 %v2039
    %2115 = vmatpush.bf16.msra.mxu0 %v2036
    %2116 = vmatmul.bf16.gmra.mxu0 %v1913
    %v2117 = vpop.f32.mrf.mxu0
    %v2118 = vadd.f32 %v1950, %v2117
    %v2119 = vpop.f32.mrf.mxu0
    %2120 = vdwg.mxu0
    %s2121 = scalar_lea.vmem [#allocation2], 72
    %2122 = vst [vmem:[%s2121] sm:$0xff] %v2092
    %2123 = vst [vmem:[%s2121 + $0x8] sm:$0xff] %v2105
    %2124 = vst [vmem:[%s2121 + $0x10] sm:$0xff] %v2118
    %s2125 = scalar_lea.vmem [#allocation5], 96
    %v2126 = vld [vmem:[%s2125] sm:$0xff]
    %v2127 = vld [vmem:[#allocation10] sm:$0xf]
    %v2128 = vld [vmem:[#allocation10 + $0xc] sm:$0xf]
    %v2129 = vld [vmem:[#allocation10 + $0x18] sm:$0xf]
    %v2130 = vld [vmem:[#allocation10 + $0x24] sm:$0xf]
    %v2131 = vld [vmem:[#allocation10 + $0x30] sm:$0xf]
    %v2132 = vld [vmem:[#allocation10 + $0x3c] sm:$0xf]
    %v2133 = vld [vmem:[#allocation10 + $0x48] sm:$0xf]
    %v2134 = vld [vmem:[#allocation10 + $0x54] sm:$0xf]
    %v2135 = vld [vmem:[#allocation10 + $0x60] sm:$0xf]
    %v2136 = vld [vmem:[#allocation10 + $0x6c] sm:$0xf]
    %v2137 = vld [vmem:[#allocation10 + $0x78] sm:$0xf]
    %v2138 = vld [vmem:[#allocation10 + $0x84] sm:$0xf]
    %v2139 = vld [vmem:[#allocation10 + $0x90] sm:$0xf]
    %v2140 = vld [vmem:[#allocation10 + $0x9c] sm:$0xf]
    %v2141 = vld [vmem:[#allocation10 + $0xa8] sm:$0xf]
    %v2142 = vld [vmem:[#allocation10 + $0xb4] sm:$0xf]
    %v2159 = vunpack.c.l.b16 %v2127
    %v2160 = vunpack.c.l.b16 %v2128
    %v2161 = vunpack.c.l.b16 %v2129
    %v2162 = vunpack.c.l.b16 %v2130
    %v2163 = vunpack.c.l.b16 %v2131
    %v2164 = vunpack.c.l.b16 %v2132
    %v2165 = vunpack.c.l.b16 %v2133
    %v2166 = vunpack.c.l.b16 %v2134
    %v2167 = vunpack.c.l.b16 %v2135
    %v2168 = vunpack.c.l.b16 %v2136
    %v2169 = vunpack.c.l.b16 %v2137
    %v2170 = vunpack.c.l.b16 %v2138
    %v2171 = vunpack.c.l.b16 %v2139
    %v2172 = vunpack.c.l.b16 %v2140
    %v2173 = vunpack.c.l.b16 %v2141
    %v2174 = vunpack.c.l.b16 %v2142
    %v2175 = vpack.c.b16 %v2160, %v2159
    %v2176 = vpack.c.b16 %v2162, %v2161
    %v2177 = vpack.c.b16 %v2164, %v2163
    %v2178 = vpack.c.b16 %v2166, %v2165
    %v2179 = vpack.c.b16 %v2168, %v2167
    %v2180 = vpack.c.b16 %v2170, %v2169
    %v2181 = vpack.c.b16 %v2172, %v2171
    %v2182 = vpack.c.b16 %v2174, %v2173
    %2191 = vmatpush.bf16.msra.mxu0 %v2182
    %2192 = vmatpush.bf16.msra.mxu0 %v2181
    %2193 = vmatpush.bf16.msra.mxu0 %v2180
    %2194 = vmatpush.bf16.msra.mxu0 %v2179
    %2195 = vmatpush.bf16.msra.mxu0 %v2178
    %2196 = vmatpush.bf16.msra.mxu0 %v2177
    %2197 = vmatpush.bf16.msra.mxu0 %v2176
    %2198 = vmatpush.bf16.msra.mxu0 %v2175
    %2199 = vmatmul.bf16.gmra.mxu0 %v1913
    %v2200 = vpop.f32.mrf.mxu0
    %v2201 = vadd.f32 0.0, %v2200
    %v2202 = vpop.f32.mrf.mxu0
    %2203 = vdwg.mxu0
    %v2204 = vadd.f32 %v2126, %v2201
    %v2205 = vxor.u32 %v2204, 2147483648
    %v2206 = vmul.f32 %v2205, 1.442695
    %v2207 = vpow.pop %v2206
    %v2208 = vadd.f32 %v2207, 1.0
    %v2209 = vrcp.pop %v2208
    %v2210 = vmul.f32 %v2208, %v2209
    %v2211 = vsub.f32 1.0, %v2210
    %v2212 = vmul.f32 %v2209, %v2211
    %v2213 = vadd.f32 %v2209, %v2212
    %vm2214 = vweird.f32 %v2208
    %vm2215 = vweird.f32 %v2209
    %vm2216 = vmor %vm2214, %vm2215
    %v2217 = vsel %vm2216, %v2209, %v2213
    %v2218 = vand.u32 2147483647, %v2208
    %vm2219 = vcmp.eq.f32.partialorder %v2218, 8.507059e+37
    %v2220 = vand.u32 %v2208, 2147483648
    %v2221 = vor.u32 1.1754944e-38, %v2220
    %v2222 = vsel %vm2219, %v2221, %v2217
    %v2223 = vmul.f32 1.0, %v2222
    %v2224 = vld [vmem:[%s2125 + $0x8] sm:$0xff]
    %v2225 = vld [vmem:[#allocation10 + $0x4] sm:$0xf]
    %v2226 = vld [vmem:[#allocation10 + $0x10] sm:$0xf]
    %v2227 = vld [vmem:[#allocation10 + $0x1c] sm:$0xf]
    %v2228 = vld [vmem:[#allocation10 + $0x28] sm:$0xf]
    %v2229 = vld [vmem:[#allocation10 + $0x34] sm:$0xf]
    %v2230 = vld [vmem:[#allocation10 + $0x40] sm:$0xf]
    %v2231 = vld [vmem:[#allocation10 + $0x4c] sm:$0xf]
    %v2232 = vld [vmem:[#allocation10 + $0x58] sm:$0xf]
    %v2233 = vld [vmem:[#allocation10 + $0x64] sm:$0xf]
    %v2234 = vld [vmem:[#allocation10 + $0x70] sm:$0xf]
    %v2235 = vld [vmem:[#allocation10 + $0x7c] sm:$0xf]
    %v2236 = vld [vmem:[#allocation10 + $0x88] sm:$0xf]
    %v2237 = vld [vmem:[#allocation10 + $0x94] sm:$0xf]
    %v2238 = vld [vmem:[#allocation10 + $0xa0] sm:$0xf]
    %v2239 = vld [vmem:[#allocation10 + $0xac] sm:$0xf]
    %v2240 = vld [vmem:[#allocation10 + $0xb8] sm:$0xf]
    %v2257 = vunpack.c.l.b16 %v2225
    %v2258 = vunpack.c.l.b16 %v2226
    %v2259 = vunpack.c.l.b16 %v2227
    %v2260 = vunpack.c.l.b16 %v2228
    %v2261 = vunpack.c.l.b16 %v2229
    %v2262 = vunpack.c.l.b16 %v2230
    %v2263 = vunpack.c.l.b16 %v2231
    %v2264 = vunpack.c.l.b16 %v2232
    %v2265 = vunpack.c.l.b16 %v2233
    %v2266 = vunpack.c.l.b16 %v2234
    %v2267 = vunpack.c.l.b16 %v2235
    %v2268 = vunpack.c.l.b16 %v2236
    %v2269 = vunpack.c.l.b16 %v2237
    %v2270 = vunpack.c.l.b16 %v2238
    %v2271 = vunpack.c.l.b16 %v2239
    %v2272 = vunpack.c.l.b16 %v2240
    %v2273 = vpack.c.b16 %v2258, %v2257
    %v2274 = vpack.c.b16 %v2260, %v2259
    %v2275 = vpack.c.b16 %v2262, %v2261
    %v2276 = vpack.c.b16 %v2264, %v2263
    %v2277 = vpack.c.b16 %v2266, %v2265
    %v2278 = vpack.c.b16 %v2268, %v2267
    %v2279 = vpack.c.b16 %v2270, %v2269
    %v2280 = vpack.c.b16 %v2272, %v2271
    %2289 = vmatpush.bf16.msra.mxu0 %v2280
    %2290 = vmatpush.bf16.msra.mxu0 %v2279
    %2291 = vmatpush.bf16.msra.mxu0 %v2278
    %2292 = vmatpush.bf16.msra.mxu0 %v2277
    %2293 = vmatpush.bf16.msra.mxu0 %v2276
    %2294 = vmatpush.bf16.msra.mxu0 %v2275
    %2295 = vmatpush.bf16.msra.mxu0 %v2274
    %2296 = vmatpush.bf16.msra.mxu0 %v2273
    %2297 = vmatmul.bf16.gmra.mxu0 %v1913
    %v2298 = vpop.f32.mrf.mxu0
    %v2299 = vadd.f32 0.0, %v2298
    %v2300 = vpop.f32.mrf.mxu0
    %2301 = vdwg.mxu0
    %v2302 = vadd.f32 %v2224, %v2299
    %v2303 = vxor.u32 %v2302, 2147483648
    %v2304 = vmul.f32 %v2303, 1.442695
    %v2305 = vpow.pop %v2304
    %v2306 = vadd.f32 %v2305, 1.0
    %v2307 = vrcp.pop %v2306
    %v2308 = vmul.f32 %v2306, %v2307
    %v2309 = vsub.f32 1.0, %v2308
    %v2310 = vmul.f32 %v2307, %v2309
    %v2311 = vadd.f32 %v2307, %v2310
    %vm2312 = vweird.f32 %v2306
    %vm2313 = vweird.f32 %v2307
    %vm2314 = vmor %vm2312, %vm2313
    %v2315 = vsel %vm2314, %v2307, %v2311
    %v2316 = vand.u32 2147483647, %v2306
    %vm2317 = vcmp.eq.f32.partialorder %v2316, 8.507059e+37
    %v2318 = vand.u32 %v2306, 2147483648
    %v2319 = vor.u32 1.1754944e-38, %v2318
    %v2320 = vsel %vm2317, %v2319, %v2315
    %v2321 = vmul.f32 1.0, %v2320
    %v2322 = vld [vmem:[%s2125 + $0x10] sm:$0xff]
    %v2323 = vld [vmem:[#allocation10 + $0x8] sm:$0xf]
    %v2324 = vld [vmem:[#allocation10 + $0x14] sm:$0xf]
    %v2325 = vld [vmem:[#allocation10 + $0x20] sm:$0xf]
    %v2326 = vld [vmem:[#allocation10 + $0x2c] sm:$0xf]
    %v2327 = vld [vmem:[#allocation10 + $0x38] sm:$0xf]
    %v2328 = vld [vmem:[#allocation10 + $0x44] sm:$0xf]
    %v2329 = vld [vmem:[#allocation10 + $0x50] sm:$0xf]
    %v2330 = vld [vmem:[#allocation10 + $0x5c] sm:$0xf]
    %v2331 = vld [vmem:[#allocation10 + $0x68] sm:$0xf]
    %v2332 = vld [vmem:[#allocation10 + $0x74] sm:$0xf]
    %v2333 = vld [vmem:[#allocation10 + $0x80] sm:$0xf]
    %v2334 = vld [vmem:[#allocation10 + $0x8c] sm:$0xf]
    %v2335 = vld [vmem:[#allocation10 + $0x98] sm:$0xf]
    %v2336 = vld [vmem:[#allocation10 + $0xa4] sm:$0xf]
    %v2337 = vld [vmem:[#allocation10 + $0xb0] sm:$0xf]
    %v2338 = vld [vmem:[#allocation10 + $0xbc] sm:$0xf]
    %v2355 = vunpack.c.l.b16 %v2323
    %v2356 = vunpack.c.l.b16 %v2324
    %v2357 = vunpack.c.l.b16 %v2325
    %v2358 = vunpack.c.l.b16 %v2326
    %v2359 = vunpack.c.l.b16 %v2327
    %v2360 = vunpack.c.l.b16 %v2328
    %v2361 = vunpack.c.l.b16 %v2329
    %v2362 = vunpack.c.l.b16 %v2330
    %v2363 = vunpack.c.l.b16 %v2331
    %v2364 = vunpack.c.l.b16 %v2332
    %v2365 = vunpack.c.l.b16 %v2333
    %v2366 = vunpack.c.l.b16 %v2334
    %v2367 = vunpack.c.l.b16 %v2335
    %v2368 = vunpack.c.l.b16 %v2336
    %v2369 = vunpack.c.l.b16 %v2337
    %v2370 = vunpack.c.l.b16 %v2338
    %v2371 = vpack.c.b16 %v2356, %v2355
    %v2372 = vpack.c.b16 %v2358, %v2357
    %v2373 = vpack.c.b16 %v2360, %v2359
    %v2374 = vpack.c.b16 %v2362, %v2361
    %v2375 = vpack.c.b16 %v2364, %v2363
    %v2376 = vpack.c.b16 %v2366, %v2365
    %v2377 = vpack.c.b16 %v2368, %v2367
    %v2378 = vpack.c.b16 %v2370, %v2369
    %2387 = vmatpush.bf16.msra.mxu0 %v2378
    %2388 = vmatpush.bf16.msra.mxu0 %v2377
    %2389 = vmatpush.bf16.msra.mxu0 %v2376
    %2390 = vmatpush.bf16.msra.mxu0 %v2375
    %2391 = vmatpush.bf16.msra.mxu0 %v2374
    %2392 = vmatpush.bf16.msra.mxu0 %v2373
    %2393 = vmatpush.bf16.msra.mxu0 %v2372
    %2394 = vmatpush.bf16.msra.mxu0 %v2371
    %2395 = vmatmul.bf16.gmra.mxu0 %v1913
    %v2396 = vpop.f32.mrf.mxu0
    %v2397 = vadd.f32 %v362, %v2396
    %v2398 = vpop.f32.mrf.mxu0
    %2399 = vdwg.mxu0
    %v2400 = vmul.f32 %v2223, %v2397
    %v2401 = vadd.f32 %v2322, %v2400
    %v2402 = vtanh.pop %v2401
    %v2403 = vsub.f32 1.0, %v2321
    %v2404 = vmul.f32 %v2403, %v2402
    %v2405 = vmul.f32 %v2321, %v1912
    %v2406 = vadd.f32 %v2404, %v2405
    %v2407 = vpack.c.bf16 %v2406, %v2406
    %v2408 = vld [vmem:[#allocation7] sm:$0xff]
    %v2409 = vld [vmem:[#allocation7 + $0x8] sm:$0xf]
    %v2410 = vld [vmem:[#allocation7 + $0xc] sm:$0xff]
    %v2411 = vld [vmem:[#allocation7 + $0x14] sm:$0xf]
    %v2412 = vld [vmem:[#allocation7 + $0x18] sm:$0xff]
    %v2413 = vld [vmem:[#allocation7 + $0x20] sm:$0xf]
    %v2414 = vld [vmem:[#allocation7 + $0x24] sm:$0xff]
    %v2415 = vld [vmem:[#allocation7 + $0x2c] sm:$0xf]
    %v2416 = vld [vmem:[#allocation7 + $0x30] sm:$0xff]
    %v2417 = vld [vmem:[#allocation7 + $0x38] sm:$0xf]
    %v2418 = vld [vmem:[#allocation7 + $0x3c] sm:$0xff]
    %v2419 = vld [vmem:[#allocation7 + $0x44] sm:$0xf]
    %v2420 = vld [vmem:[#allocation7 + $0x48] sm:$0xff]
    %v2421 = vld [vmem:[#allocation7 + $0x50] sm:$0xf]
    %v2422 = vld [vmem:[#allocation7 + $0x54] sm:$0xff]
    %v2423 = vld [vmem:[#allocation7 + $0x5c] sm:$0xf]
    %v2424 = vld [vmem:[#allocation7 + $0x60] sm:$0xff]
    %v2425 = vld [vmem:[#allocation7 + $0x68] sm:$0xf]
    %v2426 = vld [vmem:[#allocation7 + $0x6c] sm:$0xff]
    %v2427 = vld [vmem:[#allocation7 + $0x74] sm:$0xf]
    %v2428 = vld [vmem:[#allocation7 + $0x78] sm:$0xff]
    %v2429 = vld [vmem:[#allocation7 + $0x80] sm:$0xf]
    %v2430 = vld [vmem:[#allocation7 + $0x84] sm:$0xff]
    %v2431 = vld [vmem:[#allocation7 + $0x8c] sm:$0xf]
    %v2432 = vld [vmem:[#allocation7 + $0x90] sm:$0xff]
    %v2433 = vld [vmem:[#allocation7 + $0x98] sm:$0xf]
    %v2434 = vld [vmem:[#allocation7 + $0x9c] sm:$0xff]
    %v2435 = vld [vmem:[#allocation7 + $0xa4] sm:$0xf]
    %v2436 = vld [vmem:[#allocation7 + $0xa8] sm:$0xff]
    %v2437 = vld [vmem:[#allocation7 + $0xb0] sm:$0xf]
    %v2438 = vld [vmem:[#allocation7 + $0xb4] sm:$0xff]
    %v2439 = vld [vmem:[#allocation7 + $0xbc] sm:$0xf]
    %v2440 = vld [vmem:[%s2] sm:$0x7]
    %v2442 = vperm.slane %v2440, 0
    %v2443 = vperm.slane %v2440, 1
    %v2444 = vperm.slane %v2440, 2
    %v2480 = vunpack.c.l.b16 %v2408
    %v2481 = vunpack.c.h.b16 %v2408
    %v2482 = vunpack.c.l.b16 %v2409
    %v2483 = vunpack.c.l.b16 %v2410
    %v2484 = vunpack.c.h.b16 %v2410
    %v2485 = vunpack.c.l.b16 %v2411
    %v2486 = vunpack.c.l.b16 %v2412
    %v2487 = vunpack.c.h.b16 %v2412
    %v2488 = vunpack.c.l.b16 %v2413
    %v2489 = vunpack.c.l.b16 %v2414
    %v2490 = vunpack.c.h.b16 %v2414
    %v2491 = vunpack.c.l.b16 %v2415
    %v2492 = vunpack.c.l.b16 %v2416
    %v2493 = vunpack.c.h.b16 %v2416
    %v2494 = vunpack.c.l.b16 %v2417
    %v2495 = vunpack.c.l.b16 %v2418
    %v2496 = vunpack.c.h.b16 %v2418
    %v2497 = vunpack.c.l.b16 %v2419
    %v2498 = vunpack.c.l.b16 %v2420
    %v2499 = vunpack.c.h.b16 %v2420
    %v2500 = vunpack.c.l.b16 %v2421
    %v2501 = vunpack.c.l.b16 %v2422
    %v2502 = vunpack.c.h.b16 %v2422
    %v2503 = vunpack.c.l.b16 %v2423
    %v2504 = vunpack.c.l.b16 %v2424
    %v2505 = vunpack.c.h.b16 %v2424
    %v2506 = vunpack.c.l.b16 %v2425
    %v2507 = vunpack.c.l.b16 %v2426
    %v2508 = vunpack.c.h.b16 %v2426
    %v2509 = vunpack.c.l.b16 %v2427
    %v2510 = vunpack.c.l.b16 %v2428
    %v2511 = vunpack.c.h.b16 %v2428
    %v2512 = vunpack.c.l.b16 %v2429
    %v2513 = vunpack.c.l.b16 %v2430
    %v2514 = vunpack.c.h.b16 %v2430
    %v2515 = vunpack.c.l.b16 %v2431
    %v2516 = vunpack.c.l.b16 %v2432
    %v2517 = vunpack.c.h.b16 %v2432
    %v2518 = vunpack.c.l.b16 %v2433
    %v2519 = vunpack.c.l.b16 %v2434
    %v2520 = vunpack.c.h.b16 %v2434
    %v2521 = vunpack.c.l.b16 %v2435
    %v2522 = vunpack.c.l.b16 %v2436
    %v2523 = vunpack.c.h.b16 %v2436
    %v2524 = vunpack.c.l.b16 %v2437
    %v2525 = vunpack.c.l.b16 %v2438
    %v2526 = vunpack.c.h.b16 %v2438
    %v2527 = vunpack.c.l.b16 %v2439
    %v2528 = vpack.c.b16 %v2483, %v2480
    %v2529 = vpack.c.b16 %v2484, %v2481
    %v2530 = vpack.c.b16 %v2485, %v2482
    %v2531 = vpack.c.b16 %v2489, %v2486
    %v2532 = vpack.c.b16 %v2490, %v2487
    %v2533 = vpack.c.b16 %v2491, %v2488
    %v2534 = vpack.c.b16 %v2495, %v2492
    %v2535 = vpack.c.b16 %v2496, %v2493
    %v2536 = vpack.c.b16 %v2497, %v2494
    %v2537 = vpack.c.b16 %v2501, %v2498
    %v2538 = vpack.c.b16 %v2502, %v2499
    %v2539 = vpack.c.b16 %v2503, %v2500
    %v2540 = vpack.c.b16 %v2507, %v2504
    %v2541 = vpack.c.b16 %v2508, %v2505
    %v2542 = vpack.c.b16 %v2509, %v2506
    %v2543 = vpack.c.b16 %v2513, %v2510
    %v2544 = vpack.c.b16 %v2514, %v2511
    %v2545 = vpack.c.b16 %v2515, %v2512
    %v2546 = vpack.c.b16 %v2519, %v2516
    %v2547 = vpack.c.b16 %v2520, %v2517
    %v2548 = vpack.c.b16 %v2521, %v2518
    %v2549 = vpack.c.b16 %v2525, %v2522
    %v2550 = vpack.c.b16 %v2526, %v2523
    %v2551 = vpack.c.b16 %v2527, %v2524
    %2576 = vmatpush.bf16.msra.mxu0 %v2549
    %2577 = vmatpush.bf16.msra.mxu0 %v2546
    %2578 = vmatpush.bf16.msra.mxu0 %v2543
    %2579 = vmatpush.bf16.msra.mxu0 %v2540
    %2580 = vmatpush.bf16.msra.mxu0 %v2537
    %2581 = vmatpush.bf16.msra.mxu0 %v2534
    %2582 = vmatpush.bf16.msra.mxu0 %v2531
    %2583 = vmatpush.bf16.msra.mxu0 %v2528
    %2584 = vmatmul.bf16.gmra.mxu0 %v2407
    %v2585 = vpop.f32.mrf.mxu0
    %v2586 = vadd.f32 %v2442, %v2585
    %v2587 = vpop.f32.mrf.mxu0
    %2588 = vdwg.mxu0
    %2589 = vmatpush.bf16.msra.mxu0 %v2550
    %2590 = vmatpush.bf16.msra.mxu0 %v2547
    %2591 = vmatpush.bf16.msra.mxu0 %v2544
    %2592 = vmatpush.bf16.msra.mxu0 %v2541
    %2593 = vmatpush.bf16.msra.mxu0 %v2538
    %2594 = vmatpush.bf16.msra.mxu0 %v2535
    %2595 = vmatpush.bf16.msra.mxu0 %v2532
    %2596 = vmatpush.bf16.msra.mxu0 %v2529
    %2597 = vmatmul.bf16.gmra.mxu0 %v2407
    %v2598 = vpop.f32.mrf.mxu0
    %v2599 = vadd.f32 %v2443, %v2598
    %v2600 = vpop.f32.mrf.mxu0
    %2601 = vdwg.mxu0
    %2602 = vmatpush.bf16.msra.mxu0 %v2551
    %2603 = vmatpush.bf16.msra.mxu0 %v2548
    %2604 = vmatpush.bf16.msra.mxu0 %v2545
    %2605 = vmatpush.bf16.msra.mxu0 %v2542
    %2606 = vmatpush.bf16.msra.mxu0 %v2539
    %2607 = vmatpush.bf16.msra.mxu0 %v2536
    %2608 = vmatpush.bf16.msra.mxu0 %v2533
    %2609 = vmatpush.bf16.msra.mxu0 %v2530
    %2610 = vmatmul.bf16.gmra.mxu0 %v2407
    %v2611 = vpop.f32.mrf.mxu0
    %v2612 = vadd.f32 %v2444, %v2611
    %v2613 = vpop.f32.mrf.mxu0
    %2614 = vdwg.mxu0
    %s2615 = scalar_lea.vmem [#allocation2], 96
    %2616 = vst [vmem:[%s2615] sm:$0xff] %v2586
    %2617 = vst [vmem:[%s2615 + $0x8] sm:$0xff] %v2599
    %2618 = vst [vmem:[%s2615 + $0x10] sm:$0xff] %v2612
    %s2619 = scalar_lea.vmem [#allocation5], 120
    %v2620 = vld [vmem:[%s2619] sm:$0xff]
    %v2621 = vld [vmem:[#allocation10] sm:$0xf]
    %v2622 = vld [vmem:[#allocation10 + $0xc] sm:$0xf]
    %v2623 = vld [vmem:[#allocation10 + $0x18] sm:$0xf]
    %v2624 = vld [vmem:[#allocation10 + $0x24] sm:$0xf]
    %v2625 = vld [vmem:[#allocation10 + $0x30] sm:$0xf]
    %v2626 = vld [vmem:[#allocation10 + $0x3c] sm:$0xf]
    %v2627 = vld [vmem:[#allocation10 + $0x48] sm:$0xf]
    %v2628 = vld [vmem:[#allocation10 + $0x54] sm:$0xf]
    %v2629 = vld [vmem:[#allocation10 + $0x60] sm:$0xf]
    %v2630 = vld [vmem:[#allocation10 + $0x6c] sm:$0xf]
    %v2631 = vld [vmem:[#allocation10 + $0x78] sm:$0xf]
    %v2632 = vld [vmem:[#allocation10 + $0x84] sm:$0xf]
    %v2633 = vld [vmem:[#allocation10 + $0x90] sm:$0xf]
    %v2634 = vld [vmem:[#allocation10 + $0x9c] sm:$0xf]
    %v2635 = vld [vmem:[#allocation10 + $0xa8] sm:$0xf]
    %v2636 = vld [vmem:[#allocation10 + $0xb4] sm:$0xf]
    %v2653 = vunpack.c.l.b16 %v2621
    %v2654 = vunpack.c.l.b16 %v2622
    %v2655 = vunpack.c.l.b16 %v2623
    %v2656 = vunpack.c.l.b16 %v2624
    %v2657 = vunpack.c.l.b16 %v2625
    %v2658 = vunpack.c.l.b16 %v2626
    %v2659 = vunpack.c.l.b16 %v2627
    %v2660 = vunpack.c.l.b16 %v2628
    %v2661 = vunpack.c.l.b16 %v2629
    %v2662 = vunpack.c.l.b16 %v2630
    %v2663 = vunpack.c.l.b16 %v2631
    %v2664 = vunpack.c.l.b16 %v2632
    %v2665 = vunpack.c.l.b16 %v2633
    %v2666 = vunpack.c.l.b16 %v2634
    %v2667 = vunpack.c.l.b16 %v2635
    %v2668 = vunpack.c.l.b16 %v2636
    %v2669 = vpack.c.b16 %v2654, %v2653
    %v2670 = vpack.c.b16 %v2656, %v2655
    %v2671 = vpack.c.b16 %v2658, %v2657
    %v2672 = vpack.c.b16 %v2660, %v2659
    %v2673 = vpack.c.b16 %v2662, %v2661
    %v2674 = vpack.c.b16 %v2664, %v2663
    %v2675 = vpack.c.b16 %v2666, %v2665
    %v2676 = vpack.c.b16 %v2668, %v2667
    %2685 = vmatpush.bf16.msra.mxu0 %v2676
    %2686 = vmatpush.bf16.msra.mxu0 %v2675
    %2687 = vmatpush.bf16.msra.mxu0 %v2674
    %2688 = vmatpush.bf16.msra.mxu0 %v2673
    %2689 = vmatpush.bf16.msra.mxu0 %v2672
    %2690 = vmatpush.bf16.msra.mxu0 %v2671
    %2691 = vmatpush.bf16.msra.mxu0 %v2670
    %2692 = vmatpush.bf16.msra.mxu0 %v2669
    %2693 = vmatmul.bf16.gmra.mxu0 %v2407
    %v2694 = vpop.f32.mrf.mxu0
    %v2695 = vadd.f32 0.0, %v2694
    %v2696 = vpop.f32.mrf.mxu0
    %2697 = vdwg.mxu0
    %v2698 = vadd.f32 %v2620, %v2695
    %v2699 = vxor.u32 %v2698, 2147483648
    %v2700 = vmul.f32 %v2699, 1.442695
    %v2701 = vpow.pop %v2700
    %v2702 = vadd.f32 %v2701, 1.0
    %v2703 = vrcp.pop %v2702
    %v2704 = vmul.f32 %v2702, %v2703
    %v2705 = vsub.f32 1.0, %v2704
    %v2706 = vmul.f32 %v2703, %v2705
    %v2707 = vadd.f32 %v2703, %v2706
    %vm2708 = vweird.f32 %v2702
    %vm2709 = vweird.f32 %v2703
    %vm2710 = vmor %vm2708, %vm2709
    %v2711 = vsel %vm2710, %v2703, %v2707
    %v2712 = vand.u32 2147483647, %v2702
    %vm2713 = vcmp.eq.f32.partialorder %v2712, 8.507059e+37
    %v2714 = vand.u32 %v2702, 2147483648
    %v2715 = vor.u32 1.1754944e-38, %v2714
    %v2716 = vsel %vm2713, %v2715, %v2711
    %v2717 = vmul.f32 1.0, %v2716
    %v2718 = vld [vmem:[%s2619 + $0x8] sm:$0xff]
    %v2719 = vld [vmem:[#allocation10 + $0x4] sm:$0xf]
    %v2720 = vld [vmem:[#allocation10 + $0x10] sm:$0xf]
    %v2721 = vld [vmem:[#allocation10 + $0x1c] sm:$0xf]
    %v2722 = vld [vmem:[#allocation10 + $0x28] sm:$0xf]
    %v2723 = vld [vmem:[#allocation10 + $0x34] sm:$0xf]
    %v2724 = vld [vmem:[#allocation10 + $0x40] sm:$0xf]
    %v2725 = vld [vmem:[#allocation10 + $0x4c] sm:$0xf]
    %v2726 = vld [vmem:[#allocation10 + $0x58] sm:$0xf]
    %v2727 = vld [vmem:[#allocation10 + $0x64] sm:$0xf]
    %v2728 = vld [vmem:[#allocation10 + $0x70] sm:$0xf]
    %v2729 = vld [vmem:[#allocation10 + $0x7c] sm:$0xf]
    %v2730 = vld [vmem:[#allocation10 + $0x88] sm:$0xf]
    %v2731 = vld [vmem:[#allocation10 + $0x94] sm:$0xf]
    %v2732 = vld [vmem:[#allocation10 + $0xa0] sm:$0xf]
    %v2733 = vld [vmem:[#allocation10 + $0xac] sm:$0xf]
    %v2734 = vld [vmem:[#allocation10 + $0xb8] sm:$0xf]
    %v2751 = vunpack.c.l.b16 %v2719
    %v2752 = vunpack.c.l.b16 %v2720
    %v2753 = vunpack.c.l.b16 %v2721
    %v2754 = vunpack.c.l.b16 %v2722
    %v2755 = vunpack.c.l.b16 %v2723
    %v2756 = vunpack.c.l.b16 %v2724
    %v2757 = vunpack.c.l.b16 %v2725
    %v2758 = vunpack.c.l.b16 %v2726
    %v2759 = vunpack.c.l.b16 %v2727
    %v2760 = vunpack.c.l.b16 %v2728
    %v2761 = vunpack.c.l.b16 %v2729
    %v2762 = vunpack.c.l.b16 %v2730
    %v2763 = vunpack.c.l.b16 %v2731
    %v2764 = vunpack.c.l.b16 %v2732
    %v2765 = vunpack.c.l.b16 %v2733
    %v2766 = vunpack.c.l.b16 %v2734
    %v2767 = vpack.c.b16 %v2752, %v2751
    %v2768 = vpack.c.b16 %v2754, %v2753
    %v2769 = vpack.c.b16 %v2756, %v2755
    %v2770 = vpack.c.b16 %v2758, %v2757
    %v2771 = vpack.c.b16 %v2760, %v2759
    %v2772 = vpack.c.b16 %v2762, %v2761
    %v2773 = vpack.c.b16 %v2764, %v2763
    %v2774 = vpack.c.b16 %v2766, %v2765
    %2783 = vmatpush.bf16.msra.mxu0 %v2774
    %2784 = vmatpush.bf16.msra.mxu0 %v2773
    %2785 = vmatpush.bf16.msra.mxu0 %v2772
    %2786 = vmatpush.bf16.msra.mxu0 %v2771
    %2787 = vmatpush.bf16.msra.mxu0 %v2770
    %2788 = vmatpush.bf16.msra.mxu0 %v2769
    %2789 = vmatpush.bf16.msra.mxu0 %v2768
    %2790 = vmatpush.bf16.msra.mxu0 %v2767
    %2791 = vmatmul.bf16.gmra.mxu0 %v2407
    %v2792 = vpop.f32.mrf.mxu0
    %v2793 = vadd.f32 0.0, %v2792
    %v2794 = vpop.f32.mrf.mxu0
    %2795 = vdwg.mxu0
    %v2796 = vadd.f32 %v2718, %v2793
    %v2797 = vxor.u32 %v2796, 2147483648
    %v2798 = vmul.f32 %v2797, 1.442695
    %v2799 = vpow.pop %v2798
    %v2800 = vadd.f32 %v2799, 1.0
    %v2801 = vrcp.pop %v2800
    %v2802 = vmul.f32 %v2800, %v2801
    %v2803 = vsub.f32 1.0, %v2802
    %v2804 = vmul.f32 %v2801, %v2803
    %v2805 = vadd.f32 %v2801, %v2804
    %vm2806 = vweird.f32 %v2800
    %vm2807 = vweird.f32 %v2801
    %vm2808 = vmor %vm2806, %vm2807
    %v2809 = vsel %vm2808, %v2801, %v2805
    %v2810 = vand.u32 2147483647, %v2800
    %vm2811 = vcmp.eq.f32.partialorder %v2810, 8.507059e+37
    %v2812 = vand.u32 %v2800, 2147483648
    %v2813 = vor.u32 1.1754944e-38, %v2812
    %v2814 = vsel %vm2811, %v2813, %v2809
    %v2815 = vmul.f32 1.0, %v2814
    %v2816 = vld [vmem:[%s2619 + $0x10] sm:$0xff]
    %v2817 = vld [vmem:[#allocation10 + $0x8] sm:$0xf]
    %v2818 = vld [vmem:[#allocation10 + $0x14] sm:$0xf]
    %v2819 = vld [vmem:[#allocation10 + $0x20] sm:$0xf]
    %v2820 = vld [vmem:[#allocation10 + $0x2c] sm:$0xf]
    %v2821 = vld [vmem:[#allocation10 + $0x38] sm:$0xf]
    %v2822 = vld [vmem:[#allocation10 + $0x44] sm:$0xf]
    %v2823 = vld [vmem:[#allocation10 + $0x50] sm:$0xf]
    %v2824 = vld [vmem:[#allocation10 + $0x5c] sm:$0xf]
    %v2825 = vld [vmem:[#allocation10 + $0x68] sm:$0xf]
    %v2826 = vld [vmem:[#allocation10 + $0x74] sm:$0xf]
    %v2827 = vld [vmem:[#allocation10 + $0x80] sm:$0xf]
    %v2828 = vld [vmem:[#allocation10 + $0x8c] sm:$0xf]
    %v2829 = vld [vmem:[#allocation10 + $0x98] sm:$0xf]
    %v2830 = vld [vmem:[#allocation10 + $0xa4] sm:$0xf]
    %v2831 = vld [vmem:[#allocation10 + $0xb0] sm:$0xf]
    %v2832 = vld [vmem:[#allocation10 + $0xbc] sm:$0xf]
    %v2849 = vunpack.c.l.b16 %v2817
    %v2850 = vunpack.c.l.b16 %v2818
    %v2851 = vunpack.c.l.b16 %v2819
    %v2852 = vunpack.c.l.b16 %v2820
    %v2853 = vunpack.c.l.b16 %v2821
    %v2854 = vunpack.c.l.b16 %v2822
    %v2855 = vunpack.c.l.b16 %v2823
    %v2856 = vunpack.c.l.b16 %v2824
    %v2857 = vunpack.c.l.b16 %v2825
    %v2858 = vunpack.c.l.b16 %v2826
    %v2859 = vunpack.c.l.b16 %v2827
    %v2860 = vunpack.c.l.b16 %v2828
    %v2861 = vunpack.c.l.b16 %v2829
    %v2862 = vunpack.c.l.b16 %v2830
    %v2863 = vunpack.c.l.b16 %v2831
    %v2864 = vunpack.c.l.b16 %v2832
    %v2865 = vpack.c.b16 %v2850, %v2849
    %v2866 = vpack.c.b16 %v2852, %v2851
    %v2867 = vpack.c.b16 %v2854, %v2853
    %v2868 = vpack.c.b16 %v2856, %v2855
    %v2869 = vpack.c.b16 %v2858, %v2857
    %v2870 = vpack.c.b16 %v2860, %v2859
    %v2871 = vpack.c.b16 %v2862, %v2861
    %v2872 = vpack.c.b16 %v2864, %v2863
    %2881 = vmatpush.bf16.msra.mxu0 %v2872
    %2882 = vmatpush.bf16.msra.mxu0 %v2871
    %2883 = vmatpush.bf16.msra.mxu0 %v2870
    %2884 = vmatpush.bf16.msra.mxu0 %v2869
    %2885 = vmatpush.bf16.msra.mxu0 %v2868
    %2886 = vmatpush.bf16.msra.mxu0 %v2867
    %2887 = vmatpush.bf16.msra.mxu0 %v2866
    %2888 = vmatpush.bf16.msra.mxu0 %v2865
    %2889 = vmatmul.bf16.gmra.mxu0 %v2407
    %v2890 = vpop.f32.mrf.mxu0
    %v2891 = vadd.f32 %v362, %v2890
    %v2892 = vpop.f32.mrf.mxu0
    %2893 = vdwg.mxu0
    %v2894 = vmul.f32 %v2717, %v2891
    %v2895 = vadd.f32 %v2816, %v2894
    %v2896 = vtanh.pop %v2895
    %v2897 = vsub.f32 1.0, %v2815
    %v2898 = vmul.f32 %v2897, %v2896
    %v2899 = vmul.f32 %v2815, %v2406
    %v2900 = vadd.f32 %v2898, %v2899
    %v2901 = vpack.c.bf16 %v2900, %v2900
    %v2902 = vld [vmem:[#allocation7] sm:$0xff]
    %v2903 = vld [vmem:[#allocation7 + $0x8] sm:$0xf]
    %v2904 = vld [vmem:[#allocation7 + $0xc] sm:$0xff]
    %v2905 = vld [vmem:[#allocation7 + $0x14] sm:$0xf]
    %v2906 = vld [vmem:[#allocation7 + $0x18] sm:$0xff]
    %v2907 = vld [vmem:[#allocation7 + $0x20] sm:$0xf]
    %v2908 = vld [vmem:[#allocation7 + $0x24] sm:$0xff]
    %v2909 = vld [vmem:[#allocation7 + $0x2c] sm:$0xf]
    %v2910 = vld [vmem:[#allocation7 + $0x30] sm:$0xff]
    %v2911 = vld [vmem:[#allocation7 + $0x38] sm:$0xf]
    %v2912 = vld [vmem:[#allocation7 + $0x3c] sm:$0xff]
    %v2913 = vld [vmem:[#allocation7 + $0x44] sm:$0xf]
    %v2914 = vld [vmem:[#allocation7 + $0x48] sm:$0xff]
    %v2915 = vld [vmem:[#allocation7 + $0x50] sm:$0xf]
    %v2916 = vld [vmem:[#allocation7 + $0x54] sm:$0xff]
    %v2917 = vld [vmem:[#allocation7 + $0x5c] sm:$0xf]
    %v2918 = vld [vmem:[#allocation7 + $0x60] sm:$0xff]
    %v2919 = vld [vmem:[#allocation7 + $0x68] sm:$0xf]
    %v2920 = vld [vmem:[#allocation7 + $0x6c] sm:$0xff]
    %v2921 = vld [vmem:[#allocation7 + $0x74] sm:$0xf]
    %v2922 = vld [vmem:[#allocation7 + $0x78] sm:$0xff]
    %v2923 = vld [vmem:[#allocation7 + $0x80] sm:$0xf]
    %v2924 = vld [vmem:[#allocation7 + $0x84] sm:$0xff]
    %v2925 = vld [vmem:[#allocation7 + $0x8c] sm:$0xf]
    %v2926 = vld [vmem:[#allocation7 + $0x90] sm:$0xff]
    %v2927 = vld [vmem:[#allocation7 + $0x98] sm:$0xf]
    %v2928 = vld [vmem:[#allocation7 + $0x9c] sm:$0xff]
    %v2929 = vld [vmem:[#allocation7 + $0xa4] sm:$0xf]
    %v2930 = vld [vmem:[#allocation7 + $0xa8] sm:$0xff]
    %v2931 = vld [vmem:[#allocation7 + $0xb0] sm:$0xf]
    %v2932 = vld [vmem:[#allocation7 + $0xb4] sm:$0xff]
    %v2933 = vld [vmem:[#allocation7 + $0xbc] sm:$0xf]
    %v2934 = vld [vmem:[%s2] sm:$0x7]
    %v2936 = vperm.slane %v2934, 0
    %v2937 = vperm.slane %v2934, 1
    %v2938 = vperm.slane %v2934, 2
    %v2974 = vunpack.c.l.b16 %v2902
    %v2975 = vunpack.c.h.b16 %v2902
    %v2976 = vunpack.c.l.b16 %v2903
    %v2977 = vunpack.c.l.b16 %v2904
    %v2978 = vunpack.c.h.b16 %v2904
    %v2979 = vunpack.c.l.b16 %v2905
    %v2980 = vunpack.c.l.b16 %v2906
    %v2981 = vunpack.c.h.b16 %v2906
    %v2982 = vunpack.c.l.b16 %v2907
    %v2983 = vunpack.c.l.b16 %v2908
    %v2984 = vunpack.c.h.b16 %v2908
    %v2985 = vunpack.c.l.b16 %v2909
    %v2986 = vunpack.c.l.b16 %v2910
    %v2987 = vunpack.c.h.b16 %v2910
    %v2988 = vunpack.c.l.b16 %v2911
    %v2989 = vunpack.c.l.b16 %v2912
    %v2990 = vunpack.c.h.b16 %v2912
    %v2991 = vunpack.c.l.b16 %v2913
    %v2992 = vunpack.c.l.b16 %v2914
    %v2993 = vunpack.c.h.b16 %v2914
    %v2994 = vunpack.c.l.b16 %v2915
    %v2995 = vunpack.c.l.b16 %v2916
    %v2996 = vunpack.c.h.b16 %v2916
    %v2997 = vunpack.c.l.b16 %v2917
    %v2998 = vunpack.c.l.b16 %v2918
    %v2999 = vunpack.c.h.b16 %v2918
    %v3000 = vunpack.c.l.b16 %v2919
    %v3001 = vunpack.c.l.b16 %v2920
    %v3002 = vunpack.c.h.b16 %v2920
    %v3003 = vunpack.c.l.b16 %v2921
    %v3004 = vunpack.c.l.b16 %v2922
    %v3005 = vunpack.c.h.b16 %v2922
    %v3006 = vunpack.c.l.b16 %v2923
    %v3007 = vunpack.c.l.b16 %v2924
    %v3008 = vunpack.c.h.b16 %v2924
    %v3009 = vunpack.c.l.b16 %v2925
    %v3010 = vunpack.c.l.b16 %v2926
    %v3011 = vunpack.c.h.b16 %v2926
    %v3012 = vunpack.c.l.b16 %v2927
    %v3013 = vunpack.c.l.b16 %v2928
    %v3014 = vunpack.c.h.b16 %v2928
    %v3015 = vunpack.c.l.b16 %v2929
    %v3016 = vunpack.c.l.b16 %v2930
    %v3017 = vunpack.c.h.b16 %v2930
    %v3018 = vunpack.c.l.b16 %v2931
    %v3019 = vunpack.c.l.b16 %v2932
    %v3020 = vunpack.c.h.b16 %v2932
    %v3021 = vunpack.c.l.b16 %v2933
    %v3022 = vpack.c.b16 %v2977, %v2974
    %v3023 = vpack.c.b16 %v2978, %v2975
    %v3024 = vpack.c.b16 %v2979, %v2976
    %v3025 = vpack.c.b16 %v2983, %v2980
    %v3026 = vpack.c.b16 %v2984, %v2981
    %v3027 = vpack.c.b16 %v2985, %v2982
    %v3028 = vpack.c.b16 %v2989, %v2986
    %v3029 = vpack.c.b16 %v2990, %v2987
    %v3030 = vpack.c.b16 %v2991, %v2988
    %v3031 = vpack.c.b16 %v2995, %v2992
    %v3032 = vpack.c.b16 %v2996, %v2993
    %v3033 = vpack.c.b16 %v2997, %v2994
    %v3034 = vpack.c.b16 %v3001, %v2998
    %v3035 = vpack.c.b16 %v3002, %v2999
    %v3036 = vpack.c.b16 %v3003, %v3000
    %v3037 = vpack.c.b16 %v3007, %v3004
    %v3038 = vpack.c.b16 %v3008, %v3005
    %v3039 = vpack.c.b16 %v3009, %v3006
    %v3040 = vpack.c.b16 %v3013, %v3010
    %v3041 = vpack.c.b16 %v3014, %v3011
    %v3042 = vpack.c.b16 %v3015, %v3012
    %v3043 = vpack.c.b16 %v3019, %v3016
    %v3044 = vpack.c.b16 %v3020, %v3017
    %v3045 = vpack.c.b16 %v3021, %v3018
    %3070 = vmatpush.bf16.msra.mxu0 %v3043
    %3071 = vmatpush.bf16.msra.mxu0 %v3040
    %3072 = vmatpush.bf16.msra.mxu0 %v3037
    %3073 = vmatpush.bf16.msra.mxu0 %v3034
    %3074 = vmatpush.bf16.msra.mxu0 %v3031
    %3075 = vmatpush.bf16.msra.mxu0 %v3028
    %3076 = vmatpush.bf16.msra.mxu0 %v3025
    %3077 = vmatpush.bf16.msra.mxu0 %v3022
    %3078 = vmatmul.bf16.gmra.mxu0 %v2901
    %v3079 = vpop.f32.mrf.mxu0
    %v3080 = vadd.f32 %v2936, %v3079
    %v3081 = vpop.f32.mrf.mxu0
    %3082 = vdwg.mxu0
    %3083 = vmatpush.bf16.msra.mxu0 %v3044
    %3084 = vmatpush.bf16.msra.mxu0 %v3041
    %3085 = vmatpush.bf16.msra.mxu0 %v3038
    %3086 = vmatpush.bf16.msra.mxu0 %v3035
    %3087 = vmatpush.bf16.msra.mxu0 %v3032
    %3088 = vmatpush.bf16.msra.mxu0 %v3029
    %3089 = vmatpush.bf16.msra.mxu0 %v3026
    %3090 = vmatpush.bf16.msra.mxu0 %v3023
    %3091 = vmatmul.bf16.gmra.mxu0 %v2901
    %v3092 = vpop.f32.mrf.mxu0
    %v3093 = vadd.f32 %v2937, %v3092
    %v3094 = vpop.f32.mrf.mxu0
    %3095 = vdwg.mxu0
    %3096 = vmatpush.bf16.msra.mxu0 %v3045
    %3097 = vmatpush.bf16.msra.mxu0 %v3042
    %3098 = vmatpush.bf16.msra.mxu0 %v3039
    %3099 = vmatpush.bf16.msra.mxu0 %v3036
    %3100 = vmatpush.bf16.msra.mxu0 %v3033
    %3101 = vmatpush.bf16.msra.mxu0 %v3030
    %3102 = vmatpush.bf16.msra.mxu0 %v3027
    %3103 = vmatpush.bf16.msra.mxu0 %v3024
    %3104 = vmatmul.bf16.gmra.mxu0 %v2901
    %v3105 = vpop.f32.mrf.mxu0
    %v3106 = vadd.f32 %v2938, %v3105
    %v3107 = vpop.f32.mrf.mxu0
    %3108 = vdwg.mxu0
    %s3109 = scalar_lea.vmem [#allocation2], 120
    %3110 = vst [vmem:[%s3109] sm:$0xff] %v3080
    %3111 = vst [vmem:[%s3109 + $0x8] sm:$0xff] %v3093
    %3112 = vst [vmem:[%s3109 + $0x10] sm:$0xff] %v3106
    %s3113 = scalar_lea.vmem [#allocation5], 144
    %v3114 = vld [vmem:[%s3113] sm:$0xff]
    %v3115 = vld [vmem:[#allocation10] sm:$0xf]
    %v3116 = vld [vmem:[#allocation10 + $0xc] sm:$0xf]
    %v3117 = vld [vmem:[#allocation10 + $0x18] sm:$0xf]
    %v3118 = vld [vmem:[#allocation10 + $0x24] sm:$0xf]
    %v3119 = vld [vmem:[#allocation10 + $0x30] sm:$0xf]
    %v3120 = vld [vmem:[#allocation10 + $0x3c] sm:$0xf]
    %v3121 = vld [vmem:[#allocation10 + $0x48] sm:$0xf]
    %v3122 = vld [vmem:[#allocation10 + $0x54] sm:$0xf]
    %v3123 = vld [vmem:[#allocation10 + $0x60] sm:$0xf]
    %v3124 = vld [vmem:[#allocation10 + $0x6c] sm:$0xf]
    %v3125 = vld [vmem:[#allocation10 + $0x78] sm:$0xf]
    %v3126 = vld [vmem:[#allocation10 + $0x84] sm:$0xf]
    %v3127 = vld [vmem:[#allocation10 + $0x90] sm:$0xf]
    %v3128 = vld [vmem:[#allocation10 + $0x9c] sm:$0xf]
    %v3129 = vld [vmem:[#allocation10 + $0xa8] sm:$0xf]
    %v3130 = vld [vmem:[#allocation10 + $0xb4] sm:$0xf]
    %v3147 = vunpack.c.l.b16 %v3115
    %v3148 = vunpack.c.l.b16 %v3116
    %v3149 = vunpack.c.l.b16 %v3117
    %v3150 = vunpack.c.l.b16 %v3118
    %v3151 = vunpack.c.l.b16 %v3119
    %v3152 = vunpack.c.l.b16 %v3120
    %v3153 = vunpack.c.l.b16 %v3121
    %v3154 = vunpack.c.l.b16 %v3122
    %v3155 = vunpack.c.l.b16 %v3123
    %v3156 = vunpack.c.l.b16 %v3124
    %v3157 = vunpack.c.l.b16 %v3125
    %v3158 = vunpack.c.l.b16 %v3126
    %v3159 = vunpack.c.l.b16 %v3127
    %v3160 = vunpack.c.l.b16 %v3128
    %v3161 = vunpack.c.l.b16 %v3129
    %v3162 = vunpack.c.l.b16 %v3130
    %v3163 = vpack.c.b16 %v3148, %v3147
    %v3164 = vpack.c.b16 %v3150, %v3149
    %v3165 = vpack.c.b16 %v3152, %v3151
    %v3166 = vpack.c.b16 %v3154, %v3153
    %v3167 = vpack.c.b16 %v3156, %v3155
    %v3168 = vpack.c.b16 %v3158, %v3157
    %v3169 = vpack.c.b16 %v3160, %v3159
    %v3170 = vpack.c.b16 %v3162, %v3161
    %3179 = vmatpush.bf16.msra.mxu0 %v3170
    %3180 = vmatpush.bf16.msra.mxu0 %v3169
    %3181 = vmatpush.bf16.msra.mxu0 %v3168
    %3182 = vmatpush.bf16.msra.mxu0 %v3167
    %3183 = vmatpush.bf16.msra.mxu0 %v3166
    %3184 = vmatpush.bf16.msra.mxu0 %v3165
    %3185 = vmatpush.bf16.msra.mxu0 %v3164
    %3186 = vmatpush.bf16.msra.mxu0 %v3163
    %3187 = vmatmul.bf16.gmra.mxu0 %v2901
    %v3188 = vpop.f32.mrf.mxu0
    %v3189 = vadd.f32 0.0, %v3188
    %v3190 = vpop.f32.mrf.mxu0
    %3191 = vdwg.mxu0
    %v3192 = vadd.f32 %v3114, %v3189
    %v3193 = vxor.u32 %v3192, 2147483648
    %v3194 = vmul.f32 %v3193, 1.442695
    %v3195 = vpow.pop %v3194
    %v3196 = vadd.f32 %v3195, 1.0
    %v3197 = vrcp.pop %v3196
    %v3198 = vmul.f32 %v3196, %v3197
    %v3199 = vsub.f32 1.0, %v3198
    %v3200 = vmul.f32 %v3197, %v3199
    %v3201 = vadd.f32 %v3197, %v3200
    %vm3202 = vweird.f32 %v3196
    %vm3203 = vweird.f32 %v3197
    %vm3204 = vmor %vm3202, %vm3203
    %v3205 = vsel %vm3204, %v3197, %v3201
    %v3206 = vand.u32 2147483647, %v3196
    %vm3207 = vcmp.eq.f32.partialorder %v3206, 8.507059e+37
    %v3208 = vand.u32 %v3196, 2147483648
    %v3209 = vor.u32 1.1754944e-38, %v3208
    %v3210 = vsel %vm3207, %v3209, %v3205
    %v3211 = vmul.f32 1.0, %v3210
    %v3212 = vld [vmem:[%s3113 + $0x8] sm:$0xff]
    %v3213 = vld [vmem:[#allocation10 + $0x4] sm:$0xf]
    %v3214 = vld [vmem:[#allocation10 + $0x10] sm:$0xf]
    %v3215 = vld [vmem:[#allocation10 + $0x1c] sm:$0xf]
    %v3216 = vld [vmem:[#allocation10 + $0x28] sm:$0xf]
    %v3217 = vld [vmem:[#allocation10 + $0x34] sm:$0xf]
    %v3218 = vld [vmem:[#allocation10 + $0x40] sm:$0xf]
    %v3219 = vld [vmem:[#allocation10 + $0x4c] sm:$0xf]
    %v3220 = vld [vmem:[#allocation10 + $0x58] sm:$0xf]
    %v3221 = vld [vmem:[#allocation10 + $0x64] sm:$0xf]
    %v3222 = vld [vmem:[#allocation10 + $0x70] sm:$0xf]
    %v3223 = vld [vmem:[#allocation10 + $0x7c] sm:$0xf]
    %v3224 = vld [vmem:[#allocation10 + $0x88] sm:$0xf]
    %v3225 = vld [vmem:[#allocation10 + $0x94] sm:$0xf]
    %v3226 = vld [vmem:[#allocation10 + $0xa0] sm:$0xf]
    %v3227 = vld [vmem:[#allocation10 + $0xac] sm:$0xf]
    %v3228 = vld [vmem:[#allocation10 + $0xb8] sm:$0xf]
    %v3245 = vunpack.c.l.b16 %v3213
    %v3246 = vunpack.c.l.b16 %v3214
    %v3247 = vunpack.c.l.b16 %v3215
    %v3248 = vunpack.c.l.b16 %v3216
    %v3249 = vunpack.c.l.b16 %v3217
    %v3250 = vunpack.c.l.b16 %v3218
    %v3251 = vunpack.c.l.b16 %v3219
    %v3252 = vunpack.c.l.b16 %v3220
    %v3253 = vunpack.c.l.b16 %v3221
    %v3254 = vunpack.c.l.b16 %v3222
    %v3255 = vunpack.c.l.b16 %v3223
    %v3256 = vunpack.c.l.b16 %v3224
    %v3257 = vunpack.c.l.b16 %v3225
    %v3258 = vunpack.c.l.b16 %v3226
    %v3259 = vunpack.c.l.b16 %v3227
    %v3260 = vunpack.c.l.b16 %v3228
    %v3261 = vpack.c.b16 %v3246, %v3245
    %v3262 = vpack.c.b16 %v3248, %v3247
    %v3263 = vpack.c.b16 %v3250, %v3249
    %v3264 = vpack.c.b16 %v3252, %v3251
    %v3265 = vpack.c.b16 %v3254, %v3253
    %v3266 = vpack.c.b16 %v3256, %v3255
    %v3267 = vpack.c.b16 %v3258, %v3257
    %v3268 = vpack.c.b16 %v3260, %v3259
    %3277 = vmatpush.bf16.msra.mxu0 %v3268
    %3278 = vmatpush.bf16.msra.mxu0 %v3267
    %3279 = vmatpush.bf16.msra.mxu0 %v3266
    %3280 = vmatpush.bf16.msra.mxu0 %v3265
    %3281 = vmatpush.bf16.msra.mxu0 %v3264
    %3282 = vmatpush.bf16.msra.mxu0 %v3263
    %3283 = vmatpush.bf16.msra.mxu0 %v3262
    %3284 = vmatpush.bf16.msra.mxu0 %v3261
    %3285 = vmatmul.bf16.gmra.mxu0 %v2901
    %v3286 = vpop.f32.mrf.mxu0
    %v3287 = vadd.f32 0.0, %v3286
    %v3288 = vpop.f32.mrf.mxu0
    %3289 = vdwg.mxu0
    %v3290 = vadd.f32 %v3212, %v3287
    %v3291 = vxor.u32 %v3290, 2147483648
    %v3292 = vmul.f32 %v3291, 1.442695
    %v3293 = vpow.pop %v3292
    %v3294 = vadd.f32 %v3293, 1.0
    %v3295 = vrcp.pop %v3294
    %v3296 = vmul.f32 %v3294, %v3295
    %v3297 = vsub.f32 1.0, %v3296
    %v3298 = vmul.f32 %v3295, %v3297
    %v3299 = vadd.f32 %v3295, %v3298
    %vm3300 = vweird.f32 %v3294
    %vm3301 = vweird.f32 %v3295
    %vm3302 = vmor %vm3300, %vm3301
    %v3303 = vsel %vm3302, %v3295, %v3299
    %v3304 = vand.u32 2147483647, %v3294
    %vm3305 = vcmp.eq.f32.partialorder %v3304, 8.507059e+37
    %v3306 = vand.u32 %v3294, 2147483648
    %v3307 = vor.u32 1.1754944e-38, %v3306
    %v3308 = vsel %vm3305, %v3307, %v3303
    %v3309 = vmul.f32 1.0, %v3308
    %v3310 = vld [vmem:[%s3113 + $0x10] sm:$0xff]
    %v3311 = vld [vmem:[#allocation10 + $0x8] sm:$0xf]
    %v3312 = vld [vmem:[#allocation10 + $0x14] sm:$0xf]
    %v3313 = vld [vmem:[#allocation10 + $0x20] sm:$0xf]
    %v3314 = vld [vmem:[#allocation10 + $0x2c] sm:$0xf]
    %v3315 = vld [vmem:[#allocation10 + $0x38] sm:$0xf]
    %v3316 = vld [vmem:[#allocation10 + $0x44] sm:$0xf]
    %v3317 = vld [vmem:[#allocation10 + $0x50] sm:$0xf]
    %v3318 = vld [vmem:[#allocation10 + $0x5c] sm:$0xf]
    %v3319 = vld [vmem:[#allocation10 + $0x68] sm:$0xf]
    %v3320 = vld [vmem:[#allocation10 + $0x74] sm:$0xf]
    %v3321 = vld [vmem:[#allocation10 + $0x80] sm:$0xf]
    %v3322 = vld [vmem:[#allocation10 + $0x8c] sm:$0xf]
    %v3323 = vld [vmem:[#allocation10 + $0x98] sm:$0xf]
    %v3324 = vld [vmem:[#allocation10 + $0xa4] sm:$0xf]
    %v3325 = vld [vmem:[#allocation10 + $0xb0] sm:$0xf]
    %v3326 = vld [vmem:[#allocation10 + $0xbc] sm:$0xf]
    %v3343 = vunpack.c.l.b16 %v3311
    %v3344 = vunpack.c.l.b16 %v3312
    %v3345 = vunpack.c.l.b16 %v3313
    %v3346 = vunpack.c.l.b16 %v3314
    %v3347 = vunpack.c.l.b16 %v3315
    %v3348 = vunpack.c.l.b16 %v3316
    %v3349 = vunpack.c.l.b16 %v3317
    %v3350 = vunpack.c.l.b16 %v3318
    %v3351 = vunpack.c.l.b16 %v3319
    %v3352 = vunpack.c.l.b16 %v3320
    %v3353 = vunpack.c.l.b16 %v3321
    %v3354 = vunpack.c.l.b16 %v3322
    %v3355 = vunpack.c.l.b16 %v3323
    %v3356 = vunpack.c.l.b16 %v3324
    %v3357 = vunpack.c.l.b16 %v3325
    %v3358 = vunpack.c.l.b16 %v3326
    %v3359 = vpack.c.b16 %v3344, %v3343
    %v3360 = vpack.c.b16 %v3346, %v3345
    %v3361 = vpack.c.b16 %v3348, %v3347
    %v3362 = vpack.c.b16 %v3350, %v3349
    %v3363 = vpack.c.b16 %v3352, %v3351
    %v3364 = vpack.c.b16 %v3354, %v3353
    %v3365 = vpack.c.b16 %v3356, %v3355
    %v3366 = vpack.c.b16 %v3358, %v3357
    %3375 = vmatpush.bf16.msra.mxu0 %v3366
    %3376 = vmatpush.bf16.msra.mxu0 %v3365
    %3377 = vmatpush.bf16.msra.mxu0 %v3364
    %3378 = vmatpush.bf16.msra.mxu0 %v3363
    %3379 = vmatpush.bf16.msra.mxu0 %v3362
    %3380 = vmatpush.bf16.msra.mxu0 %v3361
    %3381 = vmatpush.bf16.msra.mxu0 %v3360
    %3382 = vmatpush.bf16.msra.mxu0 %v3359
    %3383 = vmatmul.bf16.gmra.mxu0 %v2901
    %v3384 = vpop.f32.mrf.mxu0
    %v3385 = vadd.f32 %v362, %v3384
    %v3386 = vpop.f32.mrf.mxu0
    %3387 = vdwg.mxu0
    %v3388 = vmul.f32 %v3211, %v3385
    %v3389 = vadd.f32 %v3310, %v3388
    %v3390 = vtanh.pop %v3389
    %v3391 = vsub.f32 1.0, %v3309
    %v3392 = vmul.f32 %v3391, %v3390
    %v3393 = vmul.f32 %v3309, %v2900
    %v3394 = vadd.f32 %v3392, %v3393
    %v3395 = vpack.c.bf16 %v3394, %v3394
    %v3396 = vld [vmem:[#allocation7] sm:$0xff]
    %v3397 = vld [vmem:[#allocation7 + $0x8] sm:$0xf]
    %v3398 = vld [vmem:[#allocation7 + $0xc] sm:$0xff]
    %v3399 = vld [vmem:[#allocation7 + $0x14] sm:$0xf]
    %v3400 = vld [vmem:[#allocation7 + $0x18] sm:$0xff]
    %v3401 = vld [vmem:[#allocation7 + $0x20] sm:$0xf]
    %v3402 = vld [vmem:[#allocation7 + $0x24] sm:$0xff]
    %v3403 = vld [vmem:[#allocation7 + $0x2c] sm:$0xf]
    %v3404 = vld [vmem:[#allocation7 + $0x30] sm:$0xff]
    %v3405 = vld [vmem:[#allocation7 + $0x38] sm:$0xf]
    %v3406 = vld [vmem:[#allocation7 + $0x3c] sm:$0xff]
    %v3407 = vld [vmem:[#allocation7 + $0x44] sm:$0xf]
    %v3408 = vld [vmem:[#allocation7 + $0x48] sm:$0xff]
    %v3409 = vld [vmem:[#allocation7 + $0x50] sm:$0xf]
    %v3410 = vld [vmem:[#allocation7 + $0x54] sm:$0xff]
    %v3411 = vld [vmem:[#allocation7 + $0x5c] sm:$0xf]
    %v3412 = vld [vmem:[#allocation7 + $0x60] sm:$0xff]
    %v3413 = vld [vmem:[#allocation7 + $0x68] sm:$0xf]
    %v3414 = vld [vmem:[#allocation7 + $0x6c] sm:$0xff]
    %v3415 = vld [vmem:[#allocation7 + $0x74] sm:$0xf]
    %v3416 = vld [vmem:[#allocation7 + $0x78] sm:$0xff]
    %v3417 = vld [vmem:[#allocation7 + $0x80] sm:$0xf]
    %v3418 = vld [vmem:[#allocation7 + $0x84] sm:$0xff]
    %v3419 = vld [vmem:[#allocation7 + $0x8c] sm:$0xf]
    %v3420 = vld [vmem:[#allocation7 + $0x90] sm:$0xff]
    %v3421 = vld [vmem:[#allocation7 + $0x98] sm:$0xf]
    %v3422 = vld [vmem:[#allocation7 + $0x9c] sm:$0xff]
    %v3423 = vld [vmem:[#allocation7 + $0xa4] sm:$0xf]
    %v3424 = vld [vmem:[#allocation7 + $0xa8] sm:$0xff]
    %v3425 = vld [vmem:[#allocation7 + $0xb0] sm:$0xf]
    %v3426 = vld [vmem:[#allocation7 + $0xb4] sm:$0xff]
    %v3427 = vld [vmem:[#allocation7 + $0xbc] sm:$0xf]
    %v3428 = vld [vmem:[%s2] sm:$0x7]
    %v3430 = vperm.slane %v3428, 0
    %v3431 = vperm.slane %v3428, 1
    %v3432 = vperm.slane %v3428, 2
    %v3468 = vunpack.c.l.b16 %v3396
    %v3469 = vunpack.c.h.b16 %v3396
    %v3470 = vunpack.c.l.b16 %v3397
    %v3471 = vunpack.c.l.b16 %v3398
    %v3472 = vunpack.c.h.b16 %v3398
    %v3473 = vunpack.c.l.b16 %v3399
    %v3474 = vunpack.c.l.b16 %v3400
    %v3475 = vunpack.c.h.b16 %v3400
    %v3476 = vunpack.c.l.b16 %v3401
    %v3477 = vunpack.c.l.b16 %v3402
    %v3478 = vunpack.c.h.b16 %v3402
    %v3479 = vunpack.c.l.b16 %v3403
    %v3480 = vunpack.c.l.b16 %v3404
    %v3481 = vunpack.c.h.b16 %v3404
    %v3482 = vunpack.c.l.b16 %v3405
    %v3483 = vunpack.c.l.b16 %v3406
    %v3484 = vunpack.c.h.b16 %v3406
    %v3485 = vunpack.c.l.b16 %v3407
    %v3486 = vunpack.c.l.b16 %v3408
    %v3487 = vunpack.c.h.b16 %v3408
    %v3488 = vunpack.c.l.b16 %v3409
    %v3489 = vunpack.c.l.b16 %v3410
    %v3490 = vunpack.c.h.b16 %v3410
    %v3491 = vunpack.c.l.b16 %v3411
    %v3492 = vunpack.c.l.b16 %v3412
    %v3493 = vunpack.c.h.b16 %v3412
    %v3494 = vunpack.c.l.b16 %v3413
    %v3495 = vunpack.c.l.b16 %v3414
    %v3496 = vunpack.c.h.b16 %v3414
    %v3497 = vunpack.c.l.b16 %v3415
    %v3498 = vunpack.c.l.b16 %v3416
    %v3499 = vunpack.c.h.b16 %v3416
    %v3500 = vunpack.c.l.b16 %v3417
    %v3501 = vunpack.c.l.b16 %v3418
    %v3502 = vunpack.c.h.b16 %v3418
    %v3503 = vunpack.c.l.b16 %v3419
    %v3504 = vunpack.c.l.b16 %v3420
    %v3505 = vunpack.c.h.b16 %v3420
    %v3506 = vunpack.c.l.b16 %v3421
    %v3507 = vunpack.c.l.b16 %v3422
    %v3508 = vunpack.c.h.b16 %v3422
    %v3509 = vunpack.c.l.b16 %v3423
    %v3510 = vunpack.c.l.b16 %v3424
    %v3511 = vunpack.c.h.b16 %v3424
    %v3512 = vunpack.c.l.b16 %v3425
    %v3513 = vunpack.c.l.b16 %v3426
    %v3514 = vunpack.c.h.b16 %v3426
    %v3515 = vunpack.c.l.b16 %v3427
    %v3516 = vpack.c.b16 %v3471, %v3468
    %v3517 = vpack.c.b16 %v3472, %v3469
    %v3518 = vpack.c.b16 %v3473, %v3470
    %v3519 = vpack.c.b16 %v3477, %v3474
    %v3520 = vpack.c.b16 %v3478, %v3475
    %v3521 = vpack.c.b16 %v3479, %v3476
    %v3522 = vpack.c.b16 %v3483, %v3480
    %v3523 = vpack.c.b16 %v3484, %v3481
    %v3524 = vpack.c.b16 %v3485, %v3482
    %v3525 = vpack.c.b16 %v3489, %v3486
    %v3526 = vpack.c.b16 %v3490, %v3487
    %v3527 = vpack.c.b16 %v3491, %v3488
    %v3528 = vpack.c.b16 %v3495, %v3492
    %v3529 = vpack.c.b16 %v3496, %v3493
    %v3530 = vpack.c.b16 %v3497, %v3494
    %v3531 = vpack.c.b16 %v3501, %v3498
    %v3532 = vpack.c.b16 %v3502, %v3499
    %v3533 = vpack.c.b16 %v3503, %v3500
    %v3534 = vpack.c.b16 %v3507, %v3504
    %v3535 = vpack.c.b16 %v3508, %v3505
    %v3536 = vpack.c.b16 %v3509, %v3506
    %v3537 = vpack.c.b16 %v3513, %v3510
    %v3538 = vpack.c.b16 %v3514, %v3511
    %v3539 = vpack.c.b16 %v3515, %v3512
    %3564 = vmatpush.bf16.msra.mxu0 %v3537
    %3565 = vmatpush.bf16.msra.mxu0 %v3534
    %3566 = vmatpush.bf16.msra.mxu0 %v3531
    %3567 = vmatpush.bf16.msra.mxu0 %v3528
    %3568 = vmatpush.bf16.msra.mxu0 %v3525
    %3569 = vmatpush.bf16.msra.mxu0 %v3522
    %3570 = vmatpush.bf16.msra.mxu0 %v3519
    %3571 = vmatpush.bf16.msra.mxu0 %v3516
    %3572 = vmatmul.bf16.gmra.mxu0 %v3395
    %v3573 = vpop.f32.mrf.mxu0
    %v3574 = vadd.f32 %v3430, %v3573
    %v3575 = vpop.f32.mrf.mxu0
    %3576 = vdwg.mxu0
    %3577 = vmatpush.bf16.msra.mxu0 %v3538
    %3578 = vmatpush.bf16.msra.mxu0 %v3535
    %3579 = vmatpush.bf16.msra.mxu0 %v3532
    %3580 = vmatpush.bf16.msra.mxu0 %v3529
    %3581 = vmatpush.bf16.msra.mxu0 %v3526
    %3582 = vmatpush.bf16.msra.mxu0 %v3523
    %3583 = vmatpush.bf16.msra.mxu0 %v3520
    %3584 = vmatpush.bf16.msra.mxu0 %v3517
    %3585 = vmatmul.bf16.gmra.mxu0 %v3395
    %v3586 = vpop.f32.mrf.mxu0
    %v3587 = vadd.f32 %v3431, %v3586
    %v3588 = vpop.f32.mrf.mxu0
    %3589 = vdwg.mxu0
    %3590 = vmatpush.bf16.msra.mxu0 %v3539
    %3591 = vmatpush.bf16.msra.mxu0 %v3536
    %3592 = vmatpush.bf16.msra.mxu0 %v3533
    %3593 = vmatpush.bf16.msra.mxu0 %v3530
    %3594 = vmatpush.bf16.msra.mxu0 %v3527
    %3595 = vmatpush.bf16.msra.mxu0 %v3524
    %3596 = vmatpush.bf16.msra.mxu0 %v3521
    %3597 = vmatpush.bf16.msra.mxu0 %v3518
    %3598 = vmatmul.bf16.gmra.mxu0 %v3395
    %v3599 = vpop.f32.mrf.mxu0
    %v3600 = vadd.f32 %v3432, %v3599
    %v3601 = vpop.f32.mrf.mxu0
    %3602 = vdwg.mxu0
    %s3603 = scalar_lea.vmem [#allocation2], 144
    %3604 = vst [vmem:[%s3603] sm:$0xff] %v3574
    %3605 = vst [vmem:[%s3603 + $0x8] sm:$0xff] %v3587
    %3606 = vst [vmem:[%s3603 + $0x10] sm:$0xff] %v3600
    %s3607 = scalar_lea.vmem [#allocation5], 168
    %v3608 = vld [vmem:[%s3607] sm:$0xff]
    %v3609 = vld [vmem:[#allocation10] sm:$0xf]
    %v3610 = vld [vmem:[#allocation10 + $0xc] sm:$0xf]
    %v3611 = vld [vmem:[#allocation10 + $0x18] sm:$0xf]
    %v3612 = vld [vmem:[#allocation10 + $0x24] sm:$0xf]
    %v3613 = vld [vmem:[#allocation10 + $0x30] sm:$0xf]
    %v3614 = vld [vmem:[#allocation10 + $0x3c] sm:$0xf]
    %v3615 = vld [vmem:[#allocation10 + $0x48] sm:$0xf]
    %v3616 = vld [vmem:[#allocation10 + $0x54] sm:$0xf]
    %v3617 = vld [vmem:[#allocation10 + $0x60] sm:$0xf]
    %v3618 = vld [vmem:[#allocation10 + $0x6c] sm:$0xf]
    %v3619 = vld [vmem:[#allocation10 + $0x78] sm:$0xf]
    %v3620 = vld [vmem:[#allocation10 + $0x84] sm:$0xf]
    %v3621 = vld [vmem:[#allocation10 + $0x90] sm:$0xf]
    %v3622 = vld [vmem:[#allocation10 + $0x9c] sm:$0xf]
    %v3623 = vld [vmem:[#allocation10 + $0xa8] sm:$0xf]
    %v3624 = vld [vmem:[#allocation10 + $0xb4] sm:$0xf]
    %v3641 = vunpack.c.l.b16 %v3609
    %v3642 = vunpack.c.l.b16 %v3610
    %v3643 = vunpack.c.l.b16 %v3611
    %v3644 = vunpack.c.l.b16 %v3612
    %v3645 = vunpack.c.l.b16 %v3613
    %v3646 = vunpack.c.l.b16 %v3614
    %v3647 = vunpack.c.l.b16 %v3615
    %v3648 = vunpack.c.l.b16 %v3616
    %v3649 = vunpack.c.l.b16 %v3617
    %v3650 = vunpack.c.l.b16 %v3618
    %v3651 = vunpack.c.l.b16 %v3619
    %v3652 = vunpack.c.l.b16 %v3620
    %v3653 = vunpack.c.l.b16 %v3621
    %v3654 = vunpack.c.l.b16 %v3622
    %v3655 = vunpack.c.l.b16 %v3623
    %v3656 = vunpack.c.l.b16 %v3624
    %v3657 = vpack.c.b16 %v3642, %v3641
    %v3658 = vpack.c.b16 %v3644, %v3643
    %v3659 = vpack.c.b16 %v3646, %v3645
    %v3660 = vpack.c.b16 %v3648, %v3647
    %v3661 = vpack.c.b16 %v3650, %v3649
    %v3662 = vpack.c.b16 %v3652, %v3651
    %v3663 = vpack.c.b16 %v3654, %v3653
    %v3664 = vpack.c.b16 %v3656, %v3655
    %3673 = vmatpush.bf16.msra.mxu0 %v3664
    %3674 = vmatpush.bf16.msra.mxu0 %v3663
    %3675 = vmatpush.bf16.msra.mxu0 %v3662
    %3676 = vmatpush.bf16.msra.mxu0 %v3661
    %3677 = vmatpush.bf16.msra.mxu0 %v3660
    %3678 = vmatpush.bf16.msra.mxu0 %v3659
    %3679 = vmatpush.bf16.msra.mxu0 %v3658
    %3680 = vmatpush.bf16.msra.mxu0 %v3657
    %3681 = vmatmul.bf16.gmra.mxu0 %v3395
    %v3682 = vpop.f32.mrf.mxu0
    %v3683 = vadd.f32 0.0, %v3682
    %v3684 = vpop.f32.mrf.mxu0
    %3685 = vdwg.mxu0
    %v3686 = vadd.f32 %v3608, %v3683
    %v3687 = vxor.u32 %v3686, 2147483648
    %v3688 = vmul.f32 %v3687, 1.442695
    %v3689 = vpow.pop %v3688
    %v3690 = vadd.f32 %v3689, 1.0
    %v3691 = vrcp.pop %v3690
    %v3692 = vmul.f32 %v3690, %v3691
    %v3693 = vsub.f32 1.0, %v3692
    %v3694 = vmul.f32 %v3691, %v3693
    %v3695 = vadd.f32 %v3691, %v3694
    %vm3696 = vweird.f32 %v3690
    %vm3697 = vweird.f32 %v3691
    %vm3698 = vmor %vm3696, %vm3697
    %v3699 = vsel %vm3698, %v3691, %v3695
    %v3700 = vand.u32 2147483647, %v3690
    %vm3701 = vcmp.eq.f32.partialorder %v3700, 8.507059e+37
    %v3702 = vand.u32 %v3690, 2147483648
    %v3703 = vor.u32 1.1754944e-38, %v3702
    %v3704 = vsel %vm3701, %v3703, %v3699
    %v3705 = vmul.f32 1.0, %v3704
    %v3706 = vld [vmem:[%s3607 + $0x8] sm:$0xff]
    %v3707 = vld [vmem:[#allocation10 + $0x4] sm:$0xf]
    %v3708 = vld [vmem:[#allocation10 + $0x10] sm:$0xf]
    %v3709 = vld [vmem:[#allocation10 + $0x1c] sm:$0xf]
    %v3710 = vld [vmem:[#allocation10 + $0x28] sm:$0xf]
    %v3711 = vld [vmem:[#allocation10 + $0x34] sm:$0xf]
    %v3712 = vld [vmem:[#allocation10 + $0x40] sm:$0xf]
    %v3713 = vld [vmem:[#allocation10 + $0x4c] sm:$0xf]
    %v3714 = vld [vmem:[#allocation10 + $0x58] sm:$0xf]
    %v3715 = vld [vmem:[#allocation10 + $0x64] sm:$0xf]
    %v3716 = vld [vmem:[#allocation10 + $0x70] sm:$0xf]
    %v3717 = vld [vmem:[#allocation10 + $0x7c] sm:$0xf]
    %v3718 = vld [vmem:[#allocation10 + $0x88] sm:$0xf]
    %v3719 = vld [vmem:[#allocation10 + $0x94] sm:$0xf]
    %v3720 = vld [vmem:[#allocation10 + $0xa0] sm:$0xf]
    %v3721 = vld [vmem:[#allocation10 + $0xac] sm:$0xf]
    %v3722 = vld [vmem:[#allocation10 + $0xb8] sm:$0xf]
    %v3739 = vunpack.c.l.b16 %v3707
    %v3740 = vunpack.c.l.b16 %v3708
    %v3741 = vunpack.c.l.b16 %v3709
    %v3742 = vunpack.c.l.b16 %v3710
    %v3743 = vunpack.c.l.b16 %v3711
    %v3744 = vunpack.c.l.b16 %v3712
    %v3745 = vunpack.c.l.b16 %v3713
    %v3746 = vunpack.c.l.b16 %v3714
    %v3747 = vunpack.c.l.b16 %v3715
    %v3748 = vunpack.c.l.b16 %v3716
    %v3749 = vunpack.c.l.b16 %v3717
    %v3750 = vunpack.c.l.b16 %v3718
    %v3751 = vunpack.c.l.b16 %v3719
    %v3752 = vunpack.c.l.b16 %v3720
    %v3753 = vunpack.c.l.b16 %v3721
    %v3754 = vunpack.c.l.b16 %v3722
    %v3755 = vpack.c.b16 %v3740, %v3739
    %v3756 = vpack.c.b16 %v3742, %v3741
    %v3757 = vpack.c.b16 %v3744, %v3743
    %v3758 = vpack.c.b16 %v3746, %v3745
    %v3759 = vpack.c.b16 %v3748, %v3747
    %v3760 = vpack.c.b16 %v3750, %v3749
    %v3761 = vpack.c.b16 %v3752, %v3751
    %v3762 = vpack.c.b16 %v3754, %v3753
    %3771 = vmatpush.bf16.msra.mxu0 %v3762
    %3772 = vmatpush.bf16.msra.mxu0 %v3761
    %3773 = vmatpush.bf16.msra.mxu0 %v3760
    %3774 = vmatpush.bf16.msra.mxu0 %v3759
    %3775 = vmatpush.bf16.msra.mxu0 %v3758
    %3776 = vmatpush.bf16.msra.mxu0 %v3757
    %3777 = vmatpush.bf16.msra.mxu0 %v3756
    %3778 = vmatpush.bf16.msra.mxu0 %v3755
    %3779 = vmatmul.bf16.gmra.mxu0 %v3395
    %v3780 = vpop.f32.mrf.mxu0
    %v3781 = vadd.f32 0.0, %v3780
    %v3782 = vpop.f32.mrf.mxu0
    %3783 = vdwg.mxu0
    %v3784 = vadd.f32 %v3706, %v3781
    %v3785 = vxor.u32 %v3784, 2147483648
    %v3786 = vmul.f32 %v3785, 1.442695
    %v3787 = vpow.pop %v3786
    %v3788 = vadd.f32 %v3787, 1.0
    %v3789 = vrcp.pop %v3788
    %v3790 = vmul.f32 %v3788, %v3789
    %v3791 = vsub.f32 1.0, %v3790
    %v3792 = vmul.f32 %v3789, %v3791
    %v3793 = vadd.f32 %v3789, %v3792
    %vm3794 = vweird.f32 %v3788
    %vm3795 = vweird.f32 %v3789
    %vm3796 = vmor %vm3794, %vm3795
    %v3797 = vsel %vm3796, %v3789, %v3793
    %v3798 = vand.u32 2147483647, %v3788
    %vm3799 = vcmp.eq.f32.partialorder %v3798, 8.507059e+37
    %v3800 = vand.u32 %v3788, 2147483648
    %v3801 = vor.u32 1.1754944e-38, %v3800
    %v3802 = vsel %vm3799, %v3801, %v3797
    %v3803 = vmul.f32 1.0, %v3802
    %v3804 = vld [vmem:[%s3607 + $0x10] sm:$0xff]
    %v3805 = vld [vmem:[#allocation10 + $0x8] sm:$0xf]
    %v3806 = vld [vmem:[#allocation10 + $0x14] sm:$0xf]
    %v3807 = vld [vmem:[#allocation10 + $0x20] sm:$0xf]
    %v3808 = vld [vmem:[#allocation10 + $0x2c] sm:$0xf]
    %v3809 = vld [vmem:[#allocation10 + $0x38] sm:$0xf]
    %v3810 = vld [vmem:[#allocation10 + $0x44] sm:$0xf]
    %v3811 = vld [vmem:[#allocation10 + $0x50] sm:$0xf]
    %v3812 = vld [vmem:[#allocation10 + $0x5c] sm:$0xf]
    %v3813 = vld [vmem:[#allocation10 + $0x68] sm:$0xf]
    %v3814 = vld [vmem:[#allocation10 + $0x74] sm:$0xf]
    %v3815 = vld [vmem:[#allocation10 + $0x80] sm:$0xf]
    %v3816 = vld [vmem:[#allocation10 + $0x8c] sm:$0xf]
    %v3817 = vld [vmem:[#allocation10 + $0x98] sm:$0xf]
    %v3818 = vld [vmem:[#allocation10 + $0xa4] sm:$0xf]
    %v3819 = vld [vmem:[#allocation10 + $0xb0] sm:$0xf]
    %v3820 = vld [vmem:[#allocation10 + $0xbc] sm:$0xf]
    %v3837 = vunpack.c.l.b16 %v3805
    %v3838 = vunpack.c.l.b16 %v3806
    %v3839 = vunpack.c.l.b16 %v3807
    %v3840 = vunpack.c.l.b16 %v3808
    %v3841 = vunpack.c.l.b16 %v3809
    %v3842 = vunpack.c.l.b16 %v3810
    %v3843 = vunpack.c.l.b16 %v3811
    %v3844 = vunpack.c.l.b16 %v3812
    %v3845 = vunpack.c.l.b16 %v3813
    %v3846 = vunpack.c.l.b16 %v3814
    %v3847 = vunpack.c.l.b16 %v3815
    %v3848 = vunpack.c.l.b16 %v3816
    %v3849 = vunpack.c.l.b16 %v3817
    %v3850 = vunpack.c.l.b16 %v3818
    %v3851 = vunpack.c.l.b16 %v3819
    %v3852 = vunpack.c.l.b16 %v3820
    %v3853 = vpack.c.b16 %v3838, %v3837
    %v3854 = vpack.c.b16 %v3840, %v3839
    %v3855 = vpack.c.b16 %v3842, %v3841
    %v3856 = vpack.c.b16 %v3844, %v3843
    %v3857 = vpack.c.b16 %v3846, %v3845
    %v3858 = vpack.c.b16 %v3848, %v3847
    %v3859 = vpack.c.b16 %v3850, %v3849
    %v3860 = vpack.c.b16 %v3852, %v3851
    %3869 = vmatpush.bf16.msra.mxu0 %v3860
    %3870 = vmatpush.bf16.msra.mxu0 %v3859
    %3871 = vmatpush.bf16.msra.mxu0 %v3858
    %3872 = vmatpush.bf16.msra.mxu0 %v3857
    %3873 = vmatpush.bf16.msra.mxu0 %v3856
    %3874 = vmatpush.bf16.msra.mxu0 %v3855
    %3875 = vmatpush.bf16.msra.mxu0 %v3854
    %3876 = vmatpush.bf16.msra.mxu0 %v3853
    %3877 = vmatmul.bf16.gmra.mxu0 %v3395
    %v3878 = vpop.f32.mrf.mxu0
    %v3879 = vadd.f32 %v362, %v3878
    %v3880 = vpop.f32.mrf.mxu0
    %3881 = vdwg.mxu0
    %v3882 = vmul.f32 %v3705, %v3879
    %v3883 = vadd.f32 %v3804, %v3882
    %v3884 = vtanh.pop %v3883
    %v3885 = vsub.f32 1.0, %v3803
    %v3886 = vmul.f32 %v3885, %v3884
    %v3887 = vmul.f32 %v3803, %v3394
    %v3888 = vadd.f32 %v3886, %v3887
    %v3889 = vpack.c.bf16 %v3888, %v3888
    %v3890 = vld [vmem:[#allocation7] sm:$0xff]
    %v3891 = vld [vmem:[#allocation7 + $0x8] sm:$0xf]
    %v3892 = vld [vmem:[#allocation7 + $0xc] sm:$0xff]
    %v3893 = vld [vmem:[#allocation7 + $0x14] sm:$0xf]
    %v3894 = vld [vmem:[#allocation7 + $0x18] sm:$0xff]
    %v3895 = vld [vmem:[#allocation7 + $0x20] sm:$0xf]
    %v3896 = vld [vmem:[#allocation7 + $0x24] sm:$0xff]
    %v3897 = vld [vmem:[#allocation7 + $0x2c] sm:$0xf]
    %v3898 = vld [vmem:[#allocation7 + $0x30] sm:$0xff]
    %v3899 = vld [vmem:[#allocation7 + $0x38] sm:$0xf]
    %v3900 = vld [vmem:[#allocation7 + $0x3c] sm:$0xff]
    %v3901 = vld [vmem:[#allocation7 + $0x44] sm:$0xf]
    %v3902 = vld [vmem:[#allocation7 + $0x48] sm:$0xff]
    %v3903 = vld [vmem:[#allocation7 + $0x50] sm:$0xf]
    %v3904 = vld [vmem:[#allocation7 + $0x54] sm:$0xff]
    %v3905 = vld [vmem:[#allocation7 + $0x5c] sm:$0xf]
    %v3906 = vld [vmem:[#allocation7 + $0x60] sm:$0xff]
    %v3907 = vld [vmem:[#allocation7 + $0x68] sm:$0xf]
    %v3908 = vld [vmem:[#allocation7 + $0x6c] sm:$0xff]
    %v3909 = vld [vmem:[#allocation7 + $0x74] sm:$0xf]
    %v3910 = vld [vmem:[#allocation7 + $0x78] sm:$0xff]
    %v3911 = vld [vmem:[#allocation7 + $0x80] sm:$0xf]
    %v3912 = vld [vmem:[#allocation7 + $0x84] sm:$0xff]
    %v3913 = vld [vmem:[#allocation7 + $0x8c] sm:$0xf]
    %v3914 = vld [vmem:[#allocation7 + $0x90] sm:$0xff]
    %v3915 = vld [vmem:[#allocation7 + $0x98] sm:$0xf]
    %v3916 = vld [vmem:[#allocation7 + $0x9c] sm:$0xff]
    %v3917 = vld [vmem:[#allocation7 + $0xa4] sm:$0xf]
    %v3918 = vld [vmem:[#allocation7 + $0xa8] sm:$0xff]
    %v3919 = vld [vmem:[#allocation7 + $0xb0] sm:$0xf]
    %v3920 = vld [vmem:[#allocation7 + $0xb4] sm:$0xff]
    %v3921 = vld [vmem:[#allocation7 + $0xbc] sm:$0xf]
    %v3922 = vld [vmem:[%s2] sm:$0x7]
    %v3924 = vperm.slane %v3922, 0
    %v3925 = vperm.slane %v3922, 1
    %v3926 = vperm.slane %v3922, 2
    %v3962 = vunpack.c.l.b16 %v3890
    %v3963 = vunpack.c.h.b16 %v3890
    %v3964 = vunpack.c.l.b16 %v3891
    %v3965 = vunpack.c.l.b16 %v3892
    %v3966 = vunpack.c.h.b16 %v3892
    %v3967 = vunpack.c.l.b16 %v3893
    %v3968 = vunpack.c.l.b16 %v3894
    %v3969 = vunpack.c.h.b16 %v3894
    %v3970 = vunpack.c.l.b16 %v3895
    %v3971 = vunpack.c.l.b16 %v3896
    %v3972 = vunpack.c.h.b16 %v3896
    %v3973 = vunpack.c.l.b16 %v3897
    %v3974 = vunpack.c.l.b16 %v3898
    %v3975 = vunpack.c.h.b16 %v3898
    %v3976 = vunpack.c.l.b16 %v3899
    %v3977 = vunpack.c.l.b16 %v3900
    %v3978 = vunpack.c.h.b16 %v3900
    %v3979 = vunpack.c.l.b16 %v3901
    %v3980 = vunpack.c.l.b16 %v3902
    %v3981 = vunpack.c.h.b16 %v3902
    %v3982 = vunpack.c.l.b16 %v3903
    %v3983 = vunpack.c.l.b16 %v3904
    %v3984 = vunpack.c.h.b16 %v3904
    %v3985 = vunpack.c.l.b16 %v3905
    %v3986 = vunpack.c.l.b16 %v3906
    %v3987 = vunpack.c.h.b16 %v3906
    %v3988 = vunpack.c.l.b16 %v3907
    %v3989 = vunpack.c.l.b16 %v3908
    %v3990 = vunpack.c.h.b16 %v3908
    %v3991 = vunpack.c.l.b16 %v3909
    %v3992 = vunpack.c.l.b16 %v3910
    %v3993 = vunpack.c.h.b16 %v3910
    %v3994 = vunpack.c.l.b16 %v3911
    %v3995 = vunpack.c.l.b16 %v3912
    %v3996 = vunpack.c.h.b16 %v3912
    %v3997 = vunpack.c.l.b16 %v3913
    %v3998 = vunpack.c.l.b16 %v3914
    %v3999 = vunpack.c.h.b16 %v3914
    %v4000 = vunpack.c.l.b16 %v3915
    %v4001 = vunpack.c.l.b16 %v3916
    %v4002 = vunpack.c.h.b16 %v3916
    %v4003 = vunpack.c.l.b16 %v3917
    %v4004 = vunpack.c.l.b16 %v3918
    %v4005 = vunpack.c.h.b16 %v3918
    %v4006 = vunpack.c.l.b16 %v3919
    %v4007 = vunpack.c.l.b16 %v3920
    %v4008 = vunpack.c.h.b16 %v3920
    %v4009 = vunpack.c.l.b16 %v3921
    %v4010 = vpack.c.b16 %v3965, %v3962
    %v4011 = vpack.c.b16 %v3966, %v3963
    %v4012 = vpack.c.b16 %v3967, %v3964
    %v4013 = vpack.c.b16 %v3971, %v3968
    %v4014 = vpack.c.b16 %v3972, %v3969
    %v4015 = vpack.c.b16 %v3973, %v3970
    %v4016 = vpack.c.b16 %v3977, %v3974
    %v4017 = vpack.c.b16 %v3978, %v3975
    %v4018 = vpack.c.b16 %v3979, %v3976
    %v4019 = vpack.c.b16 %v3983, %v3980
    %v4020 = vpack.c.b16 %v3984, %v3981
    %v4021 = vpack.c.b16 %v3985, %v3982
    %v4022 = vpack.c.b16 %v3989, %v3986
    %v4023 = vpack.c.b16 %v3990, %v3987
    %v4024 = vpack.c.b16 %v3991, %v3988
    %v4025 = vpack.c.b16 %v3995, %v3992
    %v4026 = vpack.c.b16 %v3996, %v3993
    %v4027 = vpack.c.b16 %v3997, %v3994
    %v4028 = vpack.c.b16 %v4001, %v3998
    %v4029 = vpack.c.b16 %v4002, %v3999
    %v4030 = vpack.c.b16 %v4003, %v4000
    %v4031 = vpack.c.b16 %v4007, %v4004
    %v4032 = vpack.c.b16 %v4008, %v4005
    %v4033 = vpack.c.b16 %v4009, %v4006
    %4058 = vmatpush.bf16.msra.mxu0 %v4031
    %4059 = vmatpush.bf16.msra.mxu0 %v4028
    %4060 = vmatpush.bf16.msra.mxu0 %v4025
    %4061 = vmatpush.bf16.msra.mxu0 %v4022
    %4062 = vmatpush.bf16.msra.mxu0 %v4019
    %4063 = vmatpush.bf16.msra.mxu0 %v4016
    %4064 = vmatpush.bf16.msra.mxu0 %v4013
    %4065 = vmatpush.bf16.msra.mxu0 %v4010
    %4066 = vmatmul.bf16.gmra.mxu0 %v3889
    %v4067 = vpop.f32.mrf.mxu0
    %v4068 = vadd.f32 %v3924, %v4067
    %v4069 = vpop.f32.mrf.mxu0
    %4070 = vdwg.mxu0
    %4071 = vmatpush.bf16.msra.mxu0 %v4032
    %4072 = vmatpush.bf16.msra.mxu0 %v4029
    %4073 = vmatpush.bf16.msra.mxu0 %v4026
    %4074 = vmatpush.bf16.msra.mxu0 %v4023
    %4075 = vmatpush.bf16.msra.mxu0 %v4020
    %4076 = vmatpush.bf16.msra.mxu0 %v4017
    %4077 = vmatpush.bf16.msra.mxu0 %v4014
    %4078 = vmatpush.bf16.msra.mxu0 %v4011
    %4079 = vmatmul.bf16.gmra.mxu0 %v3889
    %v4080 = vpop.f32.mrf.mxu0
    %v4081 = vadd.f32 %v3925, %v4080
    %v4082 = vpop.f32.mrf.mxu0
    %4083 = vdwg.mxu0
    %4084 = vmatpush.bf16.msra.mxu0 %v4033
    %4085 = vmatpush.bf16.msra.mxu0 %v4030
    %4086 = vmatpush.bf16.msra.mxu0 %v4027
    %4087 = vmatpush.bf16.msra.mxu0 %v4024
    %4088 = vmatpush.bf16.msra.mxu0 %v4021
    %4089 = vmatpush.bf16.msra.mxu0 %v4018
    %4090 = vmatpush.bf16.msra.mxu0 %v4015
    %4091 = vmatpush.bf16.msra.mxu0 %v4012
    %4092 = vmatmul.bf16.gmra.mxu0 %v3889
    %v4093 = vpop.f32.mrf.mxu0
    %v4094 = vadd.f32 %v3926, %v4093
    %v4095 = vpop.f32.mrf.mxu0
    %4096 = vdwg.mxu0
    %s4097 = scalar_lea.vmem [#allocation2], 168
    %4098 = vst [vmem:[%s4097] sm:$0xff] %v4068
    %4099 = vst [vmem:[%s4097 + $0x8] sm:$0xff] %v4081
    %4100 = vst [vmem:[%s4097 + $0x10] sm:$0xff] %v4094
    %v4101 = vld [vmem:[%s8] sm:$0x1]
    %v4102 = vld [vmem:[#allocation2] sm:$0xff]
    %v4103 = vld [vmem:[#allocation12] sm:$0xf]
    %v4104 = vld [vmem:[#allocation12 + $0xc] sm:$0xf]
    %v4105 = vld [vmem:[#allocation12 + $0x18] sm:$0xf]
    %v4106 = vld [vmem:[#allocation12 + $0x24] sm:$0xf]
    %v4107 = vld [vmem:[#allocation12 + $0x30] sm:$0xf]
    %v4108 = vld [vmem:[#allocation12 + $0x3c] sm:$0xf]
    %v4109 = vld [vmem:[#allocation12 + $0x48] sm:$0xf]
    %v4110 = vld [vmem:[#allocation12 + $0x54] sm:$0xf]
    %v4111 = vld [vmem:[#allocation12 + $0x60] sm:$0xf]
    %v4112 = vld [vmem:[#allocation12 + $0x6c] sm:$0xf]
    %v4113 = vld [vmem:[#allocation12 + $0x78] sm:$0xf]
    %v4114 = vld [vmem:[#allocation12 + $0x84] sm:$0xf]
    %v4115 = vld [vmem:[#allocation12 + $0x90] sm:$0xf]
    %v4116 = vld [vmem:[#allocation12 + $0x9c] sm:$0xf]
    %v4117 = vld [vmem:[#allocation12 + $0xa8] sm:$0xf]
    %v4118 = vld [vmem:[#allocation12 + $0xb4] sm:$0xf]
    %v4135 = vunpack.c.l.b16 %v4103
    %v4136 = vunpack.c.l.b16 %v4104
    %v4137 = vunpack.c.l.b16 %v4105
    %v4138 = vunpack.c.l.b16 %v4106
    %v4139 = vunpack.c.l.b16 %v4107
    %v4140 = vunpack.c.l.b16 %v4108
    %v4141 = vunpack.c.l.b16 %v4109
    %v4142 = vunpack.c.l.b16 %v4110
    %v4143 = vunpack.c.l.b16 %v4111
    %v4144 = vunpack.c.l.b16 %v4112
    %v4145 = vunpack.c.l.b16 %v4113
    %v4146 = vunpack.c.l.b16 %v4114
    %v4147 = vunpack.c.l.b16 %v4115
    %v4148 = vunpack.c.l.b16 %v4116
    %v4149 = vunpack.c.l.b16 %v4117
    %v4150 = vunpack.c.l.b16 %v4118
    %v4151 = vpack.c.b16 %v4136, %v4135
    %v4152 = vpack.c.b16 %v4138, %v4137
    %v4153 = vpack.c.b16 %v4140, %v4139
    %v4154 = vpack.c.b16 %v4142, %v4141
    %v4155 = vpack.c.b16 %v4144, %v4143
    %v4156 = vpack.c.b16 %v4146, %v4145
    %v4157 = vpack.c.b16 %v4148, %v4147
    %v4158 = vpack.c.b16 %v4150, %v4149
    %4167 = vmatpush.bf16.msra.mxu0 %v4158
    %4168 = vmatpush.bf16.msra.mxu0 %v4157
    %4169 = vmatpush.bf16.msra.mxu0 %v4156
    %4170 = vmatpush.bf16.msra.mxu0 %v4155
    %4171 = vmatpush.bf16.msra.mxu0 %v4154
    %4172 = vmatpush.bf16.msra.mxu0 %v4153
    %4173 = vmatpush.bf16.msra.mxu0 %v4152
    %4174 = vmatpush.bf16.msra.mxu0 %v4151
    %4175 = vmatmul.bf16.gmra.mxu0 0
    %v4176 = vpop.f32.mrf.mxu0
    %v4177 = vadd.f32 0.0, %v4176
    %v4178 = vpop.f32.mrf.mxu0
    %4179 = vdwg.mxu0
    %v4180 = vadd.f32 %v4102, %v4177
    %v4181 = vxor.u32 %v4180, 2147483648
    %v4182 = vmul.f32 %v4181, 1.442695
    %v4183 = vpow.pop %v4182
    %v4184 = vadd.f32 %v4183, 1.0
    %v4185 = vrcp.pop %v4184
    %v4186 = vmul.f32 %v4184, %v4185
    %v4187 = vsub.f32 1.0, %v4186
    %v4188 = vmul.f32 %v4185, %v4187
    %v4189 = vadd.f32 %v4185, %v4188
    %vm4190 = vweird.f32 %v4184
    %vm4191 = vweird.f32 %v4185
    %vm4192 = vmor %vm4190, %vm4191
    %v4193 = vsel %vm4192, %v4185, %v4189
    %v4194 = vand.u32 2147483647, %v4184
    %vm4195 = vcmp.eq.f32.partialorder %v4194, 8.507059e+37
    %v4196 = vand.u32 %v4184, 2147483648
    %v4197 = vor.u32 1.1754944e-38, %v4196
    %v4198 = vsel %vm4195, %v4197, %v4193
    %v4199 = vmul.f32 1.0, %v4198
    %v4200 = vld [vmem:[#allocation2 + $0x8] sm:$0xff]
    %v4201 = vld [vmem:[#allocation12 + $0x4] sm:$0xf]
    %v4202 = vld [vmem:[#allocation12 + $0x10] sm:$0xf]
    %v4203 = vld [vmem:[#allocation12 + $0x1c] sm:$0xf]
    %v4204 = vld [vmem:[#allocation12 + $0x28] sm:$0xf]
    %v4205 = vld [vmem:[#allocation12 + $0x34] sm:$0xf]
    %v4206 = vld [vmem:[#allocation12 + $0x40] sm:$0xf]
    %v4207 = vld [vmem:[#allocation12 + $0x4c] sm:$0xf]
    %v4208 = vld [vmem:[#allocation12 + $0x58] sm:$0xf]
    %v4209 = vld [vmem:[#allocation12 + $0x64] sm:$0xf]
    %v4210 = vld [vmem:[#allocation12 + $0x70] sm:$0xf]
    %v4211 = vld [vmem:[#allocation12 + $0x7c] sm:$0xf]
    %v4212 = vld [vmem:[#allocation12 + $0x88] sm:$0xf]
    %v4213 = vld [vmem:[#allocation12 + $0x94] sm:$0xf]
    %v4214 = vld [vmem:[#allocation12 + $0xa0] sm:$0xf]
    %v4215 = vld [vmem:[#allocation12 + $0xac] sm:$0xf]
    %v4216 = vld [vmem:[#allocation12 + $0xb8] sm:$0xf]
    %v4233 = vunpack.c.l.b16 %v4201
    %v4234 = vunpack.c.l.b16 %v4202
    %v4235 = vunpack.c.l.b16 %v4203
    %v4236 = vunpack.c.l.b16 %v4204
    %v4237 = vunpack.c.l.b16 %v4205
    %v4238 = vunpack.c.l.b16 %v4206
    %v4239 = vunpack.c.l.b16 %v4207
    %v4240 = vunpack.c.l.b16 %v4208
    %v4241 = vunpack.c.l.b16 %v4209
    %v4242 = vunpack.c.l.b16 %v4210
    %v4243 = vunpack.c.l.b16 %v4211
    %v4244 = vunpack.c.l.b16 %v4212
    %v4245 = vunpack.c.l.b16 %v4213
    %v4246 = vunpack.c.l.b16 %v4214
    %v4247 = vunpack.c.l.b16 %v4215
    %v4248 = vunpack.c.l.b16 %v4216
    %v4249 = vpack.c.b16 %v4234, %v4233
    %v4250 = vpack.c.b16 %v4236, %v4235
    %v4251 = vpack.c.b16 %v4238, %v4237
    %v4252 = vpack.c.b16 %v4240, %v4239
    %v4253 = vpack.c.b16 %v4242, %v4241
    %v4254 = vpack.c.b16 %v4244, %v4243
    %v4255 = vpack.c.b16 %v4246, %v4245
    %v4256 = vpack.c.b16 %v4248, %v4247
    %4265 = vmatpush.bf16.msra.mxu0 %v4256
    %4266 = vmatpush.bf16.msra.mxu0 %v4255
    %4267 = vmatpush.bf16.msra.mxu0 %v4254
    %4268 = vmatpush.bf16.msra.mxu0 %v4253
    %4269 = vmatpush.bf16.msra.mxu0 %v4252
    %4270 = vmatpush.bf16.msra.mxu0 %v4251
    %4271 = vmatpush.bf16.msra.mxu0 %v4250
    %4272 = vmatpush.bf16.msra.mxu0 %v4249
    %4273 = vmatmul.bf16.gmra.mxu0 0
    %v4274 = vpop.f32.mrf.mxu0
    %v4275 = vadd.f32 0.0, %v4274
    %v4276 = vpop.f32.mrf.mxu0
    %4277 = vdwg.mxu0
    %v4278 = vadd.f32 %v4200, %v4275
    %v4279 = vxor.u32 %v4278, 2147483648
    %v4280 = vmul.f32 %v4279, 1.442695
    %v4281 = vpow.pop %v4280
    %v4282 = vadd.f32 %v4281, 1.0
    %v4283 = vrcp.pop %v4282
    %v4284 = vmul.f32 %v4282, %v4283
    %v4285 = vsub.f32 1.0, %v4284
    %v4286 = vmul.f32 %v4283, %v4285
    %v4287 = vadd.f32 %v4283, %v4286
    %vm4288 = vweird.f32 %v4282
    %vm4289 = vweird.f32 %v4283
    %vm4290 = vmor %vm4288, %vm4289
    %v4291 = vsel %vm4290, %v4283, %v4287
    %v4292 = vand.u32 2147483647, %v4282
    %vm4293 = vcmp.eq.f32.partialorder %v4292, 8.507059e+37
    %v4294 = vand.u32 %v4282, 2147483648
    %v4295 = vor.u32 1.1754944e-38, %v4294
    %v4296 = vsel %vm4293, %v4295, %v4291
    %v4297 = vmul.f32 1.0, %v4296
    %v4298 = vld [vmem:[#allocation2 + $0x10] sm:$0xff]
    %v4299 = vld [vmem:[#allocation12 + $0x8] sm:$0xf]
    %v4300 = vld [vmem:[#allocation12 + $0x14] sm:$0xf]
    %v4301 = vld [vmem:[#allocation12 + $0x20] sm:$0xf]
    %v4302 = vld [vmem:[#allocation12 + $0x2c] sm:$0xf]
    %v4303 = vld [vmem:[#allocation12 + $0x38] sm:$0xf]
    %v4304 = vld [vmem:[#allocation12 + $0x44] sm:$0xf]
    %v4305 = vld [vmem:[#allocation12 + $0x50] sm:$0xf]
    %v4306 = vld [vmem:[#allocation12 + $0x5c] sm:$0xf]
    %v4307 = vld [vmem:[#allocation12 + $0x68] sm:$0xf]
    %v4308 = vld [vmem:[#allocation12 + $0x74] sm:$0xf]
    %v4309 = vld [vmem:[#allocation12 + $0x80] sm:$0xf]
    %v4310 = vld [vmem:[#allocation12 + $0x8c] sm:$0xf]
    %v4311 = vld [vmem:[#allocation12 + $0x98] sm:$0xf]
    %v4312 = vld [vmem:[#allocation12 + $0xa4] sm:$0xf]
    %v4313 = vld [vmem:[#allocation12 + $0xb0] sm:$0xf]
    %v4314 = vld [vmem:[#allocation12 + $0xbc] sm:$0xf]
    %v4316 = vperm.slane %v4101, 0
    %v4334 = vunpack.c.l.b16 %v4299
    %v4335 = vunpack.c.l.b16 %v4300
    %v4336 = vunpack.c.l.b16 %v4301
    %v4337 = vunpack.c.l.b16 %v4302
    %v4338 = vunpack.c.l.b16 %v4303
    %v4339 = vunpack.c.l.b16 %v4304
    %v4340 = vunpack.c.l.b16 %v4305
    %v4341 = vunpack.c.l.b16 %v4306
    %v4342 = vunpack.c.l.b16 %v4307
    %v4343 = vunpack.c.l.b16 %v4308
    %v4344 = vunpack.c.l.b16 %v4309
    %v4345 = vunpack.c.l.b16 %v4310
    %v4346 = vunpack.c.l.b16 %v4311
    %v4347 = vunpack.c.l.b16 %v4312
    %v4348 = vunpack.c.l.b16 %v4313
    %v4349 = vunpack.c.l.b16 %v4314
    %v4350 = vpack.c.b16 %v4335, %v4334
    %v4351 = vpack.c.b16 %v4337, %v4336
    %v4352 = vpack.c.b16 %v4339, %v4338
    %v4353 = vpack.c.b16 %v4341, %v4340
    %v4354 = vpack.c.b16 %v4343, %v4342
    %v4355 = vpack.c.b16 %v4345, %v4344
    %v4356 = vpack.c.b16 %v4347, %v4346
    %v4357 = vpack.c.b16 %v4349, %v4348
    %4366 = vmatpush.bf16.msra.mxu0 %v4357
    %4367 = vmatpush.bf16.msra.mxu0 %v4356
    %4368 = vmatpush.bf16.msra.mxu0 %v4355
    %4369 = vmatpush.bf16.msra.mxu0 %v4354
    %4370 = vmatpush.bf16.msra.mxu0 %v4353
    %4371 = vmatpush.bf16.msra.mxu0 %v4352
    %4372 = vmatpush.bf16.msra.mxu0 %v4351
    %4373 = vmatpush.bf16.msra.mxu0 %v4350
    %4374 = vmatmul.bf16.gmra.mxu0 0
    %v4375 = vpop.f32.mrf.mxu0
    %v4376 = vadd.f32 %v4316, %v4375
    %v4377 = vpop.f32.mrf.mxu0
    %4378 = vdwg.mxu0
    %v4379 = vmul.f32 %v4199, %v4376
    %v4380 = vadd.f32 %v4298, %v4379
    %v4381 = vtanh.pop %v4380
    %v4382 = vsub.f32 1.0, %v4297
    %v4383 = vmul.f32 %v4382, %v4381
    %v4384 = vmul.f32 %v4297, 0.0
    %v4385 = vadd.f32 %v4383, %v4384
    %v4386 = vpack.c.bf16 %v4385, %v4385
    %v4387 = vld [vmem:[#allocation9] sm:$0xff]
    %v4388 = vld [vmem:[#allocation9 + $0x8] sm:$0xf]
    %v4389 = vld [vmem:[#allocation9 + $0xc] sm:$0xff]
    %v4390 = vld [vmem:[#allocation9 + $0x14] sm:$0xf]
    %v4391 = vld [vmem:[#allocation9 + $0x18] sm:$0xff]
    %v4392 = vld [vmem:[#allocation9 + $0x20] sm:$0xf]
    %v4393 = vld [vmem:[#allocation9 + $0x24] sm:$0xff]
    %v4394 = vld [vmem:[#allocation9 + $0x2c] sm:$0xf]
    %v4395 = vld [vmem:[#allocation9 + $0x30] sm:$0xff]
    %v4396 = vld [vmem:[#allocation9 + $0x38] sm:$0xf]
    %v4397 = vld [vmem:[#allocation9 + $0x3c] sm:$0xff]
    %v4398 = vld [vmem:[#allocation9 + $0x44] sm:$0xf]
    %v4399 = vld [vmem:[#allocation9 + $0x48] sm:$0xff]
    %v4400 = vld [vmem:[#allocation9 + $0x50] sm:$0xf]
    %v4401 = vld [vmem:[#allocation9 + $0x54] sm:$0xff]
    %v4402 = vld [vmem:[#allocation9 + $0x5c] sm:$0xf]
    %v4403 = vld [vmem:[#allocation9 + $0x60] sm:$0xff]
    %v4404 = vld [vmem:[#allocation9 + $0x68] sm:$0xf]
    %v4405 = vld [vmem:[#allocation9 + $0x6c] sm:$0xff]
    %v4406 = vld [vmem:[#allocation9 + $0x74] sm:$0xf]
    %v4407 = vld [vmem:[#allocation9 + $0x78] sm:$0xff]
    %v4408 = vld [vmem:[#allocation9 + $0x80] sm:$0xf]
    %v4409 = vld [vmem:[#allocation9 + $0x84] sm:$0xff]
    %v4410 = vld [vmem:[#allocation9 + $0x8c] sm:$0xf]
    %v4411 = vld [vmem:[#allocation9 + $0x90] sm:$0xff]
    %v4412 = vld [vmem:[#allocation9 + $0x98] sm:$0xf]
    %v4413 = vld [vmem:[#allocation9 + $0x9c] sm:$0xff]
    %v4414 = vld [vmem:[#allocation9 + $0xa4] sm:$0xf]
    %v4415 = vld [vmem:[#allocation9 + $0xa8] sm:$0xff]
    %v4416 = vld [vmem:[#allocation9 + $0xb0] sm:$0xf]
    %v4417 = vld [vmem:[#allocation9 + $0xb4] sm:$0xff]
    %v4418 = vld [vmem:[#allocation9 + $0xbc] sm:$0xf]
    %v4419 = vld [vmem:[%s4] sm:$0x7]
    %v4421 = vperm.slane %v4419, 0
    %v4422 = vperm.slane %v4419, 1
    %v4423 = vperm.slane %v4419, 2
    %v4459 = vunpack.c.l.b16 %v4387
    %v4460 = vunpack.c.h.b16 %v4387
    %v4461 = vunpack.c.l.b16 %v4388
    %v4462 = vunpack.c.l.b16 %v4389
    %v4463 = vunpack.c.h.b16 %v4389
    %v4464 = vunpack.c.l.b16 %v4390
    %v4465 = vunpack.c.l.b16 %v4391
    %v4466 = vunpack.c.h.b16 %v4391
    %v4467 = vunpack.c.l.b16 %v4392
    %v4468 = vunpack.c.l.b16 %v4393
    %v4469 = vunpack.c.h.b16 %v4393
    %v4470 = vunpack.c.l.b16 %v4394
    %v4471 = vunpack.c.l.b16 %v4395
    %v4472 = vunpack.c.h.b16 %v4395
    %v4473 = vunpack.c.l.b16 %v4396
    %v4474 = vunpack.c.l.b16 %v4397
    %v4475 = vunpack.c.h.b16 %v4397
    %v4476 = vunpack.c.l.b16 %v4398
    %v4477 = vunpack.c.l.b16 %v4399
    %v4478 = vunpack.c.h.b16 %v4399
    %v4479 = vunpack.c.l.b16 %v4400
    %v4480 = vunpack.c.l.b16 %v4401
    %v4481 = vunpack.c.h.b16 %v4401
    %v4482 = vunpack.c.l.b16 %v4402
    %v4483 = vunpack.c.l.b16 %v4403
    %v4484 = vunpack.c.h.b16 %v4403
    %v4485 = vunpack.c.l.b16 %v4404
    %v4486 = vunpack.c.l.b16 %v4405
    %v4487 = vunpack.c.h.b16 %v4405
    %v4488 = vunpack.c.l.b16 %v4406
    %v4489 = vunpack.c.l.b16 %v4407
    %v4490 = vunpack.c.h.b16 %v4407
    %v4491 = vunpack.c.l.b16 %v4408
    %v4492 = vunpack.c.l.b16 %v4409
    %v4493 = vunpack.c.h.b16 %v4409
    %v4494 = vunpack.c.l.b16 %v4410
    %v4495 = vunpack.c.l.b16 %v4411
    %v4496 = vunpack.c.h.b16 %v4411
    %v4497 = vunpack.c.l.b16 %v4412
    %v4498 = vunpack.c.l.b16 %v4413
    %v4499 = vunpack.c.h.b16 %v4413
    %v4500 = vunpack.c.l.b16 %v4414
    %v4501 = vunpack.c.l.b16 %v4415
    %v4502 = vunpack.c.h.b16 %v4415
    %v4503 = vunpack.c.l.b16 %v4416
    %v4504 = vunpack.c.l.b16 %v4417
    %v4505 = vunpack.c.h.b16 %v4417
    %v4506 = vunpack.c.l.b16 %v4418
    %v4507 = vpack.c.b16 %v4462, %v4459
    %v4508 = vpack.c.b16 %v4463, %v4460
    %v4509 = vpack.c.b16 %v4464, %v4461
    %v4510 = vpack.c.b16 %v4468, %v4465
    %v4511 = vpack.c.b16 %v4469, %v4466
    %v4512 = vpack.c.b16 %v4470, %v4467
    %v4513 = vpack.c.b16 %v4474, %v4471
    %v4514 = vpack.c.b16 %v4475, %v4472
    %v4515 = vpack.c.b16 %v4476, %v4473
    %v4516 = vpack.c.b16 %v4480, %v4477
    %v4517 = vpack.c.b16 %v4481, %v4478
    %v4518 = vpack.c.b16 %v4482, %v4479
    %v4519 = vpack.c.b16 %v4486, %v4483
    %v4520 = vpack.c.b16 %v4487, %v4484
    %v4521 = vpack.c.b16 %v4488, %v4485
    %v4522 = vpack.c.b16 %v4492, %v4489
    %v4523 = vpack.c.b16 %v4493, %v4490
    %v4524 = vpack.c.b16 %v4494, %v4491
    %v4525 = vpack.c.b16 %v4498, %v4495
    %v4526 = vpack.c.b16 %v4499, %v4496
    %v4527 = vpack.c.b16 %v4500, %v4497
    %v4528 = vpack.c.b16 %v4504, %v4501
    %v4529 = vpack.c.b16 %v4505, %v4502
    %v4530 = vpack.c.b16 %v4506, %v4503
    %4555 = vmatpush.bf16.msra.mxu0 %v4528
    %4556 = vmatpush.bf16.msra.mxu0 %v4525
    %4557 = vmatpush.bf16.msra.mxu0 %v4522
    %4558 = vmatpush.bf16.msra.mxu0 %v4519
    %4559 = vmatpush.bf16.msra.mxu0 %v4516
    %4560 = vmatpush.bf16.msra.mxu0 %v4513
    %4561 = vmatpush.bf16.msra.mxu0 %v4510
    %4562 = vmatpush.bf16.msra.mxu0 %v4507
    %4563 = vmatmul.bf16.gmra.mxu0 %v4386
    %v4564 = vpop.f32.mrf.mxu0
    %v4565 = vadd.f32 %v4421, %v4564
    %v4566 = vpop.f32.mrf.mxu0
    %4567 = vdwg.mxu0
    %4568 = vmatpush.bf16.msra.mxu0 %v4529
    %4569 = vmatpush.bf16.msra.mxu0 %v4526
    %4570 = vmatpush.bf16.msra.mxu0 %v4523
    %4571 = vmatpush.bf16.msra.mxu0 %v4520
    %4572 = vmatpush.bf16.msra.mxu0 %v4517
    %4573 = vmatpush.bf16.msra.mxu0 %v4514
    %4574 = vmatpush.bf16.msra.mxu0 %v4511
    %4575 = vmatpush.bf16.msra.mxu0 %v4508
    %4576 = vmatmul.bf16.gmra.mxu0 %v4386
    %v4577 = vpop.f32.mrf.mxu0
    %v4578 = vadd.f32 %v4422, %v4577
    %v4579 = vpop.f32.mrf.mxu0
    %4580 = vdwg.mxu0
    %4581 = vmatpush.bf16.msra.mxu0 %v4530
    %4582 = vmatpush.bf16.msra.mxu0 %v4527
    %4583 = vmatpush.bf16.msra.mxu0 %v4524
    %4584 = vmatpush.bf16.msra.mxu0 %v4521
    %4585 = vmatpush.bf16.msra.mxu0 %v4518
    %4586 = vmatpush.bf16.msra.mxu0 %v4515
    %4587 = vmatpush.bf16.msra.mxu0 %v4512
    %4588 = vmatpush.bf16.msra.mxu0 %v4509
    %4589 = vmatmul.bf16.gmra.mxu0 %v4386
    %v4590 = vpop.f32.mrf.mxu0
    %v4591 = vadd.f32 %v4423, %v4590
    %v4592 = vpop.f32.mrf.mxu0
    %4593 = vdwg.mxu0
    %4594 = vst [vmem:[#allocation3] sm:$0xff] %v4565
    %4595 = vst [vmem:[#allocation3 + $0x8] sm:$0xff] %v4578
    %4596 = vst [vmem:[#allocation3 + $0x10] sm:$0xff] %v4591
    %v4597 = vld [vmem:[%s1133] sm:$0xff]
    %v4598 = vld [vmem:[#allocation12] sm:$0xf]
    %v4599 = vld [vmem:[#allocation12 + $0xc] sm:$0xf]
    %v4600 = vld [vmem:[#allocation12 + $0x18] sm:$0xf]
    %v4601 = vld [vmem:[#allocation12 + $0x24] sm:$0xf]
    %v4602 = vld [vmem:[#allocation12 + $0x30] sm:$0xf]
    %v4603 = vld [vmem:[#allocation12 + $0x3c] sm:$0xf]
    %v4604 = vld [vmem:[#allocation12 + $0x48] sm:$0xf]
    %v4605 = vld [vmem:[#allocation12 + $0x54] sm:$0xf]
    %v4606 = vld [vmem:[#allocation12 + $0x60] sm:$0xf]
    %v4607 = vld [vmem:[#allocation12 + $0x6c] sm:$0xf]
    %v4608 = vld [vmem:[#allocation12 + $0x78] sm:$0xf]
    %v4609 = vld [vmem:[#allocation12 + $0x84] sm:$0xf]
    %v4610 = vld [vmem:[#allocation12 + $0x90] sm:$0xf]
    %v4611 = vld [vmem:[#allocation12 + $0x9c] sm:$0xf]
    %v4612 = vld [vmem:[#allocation12 + $0xa8] sm:$0xf]
    %v4613 = vld [vmem:[#allocation12 + $0xb4] sm:$0xf]
    %v4630 = vunpack.c.l.b16 %v4598
    %v4631 = vunpack.c.l.b16 %v4599
    %v4632 = vunpack.c.l.b16 %v4600
    %v4633 = vunpack.c.l.b16 %v4601
    %v4634 = vunpack.c.l.b16 %v4602
    %v4635 = vunpack.c.l.b16 %v4603
    %v4636 = vunpack.c.l.b16 %v4604
    %v4637 = vunpack.c.l.b16 %v4605
    %v4638 = vunpack.c.l.b16 %v4606
    %v4639 = vunpack.c.l.b16 %v4607
    %v4640 = vunpack.c.l.b16 %v4608
    %v4641 = vunpack.c.l.b16 %v4609
    %v4642 = vunpack.c.l.b16 %v4610
    %v4643 = vunpack.c.l.b16 %v4611
    %v4644 = vunpack.c.l.b16 %v4612
    %v4645 = vunpack.c.l.b16 %v4613
    %v4646 = vpack.c.b16 %v4631, %v4630
    %v4647 = vpack.c.b16 %v4633, %v4632
    %v4648 = vpack.c.b16 %v4635, %v4634
    %v4649 = vpack.c.b16 %v4637, %v4636
    %v4650 = vpack.c.b16 %v4639, %v4638
    %v4651 = vpack.c.b16 %v4641, %v4640
    %v4652 = vpack.c.b16 %v4643, %v4642
    %v4653 = vpack.c.b16 %v4645, %v4644
    %4662 = vmatpush.bf16.msra.mxu0 %v4653
    %4663 = vmatpush.bf16.msra.mxu0 %v4652
    %4664 = vmatpush.bf16.msra.mxu0 %v4651
    %4665 = vmatpush.bf16.msra.mxu0 %v4650
    %4666 = vmatpush.bf16.msra.mxu0 %v4649
    %4667 = vmatpush.bf16.msra.mxu0 %v4648
    %4668 = vmatpush.bf16.msra.mxu0 %v4647
    %4669 = vmatpush.bf16.msra.mxu0 %v4646
    %4670 = vmatmul.bf16.gmra.mxu0 %v4386
    %v4671 = vpop.f32.mrf.mxu0
    %v4672 = vadd.f32 0.0, %v4671
    %v4673 = vpop.f32.mrf.mxu0
    %4674 = vdwg.mxu0
    %v4675 = vadd.f32 %v4597, %v4672
    %v4676 = vxor.u32 %v4675, 2147483648
    %v4677 = vmul.f32 %v4676, 1.442695
    %v4678 = vpow.pop %v4677
    %v4679 = vadd.f32 %v4678, 1.0
    %v4680 = vrcp.pop %v4679
    %v4681 = vmul.f32 %v4679, %v4680
    %v4682 = vsub.f32 1.0, %v4681
    %v4683 = vmul.f32 %v4680, %v4682
    %v4684 = vadd.f32 %v4680, %v4683
    %vm4685 = vweird.f32 %v4679
    %vm4686 = vweird.f32 %v4680
    %vm4687 = vmor %vm4685, %vm4686
    %v4688 = vsel %vm4687, %v4680, %v4684
    %v4689 = vand.u32 2147483647, %v4679
    %vm4690 = vcmp.eq.f32.partialorder %v4689, 8.507059e+37
    %v4691 = vand.u32 %v4679, 2147483648
    %v4692 = vor.u32 1.1754944e-38, %v4691
    %v4693 = vsel %vm4690, %v4692, %v4688
    %v4694 = vmul.f32 1.0, %v4693
    %v4695 = vld [vmem:[%s1133 + $0x8] sm:$0xff]
    %v4696 = vld [vmem:[#allocation12 + $0x4] sm:$0xf]
    %v4697 = vld [vmem:[#allocation12 + $0x10] sm:$0xf]
    %v4698 = vld [vmem:[#allocation12 + $0x1c] sm:$0xf]
    %v4699 = vld [vmem:[#allocation12 + $0x28] sm:$0xf]
    %v4700 = vld [vmem:[#allocation12 + $0x34] sm:$0xf]
    %v4701 = vld [vmem:[#allocation12 + $0x40] sm:$0xf]
    %v4702 = vld [vmem:[#allocation12 + $0x4c] sm:$0xf]
    %v4703 = vld [vmem:[#allocation12 + $0x58] sm:$0xf]
    %v4704 = vld [vmem:[#allocation12 + $0x64] sm:$0xf]
    %v4705 = vld [vmem:[#allocation12 + $0x70] sm:$0xf]
    %v4706 = vld [vmem:[#allocation12 + $0x7c] sm:$0xf]
    %v4707 = vld [vmem:[#allocation12 + $0x88] sm:$0xf]
    %v4708 = vld [vmem:[#allocation12 + $0x94] sm:$0xf]
    %v4709 = vld [vmem:[#allocation12 + $0xa0] sm:$0xf]
    %v4710 = vld [vmem:[#allocation12 + $0xac] sm:$0xf]
    %v4711 = vld [vmem:[#allocation12 + $0xb8] sm:$0xf]
    %v4728 = vunpack.c.l.b16 %v4696
    %v4729 = vunpack.c.l.b16 %v4697
    %v4730 = vunpack.c.l.b16 %v4698
    %v4731 = vunpack.c.l.b16 %v4699
    %v4732 = vunpack.c.l.b16 %v4700
    %v4733 = vunpack.c.l.b16 %v4701
    %v4734 = vunpack.c.l.b16 %v4702
    %v4735 = vunpack.c.l.b16 %v4703
    %v4736 = vunpack.c.l.b16 %v4704
    %v4737 = vunpack.c.l.b16 %v4705
    %v4738 = vunpack.c.l.b16 %v4706
    %v4739 = vunpack.c.l.b16 %v4707
    %v4740 = vunpack.c.l.b16 %v4708
    %v4741 = vunpack.c.l.b16 %v4709
    %v4742 = vunpack.c.l.b16 %v4710
    %v4743 = vunpack.c.l.b16 %v4711
    %v4744 = vpack.c.b16 %v4729, %v4728
    %v4745 = vpack.c.b16 %v4731, %v4730
    %v4746 = vpack.c.b16 %v4733, %v4732
    %v4747 = vpack.c.b16 %v4735, %v4734
    %v4748 = vpack.c.b16 %v4737, %v4736
    %v4749 = vpack.c.b16 %v4739, %v4738
    %v4750 = vpack.c.b16 %v4741, %v4740
    %v4751 = vpack.c.b16 %v4743, %v4742
    %4760 = vmatpush.bf16.msra.mxu0 %v4751
    %4761 = vmatpush.bf16.msra.mxu0 %v4750
    %4762 = vmatpush.bf16.msra.mxu0 %v4749
    %4763 = vmatpush.bf16.msra.mxu0 %v4748
    %4764 = vmatpush.bf16.msra.mxu0 %v4747
    %4765 = vmatpush.bf16.msra.mxu0 %v4746
    %4766 = vmatpush.bf16.msra.mxu0 %v4745
    %4767 = vmatpush.bf16.msra.mxu0 %v4744
    %4768 = vmatmul.bf16.gmra.mxu0 %v4386
    %v4769 = vpop.f32.mrf.mxu0
    %v4770 = vadd.f32 0.0, %v4769
    %v4771 = vpop.f32.mrf.mxu0
    %4772 = vdwg.mxu0
    %v4773 = vadd.f32 %v4695, %v4770
    %v4774 = vxor.u32 %v4773, 2147483648
    %v4775 = vmul.f32 %v4774, 1.442695
    %v4776 = vpow.pop %v4775
    %v4777 = vadd.f32 %v4776, 1.0
    %v4778 = vrcp.pop %v4777
    %v4779 = vmul.f32 %v4777, %v4778
    %v4780 = vsub.f32 1.0, %v4779
    %v4781 = vmul.f32 %v4778, %v4780
    %v4782 = vadd.f32 %v4778, %v4781
    %vm4783 = vweird.f32 %v4777
    %vm4784 = vweird.f32 %v4778
    %vm4785 = vmor %vm4783, %vm4784
    %v4786 = vsel %vm4785, %v4778, %v4782
    %v4787 = vand.u32 2147483647, %v4777
    %vm4788 = vcmp.eq.f32.partialorder %v4787, 8.507059e+37
    %v4789 = vand.u32 %v4777, 2147483648
    %v4790 = vor.u32 1.1754944e-38, %v4789
    %v4791 = vsel %vm4788, %v4790, %v4786
    %v4792 = vmul.f32 1.0, %v4791
    %v4793 = vld [vmem:[%s1133 + $0x10] sm:$0xff]
    %v4794 = vld [vmem:[#allocation12 + $0x8] sm:$0xf]
    %v4795 = vld [vmem:[#allocation12 + $0x14] sm:$0xf]
    %v4796 = vld [vmem:[#allocation12 + $0x20] sm:$0xf]
    %v4797 = vld [vmem:[#allocation12 + $0x2c] sm:$0xf]
    %v4798 = vld [vmem:[#allocation12 + $0x38] sm:$0xf]
    %v4799 = vld [vmem:[#allocation12 + $0x44] sm:$0xf]
    %v4800 = vld [vmem:[#allocation12 + $0x50] sm:$0xf]
    %v4801 = vld [vmem:[#allocation12 + $0x5c] sm:$0xf]
    %v4802 = vld [vmem:[#allocation12 + $0x68] sm:$0xf]
    %v4803 = vld [vmem:[#allocation12 + $0x74] sm:$0xf]
    %v4804 = vld [vmem:[#allocation12 + $0x80] sm:$0xf]
    %v4805 = vld [vmem:[#allocation12 + $0x8c] sm:$0xf]
    %v4806 = vld [vmem:[#allocation12 + $0x98] sm:$0xf]
    %v4807 = vld [vmem:[#allocation12 + $0xa4] sm:$0xf]
    %v4808 = vld [vmem:[#allocation12 + $0xb0] sm:$0xf]
    %v4809 = vld [vmem:[#allocation12 + $0xbc] sm:$0xf]
    %v4826 = vunpack.c.l.b16 %v4794
    %v4827 = vunpack.c.l.b16 %v4795
    %v4828 = vunpack.c.l.b16 %v4796
    %v4829 = vunpack.c.l.b16 %v4797
    %v4830 = vunpack.c.l.b16 %v4798
    %v4831 = vunpack.c.l.b16 %v4799
    %v4832 = vunpack.c.l.b16 %v4800
    %v4833 = vunpack.c.l.b16 %v4801
    %v4834 = vunpack.c.l.b16 %v4802
    %v4835 = vunpack.c.l.b16 %v4803
    %v4836 = vunpack.c.l.b16 %v4804
    %v4837 = vunpack.c.l.b16 %v4805
    %v4838 = vunpack.c.l.b16 %v4806
    %v4839 = vunpack.c.l.b16 %v4807
    %v4840 = vunpack.c.l.b16 %v4808
    %v4841 = vunpack.c.l.b16 %v4809
    %v4842 = vpack.c.b16 %v4827, %v4826
    %v4843 = vpack.c.b16 %v4829, %v4828
    %v4844 = vpack.c.b16 %v4831, %v4830
    %v4845 = vpack.c.b16 %v4833, %v4832
    %v4846 = vpack.c.b16 %v4835, %v4834
    %v4847 = vpack.c.b16 %v4837, %v4836
    %v4848 = vpack.c.b16 %v4839, %v4838
    %v4849 = vpack.c.b16 %v4841, %v4840
    %4858 = vmatpush.bf16.msra.mxu0 %v4849
    %4859 = vmatpush.bf16.msra.mxu0 %v4848
    %4860 = vmatpush.bf16.msra.mxu0 %v4847
    %4861 = vmatpush.bf16.msra.mxu0 %v4846
    %4862 = vmatpush.bf16.msra.mxu0 %v4845
    %4863 = vmatpush.bf16.msra.mxu0 %v4844
    %4864 = vmatpush.bf16.msra.mxu0 %v4843
    %4865 = vmatpush.bf16.msra.mxu0 %v4842
    %4866 = vmatmul.bf16.gmra.mxu0 %v4386
    %v4867 = vpop.f32.mrf.mxu0
    %v4868 = vadd.f32 %v4316, %v4867
    %v4869 = vpop.f32.mrf.mxu0
    %4870 = vdwg.mxu0
    %v4871 = vmul.f32 %v4694, %v4868
    %v4872 = vadd.f32 %v4793, %v4871
    %v4873 = vtanh.pop %v4872
    %v4874 = vsub.f32 1.0, %v4792
    %v4875 = vmul.f32 %v4874, %v4873
    %v4876 = vmul.f32 %v4792, %v4385
    %v4877 = vadd.f32 %v4875, %v4876
    %v4878 = vpack.c.bf16 %v4877, %v4877
    %v4879 = vld [vmem:[#allocation9] sm:$0xff]
    %v4880 = vld [vmem:[#allocation9 + $0x8] sm:$0xf]
    %v4881 = vld [vmem:[#allocation9 + $0xc] sm:$0xff]
    %v4882 = vld [vmem:[#allocation9 + $0x14] sm:$0xf]
    %v4883 = vld [vmem:[#allocation9 + $0x18] sm:$0xff]
    %v4884 = vld [vmem:[#allocation9 + $0x20] sm:$0xf]
    %v4885 = vld [vmem:[#allocation9 + $0x24] sm:$0xff]
    %v4886 = vld [vmem:[#allocation9 + $0x2c] sm:$0xf]
    %v4887 = vld [vmem:[#allocation9 + $0x30] sm:$0xff]
    %v4888 = vld [vmem:[#allocation9 + $0x38] sm:$0xf]
    %v4889 = vld [vmem:[#allocation9 + $0x3c] sm:$0xff]
    %v4890 = vld [vmem:[#allocation9 + $0x44] sm:$0xf]
    %v4891 = vld [vmem:[#allocation9 + $0x48] sm:$0xff]
    %v4892 = vld [vmem:[#allocation9 + $0x50] sm:$0xf]
    %v4893 = vld [vmem:[#allocation9 + $0x54] sm:$0xff]
    %v4894 = vld [vmem:[#allocation9 + $0x5c] sm:$0xf]
    %v4895 = vld [vmem:[#allocation9 + $0x60] sm:$0xff]
    %v4896 = vld [vmem:[#allocation9 + $0x68] sm:$0xf]
    %v4897 = vld [vmem:[#allocation9 + $0x6c] sm:$0xff]
    %v4898 = vld [vmem:[#allocation9 + $0x74] sm:$0xf]
    %v4899 = vld [vmem:[#allocation9 + $0x78] sm:$0xff]
    %v4900 = vld [vmem:[#allocation9 + $0x80] sm:$0xf]
    %v4901 = vld [vmem:[#allocation9 + $0x84] sm:$0xff]
    %v4902 = vld [vmem:[#allocation9 + $0x8c] sm:$0xf]
    %v4903 = vld [vmem:[#allocation9 + $0x90] sm:$0xff]
    %v4904 = vld [vmem:[#allocation9 + $0x98] sm:$0xf]
    %v4905 = vld [vmem:[#allocation9 + $0x9c] sm:$0xff]
    %v4906 = vld [vmem:[#allocation9 + $0xa4] sm:$0xf]
    %v4907 = vld [vmem:[#allocation9 + $0xa8] sm:$0xff]
    %v4908 = vld [vmem:[#allocation9 + $0xb0] sm:$0xf]
    %v4909 = vld [vmem:[#allocation9 + $0xb4] sm:$0xff]
    %v4910 = vld [vmem:[#allocation9 + $0xbc] sm:$0xf]
    %v4911 = vld [vmem:[%s4] sm:$0x7]
    %v4913 = vperm.slane %v4911, 0
    %v4914 = vperm.slane %v4911, 1
    %v4915 = vperm.slane %v4911, 2
    %v4951 = vunpack.c.l.b16 %v4879
    %v4952 = vunpack.c.h.b16 %v4879
    %v4953 = vunpack.c.l.b16 %v4880
    %v4954 = vunpack.c.l.b16 %v4881
    %v4955 = vunpack.c.h.b16 %v4881
    %v4956 = vunpack.c.l.b16 %v4882
    %v4957 = vunpack.c.l.b16 %v4883
    %v4958 = vunpack.c.h.b16 %v4883
    %v4959 = vunpack.c.l.b16 %v4884
    %v4960 = vunpack.c.l.b16 %v4885
    %v4961 = vunpack.c.h.b16 %v4885
    %v4962 = vunpack.c.l.b16 %v4886
    %v4963 = vunpack.c.l.b16 %v4887
    %v4964 = vunpack.c.h.b16 %v4887
    %v4965 = vunpack.c.l.b16 %v4888
    %v4966 = vunpack.c.l.b16 %v4889
    %v4967 = vunpack.c.h.b16 %v4889
    %v4968 = vunpack.c.l.b16 %v4890
    %v4969 = vunpack.c.l.b16 %v4891
    %v4970 = vunpack.c.h.b16 %v4891
    %v4971 = vunpack.c.l.b16 %v4892
    %v4972 = vunpack.c.l.b16 %v4893
    %v4973 = vunpack.c.h.b16 %v4893
    %v4974 = vunpack.c.l.b16 %v4894
    %v4975 = vunpack.c.l.b16 %v4895
    %v4976 = vunpack.c.h.b16 %v4895
    %v4977 = vunpack.c.l.b16 %v4896
    %v4978 = vunpack.c.l.b16 %v4897
    %v4979 = vunpack.c.h.b16 %v4897
    %v4980 = vunpack.c.l.b16 %v4898
    %v4981 = vunpack.c.l.b16 %v4899
    %v4982 = vunpack.c.h.b16 %v4899
    %v4983 = vunpack.c.l.b16 %v4900
    %v4984 = vunpack.c.l.b16 %v4901
    %v4985 = vunpack.c.h.b16 %v4901
    %v4986 = vunpack.c.l.b16 %v4902
    %v4987 = vunpack.c.l.b16 %v4903
    %v4988 = vunpack.c.h.b16 %v4903
    %v4989 = vunpack.c.l.b16 %v4904
    %v4990 = vunpack.c.l.b16 %v4905
    %v4991 = vunpack.c.h.b16 %v4905
    %v4992 = vunpack.c.l.b16 %v4906
    %v4993 = vunpack.c.l.b16 %v4907
    %v4994 = vunpack.c.h.b16 %v4907
    %v4995 = vunpack.c.l.b16 %v4908
    %v4996 = vunpack.c.l.b16 %v4909
    %v4997 = vunpack.c.h.b16 %v4909
    %v4998 = vunpack.c.l.b16 %v4910
    %v4999 = vpack.c.b16 %v4954, %v4951
    %v5000 = vpack.c.b16 %v4955, %v4952
    %v5001 = vpack.c.b16 %v4956, %v4953
    %v5002 = vpack.c.b16 %v4960, %v4957
    %v5003 = vpack.c.b16 %v4961, %v4958
    %v5004 = vpack.c.b16 %v4962, %v4959
    %v5005 = vpack.c.b16 %v4966, %v4963
    %v5006 = vpack.c.b16 %v4967, %v4964
    %v5007 = vpack.c.b16 %v4968, %v4965
    %v5008 = vpack.c.b16 %v4972, %v4969
    %v5009 = vpack.c.b16 %v4973, %v4970
    %v5010 = vpack.c.b16 %v4974, %v4971
    %v5011 = vpack.c.b16 %v4978, %v4975
    %v5012 = vpack.c.b16 %v4979, %v4976
    %v5013 = vpack.c.b16 %v4980, %v4977
    %v5014 = vpack.c.b16 %v4984, %v4981
    %v5015 = vpack.c.b16 %v4985, %v4982
    %v5016 = vpack.c.b16 %v4986, %v4983
    %v5017 = vpack.c.b16 %v4990, %v4987
    %v5018 = vpack.c.b16 %v4991, %v4988
    %v5019 = vpack.c.b16 %v4992, %v4989
    %v5020 = vpack.c.b16 %v4996, %v4993
    %v5021 = vpack.c.b16 %v4997, %v4994
    %v5022 = vpack.c.b16 %v4998, %v4995
    %5047 = vmatpush.bf16.msra.mxu0 %v5020
    %5048 = vmatpush.bf16.msra.mxu0 %v5017
    %5049 = vmatpush.bf16.msra.mxu0 %v5014
    %5050 = vmatpush.bf16.msra.mxu0 %v5011
    %5051 = vmatpush.bf16.msra.mxu0 %v5008
    %5052 = vmatpush.bf16.msra.mxu0 %v5005
    %5053 = vmatpush.bf16.msra.mxu0 %v5002
    %5054 = vmatpush.bf16.msra.mxu0 %v4999
    %5055 = vmatmul.bf16.gmra.mxu0 %v4878
    %v5056 = vpop.f32.mrf.mxu0
    %v5057 = vadd.f32 %v4913, %v5056
    %v5058 = vpop.f32.mrf.mxu0
    %5059 = vdwg.mxu0
    %5060 = vmatpush.bf16.msra.mxu0 %v5021
    %5061 = vmatpush.bf16.msra.mxu0 %v5018
    %5062 = vmatpush.bf16.msra.mxu0 %v5015
    %5063 = vmatpush.bf16.msra.mxu0 %v5012
    %5064 = vmatpush.bf16.msra.mxu0 %v5009
    %5065 = vmatpush.bf16.msra.mxu0 %v5006
    %5066 = vmatpush.bf16.msra.mxu0 %v5003
    %5067 = vmatpush.bf16.msra.mxu0 %v5000
    %5068 = vmatmul.bf16.gmra.mxu0 %v4878
    %v5069 = vpop.f32.mrf.mxu0
    %v5070 = vadd.f32 %v4914, %v5069
    %v5071 = vpop.f32.mrf.mxu0
    %5072 = vdwg.mxu0
    %5073 = vmatpush.bf16.msra.mxu0 %v5022
    %5074 = vmatpush.bf16.msra.mxu0 %v5019
    %5075 = vmatpush.bf16.msra.mxu0 %v5016
    %5076 = vmatpush.bf16.msra.mxu0 %v5013
    %5077 = vmatpush.bf16.msra.mxu0 %v5010
    %5078 = vmatpush.bf16.msra.mxu0 %v5007
    %5079 = vmatpush.bf16.msra.mxu0 %v5004
    %5080 = vmatpush.bf16.msra.mxu0 %v5001
    %5081 = vmatmul.bf16.gmra.mxu0 %v4878
    %v5082 = vpop.f32.mrf.mxu0
    %v5083 = vadd.f32 %v4915, %v5082
    %v5084 = vpop.f32.mrf.mxu0
    %5085 = vdwg.mxu0
    %s5086 = scalar_lea.vmem [#allocation3], 24
    %5087 = vst [vmem:[%s5086] sm:$0xff] %v5057
    %5088 = vst [vmem:[%s5086 + $0x8] sm:$0xff] %v5070
    %5089 = vst [vmem:[%s5086 + $0x10] sm:$0xff] %v5083
    %v5090 = vld [vmem:[%s1627] sm:$0xff]
    %v5091 = vld [vmem:[#allocation12] sm:$0xf]
    %v5092 = vld [vmem:[#allocation12 + $0xc] sm:$0xf]
    %v5093 = vld [vmem:[#allocation12 + $0x18] sm:$0xf]
    %v5094 = vld [vmem:[#allocation12 + $0x24] sm:$0xf]
    %v5095 = vld [vmem:[#allocation12 + $0x30] sm:$0xf]
    %v5096 = vld [vmem:[#allocation12 + $0x3c] sm:$0xf]
    %v5097 = vld [vmem:[#allocation12 + $0x48] sm:$0xf]
    %v5098 = vld [vmem:[#allocation12 + $0x54] sm:$0xf]
    %v5099 = vld [vmem:[#allocation12 + $0x60] sm:$0xf]
    %v5100 = vld [vmem:[#allocation12 + $0x6c] sm:$0xf]
    %v5101 = vld [vmem:[#allocation12 + $0x78] sm:$0xf]
    %v5102 = vld [vmem:[#allocation12 + $0x84] sm:$0xf]
    %v5103 = vld [vmem:[#allocation12 + $0x90] sm:$0xf]
    %v5104 = vld [vmem:[#allocation12 + $0x9c] sm:$0xf]
    %v5105 = vld [vmem:[#allocation12 + $0xa8] sm:$0xf]
    %v5106 = vld [vmem:[#allocation12 + $0xb4] sm:$0xf]
    %v5123 = vunpack.c.l.b16 %v5091
    %v5124 = vunpack.c.l.b16 %v5092
    %v5125 = vunpack.c.l.b16 %v5093
    %v5126 = vunpack.c.l.b16 %v5094
    %v5127 = vunpack.c.l.b16 %v5095
    %v5128 = vunpack.c.l.b16 %v5096
    %v5129 = vunpack.c.l.b16 %v5097
    %v5130 = vunpack.c.l.b16 %v5098
    %v5131 = vunpack.c.l.b16 %v5099
    %v5132 = vunpack.c.l.b16 %v5100
    %v5133 = vunpack.c.l.b16 %v5101
    %v5134 = vunpack.c.l.b16 %v5102
    %v5135 = vunpack.c.l.b16 %v5103
    %v5136 = vunpack.c.l.b16 %v5104
    %v5137 = vunpack.c.l.b16 %v5105
    %v5138 = vunpack.c.l.b16 %v5106
    %v5139 = vpack.c.b16 %v5124, %v5123
    %v5140 = vpack.c.b16 %v5126, %v5125
    %v5141 = vpack.c.b16 %v5128, %v5127
    %v5142 = vpack.c.b16 %v5130, %v5129
    %v5143 = vpack.c.b16 %v5132, %v5131
    %v5144 = vpack.c.b16 %v5134, %v5133
    %v5145 = vpack.c.b16 %v5136, %v5135
    %v5146 = vpack.c.b16 %v5138, %v5137
    %5155 = vmatpush.bf16.msra.mxu0 %v5146
    %5156 = vmatpush.bf16.msra.mxu0 %v5145
    %5157 = vmatpush.bf16.msra.mxu0 %v5144
    %5158 = vmatpush.bf16.msra.mxu0 %v5143
    %5159 = vmatpush.bf16.msra.mxu0 %v5142
    %5160 = vmatpush.bf16.msra.mxu0 %v5141
    %5161 = vmatpush.bf16.msra.mxu0 %v5140
    %5162 = vmatpush.bf16.msra.mxu0 %v5139
    %5163 = vmatmul.bf16.gmra.mxu0 %v4878
    %v5164 = vpop.f32.mrf.mxu0
    %v5165 = vadd.f32 0.0, %v5164
    %v5166 = vpop.f32.mrf.mxu0
    %5167 = vdwg.mxu0
    %v5168 = vadd.f32 %v5090, %v5165
    %v5169 = vxor.u32 %v5168, 2147483648
    %v5170 = vmul.f32 %v5169, 1.442695
    %v5171 = vpow.pop %v5170
    %v5172 = vadd.f32 %v5171, 1.0
    %v5173 = vrcp.pop %v5172
    %v5174 = vmul.f32 %v5172, %v5173
    %v5175 = vsub.f32 1.0, %v5174
    %v5176 = vmul.f32 %v5173, %v5175
    %v5177 = vadd.f32 %v5173, %v5176
    %vm5178 = vweird.f32 %v5172
    %vm5179 = vweird.f32 %v5173
    %vm5180 = vmor %vm5178, %vm5179
    %v5181 = vsel %vm5180, %v5173, %v5177
    %v5182 = vand.u32 2147483647, %v5172
    %vm5183 = vcmp.eq.f32.partialorder %v5182, 8.507059e+37
    %v5184 = vand.u32 %v5172, 2147483648
    %v5185 = vor.u32 1.1754944e-38, %v5184
    %v5186 = vsel %vm5183, %v5185, %v5181
    %v5187 = vmul.f32 1.0, %v5186
    %v5188 = vld [vmem:[%s1627 + $0x8] sm:$0xff]
    %v5189 = vld [vmem:[#allocation12 + $0x4] sm:$0xf]
    %v5190 = vld [vmem:[#allocation12 + $0x10] sm:$0xf]
    %v5191 = vld [vmem:[#allocation12 + $0x1c] sm:$0xf]
    %v5192 = vld [vmem:[#allocation12 + $0x28] sm:$0xf]
    %v5193 = vld [vmem:[#allocation12 + $0x34] sm:$0xf]
    %v5194 = vld [vmem:[#allocation12 + $0x40] sm:$0xf]
    %v5195 = vld [vmem:[#allocation12 + $0x4c] sm:$0xf]
    %v5196 = vld [vmem:[#allocation12 + $0x58] sm:$0xf]
    %v5197 = vld [vmem:[#allocation12 + $0x64] sm:$0xf]
    %v5198 = vld [vmem:[#allocation12 + $0x70] sm:$0xf]
    %v5199 = vld [vmem:[#allocation12 + $0x7c] sm:$0xf]
    %v5200 = vld [vmem:[#allocation12 + $0x88] sm:$0xf]
    %v5201 = vld [vmem:[#allocation12 + $0x94] sm:$0xf]
    %v5202 = vld [vmem:[#allocation12 + $0xa0] sm:$0xf]
    %v5203 = vld [vmem:[#allocation12 + $0xac] sm:$0xf]
    %v5204 = vld [vmem:[#allocation12 + $0xb8] sm:$0xf]
    %v5221 = vunpack.c.l.b16 %v5189
    %v5222 = vunpack.c.l.b16 %v5190
    %v5223 = vunpack.c.l.b16 %v5191
    %v5224 = vunpack.c.l.b16 %v5192
    %v5225 = vunpack.c.l.b16 %v5193
    %v5226 = vunpack.c.l.b16 %v5194
    %v5227 = vunpack.c.l.b16 %v5195
    %v5228 = vunpack.c.l.b16 %v5196
    %v5229 = vunpack.c.l.b16 %v5197
    %v5230 = vunpack.c.l.b16 %v5198
    %v5231 = vunpack.c.l.b16 %v5199
    %v5232 = vunpack.c.l.b16 %v5200
    %v5233 = vunpack.c.l.b16 %v5201
    %v5234 = vunpack.c.l.b16 %v5202
    %v5235 = vunpack.c.l.b16 %v5203
    %v5236 = vunpack.c.l.b16 %v5204
    %v5237 = vpack.c.b16 %v5222, %v5221
    %v5238 = vpack.c.b16 %v5224, %v5223
    %v5239 = vpack.c.b16 %v5226, %v5225
    %v5240 = vpack.c.b16 %v5228, %v5227
    %v5241 = vpack.c.b16 %v5230, %v5229
    %v5242 = vpack.c.b16 %v5232, %v5231
    %v5243 = vpack.c.b16 %v5234, %v5233
    %v5244 = vpack.c.b16 %v5236, %v5235
    %5253 = vmatpush.bf16.msra.mxu0 %v5244
    %5254 = vmatpush.bf16.msra.mxu0 %v5243
    %5255 = vmatpush.bf16.msra.mxu0 %v5242
    %5256 = vmatpush.bf16.msra.mxu0 %v5241
    %5257 = vmatpush.bf16.msra.mxu0 %v5240
    %5258 = vmatpush.bf16.msra.mxu0 %v5239
    %5259 = vmatpush.bf16.msra.mxu0 %v5238
    %5260 = vmatpush.bf16.msra.mxu0 %v5237
    %5261 = vmatmul.bf16.gmra.mxu0 %v4878
    %v5262 = vpop.f32.mrf.mxu0
    %v5263 = vadd.f32 0.0, %v5262
    %v5264 = vpop.f32.mrf.mxu0
    %5265 = vdwg.mxu0
    %v5266 = vadd.f32 %v5188, %v5263
    %v5267 = vxor.u32 %v5266, 2147483648
    %v5268 = vmul.f32 %v5267, 1.442695
    %v5269 = vpow.pop %v5268
    %v5270 = vadd.f32 %v5269, 1.0
    %v5271 = vrcp.pop %v5270
    %v5272 = vmul.f32 %v5270, %v5271
    %v5273 = vsub.f32 1.0, %v5272
    %v5274 = vmul.f32 %v5271, %v5273
    %v5275 = vadd.f32 %v5271, %v5274
    %vm5276 = vweird.f32 %v5270
    %vm5277 = vweird.f32 %v5271
    %vm5278 = vmor %vm5276, %vm5277
    %v5279 = vsel %vm5278, %v5271, %v5275
    %v5280 = vand.u32 2147483647, %v5270
    %vm5281 = vcmp.eq.f32.partialorder %v5280, 8.507059e+37
    %v5282 = vand.u32 %v5270, 2147483648
    %v5283 = vor.u32 1.1754944e-38, %v5282
    %v5284 = vsel %vm5281, %v5283, %v5279
    %v5285 = vmul.f32 1.0, %v5284
    %v5286 = vld [vmem:[%s1627 + $0x10] sm:$0xff]
    %v5287 = vld [vmem:[#allocation12 + $0x8] sm:$0xf]
    %v5288 = vld [vmem:[#allocation12 + $0x14] sm:$0xf]
    %v5289 = vld [vmem:[#allocation12 + $0x20] sm:$0xf]
    %v5290 = vld [vmem:[#allocation12 + $0x2c] sm:$0xf]
    %v5291 = vld [vmem:[#allocation12 + $0x38] sm:$0xf]
    %v5292 = vld [vmem:[#allocation12 + $0x44] sm:$0xf]
    %v5293 = vld [vmem:[#allocation12 + $0x50] sm:$0xf]
    %v5294 = vld [vmem:[#allocation12 + $0x5c] sm:$0xf]
    %v5295 = vld [vmem:[#allocation12 + $0x68] sm:$0xf]
    %v5296 = vld [vmem:[#allocation12 + $0x74] sm:$0xf]
    %v5297 = vld [vmem:[#allocation12 + $0x80] sm:$0xf]
    %v5298 = vld [vmem:[#allocation12 + $0x8c] sm:$0xf]
    %v5299 = vld [vmem:[#allocation12 + $0x98] sm:$0xf]
    %v5300 = vld [vmem:[#allocation12 + $0xa4] sm:$0xf]
    %v5301 = vld [vmem:[#allocation12 + $0xb0] sm:$0xf]
    %v5302 = vld [vmem:[#allocation12 + $0xbc] sm:$0xf]
    %v5319 = vunpack.c.l.b16 %v5287
    %v5320 = vunpack.c.l.b16 %v5288
    %v5321 = vunpack.c.l.b16 %v5289
    %v5322 = vunpack.c.l.b16 %v5290
    %v5323 = vunpack.c.l.b16 %v5291
    %v5324 = vunpack.c.l.b16 %v5292
    %v5325 = vunpack.c.l.b16 %v5293
    %v5326 = vunpack.c.l.b16 %v5294
    %v5327 = vunpack.c.l.b16 %v5295
    %v5328 = vunpack.c.l.b16 %v5296
    %v5329 = vunpack.c.l.b16 %v5297
    %v5330 = vunpack.c.l.b16 %v5298
    %v5331 = vunpack.c.l.b16 %v5299
    %v5332 = vunpack.c.l.b16 %v5300
    %v5333 = vunpack.c.l.b16 %v5301
    %v5334 = vunpack.c.l.b16 %v5302
    %v5335 = vpack.c.b16 %v5320, %v5319
    %v5336 = vpack.c.b16 %v5322, %v5321
    %v5337 = vpack.c.b16 %v5324, %v5323
    %v5338 = vpack.c.b16 %v5326, %v5325
    %v5339 = vpack.c.b16 %v5328, %v5327
    %v5340 = vpack.c.b16 %v5330, %v5329
    %v5341 = vpack.c.b16 %v5332, %v5331
    %v5342 = vpack.c.b16 %v5334, %v5333
    %5351 = vmatpush.bf16.msra.mxu0 %v5342
    %5352 = vmatpush.bf16.msra.mxu0 %v5341
    %5353 = vmatpush.bf16.msra.mxu0 %v5340
    %5354 = vmatpush.bf16.msra.mxu0 %v5339
    %5355 = vmatpush.bf16.msra.mxu0 %v5338
    %5356 = vmatpush.bf16.msra.mxu0 %v5337
    %5357 = vmatpush.bf16.msra.mxu0 %v5336
    %5358 = vmatpush.bf16.msra.mxu0 %v5335
    %5359 = vmatmul.bf16.gmra.mxu0 %v4878
    %v5360 = vpop.f32.mrf.mxu0
    %v5361 = vadd.f32 %v4316, %v5360
    %v5362 = vpop.f32.mrf.mxu0
    %5363 = vdwg.mxu0
    %v5364 = vmul.f32 %v5187, %v5361
    %v5365 = vadd.f32 %v5286, %v5364
    %v5366 = vtanh.pop %v5365
    %v5367 = vsub.f32 1.0, %v5285
    %v5368 = vmul.f32 %v5367, %v5366
    %v5369 = vmul.f32 %v5285, %v4877
    %v5370 = vadd.f32 %v5368, %v5369
    %v5371 = vpack.c.bf16 %v5370, %v5370
    %v5372 = vld [vmem:[#allocation9] sm:$0xff]
    %v5373 = vld [vmem:[#allocation9 + $0x8] sm:$0xf]
    %v5374 = vld [vmem:[#allocation9 + $0xc] sm:$0xff]
    %v5375 = vld [vmem:[#allocation9 + $0x14] sm:$0xf]
    %v5376 = vld [vmem:[#allocation9 + $0x18] sm:$0xff]
    %v5377 = vld [vmem:[#allocation9 + $0x20] sm:$0xf]
    %v5378 = vld [vmem:[#allocation9 + $0x24] sm:$0xff]
    %v5379 = vld [vmem:[#allocation9 + $0x2c] sm:$0xf]
    %v5380 = vld [vmem:[#allocation9 + $0x30] sm:$0xff]
    %v5381 = vld [vmem:[#allocation9 + $0x38] sm:$0xf]
    %v5382 = vld [vmem:[#allocation9 + $0x3c] sm:$0xff]
    %v5383 = vld [vmem:[#allocation9 + $0x44] sm:$0xf]
    %v5384 = vld [vmem:[#allocation9 + $0x48] sm:$0xff]
    %v5385 = vld [vmem:[#allocation9 + $0x50] sm:$0xf]
    %v5386 = vld [vmem:[#allocation9 + $0x54] sm:$0xff]
    %v5387 = vld [vmem:[#allocation9 + $0x5c] sm:$0xf]
    %v5388 = vld [vmem:[#allocation9 + $0x60] sm:$0xff]
    %v5389 = vld [vmem:[#allocation9 + $0x68] sm:$0xf]
    %v5390 = vld [vmem:[#allocation9 + $0x6c] sm:$0xff]
    %v5391 = vld [vmem:[#allocation9 + $0x74] sm:$0xf]
    %v5392 = vld [vmem:[#allocation9 + $0x78] sm:$0xff]
    %v5393 = vld [vmem:[#allocation9 + $0x80] sm:$0xf]
    %v5394 = vld [vmem:[#allocation9 + $0x84] sm:$0xff]
    %v5395 = vld [vmem:[#allocation9 + $0x8c] sm:$0xf]
    %v5396 = vld [vmem:[#allocation9 + $0x90] sm:$0xff]
    %v5397 = vld [vmem:[#allocation9 + $0x98] sm:$0xf]
    %v5398 = vld [vmem:[#allocation9 + $0x9c] sm:$0xff]
    %v5399 = vld [vmem:[#allocation9 + $0xa4] sm:$0xf]
    %v5400 = vld [vmem:[#allocation9 + $0xa8] sm:$0xff]
    %v5401 = vld [vmem:[#allocation9 + $0xb0] sm:$0xf]
    %v5402 = vld [vmem:[#allocation9 + $0xb4] sm:$0xff]
    %v5403 = vld [vmem:[#allocation9 + $0xbc] sm:$0xf]
    %v5404 = vld [vmem:[%s4] sm:$0x7]
    %v5406 = vperm.slane %v5404, 0
    %v5407 = vperm.slane %v5404, 1
    %v5408 = vperm.slane %v5404, 2
    %v5444 = vunpack.c.l.b16 %v5372
    %v5445 = vunpack.c.h.b16 %v5372
    %v5446 = vunpack.c.l.b16 %v5373
    %v5447 = vunpack.c.l.b16 %v5374
    %v5448 = vunpack.c.h.b16 %v5374
    %v5449 = vunpack.c.l.b16 %v5375
    %v5450 = vunpack.c.l.b16 %v5376
    %v5451 = vunpack.c.h.b16 %v5376
    %v5452 = vunpack.c.l.b16 %v5377
    %v5453 = vunpack.c.l.b16 %v5378
    %v5454 = vunpack.c.h.b16 %v5378
    %v5455 = vunpack.c.l.b16 %v5379
    %v5456 = vunpack.c.l.b16 %v5380
    %v5457 = vunpack.c.h.b16 %v5380
    %v5458 = vunpack.c.l.b16 %v5381
    %v5459 = vunpack.c.l.b16 %v5382
    %v5460 = vunpack.c.h.b16 %v5382
    %v5461 = vunpack.c.l.b16 %v5383
    %v5462 = vunpack.c.l.b16 %v5384
    %v5463 = vunpack.c.h.b16 %v5384
    %v5464 = vunpack.c.l.b16 %v5385
    %v5465 = vunpack.c.l.b16 %v5386
    %v5466 = vunpack.c.h.b16 %v5386
    %v5467 = vunpack.c.l.b16 %v5387
    %v5468 = vunpack.c.l.b16 %v5388
    %v5469 = vunpack.c.h.b16 %v5388
    %v5470 = vunpack.c.l.b16 %v5389
    %v5471 = vunpack.c.l.b16 %v5390
    %v5472 = vunpack.c.h.b16 %v5390
    %v5473 = vunpack.c.l.b16 %v5391
    %v5474 = vunpack.c.l.b16 %v5392
    %v5475 = vunpack.c.h.b16 %v5392
    %v5476 = vunpack.c.l.b16 %v5393
    %v5477 = vunpack.c.l.b16 %v5394
    %v5478 = vunpack.c.h.b16 %v5394
    %v5479 = vunpack.c.l.b16 %v5395
    %v5480 = vunpack.c.l.b16 %v5396
    %v5481 = vunpack.c.h.b16 %v5396
    %v5482 = vunpack.c.l.b16 %v5397
    %v5483 = vunpack.c.l.b16 %v5398
    %v5484 = vunpack.c.h.b16 %v5398
    %v5485 = vunpack.c.l.b16 %v5399
    %v5486 = vunpack.c.l.b16 %v5400
    %v5487 = vunpack.c.h.b16 %v5400
    %v5488 = vunpack.c.l.b16 %v5401
    %v5489 = vunpack.c.l.b16 %v5402
    %v5490 = vunpack.c.h.b16 %v5402
    %v5491 = vunpack.c.l.b16 %v5403
    %v5492 = vpack.c.b16 %v5447, %v5444
    %v5493 = vpack.c.b16 %v5448, %v5445
    %v5494 = vpack.c.b16 %v5449, %v5446
    %v5495 = vpack.c.b16 %v5453, %v5450
    %v5496 = vpack.c.b16 %v5454, %v5451
    %v5497 = vpack.c.b16 %v5455, %v5452
    %v5498 = vpack.c.b16 %v5459, %v5456
    %v5499 = vpack.c.b16 %v5460, %v5457
    %v5500 = vpack.c.b16 %v5461, %v5458
    %v5501 = vpack.c.b16 %v5465, %v5462
    %v5502 = vpack.c.b16 %v5466, %v5463
    %v5503 = vpack.c.b16 %v5467, %v5464
    %v5504 = vpack.c.b16 %v5471, %v5468
    %v5505 = vpack.c.b16 %v5472, %v5469
    %v5506 = vpack.c.b16 %v5473, %v5470
    %v5507 = vpack.c.b16 %v5477, %v5474
    %v5508 = vpack.c.b16 %v5478, %v5475
    %v5509 = vpack.c.b16 %v5479, %v5476
    %v5510 = vpack.c.b16 %v5483, %v5480
    %v5511 = vpack.c.b16 %v5484, %v5481
    %v5512 = vpack.c.b16 %v5485, %v5482
    %v5513 = vpack.c.b16 %v5489, %v5486
    %v5514 = vpack.c.b16 %v5490, %v5487
    %v5515 = vpack.c.b16 %v5491, %v5488
    %5540 = vmatpush.bf16.msra.mxu0 %v5513
    %5541 = vmatpush.bf16.msra.mxu0 %v5510
    %5542 = vmatpush.bf16.msra.mxu0 %v5507
    %5543 = vmatpush.bf16.msra.mxu0 %v5504
    %5544 = vmatpush.bf16.msra.mxu0 %v5501
    %5545 = vmatpush.bf16.msra.mxu0 %v5498
    %5546 = vmatpush.bf16.msra.mxu0 %v5495
    %5547 = vmatpush.bf16.msra.mxu0 %v5492
    %5548 = vmatmul.bf16.gmra.mxu0 %v5371
    %v5549 = vpop.f32.mrf.mxu0
    %v5550 = vadd.f32 %v5406, %v5549
    %v5551 = vpop.f32.mrf.mxu0
    %5552 = vdwg.mxu0
    %5553 = vmatpush.bf16.msra.mxu0 %v5514
    %5554 = vmatpush.bf16.msra.mxu0 %v5511
    %5555 = vmatpush.bf16.msra.mxu0 %v5508
    %5556 = vmatpush.bf16.msra.mxu0 %v5505
    %5557 = vmatpush.bf16.msra.mxu0 %v5502
    %5558 = vmatpush.bf16.msra.mxu0 %v5499
    %5559 = vmatpush.bf16.msra.mxu0 %v5496
    %5560 = vmatpush.bf16.msra.mxu0 %v5493
    %5561 = vmatmul.bf16.gmra.mxu0 %v5371
    %v5562 = vpop.f32.mrf.mxu0
    %v5563 = vadd.f32 %v5407, %v5562
    %v5564 = vpop.f32.mrf.mxu0
    %5565 = vdwg.mxu0
    %5566 = vmatpush.bf16.msra.mxu0 %v5515
    %5567 = vmatpush.bf16.msra.mxu0 %v5512
    %5568 = vmatpush.bf16.msra.mxu0 %v5509
    %5569 = vmatpush.bf16.msra.mxu0 %v5506
    %5570 = vmatpush.bf16.msra.mxu0 %v5503
    %5571 = vmatpush.bf16.msra.mxu0 %v5500
    %5572 = vmatpush.bf16.msra.mxu0 %v5497
    %5573 = vmatpush.bf16.msra.mxu0 %v5494
    %5574 = vmatmul.bf16.gmra.mxu0 %v5371
    %v5575 = vpop.f32.mrf.mxu0
    %v5576 = vadd.f32 %v5408, %v5575
    %v5577 = vpop.f32.mrf.mxu0
    %5578 = vdwg.mxu0
    %s5579 = scalar_lea.vmem [#allocation3], 48
    %5580 = vst [vmem:[%s5579] sm:$0xff] %v5550
    %5581 = vst [vmem:[%s5579 + $0x8] sm:$0xff] %v5563
    %5582 = vst [vmem:[%s5579 + $0x10] sm:$0xff] %v5576
    %v5583 = vld [vmem:[%s2121] sm:$0xff]
    %v5584 = vld [vmem:[#allocation12] sm:$0xf]
    %v5585 = vld [vmem:[#allocation12 + $0xc] sm:$0xf]
    %v5586 = vld [vmem:[#allocation12 + $0x18] sm:$0xf]
    %v5587 = vld [vmem:[#allocation12 + $0x24] sm:$0xf]
    %v5588 = vld [vmem:[#allocation12 + $0x30] sm:$0xf]
    %v5589 = vld [vmem:[#allocation12 + $0x3c] sm:$0xf]
    %v5590 = vld [vmem:[#allocation12 + $0x48] sm:$0xf]
    %v5591 = vld [vmem:[#allocation12 + $0x54] sm:$0xf]
    %v5592 = vld [vmem:[#allocation12 + $0x60] sm:$0xf]
    %v5593 = vld [vmem:[#allocation12 + $0x6c] sm:$0xf]
    %v5594 = vld [vmem:[#allocation12 + $0x78] sm:$0xf]
    %v5595 = vld [vmem:[#allocation12 + $0x84] sm:$0xf]
    %v5596 = vld [vmem:[#allocation12 + $0x90] sm:$0xf]
    %v5597 = vld [vmem:[#allocation12 + $0x9c] sm:$0xf]
    %v5598 = vld [vmem:[#allocation12 + $0xa8] sm:$0xf]
    %v5599 = vld [vmem:[#allocation12 + $0xb4] sm:$0xf]
    %v5616 = vunpack.c.l.b16 %v5584
    %v5617 = vunpack.c.l.b16 %v5585
    %v5618 = vunpack.c.l.b16 %v5586
    %v5619 = vunpack.c.l.b16 %v5587
    %v5620 = vunpack.c.l.b16 %v5588
    %v5621 = vunpack.c.l.b16 %v5589
    %v5622 = vunpack.c.l.b16 %v5590
    %v5623 = vunpack.c.l.b16 %v5591
    %v5624 = vunpack.c.l.b16 %v5592
    %v5625 = vunpack.c.l.b16 %v5593
    %v5626 = vunpack.c.l.b16 %v5594
    %v5627 = vunpack.c.l.b16 %v5595
    %v5628 = vunpack.c.l.b16 %v5596
    %v5629 = vunpack.c.l.b16 %v5597
    %v5630 = vunpack.c.l.b16 %v5598
    %v5631 = vunpack.c.l.b16 %v5599
    %v5632 = vpack.c.b16 %v5617, %v5616
    %v5633 = vpack.c.b16 %v5619, %v5618
    %v5634 = vpack.c.b16 %v5621, %v5620
    %v5635 = vpack.c.b16 %v5623, %v5622
    %v5636 = vpack.c.b16 %v5625, %v5624
    %v5637 = vpack.c.b16 %v5627, %v5626
    %v5638 = vpack.c.b16 %v5629, %v5628
    %v5639 = vpack.c.b16 %v5631, %v5630
    %5648 = vmatpush.bf16.msra.mxu0 %v5639
    %5649 = vmatpush.bf16.msra.mxu0 %v5638
    %5650 = vmatpush.bf16.msra.mxu0 %v5637
    %5651 = vmatpush.bf16.msra.mxu0 %v5636
    %5652 = vmatpush.bf16.msra.mxu0 %v5635
    %5653 = vmatpush.bf16.msra.mxu0 %v5634
    %5654 = vmatpush.bf16.msra.mxu0 %v5633
    %5655 = vmatpush.bf16.msra.mxu0 %v5632
    %5656 = vmatmul.bf16.gmra.mxu0 %v5371
    %v5657 = vpop.f32.mrf.mxu0
    %v5658 = vadd.f32 0.0, %v5657
    %v5659 = vpop.f32.mrf.mxu0
    %5660 = vdwg.mxu0
    %v5661 = vadd.f32 %v5583, %v5658
    %v5662 = vxor.u32 %v5661, 2147483648
    %v5663 = vmul.f32 %v5662, 1.442695
    %v5664 = vpow.pop %v5663
    %v5665 = vadd.f32 %v5664, 1.0
    %v5666 = vrcp.pop %v5665
    %v5667 = vmul.f32 %v5665, %v5666
    %v5668 = vsub.f32 1.0, %v5667
    %v5669 = vmul.f32 %v5666, %v5668
    %v5670 = vadd.f32 %v5666, %v5669
    %vm5671 = vweird.f32 %v5665
    %vm5672 = vweird.f32 %v5666
    %vm5673 = vmor %vm5671, %vm5672
    %v5674 = vsel %vm5673, %v5666, %v5670
    %v5675 = vand.u32 2147483647, %v5665
    %vm5676 = vcmp.eq.f32.partialorder %v5675, 8.507059e+37
    %v5677 = vand.u32 %v5665, 2147483648
    %v5678 = vor.u32 1.1754944e-38, %v5677
    %v5679 = vsel %vm5676, %v5678, %v5674
    %v5680 = vmul.f32 1.0, %v5679
    %v5681 = vld [vmem:[%s2121 + $0x8] sm:$0xff]
    %v5682 = vld [vmem:[#allocation12 + $0x4] sm:$0xf]
    %v5683 = vld [vmem:[#allocation12 + $0x10] sm:$0xf]
    %v5684 = vld [vmem:[#allocation12 + $0x1c] sm:$0xf]
    %v5685 = vld [vmem:[#allocation12 + $0x28] sm:$0xf]
    %v5686 = vld [vmem:[#allocation12 + $0x34] sm:$0xf]
    %v5687 = vld [vmem:[#allocation12 + $0x40] sm:$0xf]
    %v5688 = vld [vmem:[#allocation12 + $0x4c] sm:$0xf]
    %v5689 = vld [vmem:[#allocation12 + $0x58] sm:$0xf]
    %v5690 = vld [vmem:[#allocation12 + $0x64] sm:$0xf]
    %v5691 = vld [vmem:[#allocation12 + $0x70] sm:$0xf]
    %v5692 = vld [vmem:[#allocation12 + $0x7c] sm:$0xf]
    %v5693 = vld [vmem:[#allocation12 + $0x88] sm:$0xf]
    %v5694 = vld [vmem:[#allocation12 + $0x94] sm:$0xf]
    %v5695 = vld [vmem:[#allocation12 + $0xa0] sm:$0xf]
    %v5696 = vld [vmem:[#allocation12 + $0xac] sm:$0xf]
    %v5697 = vld [vmem:[#allocation12 + $0xb8] sm:$0xf]
    %v5714 = vunpack.c.l.b16 %v5682
    %v5715 = vunpack.c.l.b16 %v5683
    %v5716 = vunpack.c.l.b16 %v5684
    %v5717 = vunpack.c.l.b16 %v5685
    %v5718 = vunpack.c.l.b16 %v5686
    %v5719 = vunpack.c.l.b16 %v5687
    %v5720 = vunpack.c.l.b16 %v5688
    %v5721 = vunpack.c.l.b16 %v5689
    %v5722 = vunpack.c.l.b16 %v5690
    %v5723 = vunpack.c.l.b16 %v5691
    %v5724 = vunpack.c.l.b16 %v5692
    %v5725 = vunpack.c.l.b16 %v5693
    %v5726 = vunpack.c.l.b16 %v5694
    %v5727 = vunpack.c.l.b16 %v5695
    %v5728 = vunpack.c.l.b16 %v5696
    %v5729 = vunpack.c.l.b16 %v5697
    %v5730 = vpack.c.b16 %v5715, %v5714
    %v5731 = vpack.c.b16 %v5717, %v5716
    %v5732 = vpack.c.b16 %v5719, %v5718
    %v5733 = vpack.c.b16 %v5721, %v5720
    %v5734 = vpack.c.b16 %v5723, %v5722
    %v5735 = vpack.c.b16 %v5725, %v5724
    %v5736 = vpack.c.b16 %v5727, %v5726
    %v5737 = vpack.c.b16 %v5729, %v5728
    %5746 = vmatpush.bf16.msra.mxu0 %v5737
    %5747 = vmatpush.bf16.msra.mxu0 %v5736
    %5748 = vmatpush.bf16.msra.mxu0 %v5735
    %5749 = vmatpush.bf16.msra.mxu0 %v5734
    %5750 = vmatpush.bf16.msra.mxu0 %v5733
    %5751 = vmatpush.bf16.msra.mxu0 %v5732
    %5752 = vmatpush.bf16.msra.mxu0 %v5731
    %5753 = vmatpush.bf16.msra.mxu0 %v5730
    %5754 = vmatmul.bf16.gmra.mxu0 %v5371
    %v5755 = vpop.f32.mrf.mxu0
    %v5756 = vadd.f32 0.0, %v5755
    %v5757 = vpop.f32.mrf.mxu0
    %5758 = vdwg.mxu0
    %v5759 = vadd.f32 %v5681, %v5756
    %v5760 = vxor.u32 %v5759, 2147483648
    %v5761 = vmul.f32 %v5760, 1.442695
    %v5762 = vpow.pop %v5761
    %v5763 = vadd.f32 %v5762, 1.0
    %v5764 = vrcp.pop %v5763
    %v5765 = vmul.f32 %v5763, %v5764
    %v5766 = vsub.f32 1.0, %v5765
    %v5767 = vmul.f32 %v5764, %v5766
    %v5768 = vadd.f32 %v5764, %v5767
    %vm5769 = vweird.f32 %v5763
    %vm5770 = vweird.f32 %v5764
    %vm5771 = vmor %vm5769, %vm5770
    %v5772 = vsel %vm5771, %v5764, %v5768
    %v5773 = vand.u32 2147483647, %v5763
    %vm5774 = vcmp.eq.f32.partialorder %v5773, 8.507059e+37
    %v5775 = vand.u32 %v5763, 2147483648
    %v5776 = vor.u32 1.1754944e-38, %v5775
    %v5777 = vsel %vm5774, %v5776, %v5772
    %v5778 = vmul.f32 1.0, %v5777
    %v5779 = vld [vmem:[%s2121 + $0x10] sm:$0xff]
    %v5780 = vld [vmem:[#allocation12 + $0x8] sm:$0xf]
    %v5781 = vld [vmem:[#allocation12 + $0x14] sm:$0xf]
    %v5782 = vld [vmem:[#allocation12 + $0x20] sm:$0xf]
    %v5783 = vld [vmem:[#allocation12 + $0x2c] sm:$0xf]
    %v5784 = vld [vmem:[#allocation12 + $0x38] sm:$0xf]
    %v5785 = vld [vmem:[#allocation12 + $0x44] sm:$0xf]
    %v5786 = vld [vmem:[#allocation12 + $0x50] sm:$0xf]
    %v5787 = vld [vmem:[#allocation12 + $0x5c] sm:$0xf]
    %v5788 = vld [vmem:[#allocation12 + $0x68] sm:$0xf]
    %v5789 = vld [vmem:[#allocation12 + $0x74] sm:$0xf]
    %v5790 = vld [vmem:[#allocation12 + $0x80] sm:$0xf]
    %v5791 = vld [vmem:[#allocation12 + $0x8c] sm:$0xf]
    %v5792 = vld [vmem:[#allocation12 + $0x98] sm:$0xf]
    %v5793 = vld [vmem:[#allocation12 + $0xa4] sm:$0xf]
    %v5794 = vld [vmem:[#allocation12 + $0xb0] sm:$0xf]
    %v5795 = vld [vmem:[#allocation12 + $0xbc] sm:$0xf]
    %v5812 = vunpack.c.l.b16 %v5780
    %v5813 = vunpack.c.l.b16 %v5781
    %v5814 = vunpack.c.l.b16 %v5782
    %v5815 = vunpack.c.l.b16 %v5783
    %v5816 = vunpack.c.l.b16 %v5784
    %v5817 = vunpack.c.l.b16 %v5785
    %v5818 = vunpack.c.l.b16 %v5786
    %v5819 = vunpack.c.l.b16 %v5787
    %v5820 = vunpack.c.l.b16 %v5788
    %v5821 = vunpack.c.l.b16 %v5789
    %v5822 = vunpack.c.l.b16 %v5790
    %v5823 = vunpack.c.l.b16 %v5791
    %v5824 = vunpack.c.l.b16 %v5792
    %v5825 = vunpack.c.l.b16 %v5793
    %v5826 = vunpack.c.l.b16 %v5794
    %v5827 = vunpack.c.l.b16 %v5795
    %v5828 = vpack.c.b16 %v5813, %v5812
    %v5829 = vpack.c.b16 %v5815, %v5814
    %v5830 = vpack.c.b16 %v5817, %v5816
    %v5831 = vpack.c.b16 %v5819, %v5818
    %v5832 = vpack.c.b16 %v5821, %v5820
    %v5833 = vpack.c.b16 %v5823, %v5822
    %v5834 = vpack.c.b16 %v5825, %v5824
    %v5835 = vpack.c.b16 %v5827, %v5826
    %5844 = vmatpush.bf16.msra.mxu0 %v5835
    %5845 = vmatpush.bf16.msra.mxu0 %v5834
    %5846 = vmatpush.bf16.msra.mxu0 %v5833
    %5847 = vmatpush.bf16.msra.mxu0 %v5832
    %5848 = vmatpush.bf16.msra.mxu0 %v5831
    %5849 = vmatpush.bf16.msra.mxu0 %v5830
    %5850 = vmatpush.bf16.msra.mxu0 %v5829
    %5851 = vmatpush.bf16.msra.mxu0 %v5828
    %5852 = vmatmul.bf16.gmra.mxu0 %v5371
    %v5853 = vpop.f32.mrf.mxu0
    %v5854 = vadd.f32 %v4316, %v5853
    %v5855 = vpop.f32.mrf.mxu0
    %5856 = vdwg.mxu0
    %v5857 = vmul.f32 %v5680, %v5854
    %v5858 = vadd.f32 %v5779, %v5857
    %v5859 = vtanh.pop %v5858
    %v5860 = vsub.f32 1.0, %v5778
    %v5861 = vmul.f32 %v5860, %v5859
    %v5862 = vmul.f32 %v5778, %v5370
    %v5863 = vadd.f32 %v5861, %v5862
    %v5864 = vpack.c.bf16 %v5863, %v5863
    %v5865 = vld [vmem:[#allocation9] sm:$0xff]
    %v5866 = vld [vmem:[#allocation9 + $0x8] sm:$0xf]
    %v5867 = vld [vmem:[#allocation9 + $0xc] sm:$0xff]
    %v5868 = vld [vmem:[#allocation9 + $0x14] sm:$0xf]
    %v5869 = vld [vmem:[#allocation9 + $0x18] sm:$0xff]
    %v5870 = vld [vmem:[#allocation9 + $0x20] sm:$0xf]
    %v5871 = vld [vmem:[#allocation9 + $0x24] sm:$0xff]
    %v5872 = vld [vmem:[#allocation9 + $0x2c] sm:$0xf]
    %v5873 = vld [vmem:[#allocation9 + $0x30] sm:$0xff]
    %v5874 = vld [vmem:[#allocation9 + $0x38] sm:$0xf]
    %v5875 = vld [vmem:[#allocation9 + $0x3c] sm:$0xff]
    %v5876 = vld [vmem:[#allocation9 + $0x44] sm:$0xf]
    %v5877 = vld [vmem:[#allocation9 + $0x48] sm:$0xff]
    %v5878 = vld [vmem:[#allocation9 + $0x50] sm:$0xf]
    %v5879 = vld [vmem:[#allocation9 + $0x54] sm:$0xff]
    %v5880 = vld [vmem:[#allocation9 + $0x5c] sm:$0xf]
    %v5881 = vld [vmem:[#allocation9 + $0x60] sm:$0xff]
    %v5882 = vld [vmem:[#allocation9 + $0x68] sm:$0xf]
    %v5883 = vld [vmem:[#allocation9 + $0x6c] sm:$0xff]
    %v5884 = vld [vmem:[#allocation9 + $0x74] sm:$0xf]
    %v5885 = vld [vmem:[#allocation9 + $0x78] sm:$0xff]
    %v5886 = vld [vmem:[#allocation9 + $0x80] sm:$0xf]
    %v5887 = vld [vmem:[#allocation9 + $0x84] sm:$0xff]
    %v5888 = vld [vmem:[#allocation9 + $0x8c] sm:$0xf]
    %v5889 = vld [vmem:[#allocation9 + $0x90] sm:$0xff]
    %v5890 = vld [vmem:[#allocation9 + $0x98] sm:$0xf]
    %v5891 = vld [vmem:[#allocation9 + $0x9c] sm:$0xff]
    %v5892 = vld [vmem:[#allocation9 + $0xa4] sm:$0xf]
    %v5893 = vld [vmem:[#allocation9 + $0xa8] sm:$0xff]
    %v5894 = vld [vmem:[#allocation9 + $0xb0] sm:$0xf]
    %v5895 = vld [vmem:[#allocation9 + $0xb4] sm:$0xff]
    %v5896 = vld [vmem:[#allocation9 + $0xbc] sm:$0xf]
    %v5897 = vld [vmem:[%s4] sm:$0x7]
    %v5899 = vperm.slane %v5897, 0
    %v5900 = vperm.slane %v5897, 1
    %v5901 = vperm.slane %v5897, 2
    %v5937 = vunpack.c.l.b16 %v5865
    %v5938 = vunpack.c.h.b16 %v5865
    %v5939 = vunpack.c.l.b16 %v5866
    %v5940 = vunpack.c.l.b16 %v5867
    %v5941 = vunpack.c.h.b16 %v5867
    %v5942 = vunpack.c.l.b16 %v5868
    %v5943 = vunpack.c.l.b16 %v5869
    %v5944 = vunpack.c.h.b16 %v5869
    %v5945 = vunpack.c.l.b16 %v5870
    %v5946 = vunpack.c.l.b16 %v5871
    %v5947 = vunpack.c.h.b16 %v5871
    %v5948 = vunpack.c.l.b16 %v5872
    %v5949 = vunpack.c.l.b16 %v5873
    %v5950 = vunpack.c.h.b16 %v5873
    %v5951 = vunpack.c.l.b16 %v5874
    %v5952 = vunpack.c.l.b16 %v5875
    %v5953 = vunpack.c.h.b16 %v5875
    %v5954 = vunpack.c.l.b16 %v5876
    %v5955 = vunpack.c.l.b16 %v5877
    %v5956 = vunpack.c.h.b16 %v5877
    %v5957 = vunpack.c.l.b16 %v5878
    %v5958 = vunpack.c.l.b16 %v5879
    %v5959 = vunpack.c.h.b16 %v5879
    %v5960 = vunpack.c.l.b16 %v5880
    %v5961 = vunpack.c.l.b16 %v5881
    %v5962 = vunpack.c.h.b16 %v5881
    %v5963 = vunpack.c.l.b16 %v5882
    %v5964 = vunpack.c.l.b16 %v5883
    %v5965 = vunpack.c.h.b16 %v5883
    %v5966 = vunpack.c.l.b16 %v5884
    %v5967 = vunpack.c.l.b16 %v5885
    %v5968 = vunpack.c.h.b16 %v5885
    %v5969 = vunpack.c.l.b16 %v5886
    %v5970 = vunpack.c.l.b16 %v5887
    %v5971 = vunpack.c.h.b16 %v5887
    %v5972 = vunpack.c.l.b16 %v5888
    %v5973 = vunpack.c.l.b16 %v5889
    %v5974 = vunpack.c.h.b16 %v5889
    %v5975 = vunpack.c.l.b16 %v5890
    %v5976 = vunpack.c.l.b16 %v5891
    %v5977 = vunpack.c.h.b16 %v5891
    %v5978 = vunpack.c.l.b16 %v5892
    %v5979 = vunpack.c.l.b16 %v5893
    %v5980 = vunpack.c.h.b16 %v5893
    %v5981 = vunpack.c.l.b16 %v5894
    %v5982 = vunpack.c.l.b16 %v5895
    %v5983 = vunpack.c.h.b16 %v5895
    %v5984 = vunpack.c.l.b16 %v5896
    %v5985 = vpack.c.b16 %v5940, %v5937
    %v5986 = vpack.c.b16 %v5941, %v5938
    %v5987 = vpack.c.b16 %v5942, %v5939
    %v5988 = vpack.c.b16 %v5946, %v5943
    %v5989 = vpack.c.b16 %v5947, %v5944
    %v5990 = vpack.c.b16 %v5948, %v5945
    %v5991 = vpack.c.b16 %v5952, %v5949
    %v5992 = vpack.c.b16 %v5953, %v5950
    %v5993 = vpack.c.b16 %v5954, %v5951
    %v5994 = vpack.c.b16 %v5958, %v5955
    %v5995 = vpack.c.b16 %v5959, %v5956
    %v5996 = vpack.c.b16 %v5960, %v5957
    %v5997 = vpack.c.b16 %v5964, %v5961
    %v5998 = vpack.c.b16 %v5965, %v5962
    %v5999 = vpack.c.b16 %v5966, %v5963
    %v6000 = vpack.c.b16 %v5970, %v5967
    %v6001 = vpack.c.b16 %v5971, %v5968
    %v6002 = vpack.c.b16 %v5972, %v5969
    %v6003 = vpack.c.b16 %v5976, %v5973
    %v6004 = vpack.c.b16 %v5977, %v5974
    %v6005 = vpack.c.b16 %v5978, %v5975
    %v6006 = vpack.c.b16 %v5982, %v5979
    %v6007 = vpack.c.b16 %v5983, %v5980
    %v6008 = vpack.c.b16 %v5984, %v5981
    %6033 = vmatpush.bf16.msra.mxu0 %v6006
    %6034 = vmatpush.bf16.msra.mxu0 %v6003
    %6035 = vmatpush.bf16.msra.mxu0 %v6000
    %6036 = vmatpush.bf16.msra.mxu0 %v5997
    %6037 = vmatpush.bf16.msra.mxu0 %v5994
    %6038 = vmatpush.bf16.msra.mxu0 %v5991
    %6039 = vmatpush.bf16.msra.mxu0 %v5988
    %6040 = vmatpush.bf16.msra.mxu0 %v5985
    %6041 = vmatmul.bf16.gmra.mxu0 %v5864
    %v6042 = vpop.f32.mrf.mxu0
    %v6043 = vadd.f32 %v5899, %v6042
    %v6044 = vpop.f32.mrf.mxu0
    %6045 = vdwg.mxu0
    %6046 = vmatpush.bf16.msra.mxu0 %v6007
    %6047 = vmatpush.bf16.msra.mxu0 %v6004
    %6048 = vmatpush.bf16.msra.mxu0 %v6001
    %6049 = vmatpush.bf16.msra.mxu0 %v5998
    %6050 = vmatpush.bf16.msra.mxu0 %v5995
    %6051 = vmatpush.bf16.msra.mxu0 %v5992
    %6052 = vmatpush.bf16.msra.mxu0 %v5989
    %6053 = vmatpush.bf16.msra.mxu0 %v5986
    %6054 = vmatmul.bf16.gmra.mxu0 %v5864
    %v6055 = vpop.f32.mrf.mxu0
    %v6056 = vadd.f32 %v5900, %v6055
    %v6057 = vpop.f32.mrf.mxu0
    %6058 = vdwg.mxu0
    %6059 = vmatpush.bf16.msra.mxu0 %v6008
    %6060 = vmatpush.bf16.msra.mxu0 %v6005
    %6061 = vmatpush.bf16.msra.mxu0 %v6002
    %6062 = vmatpush.bf16.msra.mxu0 %v5999
    %6063 = vmatpush.bf16.msra.mxu0 %v5996
    %6064 = vmatpush.bf16.msra.mxu0 %v5993
    %6065 = vmatpush.bf16.msra.mxu0 %v5990
    %6066 = vmatpush.bf16.msra.mxu0 %v5987
    %6067 = vmatmul.bf16.gmra.mxu0 %v5864
    %v6068 = vpop.f32.mrf.mxu0
    %v6069 = vadd.f32 %v5901, %v6068
    %v6070 = vpop.f32.mrf.mxu0
    %6071 = vdwg.mxu0
    %s6072 = scalar_lea.vmem [#allocation3], 72
    %6073 = vst [vmem:[%s6072] sm:$0xff] %v6043
    %6074 = vst [vmem:[%s6072 + $0x8] sm:$0xff] %v6056
    %6075 = vst [vmem:[%s6072 + $0x10] sm:$0xff] %v6069
    %v6076 = vld [vmem:[%s2615] sm:$0xff]
    %v6077 = vld [vmem:[#allocation12] sm:$0xf]
    %v6078 = vld [vmem:[#allocation12 + $0xc] sm:$0xf]
    %v6079 = vld [vmem:[#allocation12 + $0x18] sm:$0xf]
    %v6080 = vld [vmem:[#allocation12 + $0x24] sm:$0xf]
    %v6081 = vld [vmem:[#allocation12 + $0x30] sm:$0xf]
    %v6082 = vld [vmem:[#allocation12 + $0x3c] sm:$0xf]
    %v6083 = vld [vmem:[#allocation12 + $0x48] sm:$0xf]
    %v6084 = vld [vmem:[#allocation12 + $0x54] sm:$0xf]
    %v6085 = vld [vmem:[#allocation12 + $0x60] sm:$0xf]
    %v6086 = vld [vmem:[#allocation12 + $0x6c] sm:$0xf]
    %v6087 = vld [vmem:[#allocation12 + $0x78] sm:$0xf]
    %v6088 = vld [vmem:[#allocation12 + $0x84] sm:$0xf]
    %v6089 = vld [vmem:[#allocation12 + $0x90] sm:$0xf]
    %v6090 = vld [vmem:[#allocation12 + $0x9c] sm:$0xf]
    %v6091 = vld [vmem:[#allocation12 + $0xa8] sm:$0xf]
    %v6092 = vld [vmem:[#allocation12 + $0xb4] sm:$0xf]
    %v6109 = vunpack.c.l.b16 %v6077
    %v6110 = vunpack.c.l.b16 %v6078
    %v6111 = vunpack.c.l.b16 %v6079
    %v6112 = vunpack.c.l.b16 %v6080
    %v6113 = vunpack.c.l.b16 %v6081
    %v6114 = vunpack.c.l.b16 %v6082
    %v6115 = vunpack.c.l.b16 %v6083
    %v6116 = vunpack.c.l.b16 %v6084
    %v6117 = vunpack.c.l.b16 %v6085
    %v6118 = vunpack.c.l.b16 %v6086
    %v6119 = vunpack.c.l.b16 %v6087
    %v6120 = vunpack.c.l.b16 %v6088
    %v6121 = vunpack.c.l.b16 %v6089
    %v6122 = vunpack.c.l.b16 %v6090
    %v6123 = vunpack.c.l.b16 %v6091
    %v6124 = vunpack.c.l.b16 %v6092
    %v6125 = vpack.c.b16 %v6110, %v6109
    %v6126 = vpack.c.b16 %v6112, %v6111
    %v6127 = vpack.c.b16 %v6114, %v6113
    %v6128 = vpack.c.b16 %v6116, %v6115
    %v6129 = vpack.c.b16 %v6118, %v6117
    %v6130 = vpack.c.b16 %v6120, %v6119
    %v6131 = vpack.c.b16 %v6122, %v6121
    %v6132 = vpack.c.b16 %v6124, %v6123
    %6141 = vmatpush.bf16.msra.mxu0 %v6132
    %6142 = vmatpush.bf16.msra.mxu0 %v6131
    %6143 = vmatpush.bf16.msra.mxu0 %v6130
    %6144 = vmatpush.bf16.msra.mxu0 %v6129
    %6145 = vmatpush.bf16.msra.mxu0 %v6128
    %6146 = vmatpush.bf16.msra.mxu0 %v6127
    %6147 = vmatpush.bf16.msra.mxu0 %v6126
    %6148 = vmatpush.bf16.msra.mxu0 %v6125
    %6149 = vmatmul.bf16.gmra.mxu0 %v5864
    %v6150 = vpop.f32.mrf.mxu0
    %v6151 = vadd.f32 0.0, %v6150
    %v6152 = vpop.f32.mrf.mxu0
    %6153 = vdwg.mxu0
    %v6154 = vadd.f32 %v6076, %v6151
    %v6155 = vxor.u32 %v6154, 2147483648
    %v6156 = vmul.f32 %v6155, 1.442695
    %v6157 = vpow.pop %v6156
    %v6158 = vadd.f32 %v6157, 1.0
    %v6159 = vrcp.pop %v6158
    %v6160 = vmul.f32 %v6158, %v6159
    %v6161 = vsub.f32 1.0, %v6160
    %v6162 = vmul.f32 %v6159, %v6161
    %v6163 = vadd.f32 %v6159, %v6162
    %vm6164 = vweird.f32 %v6158
    %vm6165 = vweird.f32 %v6159
    %vm6166 = vmor %vm6164, %vm6165
    %v6167 = vsel %vm6166, %v6159, %v6163
    %v6168 = vand.u32 2147483647, %v6158
    %vm6169 = vcmp.eq.f32.partialorder %v6168, 8.507059e+37
    %v6170 = vand.u32 %v6158, 2147483648
    %v6171 = vor.u32 1.1754944e-38, %v6170
    %v6172 = vsel %vm6169, %v6171, %v6167
    %v6173 = vmul.f32 1.0, %v6172
    %v6174 = vld [vmem:[%s2615 + $0x8] sm:$0xff]
    %v6175 = vld [vmem:[#allocation12 + $0x4] sm:$0xf]
    %v6176 = vld [vmem:[#allocation12 + $0x10] sm:$0xf]
    %v6177 = vld [vmem:[#allocation12 + $0x1c] sm:$0xf]
    %v6178 = vld [vmem:[#allocation12 + $0x28] sm:$0xf]
    %v6179 = vld [vmem:[#allocation12 + $0x34] sm:$0xf]
    %v6180 = vld [vmem:[#allocation12 + $0x40] sm:$0xf]
    %v6181 = vld [vmem:[#allocation12 + $0x4c] sm:$0xf]
    %v6182 = vld [vmem:[#allocation12 + $0x58] sm:$0xf]
    %v6183 = vld [vmem:[#allocation12 + $0x64] sm:$0xf]
    %v6184 = vld [vmem:[#allocation12 + $0x70] sm:$0xf]
    %v6185 = vld [vmem:[#allocation12 + $0x7c] sm:$0xf]
    %v6186 = vld [vmem:[#allocation12 + $0x88] sm:$0xf]
    %v6187 = vld [vmem:[#allocation12 + $0x94] sm:$0xf]
    %v6188 = vld [vmem:[#allocation12 + $0xa0] sm:$0xf]
    %v6189 = vld [vmem:[#allocation12 + $0xac] sm:$0xf]
    %v6190 = vld [vmem:[#allocation12 + $0xb8] sm:$0xf]
    %v6207 = vunpack.c.l.b16 %v6175
    %v6208 = vunpack.c.l.b16 %v6176
    %v6209 = vunpack.c.l.b16 %v6177
    %v6210 = vunpack.c.l.b16 %v6178
    %v6211 = vunpack.c.l.b16 %v6179
    %v6212 = vunpack.c.l.b16 %v6180
    %v6213 = vunpack.c.l.b16 %v6181
    %v6214 = vunpack.c.l.b16 %v6182
    %v6215 = vunpack.c.l.b16 %v6183
    %v6216 = vunpack.c.l.b16 %v6184
    %v6217 = vunpack.c.l.b16 %v6185
    %v6218 = vunpack.c.l.b16 %v6186
    %v6219 = vunpack.c.l.b16 %v6187
    %v6220 = vunpack.c.l.b16 %v6188
    %v6221 = vunpack.c.l.b16 %v6189
    %v6222 = vunpack.c.l.b16 %v6190
    %v6223 = vpack.c.b16 %v6208, %v6207
    %v6224 = vpack.c.b16 %v6210, %v6209
    %v6225 = vpack.c.b16 %v6212, %v6211
    %v6226 = vpack.c.b16 %v6214, %v6213
    %v6227 = vpack.c.b16 %v6216, %v6215
    %v6228 = vpack.c.b16 %v6218, %v6217
    %v6229 = vpack.c.b16 %v6220, %v6219
    %v6230 = vpack.c.b16 %v6222, %v6221
    %6239 = vmatpush.bf16.msra.mxu0 %v6230
    %6240 = vmatpush.bf16.msra.mxu0 %v6229
    %6241 = vmatpush.bf16.msra.mxu0 %v6228
    %6242 = vmatpush.bf16.msra.mxu0 %v6227
    %6243 = vmatpush.bf16.msra.mxu0 %v6226
    %6244 = vmatpush.bf16.msra.mxu0 %v6225
    %6245 = vmatpush.bf16.msra.mxu0 %v6224
    %6246 = vmatpush.bf16.msra.mxu0 %v6223
    %6247 = vmatmul.bf16.gmra.mxu0 %v5864
    %v6248 = vpop.f32.mrf.mxu0
    %v6249 = vadd.f32 0.0, %v6248
    %v6250 = vpop.f32.mrf.mxu0
    %6251 = vdwg.mxu0
    %v6252 = vadd.f32 %v6174, %v6249
    %v6253 = vxor.u32 %v6252, 2147483648
    %v6254 = vmul.f32 %v6253, 1.442695
    %v6255 = vpow.pop %v6254
    %v6256 = vadd.f32 %v6255, 1.0
    %v6257 = vrcp.pop %v6256
    %v6258 = vmul.f32 %v6256, %v6257
    %v6259 = vsub.f32 1.0, %v6258
    %v6260 = vmul.f32 %v6257, %v6259
    %v6261 = vadd.f32 %v6257, %v6260
    %vm6262 = vweird.f32 %v6256
    %vm6263 = vweird.f32 %v6257
    %vm6264 = vmor %vm6262, %vm6263
    %v6265 = vsel %vm6264, %v6257, %v6261
    %v6266 = vand.u32 2147483647, %v6256
    %vm6267 = vcmp.eq.f32.partialorder %v6266, 8.507059e+37
    %v6268 = vand.u32 %v6256, 2147483648
    %v6269 = vor.u32 1.1754944e-38, %v6268
    %v6270 = vsel %vm6267, %v6269, %v6265
    %v6271 = vmul.f32 1.0, %v6270
    %v6272 = vld [vmem:[%s2615 + $0x10] sm:$0xff]
    %v6273 = vld [vmem:[#allocation12 + $0x8] sm:$0xf]
    %v6274 = vld [vmem:[#allocation12 + $0x14] sm:$0xf]
    %v6275 = vld [vmem:[#allocation12 + $0x20] sm:$0xf]
    %v6276 = vld [vmem:[#allocation12 + $0x2c] sm:$0xf]
    %v6277 = vld [vmem:[#allocation12 + $0x38] sm:$0xf]
    %v6278 = vld [vmem:[#allocation12 + $0x44] sm:$0xf]
    %v6279 = vld [vmem:[#allocation12 + $0x50] sm:$0xf]
    %v6280 = vld [vmem:[#allocation12 + $0x5c] sm:$0xf]
    %v6281 = vld [vmem:[#allocation12 + $0x68] sm:$0xf]
    %v6282 = vld [vmem:[#allocation12 + $0x74] sm:$0xf]
    %v6283 = vld [vmem:[#allocation12 + $0x80] sm:$0xf]
    %v6284 = vld [vmem:[#allocation12 + $0x8c] sm:$0xf]
    %v6285 = vld [vmem:[#allocation12 + $0x98] sm:$0xf]
    %v6286 = vld [vmem:[#allocation12 + $0xa4] sm:$0xf]
    %v6287 = vld [vmem:[#allocation12 + $0xb0] sm:$0xf]
    %v6288 = vld [vmem:[#allocation12 + $0xbc] sm:$0xf]
    %v6305 = vunpack.c.l.b16 %v6273
    %v6306 = vunpack.c.l.b16 %v6274
    %v6307 = vunpack.c.l.b16 %v6275
    %v6308 = vunpack.c.l.b16 %v6276
    %v6309 = vunpack.c.l.b16 %v6277
    %v6310 = vunpack.c.l.b16 %v6278
    %v6311 = vunpack.c.l.b16 %v6279
    %v6312 = vunpack.c.l.b16 %v6280
    %v6313 = vunpack.c.l.b16 %v6281
    %v6314 = vunpack.c.l.b16 %v6282
    %v6315 = vunpack.c.l.b16 %v6283
    %v6316 = vunpack.c.l.b16 %v6284
    %v6317 = vunpack.c.l.b16 %v6285
    %v6318 = vunpack.c.l.b16 %v6286
    %v6319 = vunpack.c.l.b16 %v6287
    %v6320 = vunpack.c.l.b16 %v6288
    %v6321 = vpack.c.b16 %v6306, %v6305
    %v6322 = vpack.c.b16 %v6308, %v6307
    %v6323 = vpack.c.b16 %v6310, %v6309
    %v6324 = vpack.c.b16 %v6312, %v6311
    %v6325 = vpack.c.b16 %v6314, %v6313
    %v6326 = vpack.c.b16 %v6316, %v6315
    %v6327 = vpack.c.b16 %v6318, %v6317
    %v6328 = vpack.c.b16 %v6320, %v6319
    %6337 = vmatpush.bf16.msra.mxu0 %v6328
    %6338 = vmatpush.bf16.msra.mxu0 %v6327
    %6339 = vmatpush.bf16.msra.mxu0 %v6326
    %6340 = vmatpush.bf16.msra.mxu0 %v6325
    %6341 = vmatpush.bf16.msra.mxu0 %v6324
    %6342 = vmatpush.bf16.msra.mxu0 %v6323
    %6343 = vmatpush.bf16.msra.mxu0 %v6322
    %6344 = vmatpush.bf16.msra.mxu0 %v6321
    %6345 = vmatmul.bf16.gmra.mxu0 %v5864
    %v6346 = vpop.f32.mrf.mxu0
    %v6347 = vadd.f32 %v4316, %v6346
    %v6348 = vpop.f32.mrf.mxu0
    %6349 = vdwg.mxu0
    %v6350 = vmul.f32 %v6173, %v6347
    %v6351 = vadd.f32 %v6272, %v6350
    %v6352 = vtanh.pop %v6351
    %v6353 = vsub.f32 1.0, %v6271
    %v6354 = vmul.f32 %v6353, %v6352
    %v6355 = vmul.f32 %v6271, %v5863
    %v6356 = vadd.f32 %v6354, %v6355
    %v6357 = vpack.c.bf16 %v6356, %v6356
    %v6358 = vld [vmem:[#allocation9] sm:$0xff]
    %v6359 = vld [vmem:[#allocation9 + $0x8] sm:$0xf]
    %v6360 = vld [vmem:[#allocation9 + $0xc] sm:$0xff]
    %v6361 = vld [vmem:[#allocation9 + $0x14] sm:$0xf]
    %v6362 = vld [vmem:[#allocation9 + $0x18] sm:$0xff]
    %v6363 = vld [vmem:[#allocation9 + $0x20] sm:$0xf]
    %v6364 = vld [vmem:[#allocation9 + $0x24] sm:$0xff]
    %v6365 = vld [vmem:[#allocation9 + $0x2c] sm:$0xf]
    %v6366 = vld [vmem:[#allocation9 + $0x30] sm:$0xff]
    %v6367 = vld [vmem:[#allocation9 + $0x38] sm:$0xf]
    %v6368 = vld [vmem:[#allocation9 + $0x3c] sm:$0xff]
    %v6369 = vld [vmem:[#allocation9 + $0x44] sm:$0xf]
    %v6370 = vld [vmem:[#allocation9 + $0x48] sm:$0xff]
    %v6371 = vld [vmem:[#allocation9 + $0x50] sm:$0xf]
    %v6372 = vld [vmem:[#allocation9 + $0x54] sm:$0xff]
    %v6373 = vld [vmem:[#allocation9 + $0x5c] sm:$0xf]
    %v6374 = vld [vmem:[#allocation9 + $0x60] sm:$0xff]
    %v6375 = vld [vmem:[#allocation9 + $0x68] sm:$0xf]
    %v6376 = vld [vmem:[#allocation9 + $0x6c] sm:$0xff]
    %v6377 = vld [vmem:[#allocation9 + $0x74] sm:$0xf]
    %v6378 = vld [vmem:[#allocation9 + $0x78] sm:$0xff]
    %v6379 = vld [vmem:[#allocation9 + $0x80] sm:$0xf]
    %v6380 = vld [vmem:[#allocation9 + $0x84] sm:$0xff]
    %v6381 = vld [vmem:[#allocation9 + $0x8c] sm:$0xf]
    %v6382 = vld [vmem:[#allocation9 + $0x90] sm:$0xff]
    %v6383 = vld [vmem:[#allocation9 + $0x98] sm:$0xf]
    %v6384 = vld [vmem:[#allocation9 + $0x9c] sm:$0xff]
    %v6385 = vld [vmem:[#allocation9 + $0xa4] sm:$0xf]
    %v6386 = vld [vmem:[#allocation9 + $0xa8] sm:$0xff]
    %v6387 = vld [vmem:[#allocation9 + $0xb0] sm:$0xf]
    %v6388 = vld [vmem:[#allocation9 + $0xb4] sm:$0xff]
    %v6389 = vld [vmem:[#allocation9 + $0xbc] sm:$0xf]
    %v6390 = vld [vmem:[%s4] sm:$0x7]
    %v6392 = vperm.slane %v6390, 0
    %v6393 = vperm.slane %v6390, 1
    %v6394 = vperm.slane %v6390, 2
    %v6430 = vunpack.c.l.b16 %v6358
    %v6431 = vunpack.c.h.b16 %v6358
    %v6432 = vunpack.c.l.b16 %v6359
    %v6433 = vunpack.c.l.b16 %v6360
    %v6434 = vunpack.c.h.b16 %v6360
    %v6435 = vunpack.c.l.b16 %v6361
    %v6436 = vunpack.c.l.b16 %v6362
    %v6437 = vunpack.c.h.b16 %v6362
    %v6438 = vunpack.c.l.b16 %v6363
    %v6439 = vunpack.c.l.b16 %v6364
    %v6440 = vunpack.c.h.b16 %v6364
    %v6441 = vunpack.c.l.b16 %v6365
    %v6442 = vunpack.c.l.b16 %v6366
    %v6443 = vunpack.c.h.b16 %v6366
    %v6444 = vunpack.c.l.b16 %v6367
    %v6445 = vunpack.c.l.b16 %v6368
    %v6446 = vunpack.c.h.b16 %v6368
    %v6447 = vunpack.c.l.b16 %v6369
    %v6448 = vunpack.c.l.b16 %v6370
    %v6449 = vunpack.c.h.b16 %v6370
    %v6450 = vunpack.c.l.b16 %v6371
    %v6451 = vunpack.c.l.b16 %v6372
    %v6452 = vunpack.c.h.b16 %v6372
    %v6453 = vunpack.c.l.b16 %v6373
    %v6454 = vunpack.c.l.b16 %v6374
    %v6455 = vunpack.c.h.b16 %v6374
    %v6456 = vunpack.c.l.b16 %v6375
    %v6457 = vunpack.c.l.b16 %v6376
    %v6458 = vunpack.c.h.b16 %v6376
    %v6459 = vunpack.c.l.b16 %v6377
    %v6460 = vunpack.c.l.b16 %v6378
    %v6461 = vunpack.c.h.b16 %v6378
    %v6462 = vunpack.c.l.b16 %v6379
    %v6463 = vunpack.c.l.b16 %v6380
    %v6464 = vunpack.c.h.b16 %v6380
    %v6465 = vunpack.c.l.b16 %v6381
    %v6466 = vunpack.c.l.b16 %v6382
    %v6467 = vunpack.c.h.b16 %v6382
    %v6468 = vunpack.c.l.b16 %v6383
    %v6469 = vunpack.c.l.b16 %v6384
    %v6470 = vunpack.c.h.b16 %v6384
    %v6471 = vunpack.c.l.b16 %v6385
    %v6472 = vunpack.c.l.b16 %v6386
    %v6473 = vunpack.c.h.b16 %v6386
    %v6474 = vunpack.c.l.b16 %v6387
    %v6475 = vunpack.c.l.b16 %v6388
    %v6476 = vunpack.c.h.b16 %v6388
    %v6477 = vunpack.c.l.b16 %v6389
    %v6478 = vpack.c.b16 %v6433, %v6430
    %v6479 = vpack.c.b16 %v6434, %v6431
    %v6480 = vpack.c.b16 %v6435, %v6432
    %v6481 = vpack.c.b16 %v6439, %v6436
    %v6482 = vpack.c.b16 %v6440, %v6437
    %v6483 = vpack.c.b16 %v6441, %v6438
    %v6484 = vpack.c.b16 %v6445, %v6442
    %v6485 = vpack.c.b16 %v6446, %v6443
    %v6486 = vpack.c.b16 %v6447, %v6444
    %v6487 = vpack.c.b16 %v6451, %v6448
    %v6488 = vpack.c.b16 %v6452, %v6449
    %v6489 = vpack.c.b16 %v6453, %v6450
    %v6490 = vpack.c.b16 %v6457, %v6454
    %v6491 = vpack.c.b16 %v6458, %v6455
    %v6492 = vpack.c.b16 %v6459, %v6456
    %v6493 = vpack.c.b16 %v6463, %v6460
    %v6494 = vpack.c.b16 %v6464, %v6461
    %v6495 = vpack.c.b16 %v6465, %v6462
    %v6496 = vpack.c.b16 %v6469, %v6466
    %v6497 = vpack.c.b16 %v6470, %v6467
    %v6498 = vpack.c.b16 %v6471, %v6468
    %v6499 = vpack.c.b16 %v6475, %v6472
    %v6500 = vpack.c.b16 %v6476, %v6473
    %v6501 = vpack.c.b16 %v6477, %v6474
    %6526 = vmatpush.bf16.msra.mxu0 %v6499
    %6527 = vmatpush.bf16.msra.mxu0 %v6496
    %6528 = vmatpush.bf16.msra.mxu0 %v6493
    %6529 = vmatpush.bf16.msra.mxu0 %v6490
    %6530 = vmatpush.bf16.msra.mxu0 %v6487
    %6531 = vmatpush.bf16.msra.mxu0 %v6484
    %6532 = vmatpush.bf16.msra.mxu0 %v6481
    %6533 = vmatpush.bf16.msra.mxu0 %v6478
    %6534 = vmatmul.bf16.gmra.mxu0 %v6357
    %v6535 = vpop.f32.mrf.mxu0
    %v6536 = vadd.f32 %v6392, %v6535
    %v6537 = vpop.f32.mrf.mxu0
    %6538 = vdwg.mxu0
    %6539 = vmatpush.bf16.msra.mxu0 %v6500
    %6540 = vmatpush.bf16.msra.mxu0 %v6497
    %6541 = vmatpush.bf16.msra.mxu0 %v6494
    %6542 = vmatpush.bf16.msra.mxu0 %v6491
    %6543 = vmatpush.bf16.msra.mxu0 %v6488
    %6544 = vmatpush.bf16.msra.mxu0 %v6485
    %6545 = vmatpush.bf16.msra.mxu0 %v6482
    %6546 = vmatpush.bf16.msra.mxu0 %v6479
    %6547 = vmatmul.bf16.gmra.mxu0 %v6357
    %v6548 = vpop.f32.mrf.mxu0
    %v6549 = vadd.f32 %v6393, %v6548
    %v6550 = vpop.f32.mrf.mxu0
    %6551 = vdwg.mxu0
    %6552 = vmatpush.bf16.msra.mxu0 %v6501
    %6553 = vmatpush.bf16.msra.mxu0 %v6498
    %6554 = vmatpush.bf16.msra.mxu0 %v6495
    %6555 = vmatpush.bf16.msra.mxu0 %v6492
    %6556 = vmatpush.bf16.msra.mxu0 %v6489
    %6557 = vmatpush.bf16.msra.mxu0 %v6486
    %6558 = vmatpush.bf16.msra.mxu0 %v6483
    %6559 = vmatpush.bf16.msra.mxu0 %v6480
    %6560 = vmatmul.bf16.gmra.mxu0 %v6357
    %v6561 = vpop.f32.mrf.mxu0
    %v6562 = vadd.f32 %v6394, %v6561
    %v6563 = vpop.f32.mrf.mxu0
    %6564 = vdwg.mxu0
    %s6565 = scalar_lea.vmem [#allocation3], 96
    %6566 = vst [vmem:[%s6565] sm:$0xff] %v6536
    %6567 = vst [vmem:[%s6565 + $0x8] sm:$0xff] %v6549
    %6568 = vst [vmem:[%s6565 + $0x10] sm:$0xff] %v6562
    %v6569 = vld [vmem:[%s3109] sm:$0xff]
    %v6570 = vld [vmem:[#allocation12] sm:$0xf]
    %v6571 = vld [vmem:[#allocation12 + $0xc] sm:$0xf]
    %v6572 = vld [vmem:[#allocation12 + $0x18] sm:$0xf]
    %v6573 = vld [vmem:[#allocation12 + $0x24] sm:$0xf]
    %v6574 = vld [vmem:[#allocation12 + $0x30] sm:$0xf]
    %v6575 = vld [vmem:[#allocation12 + $0x3c] sm:$0xf]
    %v6576 = vld [vmem:[#allocation12 + $0x48] sm:$0xf]
    %v6577 = vld [vmem:[#allocation12 + $0x54] sm:$0xf]
    %v6578 = vld [vmem:[#allocation12 + $0x60] sm:$0xf]
    %v6579 = vld [vmem:[#allocation12 + $0x6c] sm:$0xf]
    %v6580 = vld [vmem:[#allocation12 + $0x78] sm:$0xf]
    %v6581 = vld [vmem:[#allocation12 + $0x84] sm:$0xf]
    %v6582 = vld [vmem:[#allocation12 + $0x90] sm:$0xf]
    %v6583 = vld [vmem:[#allocation12 + $0x9c] sm:$0xf]
    %v6584 = vld [vmem:[#allocation12 + $0xa8] sm:$0xf]
    %v6585 = vld [vmem:[#allocation12 + $0xb4] sm:$0xf]
    %v6602 = vunpack.c.l.b16 %v6570
    %v6603 = vunpack.c.l.b16 %v6571
    %v6604 = vunpack.c.l.b16 %v6572
    %v6605 = vunpack.c.l.b16 %v6573
    %v6606 = vunpack.c.l.b16 %v6574
    %v6607 = vunpack.c.l.b16 %v6575
    %v6608 = vunpack.c.l.b16 %v6576
    %v6609 = vunpack.c.l.b16 %v6577
    %v6610 = vunpack.c.l.b16 %v6578
    %v6611 = vunpack.c.l.b16 %v6579
    %v6612 = vunpack.c.l.b16 %v6580
    %v6613 = vunpack.c.l.b16 %v6581
    %v6614 = vunpack.c.l.b16 %v6582
    %v6615 = vunpack.c.l.b16 %v6583
    %v6616 = vunpack.c.l.b16 %v6584
    %v6617 = vunpack.c.l.b16 %v6585
    %v6618 = vpack.c.b16 %v6603, %v6602
    %v6619 = vpack.c.b16 %v6605, %v6604
    %v6620 = vpack.c.b16 %v6607, %v6606
    %v6621 = vpack.c.b16 %v6609, %v6608
    %v6622 = vpack.c.b16 %v6611, %v6610
    %v6623 = vpack.c.b16 %v6613, %v6612
    %v6624 = vpack.c.b16 %v6615, %v6614
    %v6625 = vpack.c.b16 %v6617, %v6616
    %6634 = vmatpush.bf16.msra.mxu0 %v6625
    %6635 = vmatpush.bf16.msra.mxu0 %v6624
    %6636 = vmatpush.bf16.msra.mxu0 %v6623
    %6637 = vmatpush.bf16.msra.mxu0 %v6622
    %6638 = vmatpush.bf16.msra.mxu0 %v6621
    %6639 = vmatpush.bf16.msra.mxu0 %v6620
    %6640 = vmatpush.bf16.msra.mxu0 %v6619
    %6641 = vmatpush.bf16.msra.mxu0 %v6618
    %6642 = vmatmul.bf16.gmra.mxu0 %v6357
    %v6643 = vpop.f32.mrf.mxu0
    %v6644 = vadd.f32 0.0, %v6643
    %v6645 = vpop.f32.mrf.mxu0
    %6646 = vdwg.mxu0
    %v6647 = vadd.f32 %v6569, %v6644
    %v6648 = vxor.u32 %v6647, 2147483648
    %v6649 = vmul.f32 %v6648, 1.442695
    %v6650 = vpow.pop %v6649
    %v6651 = vadd.f32 %v6650, 1.0
    %v6652 = vrcp.pop %v6651
    %v6653 = vmul.f32 %v6651, %v6652
    %v6654 = vsub.f32 1.0, %v6653
    %v6655 = vmul.f32 %v6652, %v6654
    %v6656 = vadd.f32 %v6652, %v6655
    %vm6657 = vweird.f32 %v6651
    %vm6658 = vweird.f32 %v6652
    %vm6659 = vmor %vm6657, %vm6658
    %v6660 = vsel %vm6659, %v6652, %v6656
    %v6661 = vand.u32 2147483647, %v6651
    %vm6662 = vcmp.eq.f32.partialorder %v6661, 8.507059e+37
    %v6663 = vand.u32 %v6651, 2147483648
    %v6664 = vor.u32 1.1754944e-38, %v6663
    %v6665 = vsel %vm6662, %v6664, %v6660
    %v6666 = vmul.f32 1.0, %v6665
    %v6667 = vld [vmem:[%s3109 + $0x8] sm:$0xff]
    %v6668 = vld [vmem:[#allocation12 + $0x4] sm:$0xf]
    %v6669 = vld [vmem:[#allocation12 + $0x10] sm:$0xf]
    %v6670 = vld [vmem:[#allocation12 + $0x1c] sm:$0xf]
    %v6671 = vld [vmem:[#allocation12 + $0x28] sm:$0xf]
    %v6672 = vld [vmem:[#allocation12 + $0x34] sm:$0xf]
    %v6673 = vld [vmem:[#allocation12 + $0x40] sm:$0xf]
    %v6674 = vld [vmem:[#allocation12 + $0x4c] sm:$0xf]
    %v6675 = vld [vmem:[#allocation12 + $0x58] sm:$0xf]
    %v6676 = vld [vmem:[#allocation12 + $0x64] sm:$0xf]
    %v6677 = vld [vmem:[#allocation12 + $0x70] sm:$0xf]
    %v6678 = vld [vmem:[#allocation12 + $0x7c] sm:$0xf]
    %v6679 = vld [vmem:[#allocation12 + $0x88] sm:$0xf]
    %v6680 = vld [vmem:[#allocation12 + $0x94] sm:$0xf]
    %v6681 = vld [vmem:[#allocation12 + $0xa0] sm:$0xf]
    %v6682 = vld [vmem:[#allocation12 + $0xac] sm:$0xf]
    %v6683 = vld [vmem:[#allocation12 + $0xb8] sm:$0xf]
    %v6700 = vunpack.c.l.b16 %v6668
    %v6701 = vunpack.c.l.b16 %v6669
    %v6702 = vunpack.c.l.b16 %v6670
    %v6703 = vunpack.c.l.b16 %v6671
    %v6704 = vunpack.c.l.b16 %v6672
    %v6705 = vunpack.c.l.b16 %v6673
    %v6706 = vunpack.c.l.b16 %v6674
    %v6707 = vunpack.c.l.b16 %v6675
    %v6708 = vunpack.c.l.b16 %v6676
    %v6709 = vunpack.c.l.b16 %v6677
    %v6710 = vunpack.c.l.b16 %v6678
    %v6711 = vunpack.c.l.b16 %v6679
    %v6712 = vunpack.c.l.b16 %v6680
    %v6713 = vunpack.c.l.b16 %v6681
    %v6714 = vunpack.c.l.b16 %v6682
    %v6715 = vunpack.c.l.b16 %v6683
    %v6716 = vpack.c.b16 %v6701, %v6700
    %v6717 = vpack.c.b16 %v6703, %v6702
    %v6718 = vpack.c.b16 %v6705, %v6704
    %v6719 = vpack.c.b16 %v6707, %v6706
    %v6720 = vpack.c.b16 %v6709, %v6708
    %v6721 = vpack.c.b16 %v6711, %v6710
    %v6722 = vpack.c.b16 %v6713, %v6712
    %v6723 = vpack.c.b16 %v6715, %v6714
    %6732 = vmatpush.bf16.msra.mxu0 %v6723
    %6733 = vmatpush.bf16.msra.mxu0 %v6722
    %6734 = vmatpush.bf16.msra.mxu0 %v6721
    %6735 = vmatpush.bf16.msra.mxu0 %v6720
    %6736 = vmatpush.bf16.msra.mxu0 %v6719
    %6737 = vmatpush.bf16.msra.mxu0 %v6718
    %6738 = vmatpush.bf16.msra.mxu0 %v6717
    %6739 = vmatpush.bf16.msra.mxu0 %v6716
    %6740 = vmatmul.bf16.gmra.mxu0 %v6357
    %v6741 = vpop.f32.mrf.mxu0
    %v6742 = vadd.f32 0.0, %v6741
    %v6743 = vpop.f32.mrf.mxu0
    %6744 = vdwg.mxu0
    %v6745 = vadd.f32 %v6667, %v6742
    %v6746 = vxor.u32 %v6745, 2147483648
    %v6747 = vmul.f32 %v6746, 1.442695
    %v6748 = vpow.pop %v6747
    %v6749 = vadd.f32 %v6748, 1.0
    %v6750 = vrcp.pop %v6749
    %v6751 = vmul.f32 %v6749, %v6750
    %v6752 = vsub.f32 1.0, %v6751
    %v6753 = vmul.f32 %v6750, %v6752
    %v6754 = vadd.f32 %v6750, %v6753
    %vm6755 = vweird.f32 %v6749
    %vm6756 = vweird.f32 %v6750
    %vm6757 = vmor %vm6755, %vm6756
    %v6758 = vsel %vm6757, %v6750, %v6754
    %v6759 = vand.u32 2147483647, %v6749
    %vm6760 = vcmp.eq.f32.partialorder %v6759, 8.507059e+37
    %v6761 = vand.u32 %v6749, 2147483648
    %v6762 = vor.u32 1.1754944e-38, %v6761
    %v6763 = vsel %vm6760, %v6762, %v6758
    %v6764 = vmul.f32 1.0, %v6763
    %v6765 = vld [vmem:[%s3109 + $0x10] sm:$0xff]
    %v6766 = vld [vmem:[#allocation12 + $0x8] sm:$0xf]
    %v6767 = vld [vmem:[#allocation12 + $0x14] sm:$0xf]
    %v6768 = vld [vmem:[#allocation12 + $0x20] sm:$0xf]
    %v6769 = vld [vmem:[#allocation12 + $0x2c] sm:$0xf]
    %v6770 = vld [vmem:[#allocation12 + $0x38] sm:$0xf]
    %v6771 = vld [vmem:[#allocation12 + $0x44] sm:$0xf]
    %v6772 = vld [vmem:[#allocation12 + $0x50] sm:$0xf]
    %v6773 = vld [vmem:[#allocation12 + $0x5c] sm:$0xf]
    %v6774 = vld [vmem:[#allocation12 + $0x68] sm:$0xf]
    %v6775 = vld [vmem:[#allocation12 + $0x74] sm:$0xf]
    %v6776 = vld [vmem:[#allocation12 + $0x80] sm:$0xf]
    %v6777 = vld [vmem:[#allocation12 + $0x8c] sm:$0xf]
    %v6778 = vld [vmem:[#allocation12 + $0x98] sm:$0xf]
    %v6779 = vld [vmem:[#allocation12 + $0xa4] sm:$0xf]
    %v6780 = vld [vmem:[#allocation12 + $0xb0] sm:$0xf]
    %v6781 = vld [vmem:[#allocation12 + $0xbc] sm:$0xf]
    %v6798 = vunpack.c.l.b16 %v6766
    %v6799 = vunpack.c.l.b16 %v6767
    %v6800 = vunpack.c.l.b16 %v6768
    %v6801 = vunpack.c.l.b16 %v6769
    %v6802 = vunpack.c.l.b16 %v6770
    %v6803 = vunpack.c.l.b16 %v6771
    %v6804 = vunpack.c.l.b16 %v6772
    %v6805 = vunpack.c.l.b16 %v6773
    %v6806 = vunpack.c.l.b16 %v6774
    %v6807 = vunpack.c.l.b16 %v6775
    %v6808 = vunpack.c.l.b16 %v6776
    %v6809 = vunpack.c.l.b16 %v6777
    %v6810 = vunpack.c.l.b16 %v6778
    %v6811 = vunpack.c.l.b16 %v6779
    %v6812 = vunpack.c.l.b16 %v6780
    %v6813 = vunpack.c.l.b16 %v6781
    %v6814 = vpack.c.b16 %v6799, %v6798
    %v6815 = vpack.c.b16 %v6801, %v6800
    %v6816 = vpack.c.b16 %v6803, %v6802
    %v6817 = vpack.c.b16 %v6805, %v6804
    %v6818 = vpack.c.b16 %v6807, %v6806
    %v6819 = vpack.c.b16 %v6809, %v6808
    %v6820 = vpack.c.b16 %v6811, %v6810
    %v6821 = vpack.c.b16 %v6813, %v6812
    %6830 = vmatpush.bf16.msra.mxu0 %v6821
    %6831 = vmatpush.bf16.msra.mxu0 %v6820
    %6832 = vmatpush.bf16.msra.mxu0 %v6819
    %6833 = vmatpush.bf16.msra.mxu0 %v6818
    %6834 = vmatpush.bf16.msra.mxu0 %v6817
    %6835 = vmatpush.bf16.msra.mxu0 %v6816
    %6836 = vmatpush.bf16.msra.mxu0 %v6815
    %6837 = vmatpush.bf16.msra.mxu0 %v6814
    %6838 = vmatmul.bf16.gmra.mxu0 %v6357
    %v6839 = vpop.f32.mrf.mxu0
    %v6840 = vadd.f32 %v4316, %v6839
    %v6841 = vpop.f32.mrf.mxu0
    %6842 = vdwg.mxu0
    %v6843 = vmul.f32 %v6666, %v6840
    %v6844 = vadd.f32 %v6765, %v6843
    %v6845 = vtanh.pop %v6844
    %v6846 = vsub.f32 1.0, %v6764
    %v6847 = vmul.f32 %v6846, %v6845
    %v6848 = vmul.f32 %v6764, %v6356
    %v6849 = vadd.f32 %v6847, %v6848
    %v6850 = vpack.c.bf16 %v6849, %v6849
    %v6851 = vld [vmem:[#allocation9] sm:$0xff]
    %v6852 = vld [vmem:[#allocation9 + $0x8] sm:$0xf]
    %v6853 = vld [vmem:[#allocation9 + $0xc] sm:$0xff]
    %v6854 = vld [vmem:[#allocation9 + $0x14] sm:$0xf]
    %v6855 = vld [vmem:[#allocation9 + $0x18] sm:$0xff]
    %v6856 = vld [vmem:[#allocation9 + $0x20] sm:$0xf]
    %v6857 = vld [vmem:[#allocation9 + $0x24] sm:$0xff]
    %v6858 = vld [vmem:[#allocation9 + $0x2c] sm:$0xf]
    %v6859 = vld [vmem:[#allocation9 + $0x30] sm:$0xff]
    %v6860 = vld [vmem:[#allocation9 + $0x38] sm:$0xf]
    %v6861 = vld [vmem:[#allocation9 + $0x3c] sm:$0xff]
    %v6862 = vld [vmem:[#allocation9 + $0x44] sm:$0xf]
    %v6863 = vld [vmem:[#allocation9 + $0x48] sm:$0xff]
    %v6864 = vld [vmem:[#allocation9 + $0x50] sm:$0xf]
    %v6865 = vld [vmem:[#allocation9 + $0x54] sm:$0xff]
    %v6866 = vld [vmem:[#allocation9 + $0x5c] sm:$0xf]
    %v6867 = vld [vmem:[#allocation9 + $0x60] sm:$0xff]
    %v6868 = vld [vmem:[#allocation9 + $0x68] sm:$0xf]
    %v6869 = vld [vmem:[#allocation9 + $0x6c] sm:$0xff]
    %v6870 = vld [vmem:[#allocation9 + $0x74] sm:$0xf]
    %v6871 = vld [vmem:[#allocation9 + $0x78] sm:$0xff]
    %v6872 = vld [vmem:[#allocation9 + $0x80] sm:$0xf]
    %v6873 = vld [vmem:[#allocation9 + $0x84] sm:$0xff]
    %v6874 = vld [vmem:[#allocation9 + $0x8c] sm:$0xf]
    %v6875 = vld [vmem:[#allocation9 + $0x90] sm:$0xff]
    %v6876 = vld [vmem:[#allocation9 + $0x98] sm:$0xf]
    %v6877 = vld [vmem:[#allocation9 + $0x9c] sm:$0xff]
    %v6878 = vld [vmem:[#allocation9 + $0xa4] sm:$0xf]
    %v6879 = vld [vmem:[#allocation9 + $0xa8] sm:$0xff]
    %v6880 = vld [vmem:[#allocation9 + $0xb0] sm:$0xf]
    %v6881 = vld [vmem:[#allocation9 + $0xb4] sm:$0xff]
    %v6882 = vld [vmem:[#allocation9 + $0xbc] sm:$0xf]
    %v6883 = vld [vmem:[%s4] sm:$0x7]
    %v6885 = vperm.slane %v6883, 0
    %v6886 = vperm.slane %v6883, 1
    %v6887 = vperm.slane %v6883, 2
    %v6923 = vunpack.c.l.b16 %v6851
    %v6924 = vunpack.c.h.b16 %v6851
    %v6925 = vunpack.c.l.b16 %v6852
    %v6926 = vunpack.c.l.b16 %v6853
    %v6927 = vunpack.c.h.b16 %v6853
    %v6928 = vunpack.c.l.b16 %v6854
    %v6929 = vunpack.c.l.b16 %v6855
    %v6930 = vunpack.c.h.b16 %v6855
    %v6931 = vunpack.c.l.b16 %v6856
    %v6932 = vunpack.c.l.b16 %v6857
    %v6933 = vunpack.c.h.b16 %v6857
    %v6934 = vunpack.c.l.b16 %v6858
    %v6935 = vunpack.c.l.b16 %v6859
    %v6936 = vunpack.c.h.b16 %v6859
    %v6937 = vunpack.c.l.b16 %v6860
    %v6938 = vunpack.c.l.b16 %v6861
    %v6939 = vunpack.c.h.b16 %v6861
    %v6940 = vunpack.c.l.b16 %v6862
    %v6941 = vunpack.c.l.b16 %v6863
    %v6942 = vunpack.c.h.b16 %v6863
    %v6943 = vunpack.c.l.b16 %v6864
    %v6944 = vunpack.c.l.b16 %v6865
    %v6945 = vunpack.c.h.b16 %v6865
    %v6946 = vunpack.c.l.b16 %v6866
    %v6947 = vunpack.c.l.b16 %v6867
    %v6948 = vunpack.c.h.b16 %v6867
    %v6949 = vunpack.c.l.b16 %v6868
    %v6950 = vunpack.c.l.b16 %v6869
    %v6951 = vunpack.c.h.b16 %v6869
    %v6952 = vunpack.c.l.b16 %v6870
    %v6953 = vunpack.c.l.b16 %v6871
    %v6954 = vunpack.c.h.b16 %v6871
    %v6955 = vunpack.c.l.b16 %v6872
    %v6956 = vunpack.c.l.b16 %v6873
    %v6957 = vunpack.c.h.b16 %v6873
    %v6958 = vunpack.c.l.b16 %v6874
    %v6959 = vunpack.c.l.b16 %v6875
    %v6960 = vunpack.c.h.b16 %v6875
    %v6961 = vunpack.c.l.b16 %v6876
    %v6962 = vunpack.c.l.b16 %v6877
    %v6963 = vunpack.c.h.b16 %v6877
    %v6964 = vunpack.c.l.b16 %v6878
    %v6965 = vunpack.c.l.b16 %v6879
    %v6966 = vunpack.c.h.b16 %v6879
    %v6967 = vunpack.c.l.b16 %v6880
    %v6968 = vunpack.c.l.b16 %v6881
    %v6969 = vunpack.c.h.b16 %v6881
    %v6970 = vunpack.c.l.b16 %v6882
    %v6971 = vpack.c.b16 %v6926, %v6923
    %v6972 = vpack.c.b16 %v6927, %v6924
    %v6973 = vpack.c.b16 %v6928, %v6925
    %v6974 = vpack.c.b16 %v6932, %v6929
    %v6975 = vpack.c.b16 %v6933, %v6930
    %v6976 = vpack.c.b16 %v6934, %v6931
    %v6977 = vpack.c.b16 %v6938, %v6935
    %v6978 = vpack.c.b16 %v6939, %v6936
    %v6979 = vpack.c.b16 %v6940, %v6937
    %v6980 = vpack.c.b16 %v6944, %v6941
    %v6981 = vpack.c.b16 %v6945, %v6942
    %v6982 = vpack.c.b16 %v6946, %v6943
    %v6983 = vpack.c.b16 %v6950, %v6947
    %v6984 = vpack.c.b16 %v6951, %v6948
    %v6985 = vpack.c.b16 %v6952, %v6949
    %v6986 = vpack.c.b16 %v6956, %v6953
    %v6987 = vpack.c.b16 %v6957, %v6954
    %v6988 = vpack.c.b16 %v6958, %v6955
    %v6989 = vpack.c.b16 %v6962, %v6959
    %v6990 = vpack.c.b16 %v6963, %v6960
    %v6991 = vpack.c.b16 %v6964, %v6961
    %v6992 = vpack.c.b16 %v6968, %v6965
    %v6993 = vpack.c.b16 %v6969, %v6966
    %v6994 = vpack.c.b16 %v6970, %v6967
    %7019 = vmatpush.bf16.msra.mxu0 %v6992
    %7020 = vmatpush.bf16.msra.mxu0 %v6989
    %7021 = vmatpush.bf16.msra.mxu0 %v6986
    %7022 = vmatpush.bf16.msra.mxu0 %v6983
    %7023 = vmatpush.bf16.msra.mxu0 %v6980
    %7024 = vmatpush.bf16.msra.mxu0 %v6977
    %7025 = vmatpush.bf16.msra.mxu0 %v6974
    %7026 = vmatpush.bf16.msra.mxu0 %v6971
    %7027 = vmatmul.bf16.gmra.mxu0 %v6850
    %v7028 = vpop.f32.mrf.mxu0
    %v7029 = vadd.f32 %v6885, %v7028
    %v7030 = vpop.f32.mrf.mxu0
    %7031 = vdwg.mxu0
    %7032 = vmatpush.bf16.msra.mxu0 %v6993
    %7033 = vmatpush.bf16.msra.mxu0 %v6990
    %7034 = vmatpush.bf16.msra.mxu0 %v6987
    %7035 = vmatpush.bf16.msra.mxu0 %v6984
    %7036 = vmatpush.bf16.msra.mxu0 %v6981
    %7037 = vmatpush.bf16.msra.mxu0 %v6978
    %7038 = vmatpush.bf16.msra.mxu0 %v6975
    %7039 = vmatpush.bf16.msra.mxu0 %v6972
    %7040 = vmatmul.bf16.gmra.mxu0 %v6850
    %v7041 = vpop.f32.mrf.mxu0
    %v7042 = vadd.f32 %v6886, %v7041
    %v7043 = vpop.f32.mrf.mxu0
    %7044 = vdwg.mxu0
    %7045 = vmatpush.bf16.msra.mxu0 %v6994
    %7046 = vmatpush.bf16.msra.mxu0 %v6991
    %7047 = vmatpush.bf16.msra.mxu0 %v6988
    %7048 = vmatpush.bf16.msra.mxu0 %v6985
    %7049 = vmatpush.bf16.msra.mxu0 %v6982
    %7050 = vmatpush.bf16.msra.mxu0 %v6979
    %7051 = vmatpush.bf16.msra.mxu0 %v6976
    %7052 = vmatpush.bf16.msra.mxu0 %v6973
    %7053 = vmatmul.bf16.gmra.mxu0 %v6850
    %v7054 = vpop.f32.mrf.mxu0
    %v7055 = vadd.f32 %v6887, %v7054
    %v7056 = vpop.f32.mrf.mxu0
    %7057 = vdwg.mxu0
    %s7058 = scalar_lea.vmem [#allocation3], 120
    %7059 = vst [vmem:[%s7058] sm:$0xff] %v7029
    %7060 = vst [vmem:[%s7058 + $0x8] sm:$0xff] %v7042
    %7061 = vst [vmem:[%s7058 + $0x10] sm:$0xff] %v7055
    %v7062 = vld [vmem:[%s3603] sm:$0xff]
    %v7063 = vld [vmem:[#allocation12] sm:$0xf]
    %v7064 = vld [vmem:[#allocation12 + $0xc] sm:$0xf]
    %v7065 = vld [vmem:[#allocation12 + $0x18] sm:$0xf]
    %v7066 = vld [vmem:[#allocation12 + $0x24] sm:$0xf]
    %v7067 = vld [vmem:[#allocation12 + $0x30] sm:$0xf]
    %v7068 = vld [vmem:[#allocation12 + $0x3c] sm:$0xf]
    %v7069 = vld [vmem:[#allocation12 + $0x48] sm:$0xf]
    %v7070 = vld [vmem:[#allocation12 + $0x54] sm:$0xf]
    %v7071 = vld [vmem:[#allocation12 + $0x60] sm:$0xf]
    %v7072 = vld [vmem:[#allocation12 + $0x6c] sm:$0xf]
    %v7073 = vld [vmem:[#allocation12 + $0x78] sm:$0xf]
    %v7074 = vld [vmem:[#allocation12 + $0x84] sm:$0xf]
    %v7075 = vld [vmem:[#allocation12 + $0x90] sm:$0xf]
    %v7076 = vld [vmem:[#allocation12 + $0x9c] sm:$0xf]
    %v7077 = vld [vmem:[#allocation12 + $0xa8] sm:$0xf]
    %v7078 = vld [vmem:[#allocation12 + $0xb4] sm:$0xf]
    %v7095 = vunpack.c.l.b16 %v7063
    %v7096 = vunpack.c.l.b16 %v7064
    %v7097 = vunpack.c.l.b16 %v7065
    %v7098 = vunpack.c.l.b16 %v7066
    %v7099 = vunpack.c.l.b16 %v7067
    %v7100 = vunpack.c.l.b16 %v7068
    %v7101 = vunpack.c.l.b16 %v7069
    %v7102 = vunpack.c.l.b16 %v7070
    %v7103 = vunpack.c.l.b16 %v7071
    %v7104 = vunpack.c.l.b16 %v7072
    %v7105 = vunpack.c.l.b16 %v7073
    %v7106 = vunpack.c.l.b16 %v7074
    %v7107 = vunpack.c.l.b16 %v7075
    %v7108 = vunpack.c.l.b16 %v7076
    %v7109 = vunpack.c.l.b16 %v7077
    %v7110 = vunpack.c.l.b16 %v7078
    %v7111 = vpack.c.b16 %v7096, %v7095
    %v7112 = vpack.c.b16 %v7098, %v7097
    %v7113 = vpack.c.b16 %v7100, %v7099
    %v7114 = vpack.c.b16 %v7102, %v7101
    %v7115 = vpack.c.b16 %v7104, %v7103
    %v7116 = vpack.c.b16 %v7106, %v7105
    %v7117 = vpack.c.b16 %v7108, %v7107
    %v7118 = vpack.c.b16 %v7110, %v7109
    %7127 = vmatpush.bf16.msra.mxu0 %v7118
    %7128 = vmatpush.bf16.msra.mxu0 %v7117
    %7129 = vmatpush.bf16.msra.mxu0 %v7116
    %7130 = vmatpush.bf16.msra.mxu0 %v7115
    %7131 = vmatpush.bf16.msra.mxu0 %v7114
    %7132 = vmatpush.bf16.msra.mxu0 %v7113
    %7133 = vmatpush.bf16.msra.mxu0 %v7112
    %7134 = vmatpush.bf16.msra.mxu0 %v7111
    %7135 = vmatmul.bf16.gmra.mxu0 %v6850
    %v7136 = vpop.f32.mrf.mxu0
    %v7137 = vadd.f32 0.0, %v7136
    %v7138 = vpop.f32.mrf.mxu0
    %7139 = vdwg.mxu0
    %v7140 = vadd.f32 %v7062, %v7137
    %v7141 = vxor.u32 %v7140, 2147483648
    %v7142 = vmul.f32 %v7141, 1.442695
    %v7143 = vpow.pop %v7142
    %v7144 = vadd.f32 %v7143, 1.0
    %v7145 = vrcp.pop %v7144
    %v7146 = vmul.f32 %v7144, %v7145
    %v7147 = vsub.f32 1.0, %v7146
    %v7148 = vmul.f32 %v7145, %v7147
    %v7149 = vadd.f32 %v7145, %v7148
    %vm7150 = vweird.f32 %v7144
    %vm7151 = vweird.f32 %v7145
    %vm7152 = vmor %vm7150, %vm7151
    %v7153 = vsel %vm7152, %v7145, %v7149
    %v7154 = vand.u32 2147483647, %v7144
    %vm7155 = vcmp.eq.f32.partialorder %v7154, 8.507059e+37
    %v7156 = vand.u32 %v7144, 2147483648
    %v7157 = vor.u32 1.1754944e-38, %v7156
    %v7158 = vsel %vm7155, %v7157, %v7153
    %v7159 = vmul.f32 1.0, %v7158
    %v7160 = vld [vmem:[%s3603 + $0x8] sm:$0xff]
    %v7161 = vld [vmem:[#allocation12 + $0x4] sm:$0xf]
    %v7162 = vld [vmem:[#allocation12 + $0x10] sm:$0xf]
    %v7163 = vld [vmem:[#allocation12 + $0x1c] sm:$0xf]
    %v7164 = vld [vmem:[#allocation12 + $0x28] sm:$0xf]
    %v7165 = vld [vmem:[#allocation12 + $0x34] sm:$0xf]
    %v7166 = vld [vmem:[#allocation12 + $0x40] sm:$0xf]
    %v7167 = vld [vmem:[#allocation12 + $0x4c] sm:$0xf]
    %v7168 = vld [vmem:[#allocation12 + $0x58] sm:$0xf]
    %v7169 = vld [vmem:[#allocation12 + $0x64] sm:$0xf]
    %v7170 = vld [vmem:[#allocation12 + $0x70] sm:$0xf]
    %v7171 = vld [vmem:[#allocation12 + $0x7c] sm:$0xf]
    %v7172 = vld [vmem:[#allocation12 + $0x88] sm:$0xf]
    %v7173 = vld [vmem:[#allocation12 + $0x94] sm:$0xf]
    %v7174 = vld [vmem:[#allocation12 + $0xa0] sm:$0xf]
    %v7175 = vld [vmem:[#allocation12 + $0xac] sm:$0xf]
    %v7176 = vld [vmem:[#allocation12 + $0xb8] sm:$0xf]
    %v7193 = vunpack.c.l.b16 %v7161
    %v7194 = vunpack.c.l.b16 %v7162
    %v7195 = vunpack.c.l.b16 %v7163
    %v7196 = vunpack.c.l.b16 %v7164
    %v7197 = vunpack.c.l.b16 %v7165
    %v7198 = vunpack.c.l.b16 %v7166
    %v7199 = vunpack.c.l.b16 %v7167
    %v7200 = vunpack.c.l.b16 %v7168
    %v7201 = vunpack.c.l.b16 %v7169
    %v7202 = vunpack.c.l.b16 %v7170
    %v7203 = vunpack.c.l.b16 %v7171
    %v7204 = vunpack.c.l.b16 %v7172
    %v7205 = vunpack.c.l.b16 %v7173
    %v7206 = vunpack.c.l.b16 %v7174
    %v7207 = vunpack.c.l.b16 %v7175
    %v7208 = vunpack.c.l.b16 %v7176
    %v7209 = vpack.c.b16 %v7194, %v7193
    %v7210 = vpack.c.b16 %v7196, %v7195
    %v7211 = vpack.c.b16 %v7198, %v7197
    %v7212 = vpack.c.b16 %v7200, %v7199
    %v7213 = vpack.c.b16 %v7202, %v7201
    %v7214 = vpack.c.b16 %v7204, %v7203
    %v7215 = vpack.c.b16 %v7206, %v7205
    %v7216 = vpack.c.b16 %v7208, %v7207
    %7225 = vmatpush.bf16.msra.mxu0 %v7216
    %7226 = vmatpush.bf16.msra.mxu0 %v7215
    %7227 = vmatpush.bf16.msra.mxu0 %v7214
    %7228 = vmatpush.bf16.msra.mxu0 %v7213
    %7229 = vmatpush.bf16.msra.mxu0 %v7212
    %7230 = vmatpush.bf16.msra.mxu0 %v7211
    %7231 = vmatpush.bf16.msra.mxu0 %v7210
    %7232 = vmatpush.bf16.msra.mxu0 %v7209
    %7233 = vmatmul.bf16.gmra.mxu0 %v6850
    %v7234 = vpop.f32.mrf.mxu0
    %v7235 = vadd.f32 0.0, %v7234
    %v7236 = vpop.f32.mrf.mxu0
    %7237 = vdwg.mxu0
    %v7238 = vadd.f32 %v7160, %v7235
    %v7239 = vxor.u32 %v7238, 2147483648
    %v7240 = vmul.f32 %v7239, 1.442695
    %v7241 = vpow.pop %v7240
    %v7242 = vadd.f32 %v7241, 1.0
    %v7243 = vrcp.pop %v7242
    %v7244 = vmul.f32 %v7242, %v7243
    %v7245 = vsub.f32 1.0, %v7244
    %v7246 = vmul.f32 %v7243, %v7245
    %v7247 = vadd.f32 %v7243, %v7246
    %vm7248 = vweird.f32 %v7242
    %vm7249 = vweird.f32 %v7243
    %vm7250 = vmor %vm7248, %vm7249
    %v7251 = vsel %vm7250, %v7243, %v7247
    %v7252 = vand.u32 2147483647, %v7242
    %vm7253 = vcmp.eq.f32.partialorder %v7252, 8.507059e+37
    %v7254 = vand.u32 %v7242, 2147483648
    %v7255 = vor.u32 1.1754944e-38, %v7254
    %v7256 = vsel %vm7253, %v7255, %v7251
    %v7257 = vmul.f32 1.0, %v7256
    %v7258 = vld [vmem:[%s3603 + $0x10] sm:$0xff]
    %v7259 = vld [vmem:[#allocation12 + $0x8] sm:$0xf]
    %v7260 = vld [vmem:[#allocation12 + $0x14] sm:$0xf]
    %v7261 = vld [vmem:[#allocation12 + $0x20] sm:$0xf]
    %v7262 = vld [vmem:[#allocation12 + $0x2c] sm:$0xf]
    %v7263 = vld [vmem:[#allocation12 + $0x38] sm:$0xf]
    %v7264 = vld [vmem:[#allocation12 + $0x44] sm:$0xf]
    %v7265 = vld [vmem:[#allocation12 + $0x50] sm:$0xf]
    %v7266 = vld [vmem:[#allocation12 + $0x5c] sm:$0xf]
    %v7267 = vld [vmem:[#allocation12 + $0x68] sm:$0xf]
    %v7268 = vld [vmem:[#allocation12 + $0x74] sm:$0xf]
    %v7269 = vld [vmem:[#allocation12 + $0x80] sm:$0xf]
    %v7270 = vld [vmem:[#allocation12 + $0x8c] sm:$0xf]
    %v7271 = vld [vmem:[#allocation12 + $0x98] sm:$0xf]
    %v7272 = vld [vmem:[#allocation12 + $0xa4] sm:$0xf]
    %v7273 = vld [vmem:[#allocation12 + $0xb0] sm:$0xf]
    %v7274 = vld [vmem:[#allocation12 + $0xbc] sm:$0xf]
    %v7291 = vunpack.c.l.b16 %v7259
    %v7292 = vunpack.c.l.b16 %v7260
    %v7293 = vunpack.c.l.b16 %v7261
    %v7294 = vunpack.c.l.b16 %v7262
    %v7295 = vunpack.c.l.b16 %v7263
    %v7296 = vunpack.c.l.b16 %v7264
    %v7297 = vunpack.c.l.b16 %v7265
    %v7298 = vunpack.c.l.b16 %v7266
    %v7299 = vunpack.c.l.b16 %v7267
    %v7300 = vunpack.c.l.b16 %v7268
    %v7301 = vunpack.c.l.b16 %v7269
    %v7302 = vunpack.c.l.b16 %v7270
    %v7303 = vunpack.c.l.b16 %v7271
    %v7304 = vunpack.c.l.b16 %v7272
    %v7305 = vunpack.c.l.b16 %v7273
    %v7306 = vunpack.c.l.b16 %v7274
    %v7307 = vpack.c.b16 %v7292, %v7291
    %v7308 = vpack.c.b16 %v7294, %v7293
    %v7309 = vpack.c.b16 %v7296, %v7295
    %v7310 = vpack.c.b16 %v7298, %v7297
    %v7311 = vpack.c.b16 %v7300, %v7299
    %v7312 = vpack.c.b16 %v7302, %v7301
    %v7313 = vpack.c.b16 %v7304, %v7303
    %v7314 = vpack.c.b16 %v7306, %v7305
    %7323 = vmatpush.bf16.msra.mxu0 %v7314
    %7324 = vmatpush.bf16.msra.mxu0 %v7313
    %7325 = vmatpush.bf16.msra.mxu0 %v7312
    %7326 = vmatpush.bf16.msra.mxu0 %v7311
    %7327 = vmatpush.bf16.msra.mxu0 %v7310
    %7328 = vmatpush.bf16.msra.mxu0 %v7309
    %7329 = vmatpush.bf16.msra.mxu0 %v7308
    %7330 = vmatpush.bf16.msra.mxu0 %v7307
    %7331 = vmatmul.bf16.gmra.mxu0 %v6850
    %v7332 = vpop.f32.mrf.mxu0
    %v7333 = vadd.f32 %v4316, %v7332
    %v7334 = vpop.f32.mrf.mxu0
    %7335 = vdwg.mxu0
    %v7336 = vmul.f32 %v7159, %v7333
    %v7337 = vadd.f32 %v7258, %v7336
    %v7338 = vtanh.pop %v7337
    %v7339 = vsub.f32 1.0, %v7257
    %v7340 = vmul.f32 %v7339, %v7338
    %v7341 = vmul.f32 %v7257, %v6849
    %v7342 = vadd.f32 %v7340, %v7341
    %v7343 = vpack.c.bf16 %v7342, %v7342
    %v7344 = vld [vmem:[#allocation9] sm:$0xff]
    %v7345 = vld [vmem:[#allocation9 + $0x8] sm:$0xf]
    %v7346 = vld [vmem:[#allocation9 + $0xc] sm:$0xff]
    %v7347 = vld [vmem:[#allocation9 + $0x14] sm:$0xf]
    %v7348 = vld [vmem:[#allocation9 + $0x18] sm:$0xff]
    %v7349 = vld [vmem:[#allocation9 + $0x20] sm:$0xf]
    %v7350 = vld [vmem:[#allocation9 + $0x24] sm:$0xff]
    %v7351 = vld [vmem:[#allocation9 + $0x2c] sm:$0xf]
    %v7352 = vld [vmem:[#allocation9 + $0x30] sm:$0xff]
    %v7353 = vld [vmem:[#allocation9 + $0x38] sm:$0xf]
    %v7354 = vld [vmem:[#allocation9 + $0x3c] sm:$0xff]
    %v7355 = vld [vmem:[#allocation9 + $0x44] sm:$0xf]
    %v7356 = vld [vmem:[#allocation9 + $0x48] sm:$0xff]
    %v7357 = vld [vmem:[#allocation9 + $0x50] sm:$0xf]
    %v7358 = vld [vmem:[#allocation9 + $0x54] sm:$0xff]
    %v7359 = vld [vmem:[#allocation9 + $0x5c] sm:$0xf]
    %v7360 = vld [vmem:[#allocation9 + $0x60] sm:$0xff]
    %v7361 = vld [vmem:[#allocation9 + $0x68] sm:$0xf]
    %v7362 = vld [vmem:[#allocation9 + $0x6c] sm:$0xff]
    %v7363 = vld [vmem:[#allocation9 + $0x74] sm:$0xf]
    %v7364 = vld [vmem:[#allocation9 + $0x78] sm:$0xff]
    %v7365 = vld [vmem:[#allocation9 + $0x80] sm:$0xf]
    %v7366 = vld [vmem:[#allocation9 + $0x84] sm:$0xff]
    %v7367 = vld [vmem:[#allocation9 + $0x8c] sm:$0xf]
    %v7368 = vld [vmem:[#allocation9 + $0x90] sm:$0xff]
    %v7369 = vld [vmem:[#allocation9 + $0x98] sm:$0xf]
    %v7370 = vld [vmem:[#allocation9 + $0x9c] sm:$0xff]
    %v7371 = vld [vmem:[#allocation9 + $0xa4] sm:$0xf]
    %v7372 = vld [vmem:[#allocation9 + $0xa8] sm:$0xff]
    %v7373 = vld [vmem:[#allocation9 + $0xb0] sm:$0xf]
    %v7374 = vld [vmem:[#allocation9 + $0xb4] sm:$0xff]
    %v7375 = vld [vmem:[#allocation9 + $0xbc] sm:$0xf]
    %v7376 = vld [vmem:[%s4] sm:$0x7]
    %v7378 = vperm.slane %v7376, 0
    %v7379 = vperm.slane %v7376, 1
    %v7380 = vperm.slane %v7376, 2
    %v7416 = vunpack.c.l.b16 %v7344
    %v7417 = vunpack.c.h.b16 %v7344
    %v7418 = vunpack.c.l.b16 %v7345
    %v7419 = vunpack.c.l.b16 %v7346
    %v7420 = vunpack.c.h.b16 %v7346
    %v7421 = vunpack.c.l.b16 %v7347
    %v7422 = vunpack.c.l.b16 %v7348
    %v7423 = vunpack.c.h.b16 %v7348
    %v7424 = vunpack.c.l.b16 %v7349
    %v7425 = vunpack.c.l.b16 %v7350
    %v7426 = vunpack.c.h.b16 %v7350
    %v7427 = vunpack.c.l.b16 %v7351
    %v7428 = vunpack.c.l.b16 %v7352
    %v7429 = vunpack.c.h.b16 %v7352
    %v7430 = vunpack.c.l.b16 %v7353
    %v7431 = vunpack.c.l.b16 %v7354
    %v7432 = vunpack.c.h.b16 %v7354
    %v7433 = vunpack.c.l.b16 %v7355
    %v7434 = vunpack.c.l.b16 %v7356
    %v7435 = vunpack.c.h.b16 %v7356
    %v7436 = vunpack.c.l.b16 %v7357
    %v7437 = vunpack.c.l.b16 %v7358
    %v7438 = vunpack.c.h.b16 %v7358
    %v7439 = vunpack.c.l.b16 %v7359
    %v7440 = vunpack.c.l.b16 %v7360
    %v7441 = vunpack.c.h.b16 %v7360
    %v7442 = vunpack.c.l.b16 %v7361
    %v7443 = vunpack.c.l.b16 %v7362
    %v7444 = vunpack.c.h.b16 %v7362
    %v7445 = vunpack.c.l.b16 %v7363
    %v7446 = vunpack.c.l.b16 %v7364
    %v7447 = vunpack.c.h.b16 %v7364
    %v7448 = vunpack.c.l.b16 %v7365
    %v7449 = vunpack.c.l.b16 %v7366
    %v7450 = vunpack.c.h.b16 %v7366
    %v7451 = vunpack.c.l.b16 %v7367
    %v7452 = vunpack.c.l.b16 %v7368
    %v7453 = vunpack.c.h.b16 %v7368
    %v7454 = vunpack.c.l.b16 %v7369
    %v7455 = vunpack.c.l.b16 %v7370
    %v7456 = vunpack.c.h.b16 %v7370
    %v7457 = vunpack.c.l.b16 %v7371
    %v7458 = vunpack.c.l.b16 %v7372
    %v7459 = vunpack.c.h.b16 %v7372
    %v7460 = vunpack.c.l.b16 %v7373
    %v7461 = vunpack.c.l.b16 %v7374
    %v7462 = vunpack.c.h.b16 %v7374
    %v7463 = vunpack.c.l.b16 %v7375
    %v7464 = vpack.c.b16 %v7419, %v7416
    %v7465 = vpack.c.b16 %v7420, %v7417
    %v7466 = vpack.c.b16 %v7421, %v7418
    %v7467 = vpack.c.b16 %v7425, %v7422
    %v7468 = vpack.c.b16 %v7426, %v7423
    %v7469 = vpack.c.b16 %v7427, %v7424
    %v7470 = vpack.c.b16 %v7431, %v7428
    %v7471 = vpack.c.b16 %v7432, %v7429
    %v7472 = vpack.c.b16 %v7433, %v7430
    %v7473 = vpack.c.b16 %v7437, %v7434
    %v7474 = vpack.c.b16 %v7438, %v7435
    %v7475 = vpack.c.b16 %v7439, %v7436
    %v7476 = vpack.c.b16 %v7443, %v7440
    %v7477 = vpack.c.b16 %v7444, %v7441
    %v7478 = vpack.c.b16 %v7445, %v7442
    %v7479 = vpack.c.b16 %v7449, %v7446
    %v7480 = vpack.c.b16 %v7450, %v7447
    %v7481 = vpack.c.b16 %v7451, %v7448
    %v7482 = vpack.c.b16 %v7455, %v7452
    %v7483 = vpack.c.b16 %v7456, %v7453
    %v7484 = vpack.c.b16 %v7457, %v7454
    %v7485 = vpack.c.b16 %v7461, %v7458
    %v7486 = vpack.c.b16 %v7462, %v7459
    %v7487 = vpack.c.b16 %v7463, %v7460
    %7512 = vmatpush.bf16.msra.mxu0 %v7485
    %7513 = vmatpush.bf16.msra.mxu0 %v7482
    %7514 = vmatpush.bf16.msra.mxu0 %v7479
    %7515 = vmatpush.bf16.msra.mxu0 %v7476
    %7516 = vmatpush.bf16.msra.mxu0 %v7473
    %7517 = vmatpush.bf16.msra.mxu0 %v7470
    %7518 = vmatpush.bf16.msra.mxu0 %v7467
    %7519 = vmatpush.bf16.msra.mxu0 %v7464
    %7520 = vmatmul.bf16.gmra.mxu0 %v7343
    %v7521 = vpop.f32.mrf.mxu0
    %v7522 = vadd.f32 %v7378, %v7521
    %v7523 = vpop.f32.mrf.mxu0
    %7524 = vdwg.mxu0
    %7525 = vmatpush.bf16.msra.mxu0 %v7486
    %7526 = vmatpush.bf16.msra.mxu0 %v7483
    %7527 = vmatpush.bf16.msra.mxu0 %v7480
    %7528 = vmatpush.bf16.msra.mxu0 %v7477
    %7529 = vmatpush.bf16.msra.mxu0 %v7474
    %7530 = vmatpush.bf16.msra.mxu0 %v7471
    %7531 = vmatpush.bf16.msra.mxu0 %v7468
    %7532 = vmatpush.bf16.msra.mxu0 %v7465
    %7533 = vmatmul.bf16.gmra.mxu0 %v7343
    %v7534 = vpop.f32.mrf.mxu0
    %v7535 = vadd.f32 %v7379, %v7534
    %v7536 = vpop.f32.mrf.mxu0
    %7537 = vdwg.mxu0
    %7538 = vmatpush.bf16.msra.mxu0 %v7487
    %7539 = vmatpush.bf16.msra.mxu0 %v7484
    %7540 = vmatpush.bf16.msra.mxu0 %v7481
    %7541 = vmatpush.bf16.msra.mxu0 %v7478
    %7542 = vmatpush.bf16.msra.mxu0 %v7475
    %7543 = vmatpush.bf16.msra.mxu0 %v7472
    %7544 = vmatpush.bf16.msra.mxu0 %v7469
    %7545 = vmatpush.bf16.msra.mxu0 %v7466
    %7546 = vmatmul.bf16.gmra.mxu0 %v7343
    %v7547 = vpop.f32.mrf.mxu0
    %v7548 = vadd.f32 %v7380, %v7547
    %v7549 = vpop.f32.mrf.mxu0
    %7550 = vdwg.mxu0
    %s7551 = scalar_lea.vmem [#allocation3], 144
    %7552 = vst [vmem:[%s7551] sm:$0xff] %v7522
    %7553 = vst [vmem:[%s7551 + $0x8] sm:$0xff] %v7535
    %7554 = vst [vmem:[%s7551 + $0x10] sm:$0xff] %v7548
    %v7555 = vld [vmem:[%s4097] sm:$0xff]
    %v7556 = vld [vmem:[#allocation12] sm:$0xf]
    %v7557 = vld [vmem:[#allocation12 + $0xc] sm:$0xf]
    %v7558 = vld [vmem:[#allocation12 + $0x18] sm:$0xf]
    %v7559 = vld [vmem:[#allocation12 + $0x24] sm:$0xf]
    %v7560 = vld [vmem:[#allocation12 + $0x30] sm:$0xf]
    %v7561 = vld [vmem:[#allocation12 + $0x3c] sm:$0xf]
    %v7562 = vld [vmem:[#allocation12 + $0x48] sm:$0xf]
    %v7563 = vld [vmem:[#allocation12 + $0x54] sm:$0xf]
    %v7564 = vld [vmem:[#allocation12 + $0x60] sm:$0xf]
    %v7565 = vld [vmem:[#allocation12 + $0x6c] sm:$0xf]
    %v7566 = vld [vmem:[#allocation12 + $0x78] sm:$0xf]
    %v7567 = vld [vmem:[#allocation12 + $0x84] sm:$0xf]
    %v7568 = vld [vmem:[#allocation12 + $0x90] sm:$0xf]
    %v7569 = vld [vmem:[#allocation12 + $0x9c] sm:$0xf]
    %v7570 = vld [vmem:[#allocation12 + $0xa8] sm:$0xf]
    %v7571 = vld [vmem:[#allocation12 + $0xb4] sm:$0xf]
    %v7588 = vunpack.c.l.b16 %v7556
    %v7589 = vunpack.c.l.b16 %v7557
    %v7590 = vunpack.c.l.b16 %v7558
    %v7591 = vunpack.c.l.b16 %v7559
    %v7592 = vunpack.c.l.b16 %v7560
    %v7593 = vunpack.c.l.b16 %v7561
    %v7594 = vunpack.c.l.b16 %v7562
    %v7595 = vunpack.c.l.b16 %v7563
    %v7596 = vunpack.c.l.b16 %v7564
    %v7597 = vunpack.c.l.b16 %v7565
    %v7598 = vunpack.c.l.b16 %v7566
    %v7599 = vunpack.c.l.b16 %v7567
    %v7600 = vunpack.c.l.b16 %v7568
    %v7601 = vunpack.c.l.b16 %v7569
    %v7602 = vunpack.c.l.b16 %v7570
    %v7603 = vunpack.c.l.b16 %v7571
    %v7604 = vpack.c.b16 %v7589, %v7588
    %v7605 = vpack.c.b16 %v7591, %v7590
    %v7606 = vpack.c.b16 %v7593, %v7592
    %v7607 = vpack.c.b16 %v7595, %v7594
    %v7608 = vpack.c.b16 %v7597, %v7596
    %v7609 = vpack.c.b16 %v7599, %v7598
    %v7610 = vpack.c.b16 %v7601, %v7600
    %v7611 = vpack.c.b16 %v7603, %v7602
    %7620 = vmatpush.bf16.msra.mxu0 %v7611
    %7621 = vmatpush.bf16.msra.mxu0 %v7610
    %7622 = vmatpush.bf16.msra.mxu0 %v7609
    %7623 = vmatpush.bf16.msra.mxu0 %v7608
    %7624 = vmatpush.bf16.msra.mxu0 %v7607
    %7625 = vmatpush.bf16.msra.mxu0 %v7606
    %7626 = vmatpush.bf16.msra.mxu0 %v7605
    %7627 = vmatpush.bf16.msra.mxu0 %v7604
    %7628 = vmatmul.bf16.gmra.mxu0 %v7343
    %v7629 = vpop.f32.mrf.mxu0
    %v7630 = vadd.f32 0.0, %v7629
    %v7631 = vpop.f32.mrf.mxu0
    %7632 = vdwg.mxu0
    %v7633 = vadd.f32 %v7555, %v7630
    %v7634 = vxor.u32 %v7633, 2147483648
    %v7635 = vmul.f32 %v7634, 1.442695
    %v7636 = vpow.pop %v7635
    %v7637 = vadd.f32 %v7636, 1.0
    %v7638 = vrcp.pop %v7637
    %v7639 = vmul.f32 %v7637, %v7638
    %v7640 = vsub.f32 1.0, %v7639
    %v7641 = vmul.f32 %v7638, %v7640
    %v7642 = vadd.f32 %v7638, %v7641
    %vm7643 = vweird.f32 %v7637
    %vm7644 = vweird.f32 %v7638
    %vm7645 = vmor %vm7643, %vm7644
    %v7646 = vsel %vm7645, %v7638, %v7642
    %v7647 = vand.u32 2147483647, %v7637
    %vm7648 = vcmp.eq.f32.partialorder %v7647, 8.507059e+37
    %v7649 = vand.u32 %v7637, 2147483648
    %v7650 = vor.u32 1.1754944e-38, %v7649
    %v7651 = vsel %vm7648, %v7650, %v7646
    %v7652 = vmul.f32 1.0, %v7651
    %v7653 = vld [vmem:[%s4097 + $0x8] sm:$0xff]
    %v7654 = vld [vmem:[#allocation12 + $0x4] sm:$0xf]
    %v7655 = vld [vmem:[#allocation12 + $0x10] sm:$0xf]
    %v7656 = vld [vmem:[#allocation12 + $0x1c] sm:$0xf]
    %v7657 = vld [vmem:[#allocation12 + $0x28] sm:$0xf]
    %v7658 = vld [vmem:[#allocation12 + $0x34] sm:$0xf]
    %v7659 = vld [vmem:[#allocation12 + $0x40] sm:$0xf]
    %v7660 = vld [vmem:[#allocation12 + $0x4c] sm:$0xf]
    %v7661 = vld [vmem:[#allocation12 + $0x58] sm:$0xf]
    %v7662 = vld [vmem:[#allocation12 + $0x64] sm:$0xf]
    %v7663 = vld [vmem:[#allocation12 + $0x70] sm:$0xf]
    %v7664 = vld [vmem:[#allocation12 + $0x7c] sm:$0xf]
    %v7665 = vld [vmem:[#allocation12 + $0x88] sm:$0xf]
    %v7666 = vld [vmem:[#allocation12 + $0x94] sm:$0xf]
    %v7667 = vld [vmem:[#allocation12 + $0xa0] sm:$0xf]
    %v7668 = vld [vmem:[#allocation12 + $0xac] sm:$0xf]
    %v7669 = vld [vmem:[#allocation12 + $0xb8] sm:$0xf]
    %v7686 = vunpack.c.l.b16 %v7654
    %v7687 = vunpack.c.l.b16 %v7655
    %v7688 = vunpack.c.l.b16 %v7656
    %v7689 = vunpack.c.l.b16 %v7657
    %v7690 = vunpack.c.l.b16 %v7658
    %v7691 = vunpack.c.l.b16 %v7659
    %v7692 = vunpack.c.l.b16 %v7660
    %v7693 = vunpack.c.l.b16 %v7661
    %v7694 = vunpack.c.l.b16 %v7662
    %v7695 = vunpack.c.l.b16 %v7663
    %v7696 = vunpack.c.l.b16 %v7664
    %v7697 = vunpack.c.l.b16 %v7665
    %v7698 = vunpack.c.l.b16 %v7666
    %v7699 = vunpack.c.l.b16 %v7667
    %v7700 = vunpack.c.l.b16 %v7668
    %v7701 = vunpack.c.l.b16 %v7669
    %v7702 = vpack.c.b16 %v7687, %v7686
    %v7703 = vpack.c.b16 %v7689, %v7688
    %v7704 = vpack.c.b16 %v7691, %v7690
    %v7705 = vpack.c.b16 %v7693, %v7692
    %v7706 = vpack.c.b16 %v7695, %v7694
    %v7707 = vpack.c.b16 %v7697, %v7696
    %v7708 = vpack.c.b16 %v7699, %v7698
    %v7709 = vpack.c.b16 %v7701, %v7700
    %7718 = vmatpush.bf16.msra.mxu0 %v7709
    %7719 = vmatpush.bf16.msra.mxu0 %v7708
    %7720 = vmatpush.bf16.msra.mxu0 %v7707
    %7721 = vmatpush.bf16.msra.mxu0 %v7706
    %7722 = vmatpush.bf16.msra.mxu0 %v7705
    %7723 = vmatpush.bf16.msra.mxu0 %v7704
    %7724 = vmatpush.bf16.msra.mxu0 %v7703
    %7725 = vmatpush.bf16.msra.mxu0 %v7702
    %7726 = vmatmul.bf16.gmra.mxu0 %v7343
    %v7727 = vpop.f32.mrf.mxu0
    %v7728 = vadd.f32 0.0, %v7727
    %v7729 = vpop.f32.mrf.mxu0
    %7730 = vdwg.mxu0
    %v7731 = vadd.f32 %v7653, %v7728
    %v7732 = vxor.u32 %v7731, 2147483648
    %v7733 = vmul.f32 %v7732, 1.442695
    %v7734 = vpow.pop %v7733
    %v7735 = vadd.f32 %v7734, 1.0
    %v7736 = vrcp.pop %v7735
    %v7737 = vmul.f32 %v7735, %v7736
    %v7738 = vsub.f32 1.0, %v7737
    %v7739 = vmul.f32 %v7736, %v7738
    %v7740 = vadd.f32 %v7736, %v7739
    %vm7741 = vweird.f32 %v7735
    %vm7742 = vweird.f32 %v7736
    %vm7743 = vmor %vm7741, %vm7742
    %v7744 = vsel %vm7743, %v7736, %v7740
    %v7745 = vand.u32 2147483647, %v7735
    %vm7746 = vcmp.eq.f32.partialorder %v7745, 8.507059e+37
    %v7747 = vand.u32 %v7735, 2147483648
    %v7748 = vor.u32 1.1754944e-38, %v7747
    %v7749 = vsel %vm7746, %v7748, %v7744
    %v7750 = vmul.f32 1.0, %v7749
    %v7751 = vld [vmem:[%s4097 + $0x10] sm:$0xff]
    %v7752 = vld [vmem:[#allocation12 + $0x8] sm:$0xf]
    %v7753 = vld [vmem:[#allocation12 + $0x14] sm:$0xf]
    %v7754 = vld [vmem:[#allocation12 + $0x20] sm:$0xf]
    %v7755 = vld [vmem:[#allocation12 + $0x2c] sm:$0xf]
    %v7756 = vld [vmem:[#allocation12 + $0x38] sm:$0xf]
    %v7757 = vld [vmem:[#allocation12 + $0x44] sm:$0xf]
    %v7758 = vld [vmem:[#allocation12 + $0x50] sm:$0xf]
    %v7759 = vld [vmem:[#allocation12 + $0x5c] sm:$0xf]
    %v7760 = vld [vmem:[#allocation12 + $0x68] sm:$0xf]
    %v7761 = vld [vmem:[#allocation12 + $0x74] sm:$0xf]
    %v7762 = vld [vmem:[#allocation12 + $0x80] sm:$0xf]
    %v7763 = vld [vmem:[#allocation12 + $0x8c] sm:$0xf]
    %v7764 = vld [vmem:[#allocation12 + $0x98] sm:$0xf]
    %v7765 = vld [vmem:[#allocation12 + $0xa4] sm:$0xf]
    %v7766 = vld [vmem:[#allocation12 + $0xb0] sm:$0xf]
    %v7767 = vld [vmem:[#allocation12 + $0xbc] sm:$0xf]
    %v7784 = vunpack.c.l.b16 %v7752
    %v7785 = vunpack.c.l.b16 %v7753
    %v7786 = vunpack.c.l.b16 %v7754
    %v7787 = vunpack.c.l.b16 %v7755
    %v7788 = vunpack.c.l.b16 %v7756
    %v7789 = vunpack.c.l.b16 %v7757
    %v7790 = vunpack.c.l.b16 %v7758
    %v7791 = vunpack.c.l.b16 %v7759
    %v7792 = vunpack.c.l.b16 %v7760
    %v7793 = vunpack.c.l.b16 %v7761
    %v7794 = vunpack.c.l.b16 %v7762
    %v7795 = vunpack.c.l.b16 %v7763
    %v7796 = vunpack.c.l.b16 %v7764
    %v7797 = vunpack.c.l.b16 %v7765
    %v7798 = vunpack.c.l.b16 %v7766
    %v7799 = vunpack.c.l.b16 %v7767
    %v7800 = vpack.c.b16 %v7785, %v7784
    %v7801 = vpack.c.b16 %v7787, %v7786
    %v7802 = vpack.c.b16 %v7789, %v7788
    %v7803 = vpack.c.b16 %v7791, %v7790
    %v7804 = vpack.c.b16 %v7793, %v7792
    %v7805 = vpack.c.b16 %v7795, %v7794
    %v7806 = vpack.c.b16 %v7797, %v7796
    %v7807 = vpack.c.b16 %v7799, %v7798
    %7816 = vmatpush.bf16.msra.mxu0 %v7807
    %7817 = vmatpush.bf16.msra.mxu0 %v7806
    %7818 = vmatpush.bf16.msra.mxu0 %v7805
    %7819 = vmatpush.bf16.msra.mxu0 %v7804
    %7820 = vmatpush.bf16.msra.mxu0 %v7803
    %7821 = vmatpush.bf16.msra.mxu0 %v7802
    %7822 = vmatpush.bf16.msra.mxu0 %v7801
    %7823 = vmatpush.bf16.msra.mxu0 %v7800
    %7824 = vmatmul.bf16.gmra.mxu0 %v7343
    %v7825 = vpop.f32.mrf.mxu0
    %v7826 = vadd.f32 %v4316, %v7825
    %v7827 = vpop.f32.mrf.mxu0
    %7828 = vdwg.mxu0
    %v7829 = vmul.f32 %v7652, %v7826
    %v7830 = vadd.f32 %v7751, %v7829
    %v7831 = vtanh.pop %v7830
    %v7832 = vsub.f32 1.0, %v7750
    %v7833 = vmul.f32 %v7832, %v7831
    %v7834 = vmul.f32 %v7750, %v7342
    %v7835 = vadd.f32 %v7833, %v7834
    %v7836 = vpack.c.bf16 %v7835, %v7835
    %v7837 = vld [vmem:[#allocation9] sm:$0xff]
    %v7838 = vld [vmem:[#allocation9 + $0x8] sm:$0xf]
    %v7839 = vld [vmem:[#allocation9 + $0xc] sm:$0xff]
    %v7840 = vld [vmem:[#allocation9 + $0x14] sm:$0xf]
    %v7841 = vld [vmem:[#allocation9 + $0x18] sm:$0xff]
    %v7842 = vld [vmem:[#allocation9 + $0x20] sm:$0xf]
    %v7843 = vld [vmem:[#allocation9 + $0x24] sm:$0xff]
    %v7844 = vld [vmem:[#allocation9 + $0x2c] sm:$0xf]
    %v7845 = vld [vmem:[#allocation9 + $0x30] sm:$0xff]
    %v7846 = vld [vmem:[#allocation9 + $0x38] sm:$0xf]
    %v7847 = vld [vmem:[#allocation9 + $0x3c] sm:$0xff]
    %v7848 = vld [vmem:[#allocation9 + $0x44] sm:$0xf]
    %v7849 = vld [vmem:[#allocation9 + $0x48] sm:$0xff]
    %v7850 = vld [vmem:[#allocation9 + $0x50] sm:$0xf]
    %v7851 = vld [vmem:[#allocation9 + $0x54] sm:$0xff]
    %v7852 = vld [vmem:[#allocation9 + $0x5c] sm:$0xf]
    %v7853 = vld [vmem:[#allocation9 + $0x60] sm:$0xff]
    %v7854 = vld [vmem:[#allocation9 + $0x68] sm:$0xf]
    %v7855 = vld [vmem:[#allocation9 + $0x6c] sm:$0xff]
    %v7856 = vld [vmem:[#allocation9 + $0x74] sm:$0xf]
    %v7857 = vld [vmem:[#allocation9 + $0x78] sm:$0xff]
    %v7858 = vld [vmem:[#allocation9 + $0x80] sm:$0xf]
    %v7859 = vld [vmem:[#allocation9 + $0x84] sm:$0xff]
    %v7860 = vld [vmem:[#allocation9 + $0x8c] sm:$0xf]
    %v7861 = vld [vmem:[#allocation9 + $0x90] sm:$0xff]
    %v7862 = vld [vmem:[#allocation9 + $0x98] sm:$0xf]
    %v7863 = vld [vmem:[#allocation9 + $0x9c] sm:$0xff]
    %v7864 = vld [vmem:[#allocation9 + $0xa4] sm:$0xf]
    %v7865 = vld [vmem:[#allocation9 + $0xa8] sm:$0xff]
    %v7866 = vld [vmem:[#allocation9 + $0xb0] sm:$0xf]
    %v7867 = vld [vmem:[#allocation9 + $0xb4] sm:$0xff]
    %v7868 = vld [vmem:[#allocation9 + $0xbc] sm:$0xf]
    %v7869 = vld [vmem:[%s4] sm:$0x7]
    %v7871 = vperm.slane %v7869, 0
    %v7872 = vperm.slane %v7869, 1
    %v7873 = vperm.slane %v7869, 2
    %v7909 = vunpack.c.l.b16 %v7837
    %v7910 = vunpack.c.h.b16 %v7837
    %v7911 = vunpack.c.l.b16 %v7838
    %v7912 = vunpack.c.l.b16 %v7839
    %v7913 = vunpack.c.h.b16 %v7839
    %v7914 = vunpack.c.l.b16 %v7840
    %v7915 = vunpack.c.l.b16 %v7841
    %v7916 = vunpack.c.h.b16 %v7841
    %v7917 = vunpack.c.l.b16 %v7842
    %v7918 = vunpack.c.l.b16 %v7843
    %v7919 = vunpack.c.h.b16 %v7843
    %v7920 = vunpack.c.l.b16 %v7844
    %v7921 = vunpack.c.l.b16 %v7845
    %v7922 = vunpack.c.h.b16 %v7845
    %v7923 = vunpack.c.l.b16 %v7846
    %v7924 = vunpack.c.l.b16 %v7847
    %v7925 = vunpack.c.h.b16 %v7847
    %v7926 = vunpack.c.l.b16 %v7848
    %v7927 = vunpack.c.l.b16 %v7849
    %v7928 = vunpack.c.h.b16 %v7849
    %v7929 = vunpack.c.l.b16 %v7850
    %v7930 = vunpack.c.l.b16 %v7851
    %v7931 = vunpack.c.h.b16 %v7851
    %v7932 = vunpack.c.l.b16 %v7852
    %v7933 = vunpack.c.l.b16 %v7853
    %v7934 = vunpack.c.h.b16 %v7853
    %v7935 = vunpack.c.l.b16 %v7854
    %v7936 = vunpack.c.l.b16 %v7855
    %v7937 = vunpack.c.h.b16 %v7855
    %v7938 = vunpack.c.l.b16 %v7856
    %v7939 = vunpack.c.l.b16 %v7857
    %v7940 = vunpack.c.h.b16 %v7857
    %v7941 = vunpack.c.l.b16 %v7858
    %v7942 = vunpack.c.l.b16 %v7859
    %v7943 = vunpack.c.h.b16 %v7859
    %v7944 = vunpack.c.l.b16 %v7860
    %v7945 = vunpack.c.l.b16 %v7861
    %v7946 = vunpack.c.h.b16 %v7861
    %v7947 = vunpack.c.l.b16 %v7862
    %v7948 = vunpack.c.l.b16 %v7863
    %v7949 = vunpack.c.h.b16 %v7863
    %v7950 = vunpack.c.l.b16 %v7864
    %v7951 = vunpack.c.l.b16 %v7865
    %v7952 = vunpack.c.h.b16 %v7865
    %v7953 = vunpack.c.l.b16 %v7866
    %v7954 = vunpack.c.l.b16 %v7867
    %v7955 = vunpack.c.h.b16 %v7867
    %v7956 = vunpack.c.l.b16 %v7868
    %v7957 = vpack.c.b16 %v7912, %v7909
    %v7958 = vpack.c.b16 %v7913, %v7910
    %v7959 = vpack.c.b16 %v7914, %v7911
    %v7960 = vpack.c.b16 %v7918, %v7915
    %v7961 = vpack.c.b16 %v7919, %v7916
    %v7962 = vpack.c.b16 %v7920, %v7917
    %v7963 = vpack.c.b16 %v7924, %v7921
    %v7964 = vpack.c.b16 %v7925, %v7922
    %v7965 = vpack.c.b16 %v7926, %v7923
    %v7966 = vpack.c.b16 %v7930, %v7927
    %v7967 = vpack.c.b16 %v7931, %v7928
    %v7968 = vpack.c.b16 %v7932, %v7929
    %v7969 = vpack.c.b16 %v7936, %v7933
    %v7970 = vpack.c.b16 %v7937, %v7934
    %v7971 = vpack.c.b16 %v7938, %v7935
    %v7972 = vpack.c.b16 %v7942, %v7939
    %v7973 = vpack.c.b16 %v7943, %v7940
    %v7974 = vpack.c.b16 %v7944, %v7941
    %v7975 = vpack.c.b16 %v7948, %v7945
    %v7976 = vpack.c.b16 %v7949, %v7946
    %v7977 = vpack.c.b16 %v7950, %v7947
    %v7978 = vpack.c.b16 %v7954, %v7951
    %v7979 = vpack.c.b16 %v7955, %v7952
    %v7980 = vpack.c.b16 %v7956, %v7953
    %8005 = vmatpush.bf16.msra.mxu0 %v7978
    %8006 = vmatpush.bf16.msra.mxu0 %v7975
    %8007 = vmatpush.bf16.msra.mxu0 %v7972
    %8008 = vmatpush.bf16.msra.mxu0 %v7969
    %8009 = vmatpush.bf16.msra.mxu0 %v7966
    %8010 = vmatpush.bf16.msra.mxu0 %v7963
    %8011 = vmatpush.bf16.msra.mxu0 %v7960
    %8012 = vmatpush.bf16.msra.mxu0 %v7957
    %8013 = vmatmul.bf16.gmra.mxu0 %v7836
    %v8014 = vpop.f32.mrf.mxu0
    %v8015 = vadd.f32 %v7871, %v8014
    %v8016 = vpop.f32.mrf.mxu0
    %8017 = vdwg.mxu0
    %8018 = vmatpush.bf16.msra.mxu0 %v7979
    %8019 = vmatpush.bf16.msra.mxu0 %v7976
    %8020 = vmatpush.bf16.msra.mxu0 %v7973
    %8021 = vmatpush.bf16.msra.mxu0 %v7970
    %8022 = vmatpush.bf16.msra.mxu0 %v7967
    %8023 = vmatpush.bf16.msra.mxu0 %v7964
    %8024 = vmatpush.bf16.msra.mxu0 %v7961
    %8025 = vmatpush.bf16.msra.mxu0 %v7958
    %8026 = vmatmul.bf16.gmra.mxu0 %v7836
    %v8027 = vpop.f32.mrf.mxu0
    %v8028 = vadd.f32 %v7872, %v8027
    %v8029 = vpop.f32.mrf.mxu0
    %8030 = vdwg.mxu0
    %8031 = vmatpush.bf16.msra.mxu0 %v7980
    %8032 = vmatpush.bf16.msra.mxu0 %v7977
    %8033 = vmatpush.bf16.msra.mxu0 %v7974
    %8034 = vmatpush.bf16.msra.mxu0 %v7971
    %8035 = vmatpush.bf16.msra.mxu0 %v7968
    %8036 = vmatpush.bf16.msra.mxu0 %v7965
    %8037 = vmatpush.bf16.msra.mxu0 %v7962
    %8038 = vmatpush.bf16.msra.mxu0 %v7959
    %8039 = vmatmul.bf16.gmra.mxu0 %v7836
    %v8040 = vpop.f32.mrf.mxu0
    %v8041 = vadd.f32 %v7873, %v8040
    %v8042 = vpop.f32.mrf.mxu0
    %8043 = vdwg.mxu0
    %s8044 = scalar_lea.vmem [#allocation3], 168
    %8045 = vst [vmem:[%s8044] sm:$0xff] %v8015
    %8046 = vst [vmem:[%s8044 + $0x8] sm:$0xff] %v8028
    %8047 = vst [vmem:[%s8044 + $0x10] sm:$0xff] %v8041
    %v8048 = vld [vmem:[%s10] sm:$0x1]
    %v8049 = vld [vmem:[#allocation3] sm:$0xff]
    %v8050 = vld [vmem:[#allocation13] sm:$0xf]
    %v8051 = vld [vmem:[#allocation13 + $0xc] sm:$0xf]
    %v8052 = vld [vmem:[#allocation13 + $0x18] sm:$0xf]
    %v8053 = vld [vmem:[#allocation13 + $0x24] sm:$0xf]
    %v8054 = vld [vmem:[#allocation13 + $0x30] sm:$0xf]
    %v8055 = vld [vmem:[#allocation13 + $0x3c] sm:$0xf]
    %v8056 = vld [vmem:[#allocation13 + $0x48] sm:$0xf]
    %v8057 = vld [vmem:[#allocation13 + $0x54] sm:$0xf]
    %v8058 = vld [vmem:[#allocation13 + $0x60] sm:$0xf]
    %v8059 = vld [vmem:[#allocation13 + $0x6c] sm:$0xf]
    %v8060 = vld [vmem:[#allocation13 + $0x78] sm:$0xf]
    %v8061 = vld [vmem:[#allocation13 + $0x84] sm:$0xf]
    %v8062 = vld [vmem:[#allocation13 + $0x90] sm:$0xf]
    %v8063 = vld [vmem:[#allocation13 + $0x9c] sm:$0xf]
    %v8064 = vld [vmem:[#allocation13 + $0xa8] sm:$0xf]
    %v8065 = vld [vmem:[#allocation13 + $0xb4] sm:$0xf]
    %v8082 = vunpack.c.l.b16 %v8050
    %v8083 = vunpack.c.l.b16 %v8051
    %v8084 = vunpack.c.l.b16 %v8052
    %v8085 = vunpack.c.l.b16 %v8053
    %v8086 = vunpack.c.l.b16 %v8054
    %v8087 = vunpack.c.l.b16 %v8055
    %v8088 = vunpack.c.l.b16 %v8056
    %v8089 = vunpack.c.l.b16 %v8057
    %v8090 = vunpack.c.l.b16 %v8058
    %v8091 = vunpack.c.l.b16 %v8059
    %v8092 = vunpack.c.l.b16 %v8060
    %v8093 = vunpack.c.l.b16 %v8061
    %v8094 = vunpack.c.l.b16 %v8062
    %v8095 = vunpack.c.l.b16 %v8063
    %v8096 = vunpack.c.l.b16 %v8064
    %v8097 = vunpack.c.l.b16 %v8065
    %v8098 = vpack.c.b16 %v8083, %v8082
    %v8099 = vpack.c.b16 %v8085, %v8084
    %v8100 = vpack.c.b16 %v8087, %v8086
    %v8101 = vpack.c.b16 %v8089, %v8088
    %v8102 = vpack.c.b16 %v8091, %v8090
    %v8103 = vpack.c.b16 %v8093, %v8092
    %v8104 = vpack.c.b16 %v8095, %v8094
    %v8105 = vpack.c.b16 %v8097, %v8096
    %8114 = vmatpush.bf16.msra.mxu0 %v8105
    %8115 = vmatpush.bf16.msra.mxu0 %v8104
    %8116 = vmatpush.bf16.msra.mxu0 %v8103
    %8117 = vmatpush.bf16.msra.mxu0 %v8102
    %8118 = vmatpush.bf16.msra.mxu0 %v8101
    %8119 = vmatpush.bf16.msra.mxu0 %v8100
    %8120 = vmatpush.bf16.msra.mxu0 %v8099
    %8121 = vmatpush.bf16.msra.mxu0 %v8098
    %8122 = vmatmul.bf16.gmra.mxu0 0
    %v8123 = vpop.f32.mrf.mxu0
    %v8124 = vadd.f32 0.0, %v8123
    %v8125 = vpop.f32.mrf.mxu0
    %8126 = vdwg.mxu0
    %v8127 = vadd.f32 %v8049, %v8124
    %v8128 = vxor.u32 %v8127, 2147483648
    %v8129 = vmul.f32 %v8128, 1.442695
    %v8130 = vpow.pop %v8129
    %v8131 = vadd.f32 %v8130, 1.0
    %v8132 = vrcp.pop %v8131
    %v8133 = vmul.f32 %v8131, %v8132
    %v8134 = vsub.f32 1.0, %v8133
    %v8135 = vmul.f32 %v8132, %v8134
    %v8136 = vadd.f32 %v8132, %v8135
    %vm8137 = vweird.f32 %v8131
    %vm8138 = vweird.f32 %v8132
    %vm8139 = vmor %vm8137, %vm8138
    %v8140 = vsel %vm8139, %v8132, %v8136
    %v8141 = vand.u32 2147483647, %v8131
    %vm8142 = vcmp.eq.f32.partialorder %v8141, 8.507059e+37
    %v8143 = vand.u32 %v8131, 2147483648
    %v8144 = vor.u32 1.1754944e-38, %v8143
    %v8145 = vsel %vm8142, %v8144, %v8140
    %v8146 = vmul.f32 1.0, %v8145
    %v8147 = vld [vmem:[#allocation3 + $0x8] sm:$0xff]
    %v8148 = vld [vmem:[#allocation13 + $0x4] sm:$0xf]
    %v8149 = vld [vmem:[#allocation13 + $0x10] sm:$0xf]
    %v8150 = vld [vmem:[#allocation13 + $0x1c] sm:$0xf]
    %v8151 = vld [vmem:[#allocation13 + $0x28] sm:$0xf]
    %v8152 = vld [vmem:[#allocation13 + $0x34] sm:$0xf]
    %v8153 = vld [vmem:[#allocation13 + $0x40] sm:$0xf]
    %v8154 = vld [vmem:[#allocation13 + $0x4c] sm:$0xf]
    %v8155 = vld [vmem:[#allocation13 + $0x58] sm:$0xf]
    %v8156 = vld [vmem:[#allocation13 + $0x64] sm:$0xf]
    %v8157 = vld [vmem:[#allocation13 + $0x70] sm:$0xf]
    %v8158 = vld [vmem:[#allocation13 + $0x7c] sm:$0xf]
    %v8159 = vld [vmem:[#allocation13 + $0x88] sm:$0xf]
    %v8160 = vld [vmem:[#allocation13 + $0x94] sm:$0xf]
    %v8161 = vld [vmem:[#allocation13 + $0xa0] sm:$0xf]
    %v8162 = vld [vmem:[#allocation13 + $0xac] sm:$0xf]
    %v8163 = vld [vmem:[#allocation13 + $0xb8] sm:$0xf]
    %v8180 = vunpack.c.l.b16 %v8148
    %v8181 = vunpack.c.l.b16 %v8149
    %v8182 = vunpack.c.l.b16 %v8150
    %v8183 = vunpack.c.l.b16 %v8151
    %v8184 = vunpack.c.l.b16 %v8152
    %v8185 = vunpack.c.l.b16 %v8153
    %v8186 = vunpack.c.l.b16 %v8154
    %v8187 = vunpack.c.l.b16 %v8155
    %v8188 = vunpack.c.l.b16 %v8156
    %v8189 = vunpack.c.l.b16 %v8157
    %v8190 = vunpack.c.l.b16 %v8158
    %v8191 = vunpack.c.l.b16 %v8159
    %v8192 = vunpack.c.l.b16 %v8160
    %v8193 = vunpack.c.l.b16 %v8161
    %v8194 = vunpack.c.l.b16 %v8162
    %v8195 = vunpack.c.l.b16 %v8163
    %v8196 = vpack.c.b16 %v8181, %v8180
    %v8197 = vpack.c.b16 %v8183, %v8182
    %v8198 = vpack.c.b16 %v8185, %v8184
    %v8199 = vpack.c.b16 %v8187, %v8186
    %v8200 = vpack.c.b16 %v8189, %v8188
    %v8201 = vpack.c.b16 %v8191, %v8190
    %v8202 = vpack.c.b16 %v8193, %v8192
    %v8203 = vpack.c.b16 %v8195, %v8194
    %8212 = vmatpush.bf16.msra.mxu0 %v8203
    %8213 = vmatpush.bf16.msra.mxu0 %v8202
    %8214 = vmatpush.bf16.msra.mxu0 %v8201
    %8215 = vmatpush.bf16.msra.mxu0 %v8200
    %8216 = vmatpush.bf16.msra.mxu0 %v8199
    %8217 = vmatpush.bf16.msra.mxu0 %v8198
    %8218 = vmatpush.bf16.msra.mxu0 %v8197
    %8219 = vmatpush.bf16.msra.mxu0 %v8196
    %8220 = vmatmul.bf16.gmra.mxu0 0
    %v8221 = vpop.f32.mrf.mxu0
    %v8222 = vadd.f32 0.0, %v8221
    %v8223 = vpop.f32.mrf.mxu0
    %8224 = vdwg.mxu0
    %v8225 = vadd.f32 %v8147, %v8222
    %v8226 = vxor.u32 %v8225, 2147483648
    %v8227 = vmul.f32 %v8226, 1.442695
    %v8228 = vpow.pop %v8227
    %v8229 = vadd.f32 %v8228, 1.0
    %v8230 = vrcp.pop %v8229
    %v8231 = vmul.f32 %v8229, %v8230
    %v8232 = vsub.f32 1.0, %v8231
    %v8233 = vmul.f32 %v8230, %v8232
    %v8234 = vadd.f32 %v8230, %v8233
    %vm8235 = vweird.f32 %v8229
    %vm8236 = vweird.f32 %v8230
    %vm8237 = vmor %vm8235, %vm8236
    %v8238 = vsel %vm8237, %v8230, %v8234
    %v8239 = vand.u32 2147483647, %v8229
    %vm8240 = vcmp.eq.f32.partialorder %v8239, 8.507059e+37
    %v8241 = vand.u32 %v8229, 2147483648
    %v8242 = vor.u32 1.1754944e-38, %v8241
    %v8243 = vsel %vm8240, %v8242, %v8238
    %v8244 = vmul.f32 1.0, %v8243
    %v8245 = vld [vmem:[#allocation3 + $0x10] sm:$0xff]
    %v8246 = vld [vmem:[#allocation13 + $0x8] sm:$0xf]
    %v8247 = vld [vmem:[#allocation13 + $0x14] sm:$0xf]
    %v8248 = vld [vmem:[#allocation13 + $0x20] sm:$0xf]
    %v8249 = vld [vmem:[#allocation13 + $0x2c] sm:$0xf]
    %v8250 = vld [vmem:[#allocation13 + $0x38] sm:$0xf]
    %v8251 = vld [vmem:[#allocation13 + $0x44] sm:$0xf]
    %v8252 = vld [vmem:[#allocation13 + $0x50] sm:$0xf]
    %v8253 = vld [vmem:[#allocation13 + $0x5c] sm:$0xf]
    %v8254 = vld [vmem:[#allocation13 + $0x68] sm:$0xf]
    %v8255 = vld [vmem:[#allocation13 + $0x74] sm:$0xf]
    %v8256 = vld [vmem:[#allocation13 + $0x80] sm:$0xf]
    %v8257 = vld [vmem:[#allocation13 + $0x8c] sm:$0xf]
    %v8258 = vld [vmem:[#allocation13 + $0x98] sm:$0xf]
    %v8259 = vld [vmem:[#allocation13 + $0xa4] sm:$0xf]
    %v8260 = vld [vmem:[#allocation13 + $0xb0] sm:$0xf]
    %v8261 = vld [vmem:[#allocation13 + $0xbc] sm:$0xf]
    %v8263 = vperm.slane %v8048, 0
    %v8281 = vunpack.c.l.b16 %v8246
    %v8282 = vunpack.c.l.b16 %v8247
    %v8283 = vunpack.c.l.b16 %v8248
    %v8284 = vunpack.c.l.b16 %v8249
    %v8285 = vunpack.c.l.b16 %v8250
    %v8286 = vunpack.c.l.b16 %v8251
    %v8287 = vunpack.c.l.b16 %v8252
    %v8288 = vunpack.c.l.b16 %v8253
    %v8289 = vunpack.c.l.b16 %v8254
    %v8290 = vunpack.c.l.b16 %v8255
    %v8291 = vunpack.c.l.b16 %v8256
    %v8292 = vunpack.c.l.b16 %v8257
    %v8293 = vunpack.c.l.b16 %v8258
    %v8294 = vunpack.c.l.b16 %v8259
    %v8295 = vunpack.c.l.b16 %v8260
    %v8296 = vunpack.c.l.b16 %v8261
    %v8297 = vpack.c.b16 %v8282, %v8281
    %v8298 = vpack.c.b16 %v8284, %v8283
    %v8299 = vpack.c.b16 %v8286, %v8285
    %v8300 = vpack.c.b16 %v8288, %v8287
    %v8301 = vpack.c.b16 %v8290, %v8289
    %v8302 = vpack.c.b16 %v8292, %v8291
    %v8303 = vpack.c.b16 %v8294, %v8293
    %v8304 = vpack.c.b16 %v8296, %v8295
    %8313 = vmatpush.bf16.msra.mxu0 %v8304
    %8314 = vmatpush.bf16.msra.mxu0 %v8303
    %8315 = vmatpush.bf16.msra.mxu0 %v8302
    %8316 = vmatpush.bf16.msra.mxu0 %v8301
    %8317 = vmatpush.bf16.msra.mxu0 %v8300
    %8318 = vmatpush.bf16.msra.mxu0 %v8299
    %8319 = vmatpush.bf16.msra.mxu0 %v8298
    %8320 = vmatpush.bf16.msra.mxu0 %v8297
    %8321 = vmatmul.bf16.gmra.mxu0 0
    %v8322 = vpop.f32.mrf.mxu0
    %v8323 = vadd.f32 %v8263, %v8322
    %v8324 = vpop.f32.mrf.mxu0
    %8325 = vdwg.mxu0
    %v8326 = vmul.f32 %v8146, %v8323
    %v8327 = vadd.f32 %v8245, %v8326
    %v8328 = vtanh.pop %v8327
    %v8329 = vsub.f32 1.0, %v8244
    %v8330 = vmul.f32 %v8329, %v8328
    %v8331 = vmul.f32 %v8244, 0.0
    %v8332 = vadd.f32 %v8330, %v8331
    %v8333 = vpack.c.bf16 %v8332, %v8332
    %v8334 = vld [vmem:[%s5086] sm:$0xff]
    %8335 = vmatpush.bf16.msra.mxu0 %v8105
    %8336 = vmatpush.bf16.msra.mxu0 %v8104
    %8337 = vmatpush.bf16.msra.mxu0 %v8103
    %8338 = vmatpush.bf16.msra.mxu0 %v8102
    %8339 = vmatpush.bf16.msra.mxu0 %v8101
    %8340 = vmatpush.bf16.msra.mxu0 %v8100
    %8341 = vmatpush.bf16.msra.mxu0 %v8099
    %8342 = vmatpush.bf16.msra.mxu0 %v8098
    %8343 = vmatmul.bf16.gmra.mxu0 %v8333
    %v8344 = vpop.f32.mrf.mxu0
    %v8345 = vadd.f32 0.0, %v8344
    %v8346 = vpop.f32.mrf.mxu0
    %8347 = vdwg.mxu0
    %v8348 = vadd.f32 %v8334, %v8345
    %v8349 = vxor.u32 %v8348, 2147483648
    %v8350 = vmul.f32 %v8349, 1.442695
    %v8351 = vpow.pop %v8350
    %v8352 = vadd.f32 %v8351, 1.0
    %v8353 = vrcp.pop %v8352
    %v8354 = vmul.f32 %v8352, %v8353
    %v8355 = vsub.f32 1.0, %v8354
    %v8356 = vmul.f32 %v8353, %v8355
    %v8357 = vadd.f32 %v8353, %v8356
    %vm8358 = vweird.f32 %v8352
    %vm8359 = vweird.f32 %v8353
    %vm8360 = vmor %vm8358, %vm8359
    %v8361 = vsel %vm8360, %v8353, %v8357
    %v8362 = vand.u32 2147483647, %v8352
    %vm8363 = vcmp.eq.f32.partialorder %v8362, 8.507059e+37
    %v8364 = vand.u32 %v8352, 2147483648
    %v8365 = vor.u32 1.1754944e-38, %v8364
    %v8366 = vsel %vm8363, %v8365, %v8361
    %v8367 = vmul.f32 1.0, %v8366
    %v8368 = vld [vmem:[%s5086 + $0x8] sm:$0xff]
    %8369 = vmatpush.bf16.msra.mxu0 %v8203
    %8370 = vmatpush.bf16.msra.mxu0 %v8202
    %8371 = vmatpush.bf16.msra.mxu0 %v8201
    %8372 = vmatpush.bf16.msra.mxu0 %v8200
    %8373 = vmatpush.bf16.msra.mxu0 %v8199
    %8374 = vmatpush.bf16.msra.mxu0 %v8198
    %8375 = vmatpush.bf16.msra.mxu0 %v8197
    %8376 = vmatpush.bf16.msra.mxu0 %v8196
    %8377 = vmatmul.bf16.gmra.mxu0 %v8333
    %v8378 = vpop.f32.mrf.mxu0
    %v8379 = vadd.f32 0.0, %v8378
    %v8380 = vpop.f32.mrf.mxu0
    %8381 = vdwg.mxu0
    %v8382 = vadd.f32 %v8368, %v8379
    %v8383 = vxor.u32 %v8382, 2147483648
    %v8384 = vmul.f32 %v8383, 1.442695
    %v8385 = vpow.pop %v8384
    %v8386 = vadd.f32 %v8385, 1.0
    %v8387 = vrcp.pop %v8386
    %v8388 = vmul.f32 %v8386, %v8387
    %v8389 = vsub.f32 1.0, %v8388
    %v8390 = vmul.f32 %v8387, %v8389
    %v8391 = vadd.f32 %v8387, %v8390
    %vm8392 = vweird.f32 %v8386
    %vm8393 = vweird.f32 %v8387
    %vm8394 = vmor %vm8392, %vm8393
    %v8395 = vsel %vm8394, %v8387, %v8391
    %v8396 = vand.u32 2147483647, %v8386
    %vm8397 = vcmp.eq.f32.partialorder %v8396, 8.507059e+37
    %v8398 = vand.u32 %v8386, 2147483648
    %v8399 = vor.u32 1.1754944e-38, %v8398
    %v8400 = vsel %vm8397, %v8399, %v8395
    %v8401 = vmul.f32 1.0, %v8400
    %v8402 = vld [vmem:[%s5086 + $0x10] sm:$0xff]
    %8403 = vmatpush.bf16.msra.mxu0 %v8304
    %8404 = vmatpush.bf16.msra.mxu0 %v8303
    %8405 = vmatpush.bf16.msra.mxu0 %v8302
    %8406 = vmatpush.bf16.msra.mxu0 %v8301
    %8407 = vmatpush.bf16.msra.mxu0 %v8300
    %8408 = vmatpush.bf16.msra.mxu0 %v8299
    %8409 = vmatpush.bf16.msra.mxu0 %v8298
    %8410 = vmatpush.bf16.msra.mxu0 %v8297
    %8411 = vmatmul.bf16.gmra.mxu0 %v8333
    %v8412 = vpop.f32.mrf.mxu0
    %v8413 = vadd.f32 %v8263, %v8412
    %v8414 = vpop.f32.mrf.mxu0
    %8415 = vdwg.mxu0
    %v8416 = vmul.f32 %v8367, %v8413
    %v8417 = vadd.f32 %v8402, %v8416
    %v8418 = vtanh.pop %v8417
    %v8419 = vsub.f32 1.0, %v8401
    %v8420 = vmul.f32 %v8419, %v8418
    %v8421 = vmul.f32 %v8401, %v8332
    %v8422 = vadd.f32 %v8420, %v8421
    %v8423 = vpack.c.bf16 %v8422, %v8422
    %v8424 = vld [vmem:[%s5579] sm:$0xff]
    %8425 = vmatpush.bf16.msra.mxu0 %v8105
    %8426 = vmatpush.bf16.msra.mxu0 %v8104
    %8427 = vmatpush.bf16.msra.mxu0 %v8103
    %8428 = vmatpush.bf16.msra.mxu0 %v8102
    %8429 = vmatpush.bf16.msra.mxu0 %v8101
    %8430 = vmatpush.bf16.msra.mxu0 %v8100
    %8431 = vmatpush.bf16.msra.mxu0 %v8099
    %8432 = vmatpush.bf16.msra.mxu0 %v8098
    %8433 = vmatmul.bf16.gmra.mxu0 %v8423
    %v8434 = vpop.f32.mrf.mxu0
    %v8435 = vadd.f32 0.0, %v8434
    %v8436 = vpop.f32.mrf.mxu0
    %8437 = vdwg.mxu0
    %v8438 = vadd.f32 %v8424, %v8435
    %v8439 = vxor.u32 %v8438, 2147483648
    %v8440 = vmul.f32 %v8439, 1.442695
    %v8441 = vpow.pop %v8440
    %v8442 = vadd.f32 %v8441, 1.0
    %v8443 = vrcp.pop %v8442
    %v8444 = vmul.f32 %v8442, %v8443
    %v8445 = vsub.f32 1.0, %v8444
    %v8446 = vmul.f32 %v8443, %v8445
    %v8447 = vadd.f32 %v8443, %v8446
    %vm8448 = vweird.f32 %v8442
    %vm8449 = vweird.f32 %v8443
    %vm8450 = vmor %vm8448, %vm8449
    %v8451 = vsel %vm8450, %v8443, %v8447
    %v8452 = vand.u32 2147483647, %v8442
    %vm8453 = vcmp.eq.f32.partialorder %v8452, 8.507059e+37
    %v8454 = vand.u32 %v8442, 2147483648
    %v8455 = vor.u32 1.1754944e-38, %v8454
    %v8456 = vsel %vm8453, %v8455, %v8451
    %v8457 = vmul.f32 1.0, %v8456
    %v8458 = vld [vmem:[%s5579 + $0x8] sm:$0xff]
    %8459 = vmatpush.bf16.msra.mxu0 %v8203
    %8460 = vmatpush.bf16.msra.mxu0 %v8202
    %8461 = vmatpush.bf16.msra.mxu0 %v8201
    %8462 = vmatpush.bf16.msra.mxu0 %v8200
    %8463 = vmatpush.bf16.msra.mxu0 %v8199
    %8464 = vmatpush.bf16.msra.mxu0 %v8198
    %8465 = vmatpush.bf16.msra.mxu0 %v8197
    %8466 = vmatpush.bf16.msra.mxu0 %v8196
    %8467 = vmatmul.bf16.gmra.mxu0 %v8423
    %v8468 = vpop.f32.mrf.mxu0
    %v8469 = vadd.f32 0.0, %v8468
    %v8470 = vpop.f32.mrf.mxu0
    %8471 = vdwg.mxu0
    %v8472 = vadd.f32 %v8458, %v8469
    %v8473 = vxor.u32 %v8472, 2147483648
    %v8474 = vmul.f32 %v8473, 1.442695
    %v8475 = vpow.pop %v8474
    %v8476 = vadd.f32 %v8475, 1.0
    %v8477 = vrcp.pop %v8476
    %v8478 = vmul.f32 %v8476, %v8477
    %v8479 = vsub.f32 1.0, %v8478
    %v8480 = vmul.f32 %v8477, %v8479
    %v8481 = vadd.f32 %v8477, %v8480
    %vm8482 = vweird.f32 %v8476
    %vm8483 = vweird.f32 %v8477
    %vm8484 = vmor %vm8482, %vm8483
    %v8485 = vsel %vm8484, %v8477, %v8481
    %v8486 = vand.u32 2147483647, %v8476
    %vm8487 = vcmp.eq.f32.partialorder %v8486, 8.507059e+37
    %v8488 = vand.u32 %v8476, 2147483648
    %v8489 = vor.u32 1.1754944e-38, %v8488
    %v8490 = vsel %vm8487, %v8489, %v8485
    %v8491 = vmul.f32 1.0, %v8490
    %v8492 = vld [vmem:[%s5579 + $0x10] sm:$0xff]
    %8493 = vmatpush.bf16.msra.mxu0 %v8304
    %8494 = vmatpush.bf16.msra.mxu0 %v8303
    %8495 = vmatpush.bf16.msra.mxu0 %v8302
    %8496 = vmatpush.bf16.msra.mxu0 %v8301
    %8497 = vmatpush.bf16.msra.mxu0 %v8300
    %8498 = vmatpush.bf16.msra.mxu0 %v8299
    %8499 = vmatpush.bf16.msra.mxu0 %v8298
    %8500 = vmatpush.bf16.msra.mxu0 %v8297
    %8501 = vmatmul.bf16.gmra.mxu0 %v8423
    %v8502 = vpop.f32.mrf.mxu0
    %v8503 = vadd.f32 %v8263, %v8502
    %v8504 = vpop.f32.mrf.mxu0
    %8505 = vdwg.mxu0
    %v8506 = vmul.f32 %v8457, %v8503
    %v8507 = vadd.f32 %v8492, %v8506
    %v8508 = vtanh.pop %v8507
    %v8509 = vsub.f32 1.0, %v8491
    %v8510 = vmul.f32 %v8509, %v8508
    %v8511 = vmul.f32 %v8491, %v8422
    %v8512 = vadd.f32 %v8510, %v8511
    %v8513 = vpack.c.bf16 %v8512, %v8512
    %v8514 = vld [vmem:[%s6072] sm:$0xff]
    %8515 = vmatpush.bf16.msra.mxu0 %v8105
    %8516 = vmatpush.bf16.msra.mxu0 %v8104
    %8517 = vmatpush.bf16.msra.mxu0 %v8103
    %8518 = vmatpush.bf16.msra.mxu0 %v8102
    %8519 = vmatpush.bf16.msra.mxu0 %v8101
    %8520 = vmatpush.bf16.msra.mxu0 %v8100
    %8521 = vmatpush.bf16.msra.mxu0 %v8099
    %8522 = vmatpush.bf16.msra.mxu0 %v8098
    %8523 = vmatmul.bf16.gmra.mxu0 %v8513
    %v8524 = vpop.f32.mrf.mxu0
    %v8525 = vadd.f32 0.0, %v8524
    %v8526 = vpop.f32.mrf.mxu0
    %8527 = vdwg.mxu0
    %v8528 = vadd.f32 %v8514, %v8525
    %v8529 = vxor.u32 %v8528, 2147483648
    %v8530 = vmul.f32 %v8529, 1.442695
    %v8531 = vpow.pop %v8530
    %v8532 = vadd.f32 %v8531, 1.0
    %v8533 = vrcp.pop %v8532
    %v8534 = vmul.f32 %v8532, %v8533
    %v8535 = vsub.f32 1.0, %v8534
    %v8536 = vmul.f32 %v8533, %v8535
    %v8537 = vadd.f32 %v8533, %v8536
    %vm8538 = vweird.f32 %v8532
    %vm8539 = vweird.f32 %v8533
    %vm8540 = vmor %vm8538, %vm8539
    %v8541 = vsel %vm8540, %v8533, %v8537
    %v8542 = vand.u32 2147483647, %v8532
    %vm8543 = vcmp.eq.f32.partialorder %v8542, 8.507059e+37
    %v8544 = vand.u32 %v8532, 2147483648
    %v8545 = vor.u32 1.1754944e-38, %v8544
    %v8546 = vsel %vm8543, %v8545, %v8541
    %v8547 = vmul.f32 1.0, %v8546
    %v8548 = vld [vmem:[%s6072 + $0x8] sm:$0xff]
    %8549 = vmatpush.bf16.msra.mxu0 %v8203
    %8550 = vmatpush.bf16.msra.mxu0 %v8202
    %8551 = vmatpush.bf16.msra.mxu0 %v8201
    %8552 = vmatpush.bf16.msra.mxu0 %v8200
    %8553 = vmatpush.bf16.msra.mxu0 %v8199
    %8554 = vmatpush.bf16.msra.mxu0 %v8198
    %8555 = vmatpush.bf16.msra.mxu0 %v8197
    %8556 = vmatpush.bf16.msra.mxu0 %v8196
    %8557 = vmatmul.bf16.gmra.mxu0 %v8513
    %v8558 = vpop.f32.mrf.mxu0
    %v8559 = vadd.f32 0.0, %v8558
    %v8560 = vpop.f32.mrf.mxu0
    %8561 = vdwg.mxu0
    %v8562 = vadd.f32 %v8548, %v8559
    %v8563 = vxor.u32 %v8562, 2147483648
    %v8564 = vmul.f32 %v8563, 1.442695
    %v8565 = vpow.pop %v8564
    %v8566 = vadd.f32 %v8565, 1.0
    %v8567 = vrcp.pop %v8566
    %v8568 = vmul.f32 %v8566, %v8567
    %v8569 = vsub.f32 1.0, %v8568
    %v8570 = vmul.f32 %v8567, %v8569
    %v8571 = vadd.f32 %v8567, %v8570
    %vm8572 = vweird.f32 %v8566
    %vm8573 = vweird.f32 %v8567
    %vm8574 = vmor %vm8572, %vm8573
    %v8575 = vsel %vm8574, %v8567, %v8571
    %v8576 = vand.u32 2147483647, %v8566
    %vm8577 = vcmp.eq.f32.partialorder %v8576, 8.507059e+37
    %v8578 = vand.u32 %v8566, 2147483648
    %v8579 = vor.u32 1.1754944e-38, %v8578
    %v8580 = vsel %vm8577, %v8579, %v8575
    %v8581 = vmul.f32 1.0, %v8580
    %v8582 = vld [vmem:[%s6072 + $0x10] sm:$0xff]
    %8583 = vmatpush.bf16.msra.mxu0 %v8304
    %8584 = vmatpush.bf16.msra.mxu0 %v8303
    %8585 = vmatpush.bf16.msra.mxu0 %v8302
    %8586 = vmatpush.bf16.msra.mxu0 %v8301
    %8587 = vmatpush.bf16.msra.mxu0 %v8300
    %8588 = vmatpush.bf16.msra.mxu0 %v8299
    %8589 = vmatpush.bf16.msra.mxu0 %v8298
    %8590 = vmatpush.bf16.msra.mxu0 %v8297
    %8591 = vmatmul.bf16.gmra.mxu0 %v8513
    %v8592 = vpop.f32.mrf.mxu0
    %v8593 = vadd.f32 %v8263, %v8592
    %v8594 = vpop.f32.mrf.mxu0
    %8595 = vdwg.mxu0
    %v8596 = vmul.f32 %v8547, %v8593
    %v8597 = vadd.f32 %v8582, %v8596
    %v8598 = vtanh.pop %v8597
    %v8599 = vsub.f32 1.0, %v8581
    %v8600 = vmul.f32 %v8599, %v8598
    %v8601 = vmul.f32 %v8581, %v8512
    %v8602 = vadd.f32 %v8600, %v8601
    %v8603 = vpack.c.bf16 %v8602, %v8602
    %v8604 = vld [vmem:[%s6565] sm:$0xff]
    %8605 = vmatpush.bf16.msra.mxu0 %v8105
    %8606 = vmatpush.bf16.msra.mxu0 %v8104
    %8607 = vmatpush.bf16.msra.mxu0 %v8103
    %8608 = vmatpush.bf16.msra.mxu0 %v8102
    %8609 = vmatpush.bf16.msra.mxu0 %v8101
    %8610 = vmatpush.bf16.msra.mxu0 %v8100
    %8611 = vmatpush.bf16.msra.mxu0 %v8099
    %8612 = vmatpush.bf16.msra.mxu0 %v8098
    %8613 = vmatmul.bf16.gmra.mxu0 %v8603
    %v8614 = vpop.f32.mrf.mxu0
    %v8615 = vadd.f32 0.0, %v8614
    %v8616 = vpop.f32.mrf.mxu0
    %8617 = vdwg.mxu0
    %v8618 = vadd.f32 %v8604, %v8615
    %v8619 = vxor.u32 %v8618, 2147483648
    %v8620 = vmul.f32 %v8619, 1.442695
    %v8621 = vpow.pop %v8620
    %v8622 = vadd.f32 %v8621, 1.0
    %v8623 = vrcp.pop %v8622
    %v8624 = vmul.f32 %v8622, %v8623
    %v8625 = vsub.f32 1.0, %v8624
    %v8626 = vmul.f32 %v8623, %v8625
    %v8627 = vadd.f32 %v8623, %v8626
    %vm8628 = vweird.f32 %v8622
    %vm8629 = vweird.f32 %v8623
    %vm8630 = vmor %vm8628, %vm8629
    %v8631 = vsel %vm8630, %v8623, %v8627
    %v8632 = vand.u32 2147483647, %v8622
    %vm8633 = vcmp.eq.f32.partialorder %v8632, 8.507059e+37
    %v8634 = vand.u32 %v8622, 2147483648
    %v8635 = vor.u32 1.1754944e-38, %v8634
    %v8636 = vsel %vm8633, %v8635, %v8631
    %v8637 = vmul.f32 1.0, %v8636
    %v8638 = vld [vmem:[%s6565 + $0x8] sm:$0xff]
    %8639 = vmatpush.bf16.msra.mxu0 %v8203
    %8640 = vmatpush.bf16.msra.mxu0 %v8202
    %8641 = vmatpush.bf16.msra.mxu0 %v8201
    %8642 = vmatpush.bf16.msra.mxu0 %v8200
    %8643 = vmatpush.bf16.msra.mxu0 %v8199
    %8644 = vmatpush.bf16.msra.mxu0 %v8198
    %8645 = vmatpush.bf16.msra.mxu0 %v8197
    %8646 = vmatpush.bf16.msra.mxu0 %v8196
    %8647 = vmatmul.bf16.gmra.mxu0 %v8603
    %v8648 = vpop.f32.mrf.mxu0
    %v8649 = vadd.f32 0.0, %v8648
    %v8650 = vpop.f32.mrf.mxu0
    %8651 = vdwg.mxu0
    %v8652 = vadd.f32 %v8638, %v8649
    %v8653 = vxor.u32 %v8652, 2147483648
    %v8654 = vmul.f32 %v8653, 1.442695
    %v8655 = vpow.pop %v8654
    %v8656 = vadd.f32 %v8655, 1.0
    %v8657 = vrcp.pop %v8656
    %v8658 = vmul.f32 %v8656, %v8657
    %v8659 = vsub.f32 1.0, %v8658
    %v8660 = vmul.f32 %v8657, %v8659
    %v8661 = vadd.f32 %v8657, %v8660
    %vm8662 = vweird.f32 %v8656
    %vm8663 = vweird.f32 %v8657
    %vm8664 = vmor %vm8662, %vm8663
    %v8665 = vsel %vm8664, %v8657, %v8661
    %v8666 = vand.u32 2147483647, %v8656
    %vm8667 = vcmp.eq.f32.partialorder %v8666, 8.507059e+37
    %v8668 = vand.u32 %v8656, 2147483648
    %v8669 = vor.u32 1.1754944e-38, %v8668
    %v8670 = vsel %vm8667, %v8669, %v8665
    %v8671 = vmul.f32 1.0, %v8670
    %v8672 = vld [vmem:[%s6565 + $0x10] sm:$0xff]
    %8673 = vmatpush.bf16.msra.mxu0 %v8304
    %8674 = vmatpush.bf16.msra.mxu0 %v8303
    %8675 = vmatpush.bf16.msra.mxu0 %v8302
    %8676 = vmatpush.bf16.msra.mxu0 %v8301
    %8677 = vmatpush.bf16.msra.mxu0 %v8300
    %8678 = vmatpush.bf16.msra.mxu0 %v8299
    %8679 = vmatpush.bf16.msra.mxu0 %v8298
    %8680 = vmatpush.bf16.msra.mxu0 %v8297
    %8681 = vmatmul.bf16.gmra.mxu0 %v8603
    %v8682 = vpop.f32.mrf.mxu0
    %v8683 = vadd.f32 %v8263, %v8682
    %v8684 = vpop.f32.mrf.mxu0
    %8685 = vdwg.mxu0
    %v8686 = vmul.f32 %v8637, %v8683
    %v8687 = vadd.f32 %v8672, %v8686
    %v8688 = vtanh.pop %v8687
    %v8689 = vsub.f32 1.0, %v8671
    %v8690 = vmul.f32 %v8689, %v8688
    %v8691 = vmul.f32 %v8671, %v8602
    %v8692 = vadd.f32 %v8690, %v8691
    %v8693 = vpack.c.bf16 %v8692, %v8692
    %v8694 = vld [vmem:[%s7058] sm:$0xff]
    %8695 = vmatpush.bf16.msra.mxu0 %v8105
    %8696 = vmatpush.bf16.msra.mxu0 %v8104
    %8697 = vmatpush.bf16.msra.mxu0 %v8103
    %8698 = vmatpush.bf16.msra.mxu0 %v8102
    %8699 = vmatpush.bf16.msra.mxu0 %v8101
    %8700 = vmatpush.bf16.msra.mxu0 %v8100
    %8701 = vmatpush.bf16.msra.mxu0 %v8099
    %8702 = vmatpush.bf16.msra.mxu0 %v8098
    %8703 = vmatmul.bf16.gmra.mxu0 %v8693
    %v8704 = vpop.f32.mrf.mxu0
    %v8705 = vadd.f32 0.0, %v8704
    %v8706 = vpop.f32.mrf.mxu0
    %8707 = vdwg.mxu0
    %v8708 = vadd.f32 %v8694, %v8705
    %v8709 = vxor.u32 %v8708, 2147483648
    %v8710 = vmul.f32 %v8709, 1.442695
    %v8711 = vpow.pop %v8710
    %v8712 = vadd.f32 %v8711, 1.0
    %v8713 = vrcp.pop %v8712
    %v8714 = vmul.f32 %v8712, %v8713
    %v8715 = vsub.f32 1.0, %v8714
    %v8716 = vmul.f32 %v8713, %v8715
    %v8717 = vadd.f32 %v8713, %v8716
    %vm8718 = vweird.f32 %v8712
    %vm8719 = vweird.f32 %v8713
    %vm8720 = vmor %vm8718, %vm8719
    %v8721 = vsel %vm8720, %v8713, %v8717
    %v8722 = vand.u32 2147483647, %v8712
    %vm8723 = vcmp.eq.f32.partialorder %v8722, 8.507059e+37
    %v8724 = vand.u32 %v8712, 2147483648
    %v8725 = vor.u32 1.1754944e-38, %v8724
    %v8726 = vsel %vm8723, %v8725, %v8721
    %v8727 = vmul.f32 1.0, %v8726
    %v8728 = vld [vmem:[%s7058 + $0x8] sm:$0xff]
    %8729 = vmatpush.bf16.msra.mxu0 %v8203
    %8730 = vmatpush.bf16.msra.mxu0 %v8202
    %8731 = vmatpush.bf16.msra.mxu0 %v8201
    %8732 = vmatpush.bf16.msra.mxu0 %v8200
    %8733 = vmatpush.bf16.msra.mxu0 %v8199
    %8734 = vmatpush.bf16.msra.mxu0 %v8198
    %8735 = vmatpush.bf16.msra.mxu0 %v8197
    %8736 = vmatpush.bf16.msra.mxu0 %v8196
    %8737 = vmatmul.bf16.gmra.mxu0 %v8693
    %v8738 = vpop.f32.mrf.mxu0
    %v8739 = vadd.f32 0.0, %v8738
    %v8740 = vpop.f32.mrf.mxu0
    %8741 = vdwg.mxu0
    %v8742 = vadd.f32 %v8728, %v8739
    %v8743 = vxor.u32 %v8742, 2147483648
    %v8744 = vmul.f32 %v8743, 1.442695
    %v8745 = vpow.pop %v8744
    %v8746 = vadd.f32 %v8745, 1.0
    %v8747 = vrcp.pop %v8746
    %v8748 = vmul.f32 %v8746, %v8747
    %v8749 = vsub.f32 1.0, %v8748
    %v8750 = vmul.f32 %v8747, %v8749
    %v8751 = vadd.f32 %v8747, %v8750
    %vm8752 = vweird.f32 %v8746
    %vm8753 = vweird.f32 %v8747
    %vm8754 = vmor %vm8752, %vm8753
    %v8755 = vsel %vm8754, %v8747, %v8751
    %v8756 = vand.u32 2147483647, %v8746
    %vm8757 = vcmp.eq.f32.partialorder %v8756, 8.507059e+37
    %v8758 = vand.u32 %v8746, 2147483648
    %v8759 = vor.u32 1.1754944e-38, %v8758
    %v8760 = vsel %vm8757, %v8759, %v8755
    %v8761 = vmul.f32 1.0, %v8760
    %v8762 = vld [vmem:[%s7058 + $0x10] sm:$0xff]
    %8763 = vmatpush.bf16.msra.mxu0 %v8304
    %8764 = vmatpush.bf16.msra.mxu0 %v8303
    %8765 = vmatpush.bf16.msra.mxu0 %v8302
    %8766 = vmatpush.bf16.msra.mxu0 %v8301
    %8767 = vmatpush.bf16.msra.mxu0 %v8300
    %8768 = vmatpush.bf16.msra.mxu0 %v8299
    %8769 = vmatpush.bf16.msra.mxu0 %v8298
    %8770 = vmatpush.bf16.msra.mxu0 %v8297
    %8771 = vmatmul.bf16.gmra.mxu0 %v8693
    %v8772 = vpop.f32.mrf.mxu0
    %v8773 = vadd.f32 %v8263, %v8772
    %v8774 = vpop.f32.mrf.mxu0
    %8775 = vdwg.mxu0
    %v8776 = vmul.f32 %v8727, %v8773
    %v8777 = vadd.f32 %v8762, %v8776
    %v8778 = vtanh.pop %v8777
    %v8779 = vsub.f32 1.0, %v8761
    %v8780 = vmul.f32 %v8779, %v8778
    %v8781 = vmul.f32 %v8761, %v8692
    %v8782 = vadd.f32 %v8780, %v8781
    %v8783 = vpack.c.bf16 %v8782, %v8782
    %v8784 = vld [vmem:[%s7551] sm:$0xff]
    %8785 = vmatpush.bf16.msra.mxu0 %v8105
    %8786 = vmatpush.bf16.msra.mxu0 %v8104
    %8787 = vmatpush.bf16.msra.mxu0 %v8103
    %8788 = vmatpush.bf16.msra.mxu0 %v8102
    %8789 = vmatpush.bf16.msra.mxu0 %v8101
    %8790 = vmatpush.bf16.msra.mxu0 %v8100
    %8791 = vmatpush.bf16.msra.mxu0 %v8099
    %8792 = vmatpush.bf16.msra.mxu0 %v8098
    %8793 = vmatmul.bf16.gmra.mxu0 %v8783
    %v8794 = vpop.f32.mrf.mxu0
    %v8795 = vadd.f32 0.0, %v8794
    %v8796 = vpop.f32.mrf.mxu0
    %8797 = vdwg.mxu0
    %v8798 = vadd.f32 %v8784, %v8795
    %v8799 = vxor.u32 %v8798, 2147483648
    %v8800 = vmul.f32 %v8799, 1.442695
    %v8801 = vpow.pop %v8800
    %v8802 = vadd.f32 %v8801, 1.0
    %v8803 = vrcp.pop %v8802
    %v8804 = vmul.f32 %v8802, %v8803
    %v8805 = vsub.f32 1.0, %v8804
    %v8806 = vmul.f32 %v8803, %v8805
    %v8807 = vadd.f32 %v8803, %v8806
    %vm8808 = vweird.f32 %v8802
    %vm8809 = vweird.f32 %v8803
    %vm8810 = vmor %vm8808, %vm8809
    %v8811 = vsel %vm8810, %v8803, %v8807
    %v8812 = vand.u32 2147483647, %v8802
    %vm8813 = vcmp.eq.f32.partialorder %v8812, 8.507059e+37
    %v8814 = vand.u32 %v8802, 2147483648
    %v8815 = vor.u32 1.1754944e-38, %v8814
    %v8816 = vsel %vm8813, %v8815, %v8811
    %v8817 = vmul.f32 1.0, %v8816
    %v8818 = vld [vmem:[%s7551 + $0x8] sm:$0xff]
    %8819 = vmatpush.bf16.msra.mxu0 %v8203
    %8820 = vmatpush.bf16.msra.mxu0 %v8202
    %8821 = vmatpush.bf16.msra.mxu0 %v8201
    %8822 = vmatpush.bf16.msra.mxu0 %v8200
    %8823 = vmatpush.bf16.msra.mxu0 %v8199
    %8824 = vmatpush.bf16.msra.mxu0 %v8198
    %8825 = vmatpush.bf16.msra.mxu0 %v8197
    %8826 = vmatpush.bf16.msra.mxu0 %v8196
    %8827 = vmatmul.bf16.gmra.mxu0 %v8783
    %v8828 = vpop.f32.mrf.mxu0
    %v8829 = vadd.f32 0.0, %v8828
    %v8830 = vpop.f32.mrf.mxu0
    %8831 = vdwg.mxu0
    %v8832 = vadd.f32 %v8818, %v8829
    %v8833 = vxor.u32 %v8832, 2147483648
    %v8834 = vmul.f32 %v8833, 1.442695
    %v8835 = vpow.pop %v8834
    %v8836 = vadd.f32 %v8835, 1.0
    %v8837 = vrcp.pop %v8836
    %v8838 = vmul.f32 %v8836, %v8837
    %v8839 = vsub.f32 1.0, %v8838
    %v8840 = vmul.f32 %v8837, %v8839
    %v8841 = vadd.f32 %v8837, %v8840
    %vm8842 = vweird.f32 %v8836
    %vm8843 = vweird.f32 %v8837
    %vm8844 = vmor %vm8842, %vm8843
    %v8845 = vsel %vm8844, %v8837, %v8841
    %v8846 = vand.u32 2147483647, %v8836
    %vm8847 = vcmp.eq.f32.partialorder %v8846, 8.507059e+37
    %v8848 = vand.u32 %v8836, 2147483648
    %v8849 = vor.u32 1.1754944e-38, %v8848
    %v8850 = vsel %vm8847, %v8849, %v8845
    %v8851 = vmul.f32 1.0, %v8850
    %v8852 = vld [vmem:[%s7551 + $0x10] sm:$0xff]
    %8853 = vmatpush.bf16.msra.mxu0 %v8304
    %8854 = vmatpush.bf16.msra.mxu0 %v8303
    %8855 = vmatpush.bf16.msra.mxu0 %v8302
    %8856 = vmatpush.bf16.msra.mxu0 %v8301
    %8857 = vmatpush.bf16.msra.mxu0 %v8300
    %8858 = vmatpush.bf16.msra.mxu0 %v8299
    %8859 = vmatpush.bf16.msra.mxu0 %v8298
    %8860 = vmatpush.bf16.msra.mxu0 %v8297
    %8861 = vmatmul.bf16.gmra.mxu0 %v8783
    %v8862 = vpop.f32.mrf.mxu0
    %v8863 = vadd.f32 %v8263, %v8862
    %v8864 = vpop.f32.mrf.mxu0
    %8865 = vdwg.mxu0
    %v8866 = vmul.f32 %v8817, %v8863
    %v8867 = vadd.f32 %v8852, %v8866
    %v8868 = vtanh.pop %v8867
    %v8869 = vsub.f32 1.0, %v8851
    %v8870 = vmul.f32 %v8869, %v8868
    %v8871 = vmul.f32 %v8851, %v8782
    %v8872 = vadd.f32 %v8870, %v8871
    %v8873 = vpack.c.bf16 %v8872, %v8872
    %v8874 = vld [vmem:[%s8044] sm:$0xff]
    %8875 = vmatpush.bf16.msra.mxu0 %v8105
    %8876 = vmatpush.bf16.msra.mxu0 %v8104
    %8877 = vmatpush.bf16.msra.mxu0 %v8103
    %8878 = vmatpush.bf16.msra.mxu0 %v8102
    %8879 = vmatpush.bf16.msra.mxu0 %v8101
    %8880 = vmatpush.bf16.msra.mxu0 %v8100
    %8881 = vmatpush.bf16.msra.mxu0 %v8099
    %8882 = vmatpush.bf16.msra.mxu0 %v8098
    %8883 = vmatmul.bf16.gmra.mxu0 %v8873
    %v8884 = vpop.f32.mrf.mxu0
    %v8885 = vadd.f32 0.0, %v8884
    %v8886 = vpop.f32.mrf.mxu0
    %8887 = vdwg.mxu0
    %v8888 = vadd.f32 %v8874, %v8885
    %v8889 = vxor.u32 %v8888, 2147483648
    %v8890 = vmul.f32 %v8889, 1.442695
    %v8891 = vpow.pop %v8890
    %v8892 = vadd.f32 %v8891, 1.0
    %v8893 = vrcp.pop %v8892
    %v8894 = vmul.f32 %v8892, %v8893
    %v8895 = vsub.f32 1.0, %v8894
    %v8896 = vmul.f32 %v8893, %v8895
    %v8897 = vadd.f32 %v8893, %v8896
    %vm8898 = vweird.f32 %v8892
    %vm8899 = vweird.f32 %v8893
    %vm8900 = vmor %vm8898, %vm8899
    %v8901 = vsel %vm8900, %v8893, %v8897
    %v8902 = vand.u32 2147483647, %v8892
    %vm8903 = vcmp.eq.f32.partialorder %v8902, 8.507059e+37
    %v8904 = vand.u32 %v8892, 2147483648
    %v8905 = vor.u32 1.1754944e-38, %v8904
    %v8906 = vsel %vm8903, %v8905, %v8901
    %v8907 = vmul.f32 1.0, %v8906
    %v8908 = vld [vmem:[%s8044 + $0x8] sm:$0xff]
    %8909 = vmatpush.bf16.msra.mxu0 %v8203
    %8910 = vmatpush.bf16.msra.mxu0 %v8202
    %8911 = vmatpush.bf16.msra.mxu0 %v8201
    %8912 = vmatpush.bf16.msra.mxu0 %v8200
    %8913 = vmatpush.bf16.msra.mxu0 %v8199
    %8914 = vmatpush.bf16.msra.mxu0 %v8198
    %8915 = vmatpush.bf16.msra.mxu0 %v8197
    %8916 = vmatpush.bf16.msra.mxu0 %v8196
    %8917 = vmatmul.bf16.gmra.mxu0 %v8873
    %v8918 = vpop.f32.mrf.mxu0
    %v8919 = vadd.f32 0.0, %v8918
    %v8920 = vpop.f32.mrf.mxu0
    %8921 = vdwg.mxu0
    %v8922 = vadd.f32 %v8908, %v8919
    %v8923 = vxor.u32 %v8922, 2147483648
    %v8924 = vmul.f32 %v8923, 1.442695
    %v8925 = vpow.pop %v8924
    %v8926 = vadd.f32 %v8925, 1.0
    %v8927 = vrcp.pop %v8926
    %v8928 = vmul.f32 %v8926, %v8927
    %v8929 = vsub.f32 1.0, %v8928
    %v8930 = vmul.f32 %v8927, %v8929
    %v8931 = vadd.f32 %v8927, %v8930
    %vm8932 = vweird.f32 %v8926
    %vm8933 = vweird.f32 %v8927
    %vm8934 = vmor %vm8932, %vm8933
    %v8935 = vsel %vm8934, %v8927, %v8931
    %v8936 = vand.u32 2147483647, %v8926
    %vm8937 = vcmp.eq.f32.partialorder %v8936, 8.507059e+37
    %v8938 = vand.u32 %v8926, 2147483648
    %v8939 = vor.u32 1.1754944e-38, %v8938
    %v8940 = vsel %vm8937, %v8939, %v8935
    %v8941 = vmul.f32 1.0, %v8940
    %v8942 = vld [vmem:[%s8044 + $0x10] sm:$0xff]
    %8943 = vmatpush.bf16.msra.mxu0 %v8304
    %8944 = vmatpush.bf16.msra.mxu0 %v8303
    %8945 = vmatpush.bf16.msra.mxu0 %v8302
    %8946 = vmatpush.bf16.msra.mxu0 %v8301
    %8947 = vmatpush.bf16.msra.mxu0 %v8300
    %8948 = vmatpush.bf16.msra.mxu0 %v8299
    %8949 = vmatpush.bf16.msra.mxu0 %v8298
    %8950 = vmatpush.bf16.msra.mxu0 %v8297
    %8951 = vmatmul.bf16.gmra.mxu0 %v8873
    %v8952 = vpop.f32.mrf.mxu0
    %v8953 = vadd.f32 %v8263, %v8952
    %v8954 = vpop.f32.mrf.mxu0
    %8955 = vdwg.mxu0
    %v8956 = vmul.f32 %v8907, %v8953
    %v8957 = vadd.f32 %v8942, %v8956
    %v8958 = vtanh.pop %v8957
    %v8959 = vsub.f32 1.0, %v8941
    %v8960 = vmul.f32 %v8959, %v8958
    %v8961 = vmul.f32 %v8941, %v8872
    %v8962 = vadd.f32 %v8960, %v8961
    %v8963 = vpack.c.bf16 %v8962, %v8962
    %v8964 = vld [vmem:[%s11] sm:$0xf]
    %v8965 = vld [vmem:[%s11 + $0x4] sm:$0xf]
    %v8966 = vld [vmem:[%s11 + $0x8] sm:$0xf]
    %v8967 = vld [vmem:[%s11 + $0xc] sm:$0xf]
    %v8968 = vld [vmem:[%s11 + $0x10] sm:$0xf]
    %v8969 = vld [vmem:[%s11 + $0x14] sm:$0xf]
    %v8970 = vld [vmem:[%s11 + $0x18] sm:$0xf]
    %v8971 = vld [vmem:[%s11 + $0x1c] sm:$0xf]
    %v8972 = vld [vmem:[%s11 + $0x20] sm:$0xf]
    %v8973 = vld [vmem:[%s11 + $0x24] sm:$0xf]
    %v8974 = vld [vmem:[%s11 + $0x28] sm:$0xf]
    %v8975 = vld [vmem:[%s11 + $0x2c] sm:$0xf]
    %v8976 = vld [vmem:[%s11 + $0x30] sm:$0xf]
    %v8977 = vld [vmem:[%s11 + $0x34] sm:$0xf]
    %v8978 = vld [vmem:[%s11 + $0x38] sm:$0xf]
    %v8979 = vld [vmem:[%s11 + $0x3c] sm:$0xf]
    %v8980 = vld [vmem:[%s12] sm:$0xff]
    %v8997 = vunpack.c.l.b16 %v8964
    %v8998 = vunpack.c.l.b16 %v8965
    %v8999 = vunpack.c.l.b16 %v8966
    %v9000 = vunpack.c.l.b16 %v8967
    %v9001 = vunpack.c.l.b16 %v8968
    %v9002 = vunpack.c.l.b16 %v8969
    %v9003 = vunpack.c.l.b16 %v8970
    %v9004 = vunpack.c.l.b16 %v8971
    %v9005 = vunpack.c.l.b16 %v8972
    %v9006 = vunpack.c.l.b16 %v8973
    %v9007 = vunpack.c.l.b16 %v8974
    %v9008 = vunpack.c.l.b16 %v8975
    %v9009 = vunpack.c.l.b16 %v8976
    %v9010 = vunpack.c.l.b16 %v8977
    %v9011 = vunpack.c.l.b16 %v8978
    %v9012 = vunpack.c.l.b16 %v8979
    %v9013 = vpack.c.b16 %v8998, %v8997
    %v9014 = vpack.c.b16 %v9000, %v8999
    %v9015 = vpack.c.b16 %v9002, %v9001
    %v9016 = vpack.c.b16 %v9004, %v9003
    %v9017 = vpack.c.b16 %v9006, %v9005
    %v9018 = vpack.c.b16 %v9008, %v9007
    %v9019 = vpack.c.b16 %v9010, %v9009
    %v9020 = vpack.c.b16 %v9012, %v9011
    %9029 = vmatpush.bf16.msra.mxu0 %v9020
    %9030 = vmatpush.bf16.msra.mxu0 %v9019
    %9031 = vmatpush.bf16.msra.mxu0 %v9018
    %9032 = vmatpush.bf16.msra.mxu0 %v9017
    %9033 = vmatpush.bf16.msra.mxu0 %v9016
    %9034 = vmatpush.bf16.msra.mxu0 %v9015
    %9035 = vmatpush.bf16.msra.mxu0 %v9014
    %9036 = vmatpush.bf16.msra.mxu0 %v9013
    %9037 = vmatmul.bf16.gmra.mxu0 %v8963
    %v9038 = vpop.f32.mrf.mxu0
    %v9039 = vadd.f32 %v8980, %v9038
    %v9040 = vpop.f32.mrf.mxu0
    %9041 = vdwg.mxu0
    %v9042 = vmax.f32 %v9039, 0.0
    %v9043 = vpack.c.bf16 %v9042, %v9042
    %v9044 = vld [vmem:[%s13] sm:$0xf]
    %v9045 = vld [vmem:[%s13 + $0x4] sm:$0xf]
    %v9046 = vld [vmem:[%s13 + $0x8] sm:$0xf]
    %v9047 = vld [vmem:[%s13 + $0xc] sm:$0xf]
    %v9048 = vld [vmem:[%s13 + $0x10] sm:$0xf]
    %v9049 = vld [vmem:[%s13 + $0x14] sm:$0xf]
    %v9050 = vld [vmem:[%s13 + $0x18] sm:$0xf]
    %v9051 = vld [vmem:[%s13 + $0x1c] sm:$0xf]
    %v9052 = vld [vmem:[#allocation4] sm:$0x1]
    %v9054 = vperm.slane %v9052, 0
    %v9064 = vunpack.c.l.b16 %v9044
    %v9065 = vunpack.c.l.b16 %v9045
    %v9066 = vunpack.c.l.b16 %v9046
    %v9067 = vunpack.c.l.b16 %v9047
    %v9068 = vunpack.c.l.b16 %v9048
    %v9069 = vunpack.c.l.b16 %v9049
    %v9070 = vunpack.c.l.b16 %v9050
    %v9071 = vunpack.c.l.b16 %v9051
    %v9072 = vpack.c.b16 %v9065, %v9064
    %v9073 = vpack.c.b16 %v9067, %v9066
    %v9074 = vpack.c.b16 %v9069, %v9068
    %v9075 = vpack.c.b16 %v9071, %v9070
    %vm9080 = vcmask 523264
    %v9082 = vsel %vm9080, %v9043, 0
    %9084 = vmatpush.bf16.msra.mxu0 0
    %9085 = vmatpush.bf16.msra.mxu0 0
    %9086 = vmatpush.bf16.msra.mxu0 0
    %9087 = vmatpush.bf16.msra.mxu0 0
    %9088 = vmatpush.bf16.msra.mxu0 %v9075
    %9089 = vmatpush.bf16.msra.mxu0 %v9074
    %9090 = vmatpush.bf16.msra.mxu0 %v9073
    %9091 = vmatpush.bf16.msra.mxu0 %v9072
    %9092 = vmatmul.bf16.gmra.mxu0 %v9082
    %v9093 = vpop.f32.mrf.mxu0
    %v9094 = vadd.f32 %v9054, %v9093
    %v9095 = vpop.f32.mrf.mxu0
    %9096 = vdwg.mxu0
    %vm9097 = vcmask 7168
    %9098 = vst.msk [vmem:[%s15] sm:$0xff] %vm9097, %v9094
    // Predicated region
    $region86: #{tpu_custom_call.1} parent=1 // pred_check
      _
    $region87: #{tpu_custom_call.1} parent=1 // pred_check_branch
      %9100 = sbr.rel (0) target = $region89
    $region88: #{tpu_custom_call.1} parent=1 // pred_region
      _
    $region89: #{tpu_custom_call.1} parent=1 // pred_fallthru
      _
    // Predicated region
    $region90: #{tpu_custom_call.1} parent=1 // pred_check
      _
    $region91: #{tpu_custom_call.1} parent=1 // pred_check_branch
      %9102 = sbr.rel (0) target = $region93
    $region92: #{tpu_custom_call.1} parent=1 // pred_region
      _
    $region93: #{tpu_custom_call.1} parent=1 // pred_fallthru
      _
    %9103 = vsyncpa [#allocation6], 1
    %9104 = vsyncpa [#allocation8], 1
    %9105 = vsyncpa [#allocation11], 1
    %9106 = vsyncpa [#allocation14], 1

</llo_original>
